<compile_context>
chip_gen: v7x
topology: tpu7x:2x2x1
jax: 0.10.0
libtpu: 0.0.40
codegen_flags: <defaults>
</compile_context>

<pallas_src>
import numpy as np
from functools import partial

import jax
import jax.numpy as jnp
from jax.experimental import pallas as pl
from jax.experimental.pallas import tpu as pltpu

N_FFT = 2048                  # hard-coded in the PyTorch module's mel_args
N_FREQS = N_FFT // 2          # Nyquist bin dropped (its mel filterbank row is 0)
LOG10_E_INV = float(1.0 / np.log(10.0))   # log10(1+x) == log1p(x) * (1/ln 10)


# ---------------------------------------------------------------------------
# Deterministic "parameter" construction (mel filterbank + windowed DFT basis)
# mirroring torchaudio defaults: hann window (periodic), center=True,
# pad_mode='reflect', power=1.0, normalized=True, mel_scale='htk', norm=None.
# ---------------------------------------------------------------------------
def _hz_to_mel(f):
    return 2595.0 * np.log10(1.0 + f / 700.0)


def _mel_to_hz(m):
    return 700.0 * (10.0 ** (m / 2595.0) - 1.0)


def melscale_fbanks(n_freqs, f_min, f_max, n_mels, sample_rate):
    # torchaudio.functional.melscale_fbanks(mel_scale="htk", norm=None)
    all_freqs = np.linspace(0.0, sample_rate // 2, n_freqs)
    m_pts = np.linspace(_hz_to_mel(f_min), _hz_to_mel(f_max), n_mels + 2)
    f_pts = _mel_to_hz(m_pts)
    f_diff = f_pts[1:] - f_pts[:-1]
    slopes = f_pts[None, :] - all_freqs[:, None]          # (n_freqs, n_mels+2)
    down = -slopes[:, :-2] / f_diff[:-1]
    up = slopes[:, 2:] / f_diff[1:]
    fb = np.maximum(0.0, np.minimum(down, up))
    return fb.astype(np.float32)                           # (n_freqs, n_mels)


def _dft_basis(win_length):
    """Fused [cos | sin] windowed-DFT basis, shape (win_length, 2*N_FREQS).

    Only the win_length non-zero window taps are kept; the centered zero-pad of
    the window inside the n_fft frame is accounted for by the phase offset.
    The hann window and the 1/sqrt(sum(w^2)) 'normalized=True' factor are folded in.
    """
    n = np.arange(win_length)
    win = 0.5 - 0.5 * np.cos(2.0 * np.pi * n / win_length)   # hann, periodic
    norm = np.sqrt((win ** 2).sum())
    offset = (N_FFT - win_length) // 2
    t = offset + np.arange(win_length)
    k = np.arange(N_FREQS)                                   # Nyquist dropped
    ang = 2.0 * np.pi * np.outer(t, k) / N_FFT               # (win, N_FREQS)
    cos_m = win[:, None] * np.cos(ang) / norm
    sin_m = win[:, None] * -np.sin(ang) / norm
    return np.concatenate([cos_m, sin_m], axis=1).astype(np.float32)


# ---------------------------------------------------------------------------
# Pallas kernel: fused windowed DFT -> magnitude -> mel projection -> log10(1+x)
# ---------------------------------------------------------------------------
def _mel_kernel(frames_ref, basis_ref, fb_ref, out_ref):
    # One MXU pass produces [re | im]; split at lane offset 1024 (tile aligned).
    ri = jnp.dot(frames_ref[...], basis_ref[...],
                 preferred_element_type=jnp.float32)         # (TM, 2*N_FREQS) f32
    sq = ri * ri
    magsq = sq[:, :N_FREQS] + sq[:, N_FREQS:]                # re^2 + im^2, f32
    # bf16 sqrt: v6e/v7x EUP has a bf16 path (~2x f32) and the result feeds the
    # bf16 MXU operand anyway; still correct (just not faster) on v5e.
    mag = jnp.sqrt(magsq.astype(jnp.bfloat16))               # power = 1.0
    mel = jnp.dot(mag, fb_ref[...],
                  preferred_element_type=jnp.float32)        # (TM, n_mels_pad)
    # log10(1 + B*mel), B = 1.0; log1p is mathematically identical & better near 0.
    out_ref[...] = jnp.log1p(mel) * LOG10_E_INV


def _pick_tile_m(M):
    """M tile: multiple of 128, up to 512; keep the grid at >=2 steps when M
    allows so v7x's two TensorCores both get work on the 'parallel' axis."""
    return 128 * max(1, min(4, (M + 255) // 256))


def _frame(xp, n_frames, hop, win, offset):
    """Gather-free framing: win == 4*hop -> concat of 4 hop-aligned slices."""
    N = xp.shape[0]
    n_taps = win // hop
    if n_taps * hop == win:
        total = (n_frames + n_taps - 1) * hop
        y = xp[:, offset: offset + total]
        chunks = y.reshape(N, n_frames + n_taps - 1, hop)
        frames = jnp.concatenate(
            [chunks[:, j:j + n_frames, :] for j in range(n_taps)], axis=-1)
    else:
        # TODO(synk): gather fallback for win_length not divisible by 4.
        idx = (np.arange(n_frames)[:, None] * hop + offset
               + np.arange(win)[None, :])
        frames = xp[:, idx]
    return frames                                             # (N, n_frames, win)


def mel_spectrogram(x, sampling_rate, win_length, n_mels):
    """x: (..., T) float32 -> (..., n_mels, n_frames), matching torchaudio."""
    hop = win_length // 4
    lead = x.shape[:-1]
    T = x.shape[-1]
    N = int(np.prod(lead)) if lead else 1
    xf = x.reshape(N, T).astype(jnp.float32)

    # center=True, pad_mode='reflect'  (requires T > N_FFT // 2 = 1024)
    pad = N_FFT // 2
    xp = jnp.pad(xf, ((0, 0), (pad, pad)), mode="reflect")
    n_frames = 1 + T // hop

    # Frame only the win_length non-zero window taps of each n_fft frame
    # (the window's centered zero-pad is folded into the DFT phase offset).
    offset = (N_FFT - win_length) // 2
    frames = _frame(xp, n_frames, hop, win_length, offset)
    M = N * n_frames
    frames = frames.reshape(M, win_length)

    # Pad rows to a multiple of the M tile; extra rows are zeros -> log(1)=0,
    # sliced off below.
    tm = _pick_tile_m(M)
    M_pad = pl.cdiv(M, tm) * tm
    frames = jnp.pad(frames, ((0, M_pad - M), (0, 0))).astype(jnp.bfloat16)

    # Mel filterbank: drop the (all-zero) Nyquist row, pad columns to 128 lanes.
    n_mels_pad = ((n_mels + 127) // 128) * 128
    fb = melscale_fbanks(N_FFT // 2 + 1, 0.0, sampling_rate / 2.0,
                         n_mels, sampling_rate)[:N_FREQS]
    fb = np.pad(fb, ((0, 0), (0, n_mels_pad - n_mels)))

    basis = _dft_basis(win_length)                            # (win, 2*N_FREQS)

    out = pl.pallas_call(
        _mel_kernel,
        out_shape=jax.ShapeDtypeStruct((M_pad, n_mels_pad), jnp.float32),
        grid_spec=pltpu.PrefetchScalarGridSpec(
            num_scalar_prefetch=0,
            grid=(M_pad // tm,),
            in_specs=[
                pl.BlockSpec((tm, win_length), lambda m: (m, 0)),
                # grid-invariant operands: fetched once, single-buffered to
                # free VMEM for the larger M tile (v7x has only 64 MiB/TC).
                pl.BlockSpec((win_length, 2 * N_FREQS), lambda m: (0, 0),
                             pipeline_mode=pl.Buffered(buffer_count=1)),
                pl.BlockSpec((N_FREQS, n_mels_pad), lambda m: (0, 0),
                             pipeline_mode=pl.Buffered(buffer_count=1)),
            ],
            out_specs=pl.BlockSpec((tm, n_mels_pad), lambda m: (m, 0)),
        ),
        compiler_params=pltpu.CompilerParams(
            dimension_semantics=("parallel",),
            # honest limit: blocks + f32 intermediates stay < ~20 MiB even at
            # tm=512 / win=512; fits v5e/v6e/v7x scoped VMEM.
            vmem_limit_bytes=32 * 1024 * 1024,
        ),
    )(frames,
      jnp.asarray(basis, dtype=jnp.bfloat16),
      jnp.asarray(fb, dtype=jnp.bfloat16))

    out = out[:M, :n_mels].reshape(N, n_frames, n_mels)
    out = jnp.transpose(out, (0, 2, 1))                       # (N, n_mels, F)
    return out.reshape(lead + (n_mels, n_frames))


def make_multi_mel_forward(sampling_rate, win_lengths, mel_bins):
    """Equivalent of MultiMelSpectrogram.forward, compiled as ONE jit so all
    glue (pad, framing, both pallas_calls, slices, transposes) fuses."""
    win_lengths = tuple(int(w) for w in win_lengths)
    mel_bins = tuple(int(n) for n in mel_bins)

    @jax.jit
    def fwd(x):
        if x.shape[0] == 1:
            x = x[:, None, ...]                               # unsqueeze(1)
        return [mel_spectrogram(x, sampling_rate, w, n)
                for w, n in zip(win_lengths, mel_bins)]

    return fwd


def multi_mel_forward(x, sampling_rate, win_lengths, mel_bins):
    return make_multi_mel_forward(sampling_rate, win_lengths, mel_bins)(x)


if __name__ == "__main__":
    key = jax.random.PRNGKey(0)
    B, C, T = 2, 1, 4096
    x = jax.random.normal(key, (B, C, T), dtype=jnp.float32)

    sampling_rate = 16000
    win_lengths = [256, 512]
    mel_bins = [64, 80]

    fwd = make_multi_mel_forward(sampling_rate, win_lengths, mel_bins)
    specs = fwd(x)
    jax.block_until_ready(specs)

    # sanity on shapes: (B, C, n_mels, 1 + T // (win//4)) and finiteness
    assert specs[0].shape == (B, C, 64, 1 + T // (256 // 4))
    assert specs[1].shape == (B, C, 80, 1 + T // (512 // 4))
    assert all(bool(jnp.all(jnp.isfinite(s))) for s in specs)
    print("KERNEL_OK")
</pallas_src>

<mosaic_0001>
module attributes {stable_mosaic.version = 11 : i64} {
  func.func @_mel_kernel(%arg0: i32, %arg1: memref<128x512xbf16, #tpu.memory_space<vmem>>, %arg2: memref<512x2048xbf16, #tpu.memory_space<vmem>>, %arg3: memref<1024x128xbf16, #tpu.memory_space<vmem>>, %arg4: memref<128x128xf32, #tpu.memory_space<vmem>>) attributes {dimension_semantics = [#tpu.dimension_semantics<parallel>], iteration_bounds = array<i64: 1>, scalar_prefetch = 0 : i64, scratch_operands = 0 : i64, tpu.core_type = #tpu.core_type<tc>, window_params = [{transform_indices = @transform_0, window_bounds = array<i64: 128, 512>}, {pipeline_mode = #tpu.pipeline_mode<synchronous>, transform_indices = @transform_1, window_bounds = array<i64: 512, 2048>}, {pipeline_mode = #tpu.pipeline_mode<synchronous>, transform_indices = @transform_2, window_bounds = array<i64: 1024, 128>}, {transform_indices = @transform_3, window_bounds = array<i64: 128, 128>}]} {
    %c0 = arith.constant 0 : index
    %c0_0 = arith.constant 0 : index
    %0 = vector.load %arg1[%c0, %c0_0] : memref<128x512xbf16, #tpu.memory_space<vmem>>, vector<128x512xbf16>
    %c0_1 = arith.constant 0 : index
    %c0_2 = arith.constant 0 : index
    %1 = vector.load %arg2[%c0_1, %c0_2] : memref<512x2048xbf16, #tpu.memory_space<vmem>>, vector<512x2048xbf16>
    %cst = arith.constant dense<0.000000e+00> : vector<128x2048xf32>
    %2 = tpu.matmul %0, %1, %cst {dimension_numbers = #tpu.dot_dimension_numbers<[1], [0], [0], [1], [0, 0, 1, 1], [], []>} : vector<128x512xbf16>, vector<512x2048xbf16>, vector<128x2048xf32> -> vector<128x2048xf32>
    %3 = arith.mulf %2, %2 : vector<128x2048xf32>
    %4 = vector.extract_strided_slice %3 {offsets = [0, 0], sizes = [128, 1024], strides = [1, 1]} : vector<128x2048xf32> to vector<128x1024xf32>
    %5 = vector.extract_strided_slice %3 {offsets = [0, 1024], sizes = [128, 1024], strides = [1, 1]} : vector<128x2048xf32> to vector<128x1024xf32>
    %6 = arith.addf %4, %5 : vector<128x1024xf32>
    %7 = arith.truncf %6 : vector<128x1024xf32> to vector<128x1024xbf16>
    %8 = math.sqrt %7 : vector<128x1024xbf16>
    %c0_3 = arith.constant 0 : index
    %c0_4 = arith.constant 0 : index
    %9 = vector.load %arg3[%c0_3, %c0_4] : memref<1024x128xbf16, #tpu.memory_space<vmem>>, vector<1024x128xbf16>
    %cst_5 = arith.constant dense<0.000000e+00> : vector<128x128xf32>
    %10 = tpu.matmul %8, %9, %cst_5 {dimension_numbers = #tpu.dot_dimension_numbers<[1], [0], [0], [1], [0, 0, 1, 1], [], []>} : vector<128x1024xbf16>, vector<1024x128xbf16>, vector<128x128xf32> -> vector<128x128xf32>
    %11 = math.log1p %10 : vector<128x128xf32>
    %cst_6 = arith.constant 0.434294492 : f32
    %12 = vector.broadcast %cst_6 : f32 to vector<128x128xf32>
    %13 = arith.mulf %11, %12 : vector<128x128xf32>
    %c0_7 = arith.constant 0 : index
    %c0_8 = arith.constant 0 : index
    %14 = vector.load %arg4[%c0_7, %c0_8] : memref<128x128xf32, #tpu.memory_space<vmem>>, vector<128x128xf32>
    tpu.vector_store %arg4[%c0_7, %c0_8], %13 {strides = array<i32>} : memref<128x128xf32, #tpu.memory_space<vmem>>, vector<128x128xf32>,
    return
  }
  func.func @transform_0(%arg0: i32) -> (i32, i32) {
    %c0_i32 = arith.constant 0 : i32
    %c0_i32_0 = arith.constant 0 : i32
    return %arg0, %c0_i32 : i32, i32
  }
  func.func @transform_1(%arg0: i32) -> (i32, i32) {
    %c0_i32 = arith.constant 0 : i32
    %c0_i32_0 = arith.constant 0 : i32
    %c0_i32_1 = arith.constant 0 : i32
    return %c0_i32, %c0_i32_0 : i32, i32
  }
  func.func @transform_2(%arg0: i32) -> (i32, i32) {
    %c0_i32 = arith.constant 0 : i32
    %c0_i32_0 = arith.constant 0 : i32
    %c0_i32_1 = arith.constant 0 : i32
    return %c0_i32, %c0_i32_0 : i32, i32
  }
  func.func @transform_3(%arg0: i32) -> (i32, i32) {
    %c0_i32 = arith.constant 0 : i32
    %c0_i32_0 = arith.constant 0 : i32
    return %arg0, %c0_i32 : i32, i32
  }
}

module attributes {stable_mosaic.version = 11 : i64} {
  func.func @_mel_kernel(%arg0: i32, %arg1: memref<128x256xbf16, #tpu.memory_space<vmem>>, %arg2: memref<256x2048xbf16, #tpu.memory_space<vmem>>, %arg3: memref<1024x128xbf16, #tpu.memory_space<vmem>>, %arg4: memref<128x128xf32, #tpu.memory_space<vmem>>) attributes {dimension_semantics = [#tpu.dimension_semantics<parallel>], iteration_bounds = array<i64: 2>, scalar_prefetch = 0 : i64, scratch_operands = 0 : i64, tpu.core_type = #tpu.core_type<tc>, window_params = [{transform_indices = @transform_0, window_bounds = array<i64: 128, 256>}, {pipeline_mode = #tpu.pipeline_mode<synchronous>, transform_indices = @transform_1, window_bounds = array<i64: 256, 2048>}, {pipeline_mode = #tpu.pipeline_mode<synchronous>, transform_indices = @transform_2, window_bounds = array<i64: 1024, 128>}, {transform_indices = @transform_3, window_bounds = array<i64: 128, 128>}]} {
    %c0 = arith.constant 0 : index
    %c0_0 = arith.constant 0 : index
    %0 = vector.load %arg1[%c0, %c0_0] : memref<128x256xbf16, #tpu.memory_space<vmem>>, vector<128x256xbf16>
    %c0_1 = arith.constant 0 : index
    %c0_2 = arith.constant 0 : index
    %1 = vector.load %arg2[%c0_1, %c0_2] : memref<256x2048xbf16, #tpu.memory_space<vmem>>, vector<256x2048xbf16>
    %cst = arith.constant dense<0.000000e+00> : vector<128x2048xf32>
    %2 = tpu.matmul %0, %1, %cst {dimension_numbers = #tpu.dot_dimension_numbers<[1], [0], [0], [1], [0, 0, 1, 1], [], []>} : vector<128x256xbf16>, vector<256x2048xbf16>, vector<128x2048xf32> -> vector<128x2048xf32>
    %3 = arith.mulf %2, %2 : vector<128x2048xf32>
    %4 = vector.extract_strided_slice %3 {offsets = [0, 0], sizes = [128, 1024], strides = [1, 1]} : vector<128x2048xf32> to vector<128x1024xf32>
    %5 = vector.extract_strided_slice %3 {offsets = [0, 1024], sizes = [128, 1024], strides = [1, 1]} : vector<128x2048xf32> to vector<128x1024xf32>
    %6 = arith.addf %4, %5 : vector<128x1024xf32>
    %7 = arith.truncf %6 : vector<128x1024xf32> to vector<128x1024xbf16>
    %8 = math.sqrt %7 : vector<128x1024xbf16>
    %c0_3 = arith.constant 0 : index
    %c0_4 = arith.constant 0 : index
    %9 = vector.load %arg3[%c0_3, %c0_4] : memref<1024x128xbf16, #tpu.memory_space<vmem>>, vector<1024x128xbf16>
    %cst_5 = arith.constant dense<0.000000e+00> : vector<128x128xf32>
    %10 = tpu.matmul %8, %9, %cst_5 {dimension_numbers = #tpu.dot_dimension_numbers<[1], [0], [0], [1], [0, 0, 1, 1], [], []>} : vector<128x1024xbf16>, vector<1024x128xbf16>, vector<128x128xf32> -> vector<128x128xf32>
    %11 = math.log1p %10 : vector<128x128xf32>
    %cst_6 = arith.constant 0.434294492 : f32
    %12 = vector.broadcast %cst_6 : f32 to vector<128x128xf32>
    %13 = arith.mulf %11, %12 : vector<128x128xf32>
    %c0_7 = arith.constant 0 : index
    %c0_8 = arith.constant 0 : index
    %14 = vector.load %arg4[%c0_7, %c0_8] : memref<128x128xf32, #tpu.memory_space<vmem>>, vector<128x128xf32>
    tpu.vector_store %arg4[%c0_7, %c0_8], %13 {strides = array<i32>} : memref<128x128xf32, #tpu.memory_space<vmem>>, vector<128x128xf32>,
    return
  }
  func.func @transform_0(%arg0: i32) -> (i32, i32) {
    %c0_i32 = arith.constant 0 : i32
    %c0_i32_0 = arith.constant 0 : i32
    return %arg0, %c0_i32 : i32, i32
  }
  func.func @transform_1(%arg0: i32) -> (i32, i32) {
    %c0_i32 = arith.constant 0 : i32
    %c0_i32_0 = arith.constant 0 : i32
    %c0_i32_1 = arith.constant 0 : i32
    return %c0_i32, %c0_i32_0 : i32, i32
  }
  func.func @transform_2(%arg0: i32) -> (i32, i32) {
    %c0_i32 = arith.constant 0 : i32
    %c0_i32_0 = arith.constant 0 : i32
    %c0_i32_1 = arith.constant 0 : i32
    return %c0_i32, %c0_i32_0 : i32, i32
  }
  func.func @transform_3(%arg0: i32) -> (i32, i32) {
    %c0_i32 = arith.constant 0 : i32
    %c0_i32_0 = arith.constant 0 : i32
    return %arg0, %c0_i32 : i32, i32
  }
}

</mosaic_0001>

<llo_original>
// kernel: fwd.2
$region0: #{fwd.2}
  #allocation0 [shape = 'u32[]', space=smem, size = 0x4, offset = 0x4, fixed_abs, tag = 'smem constant byte address 0x4 - core index']
  #allocation1 [shape = 'u32[144,128]{1,0:T(1,128)}', space=vmem, size = 0x12000, scoped, tag = 'internal scratch']
  %s0 = inlined_call_operand.vmem [shape: bf16[256,256], index: 0, kind: input, shape index: {}]
  %s1 = inlined_call_operand.vmem [shape: bf16[256,2048], index: 1, kind: input, shape index: {}]
  %s2 = inlined_call_operand.vmem [shape: bf16[1024,128], index: 2, kind: input, shape index: {}]
  %s3 = inlined_call_operand.vmem [shape: f32[256,128], index: 3, kind: output, shape index: {}]
  %s4 = sld [smem:[#allocation0]]
  $region45: #{fwd.2} parent=0
    _
  %s6 = ssub.s32 1, %s4
  %s7 = scalar_select 0, %s6, %s4
  loop: start=0, step=1, limit=4
  $region2: #{fwd.2} parent=0 // loop_pre_header
    _
  $region3: #{fwd.2} parent=0 // loop_header
    %s9 = sphi 0, %s13
    %p10 = scmp.ge.s32.totalorder %s9, 4
    %s19 = sphi 0, %s21
    %s22 = sphi 0, %s19
    %s23 = sphi 0, %s22
    %s39 = sphi 0, %s23
    %s43 = sphi 0, %s43
    %s45 = sphi 0, %s43
    %s46 = sphi 0, %s45
    %s60 = sphi 0, %s46
    %s64 = sphi 0, %s64
    %s66 = sphi 0, %s64
    %s67 = sphi 0, %s66
    %s81 = sphi 0, %s67
    %s87 = sphi 0, %s89
    %s90 = sphi 0, %s87
    %s91 = sphi 0, %s90
    %s107 = sphi 0, %s91
  $region4: #{fwd.2} parent=0 // loop_header_branch
    %12 = sbr.rel (%p10) target = $region8
  $region5: #{fwd.2} parent=0 // loop_body
    %s14 = ssub.s32 %s9, 1
    %s15 = ssub.s32 %s9, 2
    %s16 = sadd.s32 %s9, 1
    %s17 = ssub.s32 %s9, %s16
    %p18 = scmp.eq.s32.totalorder %s17, 0
    %s20 = sadd.s32 %s19, 1
    %s21 = scalar_select %p18, %s19, %s20
    %p24 = pneg %p18
    %p25 = scmp.eq.s32.totalorder %s9, 1
    %p26 = por %p24, %p25
    %p27 = scmp.ne.s32.totalorder %s19, %s22
    %p28 = scmp.eq.s32.totalorder %s9, 0
    %p29 = por %p27, %p28
    %p30 = scmp.ne.s32.totalorder %s19, %s22
    %p31 = scmp.eq.s32.totalorder %s14, 1
    %p32 = por %p30, %p31
    %p33 = scmp.ne.s32.totalorder %s22, %s23
    %p34 = scmp.eq.s32.totalorder %s14, 0
    %p35 = por %p33, %p34
    %p36 = scmp.ne.s32.totalorder %s22, %s23
    %p37 = scmp.eq.s32.totalorder %s15, 1
    %p38 = por %p36, %p37
    %p40 = scmp.ne.s32.totalorder %s23, %s39
    %p41 = scmp.eq.s32.totalorder %s15, 0
    %p42 = por %p40, %p41
    %s44 = sadd.s32 %s43, 1
    %p47 = scmp.eq.s32.totalorder %s9, 1
    %p48 = scmp.ne.s32.totalorder %s43, %s45
    %p49 = scmp.eq.s32.totalorder %s9, 0
    %p50 = por %p48, %p49
    %p51 = scmp.ne.s32.totalorder %s43, %s45
    %p52 = scmp.eq.s32.totalorder %s14, 1
    %p53 = por %p51, %p52
    %p54 = scmp.ne.s32.totalorder %s45, %s46
    %p55 = scmp.eq.s32.totalorder %s14, 0
    %p56 = por %p54, %p55
    %p57 = scmp.ne.s32.totalorder %s45, %s46
    %p58 = scmp.eq.s32.totalorder %s15, 1
    %p59 = por %p57, %p58
    %p61 = scmp.ne.s32.totalorder %s46, %s60
    %p62 = scmp.eq.s32.totalorder %s15, 0
    %p63 = por %p61, %p62
    %s65 = sadd.s32 %s64, 1
    %p68 = scmp.eq.s32.totalorder %s9, 1
    %p69 = scmp.ne.s32.totalorder %s64, %s66
    %p70 = scmp.eq.s32.totalorder %s9, 0
    %p71 = por %p69, %p70
    %p72 = scmp.ne.s32.totalorder %s64, %s66
    %p73 = scmp.eq.s32.totalorder %s14, 1
    %p74 = por %p72, %p73
    %p75 = scmp.ne.s32.totalorder %s66, %s67
    %p76 = scmp.eq.s32.totalorder %s14, 0
    %p77 = por %p75, %p76
    %p78 = scmp.ne.s32.totalorder %s66, %s67
    %p79 = scmp.eq.s32.totalorder %s15, 1
    %p80 = por %p78, %p79
    %p82 = scmp.ne.s32.totalorder %s67, %s81
    %p83 = scmp.eq.s32.totalorder %s15, 0
    %p84 = por %p82, %p83
    %s85 = ssub.s32 %s9, %s16
    %p86 = scmp.eq.s32.totalorder %s85, 0
    %s88 = sadd.s32 %s87, 1
    %s89 = scalar_select %p86, %s87, %s88
    %p92 = pneg %p86
    %p93 = scmp.eq.s32.totalorder %s9, 1
    %p94 = por %p92, %p93
    %p95 = scmp.ne.s32.totalorder %s87, %s90
    %p96 = scmp.eq.s32.totalorder %s9, 0
    %p97 = por %p95, %p96
    %p98 = scmp.ne.s32.totalorder %s87, %s90
    %p99 = scmp.eq.s32.totalorder %s14, 1
    %p100 = por %p98, %p99
    %p101 = scmp.ne.s32.totalorder %s90, %s91
    %p102 = scmp.eq.s32.totalorder %s14, 0
    %p103 = por %p101, %p102
    %p104 = scmp.ne.s32.totalorder %s90, %s91
    %p105 = scmp.eq.s32.totalorder %s15, 1
    %p106 = por %p104, %p105
    %p108 = scmp.ne.s32.totalorder %s91, %s107
    %p109 = scmp.eq.s32.totalorder %s15, 0
    %p110 = por %p108, %p109
    %p111 = scmp.le.s32.totalorder 1, %s9
    %p112 = scmp.lt.s32.totalorder %s9, 3
    %p113 = pnand %p111, %p112
    %p114 = pneg %p113
    // Predicated region
    $region9: #{fwd.2} parent=5 // pred_check
      _
    $region10: #{fwd.2} parent=5 // pred_check_branch
      %116 = sbr.rel (%p113) target = $region12
    $region11: #{fwd.2} parent=5 // pred_region
      %s117 = ssub.s32 %s9, 1
      // Predicated region
      $region13: #{fwd.2} parent=11 // pred_check
        %p118 = pneg %p56
      $region14: #{fwd.2} parent=11 // pred_check_branch
        %120 = sbr.rel (%p118) target = $region16
      $region15: #{fwd.2} parent=11 // pred_region
        _
      $region16: #{fwd.2} parent=11 // pred_fallthru
        _
      // Predicated region
      $region17: #{fwd.2} parent=11 // pred_check
        %p121 = pneg %p77
      $region18: #{fwd.2} parent=11 // pred_check_branch
        %123 = sbr.rel (%p121) target = $region20
      $region19: #{fwd.2} parent=11 // pred_region
        _
      $region20: #{fwd.2} parent=11 // pred_fallthru
        _
    $region12: #{fwd.2} parent=5 // pred_fallthru
      _
    %p124 = scmp.lt.s32.totalorder %s9, 2
    // Predicated region
    $region21: #{fwd.2} parent=5 // pred_check
      %p125 = pneg %p124
    $region22: #{fwd.2} parent=5 // pred_check_branch
      %127 = sbr.rel (%p125) target = $region24
    $region23: #{fwd.2} parent=5 // pred_region
      // Predicated region
      $region25: #{fwd.2} parent=23 // pred_check
        %p128 = pneg %p29
      $region26: #{fwd.2} parent=23 // pred_check_branch
        %130 = sbr.rel (%p128) target = $region28
      $region27: #{fwd.2} parent=23 // pred_region
        %s131 = smul.u32 16, %s9
        %p132 = scmp.lt.s32.totalorder %s131, 31
        %s133 = scalar_select %p132, %s131, 31
        %s134 = smul.addr %s133, 2
        %s135 = smul.addr %s134, 4
        %s136 = scalar_lea.vmem %s0, %s135
        %s137 = smul.u32 16, %s9
      $region28: #{fwd.2} parent=23 // pred_fallthru
        _
    $region24: #{fwd.2} parent=5 // pred_fallthru
      _
    %p138 = scmp.le.s32.totalorder 1, %s9
    %p139 = scmp.lt.s32.totalorder %s9, 3
    %p140 = pnand %p138, %p139
    %p141 = pneg %p140
    // Predicated region
    $region29: #{fwd.2} parent=5 // pred_check
      _
    $region30: #{fwd.2} parent=5 // pred_check_branch
      %143 = sbr.rel (%p140) target = $region32
    $region31: #{fwd.2} parent=5 // pred_region
      %s144 = ssub.s32 %s9, 1
      %s145 = smul.u32 16, %s14
      %p146 = scmp.lt.s32.totalorder %s145, 31
      %s147 = scalar_select %p146, %s145, 31
      %s148 = smul.addr %s147, 2
      %s149 = smul.addr %s148, 4
      %s150 = scalar_lea.vmem %s0, %s149
      %p151 = pneg %p35
      %p152 = pneg %p32
      %p153 = pneg %p56
      %p154 = pneg %p53
      %p155 = pneg %p77
      %p156 = pneg %p74
      %p157 = pneg %p103
      %p158 = pneg %p100
      %s159 = smul.u32 16, %s14
      %p160 = scmp.lt.s32.totalorder %s159, 31
      %s161 = scalar_select %p160, %s159, 31
      %s162 = smul.addr %s161, 8
      %s163 = scalar_lea.vmem %s3, %s162
      %s164 = smul.u32 16, %s14
      %p165 = scmp.lt.s32.totalorder %s164, 31
      %s166 = scalar_select %p165, %s164, 31
      %s167 = smul.addr %s166, 2
      %s168 = smul.addr %s167, 4
      %s169 = scalar_lea.vmem %s0, %s168
      %s170 = smul.u32 16, %s14
      %s171 = smul.u32 16, %s14
      %p172 = scmp.lt.s32.totalorder %s171, 31
      %s173 = scalar_select %p172, %s171, 31
      %s174 = smul.addr %s173, 8
      %s175 = scalar_lea.vmem %s3, %s174
      %s176 = smul.u32 16, %s14
      %v178 = vld [vmem:[%s169] sm:$0xff]
      %v179 = vld [vmem:[%s169 + $0x8] sm:$0xff]
      %v180 = vld [vmem:[%s169 + $0x10] sm:$0xff]
      %v181 = vld [vmem:[%s169 + $0x18] sm:$0xff]
      %v182 = vld [vmem:[%s169 + $0x20] sm:$0xff]
      %v183 = vld [vmem:[%s169 + $0x28] sm:$0xff]
      %v184 = vld [vmem:[%s169 + $0x30] sm:$0xff]
      %v185 = vld [vmem:[%s169 + $0x38] sm:$0xff]
      %v186 = vld [vmem:[%s169 + $0x40] sm:$0xff]
      %v187 = vld [vmem:[%s169 + $0x48] sm:$0xff]
      %v188 = vld [vmem:[%s169 + $0x50] sm:$0xff]
      %v189 = vld [vmem:[%s169 + $0x58] sm:$0xff]
      %v190 = vld [vmem:[%s169 + $0x60] sm:$0xff]
      %v191 = vld [vmem:[%s169 + $0x68] sm:$0xff]
      %v192 = vld [vmem:[%s169 + $0x70] sm:$0xff]
      %v193 = vld [vmem:[%s169 + $0x78] sm:$0xff]
      %v194 = vld [vmem:[%s1] sm:$0xff]
      %v195 = vld [vmem:[%s1 + $0x8] sm:$0xff]
      %v196 = vld [vmem:[%s1 + $0x10] sm:$0xff]
      %v197 = vld [vmem:[%s1 + $0x18] sm:$0xff]
      %v198 = vld [vmem:[%s1 + $0x20] sm:$0xff]
      %v199 = vld [vmem:[%s1 + $0x28] sm:$0xff]
      %v200 = vld [vmem:[%s1 + $0x30] sm:$0xff]
      %v201 = vld [vmem:[%s1 + $0x38] sm:$0xff]
      %v202 = vld [vmem:[%s1 + $0x40] sm:$0xff]
      %v203 = vld [vmem:[%s1 + $0x48] sm:$0xff]
      %v204 = vld [vmem:[%s1 + $0x50] sm:$0xff]
      %v205 = vld [vmem:[%s1 + $0x58] sm:$0xff]
      %v206 = vld [vmem:[%s1 + $0x60] sm:$0xff]
      %v207 = vld [vmem:[%s1 + $0x68] sm:$0xff]
      %v208 = vld [vmem:[%s1 + $0x70] sm:$0xff]
      %v209 = vld [vmem:[%s1 + $0x78] sm:$0xff]
      %v210 = vld [vmem:[%s1 + $0x80] sm:$0xff]
      %v211 = vld [vmem:[%s1 + $0x88] sm:$0xff]
      %v212 = vld [vmem:[%s1 + $0x90] sm:$0xff]
      %v213 = vld [vmem:[%s1 + $0x98] sm:$0xff]
      %v214 = vld [vmem:[%s1 + $0xa0] sm:$0xff]
      %v215 = vld [vmem:[%s1 + $0xa8] sm:$0xff]
      %v216 = vld [vmem:[%s1 + $0xb0] sm:$0xff]
      %v217 = vld [vmem:[%s1 + $0xb8] sm:$0xff]
      %v218 = vld [vmem:[%s1 + $0xc0] sm:$0xff]
      %v219 = vld [vmem:[%s1 + $0xc8] sm:$0xff]
      %v220 = vld [vmem:[%s1 + $0xd0] sm:$0xff]
      %v221 = vld [vmem:[%s1 + $0xd8] sm:$0xff]
      %v222 = vld [vmem:[%s1 + $0xe0] sm:$0xff]
      %v223 = vld [vmem:[%s1 + $0xe8] sm:$0xff]
      %v224 = vld [vmem:[%s1 + $0xf0] sm:$0xff]
      %v225 = vld [vmem:[%s1 + $0xf8] sm:$0xff]
      %v226 = vld [vmem:[%s1 + $0x100] sm:$0xff]
      %v227 = vld [vmem:[%s1 + $0x108] sm:$0xff]
      %v228 = vld [vmem:[%s1 + $0x110] sm:$0xff]
      %v229 = vld [vmem:[%s1 + $0x118] sm:$0xff]
      %v230 = vld [vmem:[%s1 + $0x120] sm:$0xff]
      %v231 = vld [vmem:[%s1 + $0x128] sm:$0xff]
      %v232 = vld [vmem:[%s1 + $0x130] sm:$0xff]
      %v233 = vld [vmem:[%s1 + $0x138] sm:$0xff]
      %v234 = vld [vmem:[%s1 + $0x140] sm:$0xff]
      %v235 = vld [vmem:[%s1 + $0x148] sm:$0xff]
      %v236 = vld [vmem:[%s1 + $0x150] sm:$0xff]
      %v237 = vld [vmem:[%s1 + $0x158] sm:$0xff]
      %v238 = vld [vmem:[%s1 + $0x160] sm:$0xff]
      %v239 = vld [vmem:[%s1 + $0x168] sm:$0xff]
      %v240 = vld [vmem:[%s1 + $0x170] sm:$0xff]
      %v241 = vld [vmem:[%s1 + $0x178] sm:$0xff]
      %v242 = vld [vmem:[%s1 + $0x180] sm:$0xff]
      %v243 = vld [vmem:[%s1 + $0x188] sm:$0xff]
      %v244 = vld [vmem:[%s1 + $0x190] sm:$0xff]
      %v245 = vld [vmem:[%s1 + $0x198] sm:$0xff]
      %v246 = vld [vmem:[%s1 + $0x1a0] sm:$0xff]
      %v247 = vld [vmem:[%s1 + $0x1a8] sm:$0xff]
      %v248 = vld [vmem:[%s1 + $0x1b0] sm:$0xff]
      %v249 = vld [vmem:[%s1 + $0x1b8] sm:$0xff]
      %v250 = vld [vmem:[%s1 + $0x1c0] sm:$0xff]
      %v251 = vld [vmem:[%s1 + $0x1c8] sm:$0xff]
      %v252 = vld [vmem:[%s1 + $0x1d0] sm:$0xff]
      %v253 = vld [vmem:[%s1 + $0x1d8] sm:$0xff]
      %v254 = vld [vmem:[%s1 + $0x1e0] sm:$0xff]
      %v255 = vld [vmem:[%s1 + $0x1e8] sm:$0xff]
      %v256 = vld [vmem:[%s1 + $0x1f0] sm:$0xff]
      %v257 = vld [vmem:[%s1 + $0x1f8] sm:$0xff]
      %v258 = vld [vmem:[%s1 + $0x200] sm:$0xff]
      %v259 = vld [vmem:[%s1 + $0x208] sm:$0xff]
      %v260 = vld [vmem:[%s1 + $0x210] sm:$0xff]
      %v261 = vld [vmem:[%s1 + $0x218] sm:$0xff]
      %v262 = vld [vmem:[%s1 + $0x220] sm:$0xff]
      %v263 = vld [vmem:[%s1 + $0x228] sm:$0xff]
      %v264 = vld [vmem:[%s1 + $0x230] sm:$0xff]
      %v265 = vld [vmem:[%s1 + $0x238] sm:$0xff]
      %v266 = vld [vmem:[%s1 + $0x240] sm:$0xff]
      %v267 = vld [vmem:[%s1 + $0x248] sm:$0xff]
      %v268 = vld [vmem:[%s1 + $0x250] sm:$0xff]
      %v269 = vld [vmem:[%s1 + $0x258] sm:$0xff]
      %v270 = vld [vmem:[%s1 + $0x260] sm:$0xff]
      %v271 = vld [vmem:[%s1 + $0x268] sm:$0xff]
      %v272 = vld [vmem:[%s1 + $0x270] sm:$0xff]
      %v273 = vld [vmem:[%s1 + $0x278] sm:$0xff]
      %v274 = vld [vmem:[%s1 + $0x280] sm:$0xff]
      %v275 = vld [vmem:[%s1 + $0x288] sm:$0xff]
      %v276 = vld [vmem:[%s1 + $0x290] sm:$0xff]
      %v277 = vld [vmem:[%s1 + $0x298] sm:$0xff]
      %v278 = vld [vmem:[%s1 + $0x2a0] sm:$0xff]
      %v279 = vld [vmem:[%s1 + $0x2a8] sm:$0xff]
      %v280 = vld [vmem:[%s1 + $0x2b0] sm:$0xff]
      %v281 = vld [vmem:[%s1 + $0x2b8] sm:$0xff]
      %v282 = vld [vmem:[%s1 + $0x2c0] sm:$0xff]
      %v283 = vld [vmem:[%s1 + $0x2c8] sm:$0xff]
      %v284 = vld [vmem:[%s1 + $0x2d0] sm:$0xff]
      %v285 = vld [vmem:[%s1 + $0x2d8] sm:$0xff]
      %v286 = vld [vmem:[%s1 + $0x2e0] sm:$0xff]
      %v287 = vld [vmem:[%s1 + $0x2e8] sm:$0xff]
      %v288 = vld [vmem:[%s1 + $0x2f0] sm:$0xff]
      %v289 = vld [vmem:[%s1 + $0x2f8] sm:$0xff]
      %v290 = vld [vmem:[%s1 + $0x300] sm:$0xff]
      %v291 = vld [vmem:[%s1 + $0x308] sm:$0xff]
      %v292 = vld [vmem:[%s1 + $0x310] sm:$0xff]
      %v293 = vld [vmem:[%s1 + $0x318] sm:$0xff]
      %v294 = vld [vmem:[%s1 + $0x320] sm:$0xff]
      %v295 = vld [vmem:[%s1 + $0x328] sm:$0xff]
      %v296 = vld [vmem:[%s1 + $0x330] sm:$0xff]
      %v297 = vld [vmem:[%s1 + $0x338] sm:$0xff]
      %v298 = vld [vmem:[%s1 + $0x340] sm:$0xff]
      %v299 = vld [vmem:[%s1 + $0x348] sm:$0xff]
      %v300 = vld [vmem:[%s1 + $0x350] sm:$0xff]
      %v301 = vld [vmem:[%s1 + $0x358] sm:$0xff]
      %v302 = vld [vmem:[%s1 + $0x360] sm:$0xff]
      %v303 = vld [vmem:[%s1 + $0x368] sm:$0xff]
      %v304 = vld [vmem:[%s1 + $0x370] sm:$0xff]
      %v305 = vld [vmem:[%s1 + $0x378] sm:$0xff]
      %v306 = vld [vmem:[%s1 + $0x380] sm:$0xff]
      %v307 = vld [vmem:[%s1 + $0x388] sm:$0xff]
      %v308 = vld [vmem:[%s1 + $0x390] sm:$0xff]
      %v309 = vld [vmem:[%s1 + $0x398] sm:$0xff]
      %v310 = vld [vmem:[%s1 + $0x3a0] sm:$0xff]
      %v311 = vld [vmem:[%s1 + $0x3a8] sm:$0xff]
      %v312 = vld [vmem:[%s1 + $0x3b0] sm:$0xff]
      %v313 = vld [vmem:[%s1 + $0x3b8] sm:$0xff]
      %v314 = vld [vmem:[%s1 + $0x3c0] sm:$0xff]
      %v315 = vld [vmem:[%s1 + $0x3c8] sm:$0xff]
      %v316 = vld [vmem:[%s1 + $0x3d0] sm:$0xff]
      %v317 = vld [vmem:[%s1 + $0x3d8] sm:$0xff]
      %v318 = vld [vmem:[%s1 + $0x3e0] sm:$0xff]
      %v319 = vld [vmem:[%s1 + $0x3e8] sm:$0xff]
      %v320 = vld [vmem:[%s1 + $0x3f0] sm:$0xff]
      %v321 = vld [vmem:[%s1 + $0x3f8] sm:$0xff]
      %v322 = vld [vmem:[%s1 + $0x400] sm:$0xff]
      %v323 = vld [vmem:[%s1 + $0x408] sm:$0xff]
      %v324 = vld [vmem:[%s1 + $0x410] sm:$0xff]
      %v325 = vld [vmem:[%s1 + $0x418] sm:$0xff]
      %v326 = vld [vmem:[%s1 + $0x420] sm:$0xff]
      %v327 = vld [vmem:[%s1 + $0x428] sm:$0xff]
      %v328 = vld [vmem:[%s1 + $0x430] sm:$0xff]
      %v329 = vld [vmem:[%s1 + $0x438] sm:$0xff]
      %v330 = vld [vmem:[%s1 + $0x440] sm:$0xff]
      %v331 = vld [vmem:[%s1 + $0x448] sm:$0xff]
      %v332 = vld [vmem:[%s1 + $0x450] sm:$0xff]
      %v333 = vld [vmem:[%s1 + $0x458] sm:$0xff]
      %v334 = vld [vmem:[%s1 + $0x460] sm:$0xff]
      %v335 = vld [vmem:[%s1 + $0x468] sm:$0xff]
      %v336 = vld [vmem:[%s1 + $0x470] sm:$0xff]
      %v337 = vld [vmem:[%s1 + $0x478] sm:$0xff]
      %v338 = vld [vmem:[%s1 + $0x480] sm:$0xff]
      %v339 = vld [vmem:[%s1 + $0x488] sm:$0xff]
      %v340 = vld [vmem:[%s1 + $0x490] sm:$0xff]
      %v341 = vld [vmem:[%s1 + $0x498] sm:$0xff]
      %v342 = vld [vmem:[%s1 + $0x4a0] sm:$0xff]
      %v343 = vld [vmem:[%s1 + $0x4a8] sm:$0xff]
      %v344 = vld [vmem:[%s1 + $0x4b0] sm:$0xff]
      %v345 = vld [vmem:[%s1 + $0x4b8] sm:$0xff]
      %v346 = vld [vmem:[%s1 + $0x4c0] sm:$0xff]
      %v347 = vld [vmem:[%s1 + $0x4c8] sm:$0xff]
      %v348 = vld [vmem:[%s1 + $0x4d0] sm:$0xff]
      %v349 = vld [vmem:[%s1 + $0x4d8] sm:$0xff]
      %v350 = vld [vmem:[%s1 + $0x4e0] sm:$0xff]
      %v351 = vld [vmem:[%s1 + $0x4e8] sm:$0xff]
      %v352 = vld [vmem:[%s1 + $0x4f0] sm:$0xff]
      %v353 = vld [vmem:[%s1 + $0x4f8] sm:$0xff]
      %v354 = vld [vmem:[%s1 + $0x500] sm:$0xff]
      %v355 = vld [vmem:[%s1 + $0x508] sm:$0xff]
      %v356 = vld [vmem:[%s1 + $0x510] sm:$0xff]
      %v357 = vld [vmem:[%s1 + $0x518] sm:$0xff]
      %v358 = vld [vmem:[%s1 + $0x520] sm:$0xff]
      %v359 = vld [vmem:[%s1 + $0x528] sm:$0xff]
      %v360 = vld [vmem:[%s1 + $0x530] sm:$0xff]
      %v361 = vld [vmem:[%s1 + $0x538] sm:$0xff]
      %v362 = vld [vmem:[%s1 + $0x540] sm:$0xff]
      %v363 = vld [vmem:[%s1 + $0x548] sm:$0xff]
      %v364 = vld [vmem:[%s1 + $0x550] sm:$0xff]
      %v365 = vld [vmem:[%s1 + $0x558] sm:$0xff]
      %v366 = vld [vmem:[%s1 + $0x560] sm:$0xff]
      %v367 = vld [vmem:[%s1 + $0x568] sm:$0xff]
      %v368 = vld [vmem:[%s1 + $0x570] sm:$0xff]
      %v369 = vld [vmem:[%s1 + $0x578] sm:$0xff]
      %v370 = vld [vmem:[%s1 + $0x580] sm:$0xff]
      %v371 = vld [vmem:[%s1 + $0x588] sm:$0xff]
      %v372 = vld [vmem:[%s1 + $0x590] sm:$0xff]
      %v373 = vld [vmem:[%s1 + $0x598] sm:$0xff]
      %v374 = vld [vmem:[%s1 + $0x5a0] sm:$0xff]
      %v375 = vld [vmem:[%s1 + $0x5a8] sm:$0xff]
      %v376 = vld [vmem:[%s1 + $0x5b0] sm:$0xff]
      %v377 = vld [vmem:[%s1 + $0x5b8] sm:$0xff]
      %v378 = vld [vmem:[%s1 + $0x5c0] sm:$0xff]
      %v379 = vld [vmem:[%s1 + $0x5c8] sm:$0xff]
      %v380 = vld [vmem:[%s1 + $0x5d0] sm:$0xff]
      %v381 = vld [vmem:[%s1 + $0x5d8] sm:$0xff]
      %v382 = vld [vmem:[%s1 + $0x5e0] sm:$0xff]
      %v383 = vld [vmem:[%s1 + $0x5e8] sm:$0xff]
      %v384 = vld [vmem:[%s1 + $0x5f0] sm:$0xff]
      %v385 = vld [vmem:[%s1 + $0x5f8] sm:$0xff]
      %v386 = vld [vmem:[%s1 + $0x600] sm:$0xff]
      %v387 = vld [vmem:[%s1 + $0x608] sm:$0xff]
      %v388 = vld [vmem:[%s1 + $0x610] sm:$0xff]
      %v389 = vld [vmem:[%s1 + $0x618] sm:$0xff]
      %v390 = vld [vmem:[%s1 + $0x620] sm:$0xff]
      %v391 = vld [vmem:[%s1 + $0x628] sm:$0xff]
      %v392 = vld [vmem:[%s1 + $0x630] sm:$0xff]
      %v393 = vld [vmem:[%s1 + $0x638] sm:$0xff]
      %v394 = vld [vmem:[%s1 + $0x640] sm:$0xff]
      %v395 = vld [vmem:[%s1 + $0x648] sm:$0xff]
      %v396 = vld [vmem:[%s1 + $0x650] sm:$0xff]
      %v397 = vld [vmem:[%s1 + $0x658] sm:$0xff]
      %v398 = vld [vmem:[%s1 + $0x660] sm:$0xff]
      %v399 = vld [vmem:[%s1 + $0x668] sm:$0xff]
      %v400 = vld [vmem:[%s1 + $0x670] sm:$0xff]
      %v401 = vld [vmem:[%s1 + $0x678] sm:$0xff]
      %v402 = vld [vmem:[%s1 + $0x680] sm:$0xff]
      %v403 = vld [vmem:[%s1 + $0x688] sm:$0xff]
      %v404 = vld [vmem:[%s1 + $0x690] sm:$0xff]
      %v405 = vld [vmem:[%s1 + $0x698] sm:$0xff]
      %v406 = vld [vmem:[%s1 + $0x6a0] sm:$0xff]
      %v407 = vld [vmem:[%s1 + $0x6a8] sm:$0xff]
      %v408 = vld [vmem:[%s1 + $0x6b0] sm:$0xff]
      %v409 = vld [vmem:[%s1 + $0x6b8] sm:$0xff]
      %v410 = vld [vmem:[%s1 + $0x6c0] sm:$0xff]
      %v411 = vld [vmem:[%s1 + $0x6c8] sm:$0xff]
      %v412 = vld [vmem:[%s1 + $0x6d0] sm:$0xff]
      %v413 = vld [vmem:[%s1 + $0x6d8] sm:$0xff]
      %v414 = vld [vmem:[%s1 + $0x6e0] sm:$0xff]
      %v415 = vld [vmem:[%s1 + $0x6e8] sm:$0xff]
      %v416 = vld [vmem:[%s1 + $0x6f0] sm:$0xff]
      %v417 = vld [vmem:[%s1 + $0x6f8] sm:$0xff]
      %v418 = vld [vmem:[%s1 + $0x700] sm:$0xff]
      %v419 = vld [vmem:[%s1 + $0x708] sm:$0xff]
      %v420 = vld [vmem:[%s1 + $0x710] sm:$0xff]
      %v421 = vld [vmem:[%s1 + $0x718] sm:$0xff]
      %v422 = vld [vmem:[%s1 + $0x720] sm:$0xff]
      %v423 = vld [vmem:[%s1 + $0x728] sm:$0xff]
      %v424 = vld [vmem:[%s1 + $0x730] sm:$0xff]
      %v425 = vld [vmem:[%s1 + $0x738] sm:$0xff]
      %v426 = vld [vmem:[%s1 + $0x740] sm:$0xff]
      %v427 = vld [vmem:[%s1 + $0x748] sm:$0xff]
      %v428 = vld [vmem:[%s1 + $0x750] sm:$0xff]
      %v429 = vld [vmem:[%s1 + $0x758] sm:$0xff]
      %v430 = vld [vmem:[%s1 + $0x760] sm:$0xff]
      %v431 = vld [vmem:[%s1 + $0x768] sm:$0xff]
      %v432 = vld [vmem:[%s1 + $0x770] sm:$0xff]
      %v433 = vld [vmem:[%s1 + $0x778] sm:$0xff]
      %v434 = vld [vmem:[%s1 + $0x780] sm:$0xff]
      %v435 = vld [vmem:[%s1 + $0x788] sm:$0xff]
      %v436 = vld [vmem:[%s1 + $0x790] sm:$0xff]
      %v437 = vld [vmem:[%s1 + $0x798] sm:$0xff]
      %v438 = vld [vmem:[%s1 + $0x7a0] sm:$0xff]
      %v439 = vld [vmem:[%s1 + $0x7a8] sm:$0xff]
      %v440 = vld [vmem:[%s1 + $0x7b0] sm:$0xff]
      %v441 = vld [vmem:[%s1 + $0x7b8] sm:$0xff]
      %v442 = vld [vmem:[%s1 + $0x7c0] sm:$0xff]
      %v443 = vld [vmem:[%s1 + $0x7c8] sm:$0xff]
      %v444 = vld [vmem:[%s1 + $0x7d0] sm:$0xff]
      %v445 = vld [vmem:[%s1 + $0x7d8] sm:$0xff]
      %v446 = vld [vmem:[%s1 + $0x7e0] sm:$0xff]
      %v447 = vld [vmem:[%s1 + $0x7e8] sm:$0xff]
      %v448 = vld [vmem:[%s1 + $0x7f0] sm:$0xff]
      %v449 = vld [vmem:[%s1 + $0x7f8] sm:$0xff]
      %v466 = vunpack.c.l.b16 %v178
      %v467 = vunpack.c.h.b16 %v178
      %v468 = vunpack.c.l.b16 %v179
      %v469 = vunpack.c.h.b16 %v179
      %v470 = vunpack.c.l.b16 %v180
      %v471 = vunpack.c.h.b16 %v180
      %v472 = vunpack.c.l.b16 %v181
      %v473 = vunpack.c.h.b16 %v181
      %v474 = vunpack.c.l.b16 %v182
      %v475 = vunpack.c.h.b16 %v182
      %v476 = vunpack.c.l.b16 %v183
      %v477 = vunpack.c.h.b16 %v183
      %v478 = vunpack.c.l.b16 %v184
      %v479 = vunpack.c.h.b16 %v184
      %v480 = vunpack.c.l.b16 %v185
      %v481 = vunpack.c.h.b16 %v185
      %v482 = vunpack.c.l.b16 %v186
      %v483 = vunpack.c.h.b16 %v186
      %v484 = vunpack.c.l.b16 %v187
      %v485 = vunpack.c.h.b16 %v187
      %v486 = vunpack.c.l.b16 %v188
      %v487 = vunpack.c.h.b16 %v188
      %v488 = vunpack.c.l.b16 %v189
      %v489 = vunpack.c.h.b16 %v189
      %v490 = vunpack.c.l.b16 %v190
      %v491 = vunpack.c.h.b16 %v190
      %v492 = vunpack.c.l.b16 %v191
      %v493 = vunpack.c.h.b16 %v191
      %v494 = vunpack.c.l.b16 %v192
      %v495 = vunpack.c.h.b16 %v192
      %v496 = vunpack.c.l.b16 %v193
      %v497 = vunpack.c.h.b16 %v193
      %v498 = vpack.c.b16 %v468, %v466
      %v499 = vpack.c.b16 %v469, %v467
      %v500 = vpack.c.b16 %v472, %v470
      %v501 = vpack.c.b16 %v473, %v471
      %v502 = vpack.c.b16 %v476, %v474
      %v503 = vpack.c.b16 %v477, %v475
      %v504 = vpack.c.b16 %v480, %v478
      %v505 = vpack.c.b16 %v481, %v479
      %v506 = vpack.c.b16 %v484, %v482
      %v507 = vpack.c.b16 %v485, %v483
      %v508 = vpack.c.b16 %v488, %v486
      %v509 = vpack.c.b16 %v489, %v487
      %v510 = vpack.c.b16 %v492, %v490
      %v511 = vpack.c.b16 %v493, %v491
      %v512 = vpack.c.b16 %v496, %v494
      %v513 = vpack.c.b16 %v497, %v495
      %v786 = vunpack.c.l.b16 %v194
      %v787 = vunpack.c.h.b16 %v194
      %v788 = vunpack.c.l.b16 %v195
      %v789 = vunpack.c.h.b16 %v195
      %v790 = vunpack.c.l.b16 %v196
      %v791 = vunpack.c.h.b16 %v196
      %v792 = vunpack.c.l.b16 %v197
      %v793 = vunpack.c.h.b16 %v197
      %v794 = vunpack.c.l.b16 %v198
      %v795 = vunpack.c.h.b16 %v198
      %v796 = vunpack.c.l.b16 %v199
      %v797 = vunpack.c.h.b16 %v199
      %v798 = vunpack.c.l.b16 %v200
      %v799 = vunpack.c.h.b16 %v200
      %v800 = vunpack.c.l.b16 %v201
      %v801 = vunpack.c.h.b16 %v201
      %v802 = vunpack.c.l.b16 %v202
      %v803 = vunpack.c.h.b16 %v202
      %v804 = vunpack.c.l.b16 %v203
      %v805 = vunpack.c.h.b16 %v203
      %v806 = vunpack.c.l.b16 %v204
      %v807 = vunpack.c.h.b16 %v204
      %v808 = vunpack.c.l.b16 %v205
      %v809 = vunpack.c.h.b16 %v205
      %v810 = vunpack.c.l.b16 %v206
      %v811 = vunpack.c.h.b16 %v206
      %v812 = vunpack.c.l.b16 %v207
      %v813 = vunpack.c.h.b16 %v207
      %v814 = vunpack.c.l.b16 %v208
      %v815 = vunpack.c.h.b16 %v208
      %v816 = vunpack.c.l.b16 %v209
      %v817 = vunpack.c.h.b16 %v209
      %v818 = vunpack.c.l.b16 %v210
      %v819 = vunpack.c.h.b16 %v210
      %v820 = vunpack.c.l.b16 %v211
      %v821 = vunpack.c.h.b16 %v211
      %v822 = vunpack.c.l.b16 %v212
      %v823 = vunpack.c.h.b16 %v212
      %v824 = vunpack.c.l.b16 %v213
      %v825 = vunpack.c.h.b16 %v213
      %v826 = vunpack.c.l.b16 %v214
      %v827 = vunpack.c.h.b16 %v214
      %v828 = vunpack.c.l.b16 %v215
      %v829 = vunpack.c.h.b16 %v215
      %v830 = vunpack.c.l.b16 %v216
      %v831 = vunpack.c.h.b16 %v216
      %v832 = vunpack.c.l.b16 %v217
      %v833 = vunpack.c.h.b16 %v217
      %v834 = vunpack.c.l.b16 %v218
      %v835 = vunpack.c.h.b16 %v218
      %v836 = vunpack.c.l.b16 %v219
      %v837 = vunpack.c.h.b16 %v219
      %v838 = vunpack.c.l.b16 %v220
      %v839 = vunpack.c.h.b16 %v220
      %v840 = vunpack.c.l.b16 %v221
      %v841 = vunpack.c.h.b16 %v221
      %v842 = vunpack.c.l.b16 %v222
      %v843 = vunpack.c.h.b16 %v222
      %v844 = vunpack.c.l.b16 %v223
      %v845 = vunpack.c.h.b16 %v223
      %v846 = vunpack.c.l.b16 %v224
      %v847 = vunpack.c.h.b16 %v224
      %v848 = vunpack.c.l.b16 %v225
      %v849 = vunpack.c.h.b16 %v225
      %v850 = vunpack.c.l.b16 %v226
      %v851 = vunpack.c.h.b16 %v226
      %v852 = vunpack.c.l.b16 %v227
      %v853 = vunpack.c.h.b16 %v227
      %v854 = vunpack.c.l.b16 %v228
      %v855 = vunpack.c.h.b16 %v228
      %v856 = vunpack.c.l.b16 %v229
      %v857 = vunpack.c.h.b16 %v229
      %v858 = vunpack.c.l.b16 %v230
      %v859 = vunpack.c.h.b16 %v230
      %v860 = vunpack.c.l.b16 %v231
      %v861 = vunpack.c.h.b16 %v231
      %v862 = vunpack.c.l.b16 %v232
      %v863 = vunpack.c.h.b16 %v232
      %v864 = vunpack.c.l.b16 %v233
      %v865 = vunpack.c.h.b16 %v233
      %v866 = vunpack.c.l.b16 %v234
      %v867 = vunpack.c.h.b16 %v234
      %v868 = vunpack.c.l.b16 %v235
      %v869 = vunpack.c.h.b16 %v235
      %v870 = vunpack.c.l.b16 %v236
      %v871 = vunpack.c.h.b16 %v236
      %v872 = vunpack.c.l.b16 %v237
      %v873 = vunpack.c.h.b16 %v237
      %v874 = vunpack.c.l.b16 %v238
      %v875 = vunpack.c.h.b16 %v238
      %v876 = vunpack.c.l.b16 %v239
      %v877 = vunpack.c.h.b16 %v239
      %v878 = vunpack.c.l.b16 %v240
      %v879 = vunpack.c.h.b16 %v240
      %v880 = vunpack.c.l.b16 %v241
      %v881 = vunpack.c.h.b16 %v241
      %v882 = vunpack.c.l.b16 %v242
      %v883 = vunpack.c.h.b16 %v242
      %v884 = vunpack.c.l.b16 %v243
      %v885 = vunpack.c.h.b16 %v243
      %v886 = vunpack.c.l.b16 %v244
      %v887 = vunpack.c.h.b16 %v244
      %v888 = vunpack.c.l.b16 %v245
      %v889 = vunpack.c.h.b16 %v245
      %v890 = vunpack.c.l.b16 %v246
      %v891 = vunpack.c.h.b16 %v246
      %v892 = vunpack.c.l.b16 %v247
      %v893 = vunpack.c.h.b16 %v247
      %v894 = vunpack.c.l.b16 %v248
      %v895 = vunpack.c.h.b16 %v248
      %v896 = vunpack.c.l.b16 %v249
      %v897 = vunpack.c.h.b16 %v249
      %v898 = vunpack.c.l.b16 %v250
      %v899 = vunpack.c.h.b16 %v250
      %v900 = vunpack.c.l.b16 %v251
      %v901 = vunpack.c.h.b16 %v251
      %v902 = vunpack.c.l.b16 %v252
      %v903 = vunpack.c.h.b16 %v252
      %v904 = vunpack.c.l.b16 %v253
      %v905 = vunpack.c.h.b16 %v253
      %v906 = vunpack.c.l.b16 %v254
      %v907 = vunpack.c.h.b16 %v254
      %v908 = vunpack.c.l.b16 %v255
      %v909 = vunpack.c.h.b16 %v255
      %v910 = vunpack.c.l.b16 %v256
      %v911 = vunpack.c.h.b16 %v256
      %v912 = vunpack.c.l.b16 %v257
      %v913 = vunpack.c.h.b16 %v257
      %v914 = vunpack.c.l.b16 %v258
      %v915 = vunpack.c.h.b16 %v258
      %v916 = vunpack.c.l.b16 %v259
      %v917 = vunpack.c.h.b16 %v259
      %v918 = vunpack.c.l.b16 %v260
      %v919 = vunpack.c.h.b16 %v260
      %v920 = vunpack.c.l.b16 %v261
      %v921 = vunpack.c.h.b16 %v261
      %v922 = vunpack.c.l.b16 %v262
      %v923 = vunpack.c.h.b16 %v262
      %v924 = vunpack.c.l.b16 %v263
      %v925 = vunpack.c.h.b16 %v263
      %v926 = vunpack.c.l.b16 %v264
      %v927 = vunpack.c.h.b16 %v264
      %v928 = vunpack.c.l.b16 %v265
      %v929 = vunpack.c.h.b16 %v265
      %v930 = vunpack.c.l.b16 %v266
      %v931 = vunpack.c.h.b16 %v266
      %v932 = vunpack.c.l.b16 %v267
      %v933 = vunpack.c.h.b16 %v267
      %v934 = vunpack.c.l.b16 %v268
      %v935 = vunpack.c.h.b16 %v268
      %v936 = vunpack.c.l.b16 %v269
      %v937 = vunpack.c.h.b16 %v269
      %v938 = vunpack.c.l.b16 %v270
      %v939 = vunpack.c.h.b16 %v270
      %v940 = vunpack.c.l.b16 %v271
      %v941 = vunpack.c.h.b16 %v271
      %v942 = vunpack.c.l.b16 %v272
      %v943 = vunpack.c.h.b16 %v272
      %v944 = vunpack.c.l.b16 %v273
      %v945 = vunpack.c.h.b16 %v273
      %v946 = vunpack.c.l.b16 %v274
      %v947 = vunpack.c.h.b16 %v274
      %v948 = vunpack.c.l.b16 %v275
      %v949 = vunpack.c.h.b16 %v275
      %v950 = vunpack.c.l.b16 %v276
      %v951 = vunpack.c.h.b16 %v276
      %v952 = vunpack.c.l.b16 %v277
      %v953 = vunpack.c.h.b16 %v277
      %v954 = vunpack.c.l.b16 %v278
      %v955 = vunpack.c.h.b16 %v278
      %v956 = vunpack.c.l.b16 %v279
      %v957 = vunpack.c.h.b16 %v279
      %v958 = vunpack.c.l.b16 %v280
      %v959 = vunpack.c.h.b16 %v280
      %v960 = vunpack.c.l.b16 %v281
      %v961 = vunpack.c.h.b16 %v281
      %v962 = vunpack.c.l.b16 %v282
      %v963 = vunpack.c.h.b16 %v282
      %v964 = vunpack.c.l.b16 %v283
      %v965 = vunpack.c.h.b16 %v283
      %v966 = vunpack.c.l.b16 %v284
      %v967 = vunpack.c.h.b16 %v284
      %v968 = vunpack.c.l.b16 %v285
      %v969 = vunpack.c.h.b16 %v285
      %v970 = vunpack.c.l.b16 %v286
      %v971 = vunpack.c.h.b16 %v286
      %v972 = vunpack.c.l.b16 %v287
      %v973 = vunpack.c.h.b16 %v287
      %v974 = vunpack.c.l.b16 %v288
      %v975 = vunpack.c.h.b16 %v288
      %v976 = vunpack.c.l.b16 %v289
      %v977 = vunpack.c.h.b16 %v289
      %v978 = vunpack.c.l.b16 %v290
      %v979 = vunpack.c.h.b16 %v290
      %v980 = vunpack.c.l.b16 %v291
      %v981 = vunpack.c.h.b16 %v291
      %v982 = vunpack.c.l.b16 %v292
      %v983 = vunpack.c.h.b16 %v292
      %v984 = vunpack.c.l.b16 %v293
      %v985 = vunpack.c.h.b16 %v293
      %v986 = vunpack.c.l.b16 %v294
      %v987 = vunpack.c.h.b16 %v294
      %v988 = vunpack.c.l.b16 %v295
      %v989 = vunpack.c.h.b16 %v295
      %v990 = vunpack.c.l.b16 %v296
      %v991 = vunpack.c.h.b16 %v296
      %v992 = vunpack.c.l.b16 %v297
      %v993 = vunpack.c.h.b16 %v297
      %v994 = vunpack.c.l.b16 %v298
      %v995 = vunpack.c.h.b16 %v298
      %v996 = vunpack.c.l.b16 %v299
      %v997 = vunpack.c.h.b16 %v299
      %v998 = vunpack.c.l.b16 %v300
      %v999 = vunpack.c.h.b16 %v300
      %v1000 = vunpack.c.l.b16 %v301
      %v1001 = vunpack.c.h.b16 %v301
      %v1002 = vunpack.c.l.b16 %v302
      %v1003 = vunpack.c.h.b16 %v302
      %v1004 = vunpack.c.l.b16 %v303
      %v1005 = vunpack.c.h.b16 %v303
      %v1006 = vunpack.c.l.b16 %v304
      %v1007 = vunpack.c.h.b16 %v304
      %v1008 = vunpack.c.l.b16 %v305
      %v1009 = vunpack.c.h.b16 %v305
      %v1010 = vunpack.c.l.b16 %v306
      %v1011 = vunpack.c.h.b16 %v306
      %v1012 = vunpack.c.l.b16 %v307
      %v1013 = vunpack.c.h.b16 %v307
      %v1014 = vunpack.c.l.b16 %v308
      %v1015 = vunpack.c.h.b16 %v308
      %v1016 = vunpack.c.l.b16 %v309
      %v1017 = vunpack.c.h.b16 %v309
      %v1018 = vunpack.c.l.b16 %v310
      %v1019 = vunpack.c.h.b16 %v310
      %v1020 = vunpack.c.l.b16 %v311
      %v1021 = vunpack.c.h.b16 %v311
      %v1022 = vunpack.c.l.b16 %v312
      %v1023 = vunpack.c.h.b16 %v312
      %v1024 = vunpack.c.l.b16 %v313
      %v1025 = vunpack.c.h.b16 %v313
      %v1026 = vunpack.c.l.b16 %v314
      %v1027 = vunpack.c.h.b16 %v314
      %v1028 = vunpack.c.l.b16 %v315
      %v1029 = vunpack.c.h.b16 %v315
      %v1030 = vunpack.c.l.b16 %v316
      %v1031 = vunpack.c.h.b16 %v316
      %v1032 = vunpack.c.l.b16 %v317
      %v1033 = vunpack.c.h.b16 %v317
      %v1034 = vunpack.c.l.b16 %v318
      %v1035 = vunpack.c.h.b16 %v318
      %v1036 = vunpack.c.l.b16 %v319
      %v1037 = vunpack.c.h.b16 %v319
      %v1038 = vunpack.c.l.b16 %v320
      %v1039 = vunpack.c.h.b16 %v320
      %v1040 = vunpack.c.l.b16 %v321
      %v1041 = vunpack.c.h.b16 %v321
      %v1042 = vunpack.c.l.b16 %v322
      %v1043 = vunpack.c.h.b16 %v322
      %v1044 = vunpack.c.l.b16 %v323
      %v1045 = vunpack.c.h.b16 %v323
      %v1046 = vunpack.c.l.b16 %v324
      %v1047 = vunpack.c.h.b16 %v324
      %v1048 = vunpack.c.l.b16 %v325
      %v1049 = vunpack.c.h.b16 %v325
      %v1050 = vunpack.c.l.b16 %v326
      %v1051 = vunpack.c.h.b16 %v326
      %v1052 = vunpack.c.l.b16 %v327
      %v1053 = vunpack.c.h.b16 %v327
      %v1054 = vunpack.c.l.b16 %v328
      %v1055 = vunpack.c.h.b16 %v328
      %v1056 = vunpack.c.l.b16 %v329
      %v1057 = vunpack.c.h.b16 %v329
      %v1058 = vunpack.c.l.b16 %v330
      %v1059 = vunpack.c.h.b16 %v330
      %v1060 = vunpack.c.l.b16 %v331
      %v1061 = vunpack.c.h.b16 %v331
      %v1062 = vunpack.c.l.b16 %v332
      %v1063 = vunpack.c.h.b16 %v332
      %v1064 = vunpack.c.l.b16 %v333
      %v1065 = vunpack.c.h.b16 %v333
      %v1066 = vunpack.c.l.b16 %v334
      %v1067 = vunpack.c.h.b16 %v334
      %v1068 = vunpack.c.l.b16 %v335
      %v1069 = vunpack.c.h.b16 %v335
      %v1070 = vunpack.c.l.b16 %v336
      %v1071 = vunpack.c.h.b16 %v336
      %v1072 = vunpack.c.l.b16 %v337
      %v1073 = vunpack.c.h.b16 %v337
      %v1074 = vunpack.c.l.b16 %v338
      %v1075 = vunpack.c.h.b16 %v338
      %v1076 = vunpack.c.l.b16 %v339
      %v1077 = vunpack.c.h.b16 %v339
      %v1078 = vunpack.c.l.b16 %v340
      %v1079 = vunpack.c.h.b16 %v340
      %v1080 = vunpack.c.l.b16 %v341
      %v1081 = vunpack.c.h.b16 %v341
      %v1082 = vunpack.c.l.b16 %v342
      %v1083 = vunpack.c.h.b16 %v342
      %v1084 = vunpack.c.l.b16 %v343
      %v1085 = vunpack.c.h.b16 %v343
      %v1086 = vunpack.c.l.b16 %v344
      %v1087 = vunpack.c.h.b16 %v344
      %v1088 = vunpack.c.l.b16 %v345
      %v1089 = vunpack.c.h.b16 %v345
      %v1090 = vunpack.c.l.b16 %v346
      %v1091 = vunpack.c.h.b16 %v346
      %v1092 = vunpack.c.l.b16 %v347
      %v1093 = vunpack.c.h.b16 %v347
      %v1094 = vunpack.c.l.b16 %v348
      %v1095 = vunpack.c.h.b16 %v348
      %v1096 = vunpack.c.l.b16 %v349
      %v1097 = vunpack.c.h.b16 %v349
      %v1098 = vunpack.c.l.b16 %v350
      %v1099 = vunpack.c.h.b16 %v350
      %v1100 = vunpack.c.l.b16 %v351
      %v1101 = vunpack.c.h.b16 %v351
      %v1102 = vunpack.c.l.b16 %v352
      %v1103 = vunpack.c.h.b16 %v352
      %v1104 = vunpack.c.l.b16 %v353
      %v1105 = vunpack.c.h.b16 %v353
      %v1106 = vunpack.c.l.b16 %v354
      %v1107 = vunpack.c.h.b16 %v354
      %v1108 = vunpack.c.l.b16 %v355
      %v1109 = vunpack.c.h.b16 %v355
      %v1110 = vunpack.c.l.b16 %v356
      %v1111 = vunpack.c.h.b16 %v356
      %v1112 = vunpack.c.l.b16 %v357
      %v1113 = vunpack.c.h.b16 %v357
      %v1114 = vunpack.c.l.b16 %v358
      %v1115 = vunpack.c.h.b16 %v358
      %v1116 = vunpack.c.l.b16 %v359
      %v1117 = vunpack.c.h.b16 %v359
      %v1118 = vunpack.c.l.b16 %v360
      %v1119 = vunpack.c.h.b16 %v360
      %v1120 = vunpack.c.l.b16 %v361
      %v1121 = vunpack.c.h.b16 %v361
      %v1122 = vunpack.c.l.b16 %v362
      %v1123 = vunpack.c.h.b16 %v362
      %v1124 = vunpack.c.l.b16 %v363
      %v1125 = vunpack.c.h.b16 %v363
      %v1126 = vunpack.c.l.b16 %v364
      %v1127 = vunpack.c.h.b16 %v364
      %v1128 = vunpack.c.l.b16 %v365
      %v1129 = vunpack.c.h.b16 %v365
      %v1130 = vunpack.c.l.b16 %v366
      %v1131 = vunpack.c.h.b16 %v366
      %v1132 = vunpack.c.l.b16 %v367
      %v1133 = vunpack.c.h.b16 %v367
      %v1134 = vunpack.c.l.b16 %v368
      %v1135 = vunpack.c.h.b16 %v368
      %v1136 = vunpack.c.l.b16 %v369
      %v1137 = vunpack.c.h.b16 %v369
      %v1138 = vunpack.c.l.b16 %v370
      %v1139 = vunpack.c.h.b16 %v370
      %v1140 = vunpack.c.l.b16 %v371
      %v1141 = vunpack.c.h.b16 %v371
      %v1142 = vunpack.c.l.b16 %v372
      %v1143 = vunpack.c.h.b16 %v372
      %v1144 = vunpack.c.l.b16 %v373
      %v1145 = vunpack.c.h.b16 %v373
      %v1146 = vunpack.c.l.b16 %v374
      %v1147 = vunpack.c.h.b16 %v374
      %v1148 = vunpack.c.l.b16 %v375
      %v1149 = vunpack.c.h.b16 %v375
      %v1150 = vunpack.c.l.b16 %v376
      %v1151 = vunpack.c.h.b16 %v376
      %v1152 = vunpack.c.l.b16 %v377
      %v1153 = vunpack.c.h.b16 %v377
      %v1154 = vunpack.c.l.b16 %v378
      %v1155 = vunpack.c.h.b16 %v378
      %v1156 = vunpack.c.l.b16 %v379
      %v1157 = vunpack.c.h.b16 %v379
      %v1158 = vunpack.c.l.b16 %v380
      %v1159 = vunpack.c.h.b16 %v380
      %v1160 = vunpack.c.l.b16 %v381
      %v1161 = vunpack.c.h.b16 %v381
      %v1162 = vunpack.c.l.b16 %v382
      %v1163 = vunpack.c.h.b16 %v382
      %v1164 = vunpack.c.l.b16 %v383
      %v1165 = vunpack.c.h.b16 %v383
      %v1166 = vunpack.c.l.b16 %v384
      %v1167 = vunpack.c.h.b16 %v384
      %v1168 = vunpack.c.l.b16 %v385
      %v1169 = vunpack.c.h.b16 %v385
      %v1170 = vunpack.c.l.b16 %v386
      %v1171 = vunpack.c.h.b16 %v386
      %v1172 = vunpack.c.l.b16 %v387
      %v1173 = vunpack.c.h.b16 %v387
      %v1174 = vunpack.c.l.b16 %v388
      %v1175 = vunpack.c.h.b16 %v388
      %v1176 = vunpack.c.l.b16 %v389
      %v1177 = vunpack.c.h.b16 %v389
      %v1178 = vunpack.c.l.b16 %v390
      %v1179 = vunpack.c.h.b16 %v390
      %v1180 = vunpack.c.l.b16 %v391
      %v1181 = vunpack.c.h.b16 %v391
      %v1182 = vunpack.c.l.b16 %v392
      %v1183 = vunpack.c.h.b16 %v392
      %v1184 = vunpack.c.l.b16 %v393
      %v1185 = vunpack.c.h.b16 %v393
      %v1186 = vunpack.c.l.b16 %v394
      %v1187 = vunpack.c.h.b16 %v394
      %v1188 = vunpack.c.l.b16 %v395
      %v1189 = vunpack.c.h.b16 %v395
      %v1190 = vunpack.c.l.b16 %v396
      %v1191 = vunpack.c.h.b16 %v396
      %v1192 = vunpack.c.l.b16 %v397
      %v1193 = vunpack.c.h.b16 %v397
      %v1194 = vunpack.c.l.b16 %v398
      %v1195 = vunpack.c.h.b16 %v398
      %v1196 = vunpack.c.l.b16 %v399
      %v1197 = vunpack.c.h.b16 %v399
      %v1198 = vunpack.c.l.b16 %v400
      %v1199 = vunpack.c.h.b16 %v400
      %v1200 = vunpack.c.l.b16 %v401
      %v1201 = vunpack.c.h.b16 %v401
      %v1202 = vunpack.c.l.b16 %v402
      %v1203 = vunpack.c.h.b16 %v402
      %v1204 = vunpack.c.l.b16 %v403
      %v1205 = vunpack.c.h.b16 %v403
      %v1206 = vunpack.c.l.b16 %v404
      %v1207 = vunpack.c.h.b16 %v404
      %v1208 = vunpack.c.l.b16 %v405
      %v1209 = vunpack.c.h.b16 %v405
      %v1210 = vunpack.c.l.b16 %v406
      %v1211 = vunpack.c.h.b16 %v406
      %v1212 = vunpack.c.l.b16 %v407
      %v1213 = vunpack.c.h.b16 %v407
      %v1214 = vunpack.c.l.b16 %v408
      %v1215 = vunpack.c.h.b16 %v408
      %v1216 = vunpack.c.l.b16 %v409
      %v1217 = vunpack.c.h.b16 %v409
      %v1218 = vunpack.c.l.b16 %v410
      %v1219 = vunpack.c.h.b16 %v410
      %v1220 = vunpack.c.l.b16 %v411
      %v1221 = vunpack.c.h.b16 %v411
      %v1222 = vunpack.c.l.b16 %v412
      %v1223 = vunpack.c.h.b16 %v412
      %v1224 = vunpack.c.l.b16 %v413
      %v1225 = vunpack.c.h.b16 %v413
      %v1226 = vunpack.c.l.b16 %v414
      %v1227 = vunpack.c.h.b16 %v414
      %v1228 = vunpack.c.l.b16 %v415
      %v1229 = vunpack.c.h.b16 %v415
      %v1230 = vunpack.c.l.b16 %v416
      %v1231 = vunpack.c.h.b16 %v416
      %v1232 = vunpack.c.l.b16 %v417
      %v1233 = vunpack.c.h.b16 %v417
      %v1234 = vunpack.c.l.b16 %v418
      %v1235 = vunpack.c.h.b16 %v418
      %v1236 = vunpack.c.l.b16 %v419
      %v1237 = vunpack.c.h.b16 %v419
      %v1238 = vunpack.c.l.b16 %v420
      %v1239 = vunpack.c.h.b16 %v420
      %v1240 = vunpack.c.l.b16 %v421
      %v1241 = vunpack.c.h.b16 %v421
      %v1242 = vunpack.c.l.b16 %v422
      %v1243 = vunpack.c.h.b16 %v422
      %v1244 = vunpack.c.l.b16 %v423
      %v1245 = vunpack.c.h.b16 %v423
      %v1246 = vunpack.c.l.b16 %v424
      %v1247 = vunpack.c.h.b16 %v424
      %v1248 = vunpack.c.l.b16 %v425
      %v1249 = vunpack.c.h.b16 %v425
      %v1250 = vunpack.c.l.b16 %v426
      %v1251 = vunpack.c.h.b16 %v426
      %v1252 = vunpack.c.l.b16 %v427
      %v1253 = vunpack.c.h.b16 %v427
      %v1254 = vunpack.c.l.b16 %v428
      %v1255 = vunpack.c.h.b16 %v428
      %v1256 = vunpack.c.l.b16 %v429
      %v1257 = vunpack.c.h.b16 %v429
      %v1258 = vunpack.c.l.b16 %v430
      %v1259 = vunpack.c.h.b16 %v430
      %v1260 = vunpack.c.l.b16 %v431
      %v1261 = vunpack.c.h.b16 %v431
      %v1262 = vunpack.c.l.b16 %v432
      %v1263 = vunpack.c.h.b16 %v432
      %v1264 = vunpack.c.l.b16 %v433
      %v1265 = vunpack.c.h.b16 %v433
      %v1266 = vunpack.c.l.b16 %v434
      %v1267 = vunpack.c.h.b16 %v434
      %v1268 = vunpack.c.l.b16 %v435
      %v1269 = vunpack.c.h.b16 %v435
      %v1270 = vunpack.c.l.b16 %v436
      %v1271 = vunpack.c.h.b16 %v436
      %v1272 = vunpack.c.l.b16 %v437
      %v1273 = vunpack.c.h.b16 %v437
      %v1274 = vunpack.c.l.b16 %v438
      %v1275 = vunpack.c.h.b16 %v438
      %v1276 = vunpack.c.l.b16 %v439
      %v1277 = vunpack.c.h.b16 %v439
      %v1278 = vunpack.c.l.b16 %v440
      %v1279 = vunpack.c.h.b16 %v440
      %v1280 = vunpack.c.l.b16 %v441
      %v1281 = vunpack.c.h.b16 %v441
      %v1282 = vunpack.c.l.b16 %v442
      %v1283 = vunpack.c.h.b16 %v442
      %v1284 = vunpack.c.l.b16 %v443
      %v1285 = vunpack.c.h.b16 %v443
      %v1286 = vunpack.c.l.b16 %v444
      %v1287 = vunpack.c.h.b16 %v444
      %v1288 = vunpack.c.l.b16 %v445
      %v1289 = vunpack.c.h.b16 %v445
      %v1290 = vunpack.c.l.b16 %v446
      %v1291 = vunpack.c.h.b16 %v446
      %v1292 = vunpack.c.l.b16 %v447
      %v1293 = vunpack.c.h.b16 %v447
      %v1294 = vunpack.c.l.b16 %v448
      %v1295 = vunpack.c.h.b16 %v448
      %v1296 = vunpack.c.l.b16 %v449
      %v1297 = vunpack.c.h.b16 %v449
      %v1298 = vpack.c.b16 %v802, %v786
      %v1299 = vpack.c.b16 %v803, %v787
      %v1300 = vpack.c.b16 %v804, %v788
      %v1301 = vpack.c.b16 %v805, %v789
      %v1302 = vpack.c.b16 %v806, %v790
      %v1303 = vpack.c.b16 %v807, %v791
      %v1304 = vpack.c.b16 %v808, %v792
      %v1305 = vpack.c.b16 %v809, %v793
      %v1306 = vpack.c.b16 %v810, %v794
      %v1307 = vpack.c.b16 %v811, %v795
      %v1308 = vpack.c.b16 %v812, %v796
      %v1309 = vpack.c.b16 %v813, %v797
      %v1310 = vpack.c.b16 %v814, %v798
      %v1311 = vpack.c.b16 %v815, %v799
      %v1312 = vpack.c.b16 %v816, %v800
      %v1313 = vpack.c.b16 %v817, %v801
      %v1314 = vpack.c.b16 %v834, %v818
      %v1315 = vpack.c.b16 %v835, %v819
      %v1316 = vpack.c.b16 %v836, %v820
      %v1317 = vpack.c.b16 %v837, %v821
      %v1318 = vpack.c.b16 %v838, %v822
      %v1319 = vpack.c.b16 %v839, %v823
      %v1320 = vpack.c.b16 %v840, %v824
      %v1321 = vpack.c.b16 %v841, %v825
      %v1322 = vpack.c.b16 %v842, %v826
      %v1323 = vpack.c.b16 %v843, %v827
      %v1324 = vpack.c.b16 %v844, %v828
      %v1325 = vpack.c.b16 %v845, %v829
      %v1326 = vpack.c.b16 %v846, %v830
      %v1327 = vpack.c.b16 %v847, %v831
      %v1328 = vpack.c.b16 %v848, %v832
      %v1329 = vpack.c.b16 %v849, %v833
      %v1330 = vpack.c.b16 %v866, %v850
      %v1331 = vpack.c.b16 %v867, %v851
      %v1332 = vpack.c.b16 %v868, %v852
      %v1333 = vpack.c.b16 %v869, %v853
      %v1334 = vpack.c.b16 %v870, %v854
      %v1335 = vpack.c.b16 %v871, %v855
      %v1336 = vpack.c.b16 %v872, %v856
      %v1337 = vpack.c.b16 %v873, %v857
      %v1338 = vpack.c.b16 %v874, %v858
      %v1339 = vpack.c.b16 %v875, %v859
      %v1340 = vpack.c.b16 %v876, %v860
      %v1341 = vpack.c.b16 %v877, %v861
      %v1342 = vpack.c.b16 %v878, %v862
      %v1343 = vpack.c.b16 %v879, %v863
      %v1344 = vpack.c.b16 %v880, %v864
      %v1345 = vpack.c.b16 %v881, %v865
      %v1346 = vpack.c.b16 %v898, %v882
      %v1347 = vpack.c.b16 %v899, %v883
      %v1348 = vpack.c.b16 %v900, %v884
      %v1349 = vpack.c.b16 %v901, %v885
      %v1350 = vpack.c.b16 %v902, %v886
      %v1351 = vpack.c.b16 %v903, %v887
      %v1352 = vpack.c.b16 %v904, %v888
      %v1353 = vpack.c.b16 %v905, %v889
      %v1354 = vpack.c.b16 %v906, %v890
      %v1355 = vpack.c.b16 %v907, %v891
      %v1356 = vpack.c.b16 %v908, %v892
      %v1357 = vpack.c.b16 %v909, %v893
      %v1358 = vpack.c.b16 %v910, %v894
      %v1359 = vpack.c.b16 %v911, %v895
      %v1360 = vpack.c.b16 %v912, %v896
      %v1361 = vpack.c.b16 %v913, %v897
      %v1362 = vpack.c.b16 %v930, %v914
      %v1363 = vpack.c.b16 %v931, %v915
      %v1364 = vpack.c.b16 %v932, %v916
      %v1365 = vpack.c.b16 %v933, %v917
      %v1366 = vpack.c.b16 %v934, %v918
      %v1367 = vpack.c.b16 %v935, %v919
      %v1368 = vpack.c.b16 %v936, %v920
      %v1369 = vpack.c.b16 %v937, %v921
      %v1370 = vpack.c.b16 %v938, %v922
      %v1371 = vpack.c.b16 %v939, %v923
      %v1372 = vpack.c.b16 %v940, %v924
      %v1373 = vpack.c.b16 %v941, %v925
      %v1374 = vpack.c.b16 %v942, %v926
      %v1375 = vpack.c.b16 %v943, %v927
      %v1376 = vpack.c.b16 %v944, %v928
      %v1377 = vpack.c.b16 %v945, %v929
      %v1378 = vpack.c.b16 %v962, %v946
      %v1379 = vpack.c.b16 %v963, %v947
      %v1380 = vpack.c.b16 %v964, %v948
      %v1381 = vpack.c.b16 %v965, %v949
      %v1382 = vpack.c.b16 %v966, %v950
      %v1383 = vpack.c.b16 %v967, %v951
      %v1384 = vpack.c.b16 %v968, %v952
      %v1385 = vpack.c.b16 %v969, %v953
      %v1386 = vpack.c.b16 %v970, %v954
      %v1387 = vpack.c.b16 %v971, %v955
      %v1388 = vpack.c.b16 %v972, %v956
      %v1389 = vpack.c.b16 %v973, %v957
      %v1390 = vpack.c.b16 %v974, %v958
      %v1391 = vpack.c.b16 %v975, %v959
      %v1392 = vpack.c.b16 %v976, %v960
      %v1393 = vpack.c.b16 %v977, %v961
      %v1394 = vpack.c.b16 %v994, %v978
      %v1395 = vpack.c.b16 %v995, %v979
      %v1396 = vpack.c.b16 %v996, %v980
      %v1397 = vpack.c.b16 %v997, %v981
      %v1398 = vpack.c.b16 %v998, %v982
      %v1399 = vpack.c.b16 %v999, %v983
      %v1400 = vpack.c.b16 %v1000, %v984
      %v1401 = vpack.c.b16 %v1001, %v985
      %v1402 = vpack.c.b16 %v1002, %v986
      %v1403 = vpack.c.b16 %v1003, %v987
      %v1404 = vpack.c.b16 %v1004, %v988
      %v1405 = vpack.c.b16 %v1005, %v989
      %v1406 = vpack.c.b16 %v1006, %v990
      %v1407 = vpack.c.b16 %v1007, %v991
      %v1408 = vpack.c.b16 %v1008, %v992
      %v1409 = vpack.c.b16 %v1009, %v993
      %v1410 = vpack.c.b16 %v1026, %v1010
      %v1411 = vpack.c.b16 %v1027, %v1011
      %v1412 = vpack.c.b16 %v1028, %v1012
      %v1413 = vpack.c.b16 %v1029, %v1013
      %v1414 = vpack.c.b16 %v1030, %v1014
      %v1415 = vpack.c.b16 %v1031, %v1015
      %v1416 = vpack.c.b16 %v1032, %v1016
      %v1417 = vpack.c.b16 %v1033, %v1017
      %v1418 = vpack.c.b16 %v1034, %v1018
      %v1419 = vpack.c.b16 %v1035, %v1019
      %v1420 = vpack.c.b16 %v1036, %v1020
      %v1421 = vpack.c.b16 %v1037, %v1021
      %v1422 = vpack.c.b16 %v1038, %v1022
      %v1423 = vpack.c.b16 %v1039, %v1023
      %v1424 = vpack.c.b16 %v1040, %v1024
      %v1425 = vpack.c.b16 %v1041, %v1025
      %v1426 = vpack.c.b16 %v1058, %v1042
      %v1427 = vpack.c.b16 %v1059, %v1043
      %v1428 = vpack.c.b16 %v1060, %v1044
      %v1429 = vpack.c.b16 %v1061, %v1045
      %v1430 = vpack.c.b16 %v1062, %v1046
      %v1431 = vpack.c.b16 %v1063, %v1047
      %v1432 = vpack.c.b16 %v1064, %v1048
      %v1433 = vpack.c.b16 %v1065, %v1049
      %v1434 = vpack.c.b16 %v1066, %v1050
      %v1435 = vpack.c.b16 %v1067, %v1051
      %v1436 = vpack.c.b16 %v1068, %v1052
      %v1437 = vpack.c.b16 %v1069, %v1053
      %v1438 = vpack.c.b16 %v1070, %v1054
      %v1439 = vpack.c.b16 %v1071, %v1055
      %v1440 = vpack.c.b16 %v1072, %v1056
      %v1441 = vpack.c.b16 %v1073, %v1057
      %v1442 = vpack.c.b16 %v1090, %v1074
      %v1443 = vpack.c.b16 %v1091, %v1075
      %v1444 = vpack.c.b16 %v1092, %v1076
      %v1445 = vpack.c.b16 %v1093, %v1077
      %v1446 = vpack.c.b16 %v1094, %v1078
      %v1447 = vpack.c.b16 %v1095, %v1079
      %v1448 = vpack.c.b16 %v1096, %v1080
      %v1449 = vpack.c.b16 %v1097, %v1081
      %v1450 = vpack.c.b16 %v1098, %v1082
      %v1451 = vpack.c.b16 %v1099, %v1083
      %v1452 = vpack.c.b16 %v1100, %v1084
      %v1453 = vpack.c.b16 %v1101, %v1085
      %v1454 = vpack.c.b16 %v1102, %v1086
      %v1455 = vpack.c.b16 %v1103, %v1087
      %v1456 = vpack.c.b16 %v1104, %v1088
      %v1457 = vpack.c.b16 %v1105, %v1089
      %v1458 = vpack.c.b16 %v1122, %v1106
      %v1459 = vpack.c.b16 %v1123, %v1107
      %v1460 = vpack.c.b16 %v1124, %v1108
      %v1461 = vpack.c.b16 %v1125, %v1109
      %v1462 = vpack.c.b16 %v1126, %v1110
      %v1463 = vpack.c.b16 %v1127, %v1111
      %v1464 = vpack.c.b16 %v1128, %v1112
      %v1465 = vpack.c.b16 %v1129, %v1113
      %v1466 = vpack.c.b16 %v1130, %v1114
      %v1467 = vpack.c.b16 %v1131, %v1115
      %v1468 = vpack.c.b16 %v1132, %v1116
      %v1469 = vpack.c.b16 %v1133, %v1117
      %v1470 = vpack.c.b16 %v1134, %v1118
      %v1471 = vpack.c.b16 %v1135, %v1119
      %v1472 = vpack.c.b16 %v1136, %v1120
      %v1473 = vpack.c.b16 %v1137, %v1121
      %v1474 = vpack.c.b16 %v1154, %v1138
      %v1475 = vpack.c.b16 %v1155, %v1139
      %v1476 = vpack.c.b16 %v1156, %v1140
      %v1477 = vpack.c.b16 %v1157, %v1141
      %v1478 = vpack.c.b16 %v1158, %v1142
      %v1479 = vpack.c.b16 %v1159, %v1143
      %v1480 = vpack.c.b16 %v1160, %v1144
      %v1481 = vpack.c.b16 %v1161, %v1145
      %v1482 = vpack.c.b16 %v1162, %v1146
      %v1483 = vpack.c.b16 %v1163, %v1147
      %v1484 = vpack.c.b16 %v1164, %v1148
      %v1485 = vpack.c.b16 %v1165, %v1149
      %v1486 = vpack.c.b16 %v1166, %v1150
      %v1487 = vpack.c.b16 %v1167, %v1151
      %v1488 = vpack.c.b16 %v1168, %v1152
      %v1489 = vpack.c.b16 %v1169, %v1153
      %v1490 = vpack.c.b16 %v1186, %v1170
      %v1491 = vpack.c.b16 %v1187, %v1171
      %v1492 = vpack.c.b16 %v1188, %v1172
      %v1493 = vpack.c.b16 %v1189, %v1173
      %v1494 = vpack.c.b16 %v1190, %v1174
      %v1495 = vpack.c.b16 %v1191, %v1175
      %v1496 = vpack.c.b16 %v1192, %v1176
      %v1497 = vpack.c.b16 %v1193, %v1177
      %v1498 = vpack.c.b16 %v1194, %v1178
      %v1499 = vpack.c.b16 %v1195, %v1179
      %v1500 = vpack.c.b16 %v1196, %v1180
      %v1501 = vpack.c.b16 %v1197, %v1181
      %v1502 = vpack.c.b16 %v1198, %v1182
      %v1503 = vpack.c.b16 %v1199, %v1183
      %v1504 = vpack.c.b16 %v1200, %v1184
      %v1505 = vpack.c.b16 %v1201, %v1185
      %v1506 = vpack.c.b16 %v1218, %v1202
      %v1507 = vpack.c.b16 %v1219, %v1203
      %v1508 = vpack.c.b16 %v1220, %v1204
      %v1509 = vpack.c.b16 %v1221, %v1205
      %v1510 = vpack.c.b16 %v1222, %v1206
      %v1511 = vpack.c.b16 %v1223, %v1207
      %v1512 = vpack.c.b16 %v1224, %v1208
      %v1513 = vpack.c.b16 %v1225, %v1209
      %v1514 = vpack.c.b16 %v1226, %v1210
      %v1515 = vpack.c.b16 %v1227, %v1211
      %v1516 = vpack.c.b16 %v1228, %v1212
      %v1517 = vpack.c.b16 %v1229, %v1213
      %v1518 = vpack.c.b16 %v1230, %v1214
      %v1519 = vpack.c.b16 %v1231, %v1215
      %v1520 = vpack.c.b16 %v1232, %v1216
      %v1521 = vpack.c.b16 %v1233, %v1217
      %v1522 = vpack.c.b16 %v1250, %v1234
      %v1523 = vpack.c.b16 %v1251, %v1235
      %v1524 = vpack.c.b16 %v1252, %v1236
      %v1525 = vpack.c.b16 %v1253, %v1237
      %v1526 = vpack.c.b16 %v1254, %v1238
      %v1527 = vpack.c.b16 %v1255, %v1239
      %v1528 = vpack.c.b16 %v1256, %v1240
      %v1529 = vpack.c.b16 %v1257, %v1241
      %v1530 = vpack.c.b16 %v1258, %v1242
      %v1531 = vpack.c.b16 %v1259, %v1243
      %v1532 = vpack.c.b16 %v1260, %v1244
      %v1533 = vpack.c.b16 %v1261, %v1245
      %v1534 = vpack.c.b16 %v1262, %v1246
      %v1535 = vpack.c.b16 %v1263, %v1247
      %v1536 = vpack.c.b16 %v1264, %v1248
      %v1537 = vpack.c.b16 %v1265, %v1249
      %v1538 = vpack.c.b16 %v1282, %v1266
      %v1539 = vpack.c.b16 %v1283, %v1267
      %v1540 = vpack.c.b16 %v1284, %v1268
      %v1541 = vpack.c.b16 %v1285, %v1269
      %v1542 = vpack.c.b16 %v1286, %v1270
      %v1543 = vpack.c.b16 %v1287, %v1271
      %v1544 = vpack.c.b16 %v1288, %v1272
      %v1545 = vpack.c.b16 %v1289, %v1273
      %v1546 = vpack.c.b16 %v1290, %v1274
      %v1547 = vpack.c.b16 %v1291, %v1275
      %v1548 = vpack.c.b16 %v1292, %v1276
      %v1549 = vpack.c.b16 %v1293, %v1277
      %v1550 = vpack.c.b16 %v1294, %v1278
      %v1551 = vpack.c.b16 %v1295, %v1279
      %v1552 = vpack.c.b16 %v1296, %v1280
      %v1553 = vpack.c.b16 %v1297, %v1281
      %1810 = vmatprep.subr.bf16.mxu0 %v1299
      %1811 = vmatpush1.bf16.msra.mxu0 %v1298
      %1812 = vmatprep.subr.bf16.mxu0 %v1315
      %1813 = vmatpush1.bf16.msra.mxu0 %v1314
      %1814 = vmatprep.subr.bf16.mxu0 %v1331
      %1815 = vmatpush1.bf16.msra.mxu0 %v1330
      %1816 = vmatprep.subr.bf16.mxu0 %v1347
      %1817 = vmatpush1.bf16.msra.mxu0 %v1346
      %1818 = vmatprep.subr.bf16.mxu0 %v1363
      %1819 = vmatpush1.bf16.msra.mxu0 %v1362
      %1820 = vmatprep.subr.bf16.mxu0 %v1379
      %1821 = vmatpush1.bf16.msra.mxu0 %v1378
      %1822 = vmatprep.subr.bf16.mxu0 %v1395
      %1823 = vmatpush1.bf16.msra.mxu0 %v1394
      %1824 = vmatprep.subr.bf16.mxu0 %v1411
      %1825 = vmatpush1.bf16.msra.mxu0 %v1410
      %1826 = vmatprep.subr.bf16.mxu0 %v1427
      %1827 = vmatpush1.bf16.msra.mxu0 %v1426
      %1828 = vmatprep.subr.bf16.mxu0 %v1443
      %1829 = vmatpush1.bf16.msra.mxu0 %v1442
      %1830 = vmatprep.subr.bf16.mxu0 %v1459
      %1831 = vmatpush1.bf16.msra.mxu0 %v1458
      %1832 = vmatprep.subr.bf16.mxu0 %v1475
      %1833 = vmatpush1.bf16.msra.mxu0 %v1474
      %1834 = vmatprep.subr.bf16.mxu0 %v1491
      %1835 = vmatpush1.bf16.msra.mxu0 %v1490
      %1836 = vmatprep.subr.bf16.mxu0 %v1507
      %1837 = vmatpush1.bf16.msra.mxu0 %v1506
      %1838 = vmatprep.subr.bf16.mxu0 %v1523
      %1839 = vmatpush1.bf16.msra.mxu0 %v1522
      %1840 = vmatprep.subr.bf16.mxu0 %v1539
      %1841 = vmatpush1.bf16.msra.mxu0 %v1538
      %1842 = vmatprep.mubr.bf16.mxu0 %v499
      %1843 = vmatmul.mubr.bf16.gmra.mrb[0].mxu0 %v498
      %v1844 = vpop.f32.mrb[0].mxu0
      %v1845 = vadd.f32 0.0, %v1844
      %v1846 = vpop.f32.mrb[0].mxu0
      %v1847 = vadd.f32 0.0, %v1846
      %v1848 = vpop.f32.mrb[0].mxu0
      %v1849 = vadd.f32 0.0, %v1848
      %v1850 = vpop.f32.mrb[0].mxu0
      %v1851 = vadd.f32 0.0, %v1850
      %1852 = vmatprep.mubr.bf16.mxu0 %v501
      %1853 = vmatmul.mubr.bf16.gmra.mrb[0].mxu0 %v500
      %v1854 = vpop.f32.mrb[0].mxu0
      %v1855 = vadd.f32 0.0, %v1854
      %v1856 = vpop.f32.mrb[0].mxu0
      %v1857 = vadd.f32 0.0, %v1856
      %v1858 = vpop.f32.mrb[0].mxu0
      %v1859 = vadd.f32 0.0, %v1858
      %v1860 = vpop.f32.mrb[0].mxu0
      %v1861 = vadd.f32 0.0, %v1860
      %1862 = vmatprep.mubr.bf16.mxu0 %v503
      %1863 = vmatmul.mubr.bf16.gmra.mrb[0].mxu0 %v502
      %v1864 = vpop.f32.mrb[0].mxu0
      %v1865 = vadd.f32 0.0, %v1864
      %v1866 = vpop.f32.mrb[0].mxu0
      %v1867 = vadd.f32 0.0, %v1866
      %v1868 = vpop.f32.mrb[0].mxu0
      %v1869 = vadd.f32 0.0, %v1868
      %v1870 = vpop.f32.mrb[0].mxu0
      %v1871 = vadd.f32 0.0, %v1870
      %1872 = vmatprep.mubr.bf16.mxu0 %v505
      %1873 = vmatmul.mubr.bf16.gmra.mrb[0].mxu0 %v504
      %v1874 = vpop.f32.mrb[0].mxu0
      %v1875 = vadd.f32 0.0, %v1874
      %v1876 = vpop.f32.mrb[0].mxu0
      %v1877 = vadd.f32 0.0, %v1876
      %v1878 = vpop.f32.mrb[0].mxu0
      %v1879 = vadd.f32 0.0, %v1878
      %v1880 = vpop.f32.mrb[0].mxu0
      %v1881 = vadd.f32 0.0, %v1880
      %1882 = vmatprep.mubr.bf16.mxu0 %v507
      %1883 = vmatmul.mubr.bf16.gmra.mrb[0].mxu0 %v506
      %v1884 = vpop.f32.mrb[0].mxu0
      %v1885 = vadd.f32 0.0, %v1884
      %v1886 = vpop.f32.mrb[0].mxu0
      %v1887 = vadd.f32 0.0, %v1886
      %v1888 = vpop.f32.mrb[0].mxu0
      %v1889 = vadd.f32 0.0, %v1888
      %v1890 = vpop.f32.mrb[0].mxu0
      %v1891 = vadd.f32 0.0, %v1890
      %1892 = vmatprep.mubr.bf16.mxu0 %v509
      %1893 = vmatmul.mubr.bf16.gmra.mrb[0].mxu0 %v508
      %v1894 = vpop.f32.mrb[0].mxu0
      %v1895 = vadd.f32 0.0, %v1894
      %v1896 = vpop.f32.mrb[0].mxu0
      %v1897 = vadd.f32 0.0, %v1896
      %v1898 = vpop.f32.mrb[0].mxu0
      %v1899 = vadd.f32 0.0, %v1898
      %v1900 = vpop.f32.mrb[0].mxu0
      %v1901 = vadd.f32 0.0, %v1900
      %1902 = vmatprep.mubr.bf16.mxu0 %v511
      %1903 = vmatmul.mubr.bf16.gmra.mrb[0].mxu0 %v510
      %v1904 = vpop.f32.mrb[0].mxu0
      %v1905 = vadd.f32 0.0, %v1904
      %v1906 = vpop.f32.mrb[0].mxu0
      %v1907 = vadd.f32 0.0, %v1906
      %v1908 = vpop.f32.mrb[0].mxu0
      %v1909 = vadd.f32 0.0, %v1908
      %v1910 = vpop.f32.mrb[0].mxu0
      %v1911 = vadd.f32 0.0, %v1910
      %1912 = vmatprep.mubr.bf16.mxu0 %v513
      %1913 = vmatmul.mubr.bf16.gmra.mrb[0].mxu0 %v512
      %v1914 = vpop.f32.mrb[0].mxu0
      %v1915 = vadd.f32 0.0, %v1914
      %v1916 = vpop.f32.mrb[0].mxu0
      %v1917 = vadd.f32 0.0, %v1916
      %v1918 = vpop.f32.mrb[0].mxu0
      %v1919 = vadd.f32 0.0, %v1918
      %v1920 = vpop.f32.mrb[0].mxu0
      %v1921 = vadd.f32 0.0, %v1920
      %1922 = vdwg.mxu0
      %1923 = vmatprep.subr.bf16.mxu0 %v1301
      %1924 = vmatpush1.bf16.msra.mxu0 %v1300
      %1925 = vmatprep.subr.bf16.mxu0 %v1317
      %1926 = vmatpush1.bf16.msra.mxu0 %v1316
      %1927 = vmatprep.subr.bf16.mxu0 %v1333
      %1928 = vmatpush1.bf16.msra.mxu0 %v1332
      %1929 = vmatprep.subr.bf16.mxu0 %v1349
      %1930 = vmatpush1.bf16.msra.mxu0 %v1348
      %1931 = vmatprep.subr.bf16.mxu0 %v1365
      %1932 = vmatpush1.bf16.msra.mxu0 %v1364
      %1933 = vmatprep.subr.bf16.mxu0 %v1381
      %1934 = vmatpush1.bf16.msra.mxu0 %v1380
      %1935 = vmatprep.subr.bf16.mxu0 %v1397
      %1936 = vmatpush1.bf16.msra.mxu0 %v1396
      %1937 = vmatprep.subr.bf16.mxu0 %v1413
      %1938 = vmatpush1.bf16.msra.mxu0 %v1412
      %1939 = vmatprep.subr.bf16.mxu0 %v1429
      %1940 = vmatpush1.bf16.msra.mxu0 %v1428
      %1941 = vmatprep.subr.bf16.mxu0 %v1445
      %1942 = vmatpush1.bf16.msra.mxu0 %v1444
      %1943 = vmatprep.subr.bf16.mxu0 %v1461
      %1944 = vmatpush1.bf16.msra.mxu0 %v1460
      %1945 = vmatprep.subr.bf16.mxu0 %v1477
      %1946 = vmatpush1.bf16.msra.mxu0 %v1476
      %1947 = vmatprep.subr.bf16.mxu0 %v1493
      %1948 = vmatpush1.bf16.msra.mxu0 %v1492
      %1949 = vmatprep.subr.bf16.mxu0 %v1509
      %1950 = vmatpush1.bf16.msra.mxu0 %v1508
      %1951 = vmatprep.subr.bf16.mxu0 %v1525
      %1952 = vmatpush1.bf16.msra.mxu0 %v1524
      %1953 = vmatprep.subr.bf16.mxu0 %v1541
      %1954 = vmatpush1.bf16.msra.mxu0 %v1540
      %1955 = vmatprep.mubr.bf16.mxu0 %v499
      %1956 = vmatmul.mubr.bf16.gmra.mrb[0].mxu0 %v498
      %v1957 = vpop.f32.mrb[0].mxu0
      %v1958 = vadd.f32 0.0, %v1957
      %v1959 = vpop.f32.mrb[0].mxu0
      %v1960 = vadd.f32 0.0, %v1959
      %v1961 = vpop.f32.mrb[0].mxu0
      %v1962 = vadd.f32 0.0, %v1961
      %v1963 = vpop.f32.mrb[0].mxu0
      %v1964 = vadd.f32 0.0, %v1963
      %1965 = vmatprep.mubr.bf16.mxu0 %v501
      %1966 = vmatmul.mubr.bf16.gmra.mrb[0].mxu0 %v500
      %v1967 = vpop.f32.mrb[0].mxu0
      %v1968 = vadd.f32 0.0, %v1967
      %v1969 = vpop.f32.mrb[0].mxu0
      %v1970 = vadd.f32 0.0, %v1969
      %v1971 = vpop.f32.mrb[0].mxu0
      %v1972 = vadd.f32 0.0, %v1971
      %v1973 = vpop.f32.mrb[0].mxu0
      %v1974 = vadd.f32 0.0, %v1973
      %1975 = vmatprep.mubr.bf16.mxu0 %v503
      %1976 = vmatmul.mubr.bf16.gmra.mrb[0].mxu0 %v502
      %v1977 = vpop.f32.mrb[0].mxu0
      %v1978 = vadd.f32 0.0, %v1977
      %v1979 = vpop.f32.mrb[0].mxu0
      %v1980 = vadd.f32 0.0, %v1979
      %v1981 = vpop.f32.mrb[0].mxu0
      %v1982 = vadd.f32 0.0, %v1981
      %v1983 = vpop.f32.mrb[0].mxu0
      %v1984 = vadd.f32 0.0, %v1983
      %1985 = vmatprep.mubr.bf16.mxu0 %v505
      %1986 = vmatmul.mubr.bf16.gmra.mrb[0].mxu0 %v504
      %v1987 = vpop.f32.mrb[0].mxu0
      %v1988 = vadd.f32 0.0, %v1987
      %v1989 = vpop.f32.mrb[0].mxu0
      %v1990 = vadd.f32 0.0, %v1989
      %v1991 = vpop.f32.mrb[0].mxu0
      %v1992 = vadd.f32 0.0, %v1991
      %v1993 = vpop.f32.mrb[0].mxu0
      %v1994 = vadd.f32 0.0, %v1993
      %1995 = vmatprep.mubr.bf16.mxu0 %v507
      %1996 = vmatmul.mubr.bf16.gmra.mrb[0].mxu0 %v506
      %v1997 = vpop.f32.mrb[0].mxu0
      %v1998 = vadd.f32 0.0, %v1997
      %v1999 = vpop.f32.mrb[0].mxu0
      %v2000 = vadd.f32 0.0, %v1999
      %v2001 = vpop.f32.mrb[0].mxu0
      %v2002 = vadd.f32 0.0, %v2001
      %v2003 = vpop.f32.mrb[0].mxu0
      %v2004 = vadd.f32 0.0, %v2003
      %2005 = vmatprep.mubr.bf16.mxu0 %v509
      %2006 = vmatmul.mubr.bf16.gmra.mrb[0].mxu0 %v508
      %v2007 = vpop.f32.mrb[0].mxu0
      %v2008 = vadd.f32 0.0, %v2007
      %v2009 = vpop.f32.mrb[0].mxu0
      %v2010 = vadd.f32 0.0, %v2009
      %v2011 = vpop.f32.mrb[0].mxu0
      %v2012 = vadd.f32 0.0, %v2011
      %v2013 = vpop.f32.mrb[0].mxu0
      %v2014 = vadd.f32 0.0, %v2013
      %2015 = vmatprep.mubr.bf16.mxu0 %v511
      %2016 = vmatmul.mubr.bf16.gmra.mrb[0].mxu0 %v510
      %v2017 = vpop.f32.mrb[0].mxu0
      %v2018 = vadd.f32 0.0, %v2017
      %v2019 = vpop.f32.mrb[0].mxu0
      %v2020 = vadd.f32 0.0, %v2019
      %v2021 = vpop.f32.mrb[0].mxu0
      %v2022 = vadd.f32 0.0, %v2021
      %v2023 = vpop.f32.mrb[0].mxu0
      %v2024 = vadd.f32 0.0, %v2023
      %2025 = vmatprep.mubr.bf16.mxu0 %v513
      %2026 = vmatmul.mubr.bf16.gmra.mrb[0].mxu0 %v512
      %v2027 = vpop.f32.mrb[0].mxu0
      %v2028 = vadd.f32 0.0, %v2027
      %v2029 = vpop.f32.mrb[0].mxu0
      %v2030 = vadd.f32 0.0, %v2029
      %v2031 = vpop.f32.mrb[0].mxu0
      %v2032 = vadd.f32 0.0, %v2031
      %v2033 = vpop.f32.mrb[0].mxu0
      %v2034 = vadd.f32 0.0, %v2033
      %2035 = vdwg.mxu0
      %2036 = vmatprep.subr.bf16.mxu0 %v1303
      %2037 = vmatpush1.bf16.msra.mxu0 %v1302
      %2038 = vmatprep.subr.bf16.mxu0 %v1319
      %2039 = vmatpush1.bf16.msra.mxu0 %v1318
      %2040 = vmatprep.subr.bf16.mxu0 %v1335
      %2041 = vmatpush1.bf16.msra.mxu0 %v1334
      %2042 = vmatprep.subr.bf16.mxu0 %v1351
      %2043 = vmatpush1.bf16.msra.mxu0 %v1350
      %2044 = vmatprep.subr.bf16.mxu0 %v1367
      %2045 = vmatpush1.bf16.msra.mxu0 %v1366
      %2046 = vmatprep.subr.bf16.mxu0 %v1383
      %2047 = vmatpush1.bf16.msra.mxu0 %v1382
      %2048 = vmatprep.subr.bf16.mxu0 %v1399
      %2049 = vmatpush1.bf16.msra.mxu0 %v1398
      %2050 = vmatprep.subr.bf16.mxu0 %v1415
      %2051 = vmatpush1.bf16.msra.mxu0 %v1414
      %2052 = vmatprep.subr.bf16.mxu0 %v1431
      %2053 = vmatpush1.bf16.msra.mxu0 %v1430
      %2054 = vmatprep.subr.bf16.mxu0 %v1447
      %2055 = vmatpush1.bf16.msra.mxu0 %v1446
      %2056 = vmatprep.subr.bf16.mxu0 %v1463
      %2057 = vmatpush1.bf16.msra.mxu0 %v1462
      %2058 = vmatprep.subr.bf16.mxu0 %v1479
      %2059 = vmatpush1.bf16.msra.mxu0 %v1478
      %2060 = vmatprep.subr.bf16.mxu0 %v1495
      %2061 = vmatpush1.bf16.msra.mxu0 %v1494
      %2062 = vmatprep.subr.bf16.mxu0 %v1511
      %2063 = vmatpush1.bf16.msra.mxu0 %v1510
      %2064 = vmatprep.subr.bf16.mxu0 %v1527
      %2065 = vmatpush1.bf16.msra.mxu0 %v1526
      %2066 = vmatprep.subr.bf16.mxu0 %v1543
      %2067 = vmatpush1.bf16.msra.mxu0 %v1542
      %2068 = vmatprep.mubr.bf16.mxu0 %v499
      %2069 = vmatmul.mubr.bf16.gmra.mrb[0].mxu0 %v498
      %v2070 = vpop.f32.mrb[0].mxu0
      %v2071 = vadd.f32 0.0, %v2070
      %v2072 = vpop.f32.mrb[0].mxu0
      %v2073 = vadd.f32 0.0, %v2072
      %v2074 = vpop.f32.mrb[0].mxu0
      %v2075 = vadd.f32 0.0, %v2074
      %v2076 = vpop.f32.mrb[0].mxu0
      %v2077 = vadd.f32 0.0, %v2076
      %2078 = vmatprep.mubr.bf16.mxu0 %v501
      %2079 = vmatmul.mubr.bf16.gmra.mrb[0].mxu0 %v500
      %v2080 = vpop.f32.mrb[0].mxu0
      %v2081 = vadd.f32 0.0, %v2080
      %v2082 = vpop.f32.mrb[0].mxu0
      %v2083 = vadd.f32 0.0, %v2082
      %v2084 = vpop.f32.mrb[0].mxu0
      %v2085 = vadd.f32 0.0, %v2084
      %v2086 = vpop.f32.mrb[0].mxu0
      %v2087 = vadd.f32 0.0, %v2086
      %2088 = vmatprep.mubr.bf16.mxu0 %v503
      %2089 = vmatmul.mubr.bf16.gmra.mrb[0].mxu0 %v502
      %v2090 = vpop.f32.mrb[0].mxu0
      %v2091 = vadd.f32 0.0, %v2090
      %v2092 = vpop.f32.mrb[0].mxu0
      %v2093 = vadd.f32 0.0, %v2092
      %v2094 = vpop.f32.mrb[0].mxu0
      %v2095 = vadd.f32 0.0, %v2094
      %v2096 = vpop.f32.mrb[0].mxu0
      %v2097 = vadd.f32 0.0, %v2096
      %2098 = vmatprep.mubr.bf16.mxu0 %v505
      %2099 = vmatmul.mubr.bf16.gmra.mrb[0].mxu0 %v504
      %v2100 = vpop.f32.mrb[0].mxu0
      %v2101 = vadd.f32 0.0, %v2100
      %v2102 = vpop.f32.mrb[0].mxu0
      %v2103 = vadd.f32 0.0, %v2102
      %v2104 = vpop.f32.mrb[0].mxu0
      %v2105 = vadd.f32 0.0, %v2104
      %v2106 = vpop.f32.mrb[0].mxu0
      %v2107 = vadd.f32 0.0, %v2106
      %2108 = vmatprep.mubr.bf16.mxu0 %v507
      %2109 = vmatmul.mubr.bf16.gmra.mrb[0].mxu0 %v506
      %v2110 = vpop.f32.mrb[0].mxu0
      %v2111 = vadd.f32 0.0, %v2110
      %v2112 = vpop.f32.mrb[0].mxu0
      %v2113 = vadd.f32 0.0, %v2112
      %v2114 = vpop.f32.mrb[0].mxu0
      %v2115 = vadd.f32 0.0, %v2114
      %v2116 = vpop.f32.mrb[0].mxu0
      %v2117 = vadd.f32 0.0, %v2116
      %2118 = vmatprep.mubr.bf16.mxu0 %v509
      %2119 = vmatmul.mubr.bf16.gmra.mrb[0].mxu0 %v508
      %v2120 = vpop.f32.mrb[0].mxu0
      %v2121 = vadd.f32 0.0, %v2120
      %v2122 = vpop.f32.mrb[0].mxu0
      %v2123 = vadd.f32 0.0, %v2122
      %v2124 = vpop.f32.mrb[0].mxu0
      %v2125 = vadd.f32 0.0, %v2124
      %v2126 = vpop.f32.mrb[0].mxu0
      %v2127 = vadd.f32 0.0, %v2126
      %2128 = vmatprep.mubr.bf16.mxu0 %v511
      %2129 = vmatmul.mubr.bf16.gmra.mrb[0].mxu0 %v510
      %v2130 = vpop.f32.mrb[0].mxu0
      %v2131 = vadd.f32 0.0, %v2130
      %v2132 = vpop.f32.mrb[0].mxu0
      %v2133 = vadd.f32 0.0, %v2132
      %v2134 = vpop.f32.mrb[0].mxu0
      %v2135 = vadd.f32 0.0, %v2134
      %v2136 = vpop.f32.mrb[0].mxu0
      %v2137 = vadd.f32 0.0, %v2136
      %2138 = vmatprep.mubr.bf16.mxu0 %v513
      %2139 = vmatmul.mubr.bf16.gmra.mrb[0].mxu0 %v512
      %v2140 = vpop.f32.mrb[0].mxu0
      %v2141 = vadd.f32 0.0, %v2140
      %v2142 = vpop.f32.mrb[0].mxu0
      %v2143 = vadd.f32 0.0, %v2142
      %v2144 = vpop.f32.mrb[0].mxu0
      %v2145 = vadd.f32 0.0, %v2144
      %v2146 = vpop.f32.mrb[0].mxu0
      %v2147 = vadd.f32 0.0, %v2146
      %2148 = vdwg.mxu0
      %2149 = vmatprep.subr.bf16.mxu0 %v1305
      %2150 = vmatpush1.bf16.msra.mxu0 %v1304
      %2151 = vmatprep.subr.bf16.mxu0 %v1321
      %2152 = vmatpush1.bf16.msra.mxu0 %v1320
      %2153 = vmatprep.subr.bf16.mxu0 %v1337
      %2154 = vmatpush1.bf16.msra.mxu0 %v1336
      %2155 = vmatprep.subr.bf16.mxu0 %v1353
      %2156 = vmatpush1.bf16.msra.mxu0 %v1352
      %2157 = vmatprep.subr.bf16.mxu0 %v1369
      %2158 = vmatpush1.bf16.msra.mxu0 %v1368
      %2159 = vmatprep.subr.bf16.mxu0 %v1385
      %2160 = vmatpush1.bf16.msra.mxu0 %v1384
      %2161 = vmatprep.subr.bf16.mxu0 %v1401
      %2162 = vmatpush1.bf16.msra.mxu0 %v1400
      %2163 = vmatprep.subr.bf16.mxu0 %v1417
      %2164 = vmatpush1.bf16.msra.mxu0 %v1416
      %2165 = vmatprep.subr.bf16.mxu0 %v1433
      %2166 = vmatpush1.bf16.msra.mxu0 %v1432
      %2167 = vmatprep.subr.bf16.mxu0 %v1449
      %2168 = vmatpush1.bf16.msra.mxu0 %v1448
      %2169 = vmatprep.subr.bf16.mxu0 %v1465
      %2170 = vmatpush1.bf16.msra.mxu0 %v1464
      %2171 = vmatprep.subr.bf16.mxu0 %v1481
      %2172 = vmatpush1.bf16.msra.mxu0 %v1480
      %2173 = vmatprep.subr.bf16.mxu0 %v1497
      %2174 = vmatpush1.bf16.msra.mxu0 %v1496
      %2175 = vmatprep.subr.bf16.mxu0 %v1513
      %2176 = vmatpush1.bf16.msra.mxu0 %v1512
      %2177 = vmatprep.subr.bf16.mxu0 %v1529
      %2178 = vmatpush1.bf16.msra.mxu0 %v1528
      %2179 = vmatprep.subr.bf16.mxu0 %v1545
      %2180 = vmatpush1.bf16.msra.mxu0 %v1544
      %2181 = vmatprep.mubr.bf16.mxu0 %v499
      %2182 = vmatmul.mubr.bf16.gmra.mrb[0].mxu0 %v498
      %v2183 = vpop.f32.mrb[0].mxu0
      %v2184 = vadd.f32 0.0, %v2183
      %v2185 = vpop.f32.mrb[0].mxu0
      %v2186 = vadd.f32 0.0, %v2185
      %v2187 = vpop.f32.mrb[0].mxu0
      %v2188 = vadd.f32 0.0, %v2187
      %v2189 = vpop.f32.mrb[0].mxu0
      %v2190 = vadd.f32 0.0, %v2189
      %2191 = vmatprep.mubr.bf16.mxu0 %v501
      %2192 = vmatmul.mubr.bf16.gmra.mrb[0].mxu0 %v500
      %v2193 = vpop.f32.mrb[0].mxu0
      %v2194 = vadd.f32 0.0, %v2193
      %v2195 = vpop.f32.mrb[0].mxu0
      %v2196 = vadd.f32 0.0, %v2195
      %v2197 = vpop.f32.mrb[0].mxu0
      %v2198 = vadd.f32 0.0, %v2197
      %v2199 = vpop.f32.mrb[0].mxu0
      %v2200 = vadd.f32 0.0, %v2199
      %2201 = vmatprep.mubr.bf16.mxu0 %v503
      %2202 = vmatmul.mubr.bf16.gmra.mrb[0].mxu0 %v502
      %v2203 = vpop.f32.mrb[0].mxu0
      %v2204 = vadd.f32 0.0, %v2203
      %v2205 = vpop.f32.mrb[0].mxu0
      %v2206 = vadd.f32 0.0, %v2205
      %v2207 = vpop.f32.mrb[0].mxu0
      %v2208 = vadd.f32 0.0, %v2207
      %v2209 = vpop.f32.mrb[0].mxu0
      %v2210 = vadd.f32 0.0, %v2209
      %2211 = vmatprep.mubr.bf16.mxu0 %v505
      %2212 = vmatmul.mubr.bf16.gmra.mrb[0].mxu0 %v504
      %v2213 = vpop.f32.mrb[0].mxu0
      %v2214 = vadd.f32 0.0, %v2213
      %v2215 = vpop.f32.mrb[0].mxu0
      %v2216 = vadd.f32 0.0, %v2215
      %v2217 = vpop.f32.mrb[0].mxu0
      %v2218 = vadd.f32 0.0, %v2217
      %v2219 = vpop.f32.mrb[0].mxu0
      %v2220 = vadd.f32 0.0, %v2219
      %2221 = vmatprep.mubr.bf16.mxu0 %v507
      %2222 = vmatmul.mubr.bf16.gmra.mrb[0].mxu0 %v506
      %v2223 = vpop.f32.mrb[0].mxu0
      %v2224 = vadd.f32 0.0, %v2223
      %v2225 = vpop.f32.mrb[0].mxu0
      %v2226 = vadd.f32 0.0, %v2225
      %v2227 = vpop.f32.mrb[0].mxu0
      %v2228 = vadd.f32 0.0, %v2227
      %v2229 = vpop.f32.mrb[0].mxu0
      %v2230 = vadd.f32 0.0, %v2229
      %2231 = vmatprep.mubr.bf16.mxu0 %v509
      %2232 = vmatmul.mubr.bf16.gmra.mrb[0].mxu0 %v508
      %v2233 = vpop.f32.mrb[0].mxu0
      %v2234 = vadd.f32 0.0, %v2233
      %v2235 = vpop.f32.mrb[0].mxu0
      %v2236 = vadd.f32 0.0, %v2235
      %v2237 = vpop.f32.mrb[0].mxu0
      %v2238 = vadd.f32 0.0, %v2237
      %v2239 = vpop.f32.mrb[0].mxu0
      %v2240 = vadd.f32 0.0, %v2239
      %2241 = vmatprep.mubr.bf16.mxu0 %v511
      %2242 = vmatmul.mubr.bf16.gmra.mrb[0].mxu0 %v510
      %v2243 = vpop.f32.mrb[0].mxu0
      %v2244 = vadd.f32 0.0, %v2243
      %v2245 = vpop.f32.mrb[0].mxu0
      %v2246 = vadd.f32 0.0, %v2245
      %v2247 = vpop.f32.mrb[0].mxu0
      %v2248 = vadd.f32 0.0, %v2247
      %v2249 = vpop.f32.mrb[0].mxu0
      %v2250 = vadd.f32 0.0, %v2249
      %2251 = vmatprep.mubr.bf16.mxu0 %v513
      %2252 = vmatmul.mubr.bf16.gmra.mrb[0].mxu0 %v512
      %v2253 = vpop.f32.mrb[0].mxu0
      %v2254 = vadd.f32 0.0, %v2253
      %v2255 = vpop.f32.mrb[0].mxu0
      %v2256 = vadd.f32 0.0, %v2255
      %v2257 = vpop.f32.mrb[0].mxu0
      %v2258 = vadd.f32 0.0, %v2257
      %v2259 = vpop.f32.mrb[0].mxu0
      %v2260 = vadd.f32 0.0, %v2259
      %2261 = vdwg.mxu0
      %2262 = vmatprep.subr.bf16.mxu0 %v1307
      %2263 = vmatpush1.bf16.msra.mxu0 %v1306
      %2264 = vmatprep.subr.bf16.mxu0 %v1323
      %2265 = vmatpush1.bf16.msra.mxu0 %v1322
      %2266 = vmatprep.subr.bf16.mxu0 %v1339
      %2267 = vmatpush1.bf16.msra.mxu0 %v1338
      %2268 = vmatprep.subr.bf16.mxu0 %v1355
      %2269 = vmatpush1.bf16.msra.mxu0 %v1354
      %2270 = vmatprep.subr.bf16.mxu0 %v1371
      %2271 = vmatpush1.bf16.msra.mxu0 %v1370
      %2272 = vmatprep.subr.bf16.mxu0 %v1387
      %2273 = vmatpush1.bf16.msra.mxu0 %v1386
      %2274 = vmatprep.subr.bf16.mxu0 %v1403
      %2275 = vmatpush1.bf16.msra.mxu0 %v1402
      %2276 = vmatprep.subr.bf16.mxu0 %v1419
      %2277 = vmatpush1.bf16.msra.mxu0 %v1418
      %2278 = vmatprep.subr.bf16.mxu0 %v1435
      %2279 = vmatpush1.bf16.msra.mxu0 %v1434
      %2280 = vmatprep.subr.bf16.mxu0 %v1451
      %2281 = vmatpush1.bf16.msra.mxu0 %v1450
      %2282 = vmatprep.subr.bf16.mxu0 %v1467
      %2283 = vmatpush1.bf16.msra.mxu0 %v1466
      %2284 = vmatprep.subr.bf16.mxu0 %v1483
      %2285 = vmatpush1.bf16.msra.mxu0 %v1482
      %2286 = vmatprep.subr.bf16.mxu0 %v1499
      %2287 = vmatpush1.bf16.msra.mxu0 %v1498
      %2288 = vmatprep.subr.bf16.mxu0 %v1515
      %2289 = vmatpush1.bf16.msra.mxu0 %v1514
      %2290 = vmatprep.subr.bf16.mxu0 %v1531
      %2291 = vmatpush1.bf16.msra.mxu0 %v1530
      %2292 = vmatprep.subr.bf16.mxu0 %v1547
      %2293 = vmatpush1.bf16.msra.mxu0 %v1546
      %2294 = vmatprep.mubr.bf16.mxu0 %v499
      %2295 = vmatmul.mubr.bf16.gmra.mrb[0].mxu0 %v498
      %v2296 = vpop.f32.mrb[0].mxu0
      %v2297 = vadd.f32 0.0, %v2296
      %v2298 = vpop.f32.mrb[0].mxu0
      %v2299 = vadd.f32 0.0, %v2298
      %v2300 = vpop.f32.mrb[0].mxu0
      %v2301 = vadd.f32 0.0, %v2300
      %v2302 = vpop.f32.mrb[0].mxu0
      %v2303 = vadd.f32 0.0, %v2302
      %2304 = vmatprep.mubr.bf16.mxu0 %v501
      %2305 = vmatmul.mubr.bf16.gmra.mrb[0].mxu0 %v500
      %v2306 = vpop.f32.mrb[0].mxu0
      %v2307 = vadd.f32 0.0, %v2306
      %v2308 = vpop.f32.mrb[0].mxu0
      %v2309 = vadd.f32 0.0, %v2308
      %v2310 = vpop.f32.mrb[0].mxu0
      %v2311 = vadd.f32 0.0, %v2310
      %v2312 = vpop.f32.mrb[0].mxu0
      %v2313 = vadd.f32 0.0, %v2312
      %2314 = vmatprep.mubr.bf16.mxu0 %v503
      %2315 = vmatmul.mubr.bf16.gmra.mrb[0].mxu0 %v502
      %v2316 = vpop.f32.mrb[0].mxu0
      %v2317 = vadd.f32 0.0, %v2316
      %v2318 = vpop.f32.mrb[0].mxu0
      %v2319 = vadd.f32 0.0, %v2318
      %v2320 = vpop.f32.mrb[0].mxu0
      %v2321 = vadd.f32 0.0, %v2320
      %v2322 = vpop.f32.mrb[0].mxu0
      %v2323 = vadd.f32 0.0, %v2322
      %2324 = vmatprep.mubr.bf16.mxu0 %v505
      %2325 = vmatmul.mubr.bf16.gmra.mrb[0].mxu0 %v504
      %v2326 = vpop.f32.mrb[0].mxu0
      %v2327 = vadd.f32 0.0, %v2326
      %v2328 = vpop.f32.mrb[0].mxu0
      %v2329 = vadd.f32 0.0, %v2328
      %v2330 = vpop.f32.mrb[0].mxu0
      %v2331 = vadd.f32 0.0, %v2330
      %v2332 = vpop.f32.mrb[0].mxu0
      %v2333 = vadd.f32 0.0, %v2332
      %2334 = vmatprep.mubr.bf16.mxu0 %v507
      %2335 = vmatmul.mubr.bf16.gmra.mrb[0].mxu0 %v506
      %v2336 = vpop.f32.mrb[0].mxu0
      %v2337 = vadd.f32 0.0, %v2336
      %v2338 = vpop.f32.mrb[0].mxu0
      %v2339 = vadd.f32 0.0, %v2338
      %v2340 = vpop.f32.mrb[0].mxu0
      %v2341 = vadd.f32 0.0, %v2340
      %v2342 = vpop.f32.mrb[0].mxu0
      %v2343 = vadd.f32 0.0, %v2342
      %2344 = vmatprep.mubr.bf16.mxu0 %v509
      %2345 = vmatmul.mubr.bf16.gmra.mrb[0].mxu0 %v508
      %v2346 = vpop.f32.mrb[0].mxu0
      %v2347 = vadd.f32 0.0, %v2346
      %v2348 = vpop.f32.mrb[0].mxu0
      %v2349 = vadd.f32 0.0, %v2348
      %v2350 = vpop.f32.mrb[0].mxu0
      %v2351 = vadd.f32 0.0, %v2350
      %v2352 = vpop.f32.mrb[0].mxu0
      %v2353 = vadd.f32 0.0, %v2352
      %2354 = vmatprep.mubr.bf16.mxu0 %v511
      %2355 = vmatmul.mubr.bf16.gmra.mrb[0].mxu0 %v510
      %v2356 = vpop.f32.mrb[0].mxu0
      %v2357 = vadd.f32 0.0, %v2356
      %v2358 = vpop.f32.mrb[0].mxu0
      %v2359 = vadd.f32 0.0, %v2358
      %v2360 = vpop.f32.mrb[0].mxu0
      %v2361 = vadd.f32 0.0, %v2360
      %v2362 = vpop.f32.mrb[0].mxu0
      %v2363 = vadd.f32 0.0, %v2362
      %2364 = vmatprep.mubr.bf16.mxu0 %v513
      %2365 = vmatmul.mubr.bf16.gmra.mrb[0].mxu0 %v512
      %v2366 = vpop.f32.mrb[0].mxu0
      %v2367 = vadd.f32 0.0, %v2366
      %v2368 = vpop.f32.mrb[0].mxu0
      %v2369 = vadd.f32 0.0, %v2368
      %v2370 = vpop.f32.mrb[0].mxu0
      %v2371 = vadd.f32 0.0, %v2370
      %v2372 = vpop.f32.mrb[0].mxu0
      %v2373 = vadd.f32 0.0, %v2372
      %2374 = vdwg.mxu0
      %2375 = vmatprep.subr.bf16.mxu0 %v1309
      %2376 = vmatpush1.bf16.msra.mxu0 %v1308
      %2377 = vmatprep.subr.bf16.mxu0 %v1325
      %2378 = vmatpush1.bf16.msra.mxu0 %v1324
      %2379 = vmatprep.subr.bf16.mxu0 %v1341
      %2380 = vmatpush1.bf16.msra.mxu0 %v1340
      %2381 = vmatprep.subr.bf16.mxu0 %v1357
      %2382 = vmatpush1.bf16.msra.mxu0 %v1356
      %2383 = vmatprep.subr.bf16.mxu0 %v1373
      %2384 = vmatpush1.bf16.msra.mxu0 %v1372
      %2385 = vmatprep.subr.bf16.mxu0 %v1389
      %2386 = vmatpush1.bf16.msra.mxu0 %v1388
      %2387 = vmatprep.subr.bf16.mxu0 %v1405
      %2388 = vmatpush1.bf16.msra.mxu0 %v1404
      %2389 = vmatprep.subr.bf16.mxu0 %v1421
      %2390 = vmatpush1.bf16.msra.mxu0 %v1420
      %2391 = vmatprep.subr.bf16.mxu0 %v1437
      %2392 = vmatpush1.bf16.msra.mxu0 %v1436
      %2393 = vmatprep.subr.bf16.mxu0 %v1453
      %2394 = vmatpush1.bf16.msra.mxu0 %v1452
      %2395 = vmatprep.subr.bf16.mxu0 %v1469
      %2396 = vmatpush1.bf16.msra.mxu0 %v1468
      %2397 = vmatprep.subr.bf16.mxu0 %v1485
      %2398 = vmatpush1.bf16.msra.mxu0 %v1484
      %2399 = vmatprep.subr.bf16.mxu0 %v1501
      %2400 = vmatpush1.bf16.msra.mxu0 %v1500
      %2401 = vmatprep.subr.bf16.mxu0 %v1517
      %2402 = vmatpush1.bf16.msra.mxu0 %v1516
      %2403 = vmatprep.subr.bf16.mxu0 %v1533
      %2404 = vmatpush1.bf16.msra.mxu0 %v1532
      %2405 = vmatprep.subr.bf16.mxu0 %v1549
      %2406 = vmatpush1.bf16.msra.mxu0 %v1548
      %2407 = vmatprep.mubr.bf16.mxu0 %v499
      %2408 = vmatmul.mubr.bf16.gmra.mrb[0].mxu0 %v498
      %v2409 = vpop.f32.mrb[0].mxu0
      %v2410 = vadd.f32 0.0, %v2409
      %v2411 = vpop.f32.mrb[0].mxu0
      %v2412 = vadd.f32 0.0, %v2411
      %v2413 = vpop.f32.mrb[0].mxu0
      %v2414 = vadd.f32 0.0, %v2413
      %v2415 = vpop.f32.mrb[0].mxu0
      %v2416 = vadd.f32 0.0, %v2415
      %2417 = vmatprep.mubr.bf16.mxu0 %v501
      %2418 = vmatmul.mubr.bf16.gmra.mrb[0].mxu0 %v500
      %v2419 = vpop.f32.mrb[0].mxu0
      %v2420 = vadd.f32 0.0, %v2419
      %v2421 = vpop.f32.mrb[0].mxu0
      %v2422 = vadd.f32 0.0, %v2421
      %v2423 = vpop.f32.mrb[0].mxu0
      %v2424 = vadd.f32 0.0, %v2423
      %v2425 = vpop.f32.mrb[0].mxu0
      %v2426 = vadd.f32 0.0, %v2425
      %2427 = vmatprep.mubr.bf16.mxu0 %v503
      %2428 = vmatmul.mubr.bf16.gmra.mrb[0].mxu0 %v502
      %v2429 = vpop.f32.mrb[0].mxu0
      %v2430 = vadd.f32 0.0, %v2429
      %v2431 = vpop.f32.mrb[0].mxu0
      %v2432 = vadd.f32 0.0, %v2431
      %v2433 = vpop.f32.mrb[0].mxu0
      %v2434 = vadd.f32 0.0, %v2433
      %v2435 = vpop.f32.mrb[0].mxu0
      %v2436 = vadd.f32 0.0, %v2435
      %2437 = vmatprep.mubr.bf16.mxu0 %v505
      %2438 = vmatmul.mubr.bf16.gmra.mrb[0].mxu0 %v504
      %v2439 = vpop.f32.mrb[0].mxu0
      %v2440 = vadd.f32 0.0, %v2439
      %v2441 = vpop.f32.mrb[0].mxu0
      %v2442 = vadd.f32 0.0, %v2441
      %v2443 = vpop.f32.mrb[0].mxu0
      %v2444 = vadd.f32 0.0, %v2443
      %v2445 = vpop.f32.mrb[0].mxu0
      %v2446 = vadd.f32 0.0, %v2445
      %2447 = vmatprep.mubr.bf16.mxu0 %v507
      %2448 = vmatmul.mubr.bf16.gmra.mrb[0].mxu0 %v506
      %v2449 = vpop.f32.mrb[0].mxu0
      %v2450 = vadd.f32 0.0, %v2449
      %v2451 = vpop.f32.mrb[0].mxu0
      %v2452 = vadd.f32 0.0, %v2451
      %v2453 = vpop.f32.mrb[0].mxu0
      %v2454 = vadd.f32 0.0, %v2453
      %v2455 = vpop.f32.mrb[0].mxu0
      %v2456 = vadd.f32 0.0, %v2455
      %2457 = vmatprep.mubr.bf16.mxu0 %v509
      %2458 = vmatmul.mubr.bf16.gmra.mrb[0].mxu0 %v508
      %v2459 = vpop.f32.mrb[0].mxu0
      %v2460 = vadd.f32 0.0, %v2459
      %v2461 = vpop.f32.mrb[0].mxu0
      %v2462 = vadd.f32 0.0, %v2461
      %v2463 = vpop.f32.mrb[0].mxu0
      %v2464 = vadd.f32 0.0, %v2463
      %v2465 = vpop.f32.mrb[0].mxu0
      %v2466 = vadd.f32 0.0, %v2465
      %2467 = vmatprep.mubr.bf16.mxu0 %v511
      %2468 = vmatmul.mubr.bf16.gmra.mrb[0].mxu0 %v510
      %v2469 = vpop.f32.mrb[0].mxu0
      %v2470 = vadd.f32 0.0, %v2469
      %v2471 = vpop.f32.mrb[0].mxu0
      %v2472 = vadd.f32 0.0, %v2471
      %v2473 = vpop.f32.mrb[0].mxu0
      %v2474 = vadd.f32 0.0, %v2473
      %v2475 = vpop.f32.mrb[0].mxu0
      %v2476 = vadd.f32 0.0, %v2475
      %2477 = vmatprep.mubr.bf16.mxu0 %v513
      %2478 = vmatmul.mubr.bf16.gmra.mrb[0].mxu0 %v512
      %v2479 = vpop.f32.mrb[0].mxu0
      %v2480 = vadd.f32 0.0, %v2479
      %v2481 = vpop.f32.mrb[0].mxu0
      %v2482 = vadd.f32 0.0, %v2481
      %v2483 = vpop.f32.mrb[0].mxu0
      %v2484 = vadd.f32 0.0, %v2483
      %v2485 = vpop.f32.mrb[0].mxu0
      %v2486 = vadd.f32 0.0, %v2485
      %2487 = vdwg.mxu0
      %2488 = vmatprep.subr.bf16.mxu0 %v1311
      %2489 = vmatpush1.bf16.msra.mxu0 %v1310
      %2490 = vmatprep.subr.bf16.mxu0 %v1327
      %2491 = vmatpush1.bf16.msra.mxu0 %v1326
      %2492 = vmatprep.subr.bf16.mxu0 %v1343
      %2493 = vmatpush1.bf16.msra.mxu0 %v1342
      %2494 = vmatprep.subr.bf16.mxu0 %v1359
      %2495 = vmatpush1.bf16.msra.mxu0 %v1358
      %2496 = vmatprep.subr.bf16.mxu0 %v1375
      %2497 = vmatpush1.bf16.msra.mxu0 %v1374
      %2498 = vmatprep.subr.bf16.mxu0 %v1391
      %2499 = vmatpush1.bf16.msra.mxu0 %v1390
      %2500 = vmatprep.subr.bf16.mxu0 %v1407
      %2501 = vmatpush1.bf16.msra.mxu0 %v1406
      %2502 = vmatprep.subr.bf16.mxu0 %v1423
      %2503 = vmatpush1.bf16.msra.mxu0 %v1422
      %2504 = vmatprep.subr.bf16.mxu0 %v1439
      %2505 = vmatpush1.bf16.msra.mxu0 %v1438
      %2506 = vmatprep.subr.bf16.mxu0 %v1455
      %2507 = vmatpush1.bf16.msra.mxu0 %v1454
      %2508 = vmatprep.subr.bf16.mxu0 %v1471
      %2509 = vmatpush1.bf16.msra.mxu0 %v1470
      %2510 = vmatprep.subr.bf16.mxu0 %v1487
      %2511 = vmatpush1.bf16.msra.mxu0 %v1486
      %2512 = vmatprep.subr.bf16.mxu0 %v1503
      %2513 = vmatpush1.bf16.msra.mxu0 %v1502
      %2514 = vmatprep.subr.bf16.mxu0 %v1519
      %2515 = vmatpush1.bf16.msra.mxu0 %v1518
      %2516 = vmatprep.subr.bf16.mxu0 %v1535
      %2517 = vmatpush1.bf16.msra.mxu0 %v1534
      %2518 = vmatprep.subr.bf16.mxu0 %v1551
      %2519 = vmatpush1.bf16.msra.mxu0 %v1550
      %2520 = vmatprep.mubr.bf16.mxu0 %v499
      %2521 = vmatmul.mubr.bf16.gmra.mrb[0].mxu0 %v498
      %v2522 = vpop.f32.mrb[0].mxu0
      %v2523 = vadd.f32 0.0, %v2522
      %v2524 = vpop.f32.mrb[0].mxu0
      %v2525 = vadd.f32 0.0, %v2524
      %v2526 = vpop.f32.mrb[0].mxu0
      %v2527 = vadd.f32 0.0, %v2526
      %v2528 = vpop.f32.mrb[0].mxu0
      %v2529 = vadd.f32 0.0, %v2528
      %2530 = vmatprep.mubr.bf16.mxu0 %v501
      %2531 = vmatmul.mubr.bf16.gmra.mrb[0].mxu0 %v500
      %v2532 = vpop.f32.mrb[0].mxu0
      %v2533 = vadd.f32 0.0, %v2532
      %v2534 = vpop.f32.mrb[0].mxu0
      %v2535 = vadd.f32 0.0, %v2534
      %v2536 = vpop.f32.mrb[0].mxu0
      %v2537 = vadd.f32 0.0, %v2536
      %v2538 = vpop.f32.mrb[0].mxu0
      %v2539 = vadd.f32 0.0, %v2538
      %2540 = vmatprep.mubr.bf16.mxu0 %v503
      %2541 = vmatmul.mubr.bf16.gmra.mrb[0].mxu0 %v502
      %v2542 = vpop.f32.mrb[0].mxu0
      %v2543 = vadd.f32 0.0, %v2542
      %v2544 = vpop.f32.mrb[0].mxu0
      %v2545 = vadd.f32 0.0, %v2544
      %v2546 = vpop.f32.mrb[0].mxu0
      %v2547 = vadd.f32 0.0, %v2546
      %v2548 = vpop.f32.mrb[0].mxu0
      %v2549 = vadd.f32 0.0, %v2548
      %2550 = vmatprep.mubr.bf16.mxu0 %v505
      %2551 = vmatmul.mubr.bf16.gmra.mrb[0].mxu0 %v504
      %v2552 = vpop.f32.mrb[0].mxu0
      %v2553 = vadd.f32 0.0, %v2552
      %v2554 = vpop.f32.mrb[0].mxu0
      %v2555 = vadd.f32 0.0, %v2554
      %v2556 = vpop.f32.mrb[0].mxu0
      %v2557 = vadd.f32 0.0, %v2556
      %v2558 = vpop.f32.mrb[0].mxu0
      %v2559 = vadd.f32 0.0, %v2558
      %2560 = vmatprep.mubr.bf16.mxu0 %v507
      %2561 = vmatmul.mubr.bf16.gmra.mrb[0].mxu0 %v506
      %v2562 = vpop.f32.mrb[0].mxu0
      %v2563 = vadd.f32 0.0, %v2562
      %v2564 = vpop.f32.mrb[0].mxu0
      %v2565 = vadd.f32 0.0, %v2564
      %v2566 = vpop.f32.mrb[0].mxu0
      %v2567 = vadd.f32 0.0, %v2566
      %v2568 = vpop.f32.mrb[0].mxu0
      %v2569 = vadd.f32 0.0, %v2568
      %2570 = vmatprep.mubr.bf16.mxu0 %v509
      %2571 = vmatmul.mubr.bf16.gmra.mrb[0].mxu0 %v508
      %v2572 = vpop.f32.mrb[0].mxu0
      %v2573 = vadd.f32 0.0, %v2572
      %v2574 = vpop.f32.mrb[0].mxu0
      %v2575 = vadd.f32 0.0, %v2574
      %v2576 = vpop.f32.mrb[0].mxu0
      %v2577 = vadd.f32 0.0, %v2576
      %v2578 = vpop.f32.mrb[0].mxu0
      %v2579 = vadd.f32 0.0, %v2578
      %2580 = vmatprep.mubr.bf16.mxu0 %v511
      %2581 = vmatmul.mubr.bf16.gmra.mrb[0].mxu0 %v510
      %v2582 = vpop.f32.mrb[0].mxu0
      %v2583 = vadd.f32 0.0, %v2582
      %v2584 = vpop.f32.mrb[0].mxu0
      %v2585 = vadd.f32 0.0, %v2584
      %v2586 = vpop.f32.mrb[0].mxu0
      %v2587 = vadd.f32 0.0, %v2586
      %v2588 = vpop.f32.mrb[0].mxu0
      %v2589 = vadd.f32 0.0, %v2588
      %2590 = vmatprep.mubr.bf16.mxu0 %v513
      %2591 = vmatmul.mubr.bf16.gmra.mrb[0].mxu0 %v512
      %v2592 = vpop.f32.mrb[0].mxu0
      %v2593 = vadd.f32 0.0, %v2592
      %v2594 = vpop.f32.mrb[0].mxu0
      %v2595 = vadd.f32 0.0, %v2594
      %v2596 = vpop.f32.mrb[0].mxu0
      %v2597 = vadd.f32 0.0, %v2596
      %v2598 = vpop.f32.mrb[0].mxu0
      %v2599 = vadd.f32 0.0, %v2598
      %2600 = vdwg.mxu0
      %2601 = vmatprep.subr.bf16.mxu0 %v1313
      %2602 = vmatpush1.bf16.msra.mxu0 %v1312
      %2603 = vmatprep.subr.bf16.mxu0 %v1329
      %2604 = vmatpush1.bf16.msra.mxu0 %v1328
      %2605 = vmatprep.subr.bf16.mxu0 %v1345
      %2606 = vmatpush1.bf16.msra.mxu0 %v1344
      %2607 = vmatprep.subr.bf16.mxu0 %v1361
      %2608 = vmatpush1.bf16.msra.mxu0 %v1360
      %2609 = vmatprep.subr.bf16.mxu0 %v1377
      %2610 = vmatpush1.bf16.msra.mxu0 %v1376
      %2611 = vmatprep.subr.bf16.mxu0 %v1393
      %2612 = vmatpush1.bf16.msra.mxu0 %v1392
      %2613 = vmatprep.subr.bf16.mxu0 %v1409
      %2614 = vmatpush1.bf16.msra.mxu0 %v1408
      %2615 = vmatprep.subr.bf16.mxu0 %v1425
      %2616 = vmatpush1.bf16.msra.mxu0 %v1424
      %2617 = vmatprep.subr.bf16.mxu0 %v1441
      %2618 = vmatpush1.bf16.msra.mxu0 %v1440
      %2619 = vmatprep.subr.bf16.mxu0 %v1457
      %2620 = vmatpush1.bf16.msra.mxu0 %v1456
      %2621 = vmatprep.subr.bf16.mxu0 %v1473
      %2622 = vmatpush1.bf16.msra.mxu0 %v1472
      %2623 = vmatprep.subr.bf16.mxu0 %v1489
      %2624 = vmatpush1.bf16.msra.mxu0 %v1488
      %2625 = vmatprep.subr.bf16.mxu0 %v1505
      %2626 = vmatpush1.bf16.msra.mxu0 %v1504
      %2627 = vmatprep.subr.bf16.mxu0 %v1521
      %2628 = vmatpush1.bf16.msra.mxu0 %v1520
      %2629 = vmatprep.subr.bf16.mxu0 %v1537
      %2630 = vmatpush1.bf16.msra.mxu0 %v1536
      %2631 = vmatprep.subr.bf16.mxu0 %v1553
      %2632 = vmatpush1.bf16.msra.mxu0 %v1552
      %2633 = vmatprep.mubr.bf16.mxu0 %v499
      %2634 = vmatmul.mubr.bf16.gmra.mrb[0].mxu0 %v498
      %v2635 = vpop.f32.mrb[0].mxu0
      %v2636 = vadd.f32 0.0, %v2635
      %v2637 = vpop.f32.mrb[0].mxu0
      %v2638 = vadd.f32 0.0, %v2637
      %v2639 = vpop.f32.mrb[0].mxu0
      %v2640 = vadd.f32 0.0, %v2639
      %v2641 = vpop.f32.mrb[0].mxu0
      %v2642 = vadd.f32 0.0, %v2641
      %2643 = vmatprep.mubr.bf16.mxu0 %v501
      %2644 = vmatmul.mubr.bf16.gmra.mrb[0].mxu0 %v500
      %v2645 = vpop.f32.mrb[0].mxu0
      %v2646 = vadd.f32 0.0, %v2645
      %v2647 = vpop.f32.mrb[0].mxu0
      %v2648 = vadd.f32 0.0, %v2647
      %v2649 = vpop.f32.mrb[0].mxu0
      %v2650 = vadd.f32 0.0, %v2649
      %v2651 = vpop.f32.mrb[0].mxu0
      %v2652 = vadd.f32 0.0, %v2651
      %2653 = vmatprep.mubr.bf16.mxu0 %v503
      %2654 = vmatmul.mubr.bf16.gmra.mrb[0].mxu0 %v502
      %v2655 = vpop.f32.mrb[0].mxu0
      %v2656 = vadd.f32 0.0, %v2655
      %v2657 = vpop.f32.mrb[0].mxu0
      %v2658 = vadd.f32 0.0, %v2657
      %v2659 = vpop.f32.mrb[0].mxu0
      %v2660 = vadd.f32 0.0, %v2659
      %v2661 = vpop.f32.mrb[0].mxu0
      %v2662 = vadd.f32 0.0, %v2661
      %2663 = vmatprep.mubr.bf16.mxu0 %v505
      %2664 = vmatmul.mubr.bf16.gmra.mrb[0].mxu0 %v504
      %v2665 = vpop.f32.mrb[0].mxu0
      %v2666 = vadd.f32 0.0, %v2665
      %v2667 = vpop.f32.mrb[0].mxu0
      %v2668 = vadd.f32 0.0, %v2667
      %v2669 = vpop.f32.mrb[0].mxu0
      %v2670 = vadd.f32 0.0, %v2669
      %v2671 = vpop.f32.mrb[0].mxu0
      %v2672 = vadd.f32 0.0, %v2671
      %2673 = vmatprep.mubr.bf16.mxu0 %v507
      %2674 = vmatmul.mubr.bf16.gmra.mrb[0].mxu0 %v506
      %v2675 = vpop.f32.mrb[0].mxu0
      %v2676 = vadd.f32 0.0, %v2675
      %v2677 = vpop.f32.mrb[0].mxu0
      %v2678 = vadd.f32 0.0, %v2677
      %v2679 = vpop.f32.mrb[0].mxu0
      %v2680 = vadd.f32 0.0, %v2679
      %v2681 = vpop.f32.mrb[0].mxu0
      %v2682 = vadd.f32 0.0, %v2681
      %2683 = vmatprep.mubr.bf16.mxu0 %v509
      %2684 = vmatmul.mubr.bf16.gmra.mrb[0].mxu0 %v508
      %v2685 = vpop.f32.mrb[0].mxu0
      %v2686 = vadd.f32 0.0, %v2685
      %v2687 = vpop.f32.mrb[0].mxu0
      %v2688 = vadd.f32 0.0, %v2687
      %v2689 = vpop.f32.mrb[0].mxu0
      %v2690 = vadd.f32 0.0, %v2689
      %v2691 = vpop.f32.mrb[0].mxu0
      %v2692 = vadd.f32 0.0, %v2691
      %2693 = vmatprep.mubr.bf16.mxu0 %v511
      %2694 = vmatmul.mubr.bf16.gmra.mrb[0].mxu0 %v510
      %v2695 = vpop.f32.mrb[0].mxu0
      %v2696 = vadd.f32 0.0, %v2695
      %v2697 = vpop.f32.mrb[0].mxu0
      %v2698 = vadd.f32 0.0, %v2697
      %v2699 = vpop.f32.mrb[0].mxu0
      %v2700 = vadd.f32 0.0, %v2699
      %v2701 = vpop.f32.mrb[0].mxu0
      %v2702 = vadd.f32 0.0, %v2701
      %2703 = vmatprep.mubr.bf16.mxu0 %v513
      %2704 = vmatmul.mubr.bf16.gmra.mrb[0].mxu0 %v512
      %v2705 = vpop.f32.mrb[0].mxu0
      %v2706 = vadd.f32 0.0, %v2705
      %v2707 = vpop.f32.mrb[0].mxu0
      %v2708 = vadd.f32 0.0, %v2707
      %v2709 = vpop.f32.mrb[0].mxu0
      %v2710 = vadd.f32 0.0, %v2709
      %v2711 = vpop.f32.mrb[0].mxu0
      %v2712 = vadd.f32 0.0, %v2711
      %2713 = vdwg.mxu0
      %v2714 = vmul.f32 %v1845, %v1845
      %v2715 = vmul.f32 %v1847, %v1847
      %v2716 = vmul.f32 %v1958, %v1958
      %v2717 = vmul.f32 %v1960, %v1960
      %v2718 = vmul.f32 %v2071, %v2071
      %v2719 = vmul.f32 %v2073, %v2073
      %v2720 = vmul.f32 %v2184, %v2184
      %v2721 = vmul.f32 %v2186, %v2186
      %v2722 = vmul.f32 %v2297, %v2297
      %v2723 = vmul.f32 %v2299, %v2299
      %v2724 = vmul.f32 %v2410, %v2410
      %v2725 = vmul.f32 %v2412, %v2412
      %v2726 = vmul.f32 %v2523, %v2523
      %v2727 = vmul.f32 %v2525, %v2525
      %v2728 = vmul.f32 %v2636, %v2636
      %v2729 = vmul.f32 %v2638, %v2638
      %v2730 = vmul.f32 %v1849, %v1849
      %v2731 = vmul.f32 %v1851, %v1851
      %v2732 = vmul.f32 %v1962, %v1962
      %v2733 = vmul.f32 %v1964, %v1964
      %v2734 = vmul.f32 %v2075, %v2075
      %v2735 = vmul.f32 %v2077, %v2077
      %v2736 = vmul.f32 %v2188, %v2188
      %v2737 = vmul.f32 %v2190, %v2190
      %v2738 = vmul.f32 %v2301, %v2301
      %v2739 = vmul.f32 %v2303, %v2303
      %v2740 = vmul.f32 %v2414, %v2414
      %v2741 = vmul.f32 %v2416, %v2416
      %v2742 = vmul.f32 %v2527, %v2527
      %v2743 = vmul.f32 %v2529, %v2529
      %v2744 = vmul.f32 %v2640, %v2640
      %v2745 = vmul.f32 %v2642, %v2642
      %v2746 = vmul.f32 %v1855, %v1855
      %v2747 = vmul.f32 %v1857, %v1857
      %v2748 = vmul.f32 %v1968, %v1968
      %v2749 = vmul.f32 %v1970, %v1970
      %v2750 = vmul.f32 %v2081, %v2081
      %v2751 = vmul.f32 %v2083, %v2083
      %v2752 = vmul.f32 %v2194, %v2194
      %v2753 = vmul.f32 %v2196, %v2196
      %v2754 = vmul.f32 %v2307, %v2307
      %v2755 = vmul.f32 %v2309, %v2309
      %v2756 = vmul.f32 %v2420, %v2420
      %v2757 = vmul.f32 %v2422, %v2422
      %v2758 = vmul.f32 %v2533, %v2533
      %v2759 = vmul.f32 %v2535, %v2535
      %v2760 = vmul.f32 %v2646, %v2646
      %v2761 = vmul.f32 %v2648, %v2648
      %v2762 = vmul.f32 %v1859, %v1859
      %v2763 = vmul.f32 %v1861, %v1861
      %v2764 = vmul.f32 %v1972, %v1972
      %v2765 = vmul.f32 %v1974, %v1974
      %v2766 = vmul.f32 %v2085, %v2085
      %v2767 = vmul.f32 %v2087, %v2087
      %v2768 = vmul.f32 %v2198, %v2198
      %v2769 = vmul.f32 %v2200, %v2200
      %v2770 = vmul.f32 %v2311, %v2311
      %v2771 = vmul.f32 %v2313, %v2313
      %v2772 = vmul.f32 %v2424, %v2424
      %v2773 = vmul.f32 %v2426, %v2426
      %v2774 = vmul.f32 %v2537, %v2537
      %v2775 = vmul.f32 %v2539, %v2539
      %v2776 = vmul.f32 %v2650, %v2650
      %v2777 = vmul.f32 %v2652, %v2652
      %v2778 = vmul.f32 %v1865, %v1865
      %v2779 = vmul.f32 %v1867, %v1867
      %v2780 = vmul.f32 %v1978, %v1978
      %v2781 = vmul.f32 %v1980, %v1980
      %v2782 = vmul.f32 %v2091, %v2091
      %v2783 = vmul.f32 %v2093, %v2093
      %v2784 = vmul.f32 %v2204, %v2204
      %v2785 = vmul.f32 %v2206, %v2206
      %v2786 = vmul.f32 %v2317, %v2317
      %v2787 = vmul.f32 %v2319, %v2319
      %v2788 = vmul.f32 %v2430, %v2430
      %v2789 = vmul.f32 %v2432, %v2432
      %v2790 = vmul.f32 %v2543, %v2543
      %v2791 = vmul.f32 %v2545, %v2545
      %v2792 = vmul.f32 %v2656, %v2656
      %v2793 = vmul.f32 %v2658, %v2658
      %v2794 = vmul.f32 %v1869, %v1869
      %v2795 = vmul.f32 %v1871, %v1871
      %v2796 = vmul.f32 %v1982, %v1982
      %v2797 = vmul.f32 %v1984, %v1984
      %v2798 = vmul.f32 %v2095, %v2095
      %v2799 = vmul.f32 %v2097, %v2097
      %v2800 = vmul.f32 %v2208, %v2208
      %v2801 = vmul.f32 %v2210, %v2210
      %v2802 = vmul.f32 %v2321, %v2321
      %v2803 = vmul.f32 %v2323, %v2323
      %v2804 = vmul.f32 %v2434, %v2434
      %v2805 = vmul.f32 %v2436, %v2436
      %v2806 = vmul.f32 %v2547, %v2547
      %v2807 = vmul.f32 %v2549, %v2549
      %v2808 = vmul.f32 %v2660, %v2660
      %v2809 = vmul.f32 %v2662, %v2662
      %v2810 = vmul.f32 %v1875, %v1875
      %v2811 = vmul.f32 %v1877, %v1877
      %v2812 = vmul.f32 %v1988, %v1988
      %v2813 = vmul.f32 %v1990, %v1990
      %v2814 = vmul.f32 %v2101, %v2101
      %v2815 = vmul.f32 %v2103, %v2103
      %v2816 = vmul.f32 %v2214, %v2214
      %v2817 = vmul.f32 %v2216, %v2216
      %v2818 = vmul.f32 %v2327, %v2327
      %v2819 = vmul.f32 %v2329, %v2329
      %v2820 = vmul.f32 %v2440, %v2440
      %v2821 = vmul.f32 %v2442, %v2442
      %v2822 = vmul.f32 %v2553, %v2553
      %v2823 = vmul.f32 %v2555, %v2555
      %v2824 = vmul.f32 %v2666, %v2666
      %v2825 = vmul.f32 %v2668, %v2668
      %v2826 = vmul.f32 %v1879, %v1879
      %v2827 = vmul.f32 %v1881, %v1881
      %v2828 = vmul.f32 %v1992, %v1992
      %v2829 = vmul.f32 %v1994, %v1994
      %v2830 = vmul.f32 %v2105, %v2105
      %v2831 = vmul.f32 %v2107, %v2107
      %v2832 = vmul.f32 %v2218, %v2218
      %v2833 = vmul.f32 %v2220, %v2220
      %v2834 = vmul.f32 %v2331, %v2331
      %v2835 = vmul.f32 %v2333, %v2333
      %v2836 = vmul.f32 %v2444, %v2444
      %v2837 = vmul.f32 %v2446, %v2446
      %v2838 = vmul.f32 %v2557, %v2557
      %v2839 = vmul.f32 %v2559, %v2559
      %v2840 = vmul.f32 %v2670, %v2670
      %v2841 = vmul.f32 %v2672, %v2672
      %v2842 = vmul.f32 %v1885, %v1885
      %v2843 = vmul.f32 %v1887, %v1887
      %v2844 = vmul.f32 %v1998, %v1998
      %v2845 = vmul.f32 %v2000, %v2000
      %v2846 = vmul.f32 %v2111, %v2111
      %v2847 = vmul.f32 %v2113, %v2113
      %v2848 = vmul.f32 %v2224, %v2224
      %v2849 = vmul.f32 %v2226, %v2226
      %v2850 = vmul.f32 %v2337, %v2337
      %v2851 = vmul.f32 %v2339, %v2339
      %v2852 = vmul.f32 %v2450, %v2450
      %v2853 = vmul.f32 %v2452, %v2452
      %v2854 = vmul.f32 %v2563, %v2563
      %v2855 = vmul.f32 %v2565, %v2565
      %v2856 = vmul.f32 %v2676, %v2676
      %v2857 = vmul.f32 %v2678, %v2678
      %v2858 = vmul.f32 %v1889, %v1889
      %v2859 = vmul.f32 %v1891, %v1891
      %v2860 = vmul.f32 %v2002, %v2002
      %v2861 = vmul.f32 %v2004, %v2004
      %v2862 = vmul.f32 %v2115, %v2115
      %v2863 = vmul.f32 %v2117, %v2117
      %v2864 = vmul.f32 %v2228, %v2228
      %v2865 = vmul.f32 %v2230, %v2230
      %v2866 = vmul.f32 %v2341, %v2341
      %v2867 = vmul.f32 %v2343, %v2343
      %v2868 = vmul.f32 %v2454, %v2454
      %v2869 = vmul.f32 %v2456, %v2456
      %v2870 = vmul.f32 %v2567, %v2567
      %v2871 = vmul.f32 %v2569, %v2569
      %v2872 = vmul.f32 %v2680, %v2680
      %v2873 = vmul.f32 %v2682, %v2682
      %v2874 = vmul.f32 %v1895, %v1895
      %v2875 = vmul.f32 %v1897, %v1897
      %v2876 = vmul.f32 %v2008, %v2008
      %v2877 = vmul.f32 %v2010, %v2010
      %v2878 = vmul.f32 %v2121, %v2121
      %v2879 = vmul.f32 %v2123, %v2123
      %v2880 = vmul.f32 %v2234, %v2234
      %v2881 = vmul.f32 %v2236, %v2236
      %v2882 = vmul.f32 %v2347, %v2347
      %v2883 = vmul.f32 %v2349, %v2349
      %v2884 = vmul.f32 %v2460, %v2460
      %v2885 = vmul.f32 %v2462, %v2462
      %v2886 = vmul.f32 %v2573, %v2573
      %v2887 = vmul.f32 %v2575, %v2575
      %v2888 = vmul.f32 %v2686, %v2686
      %v2889 = vmul.f32 %v2688, %v2688
      %v2890 = vmul.f32 %v1899, %v1899
      %v2891 = vmul.f32 %v1901, %v1901
      %v2892 = vmul.f32 %v2012, %v2012
      %v2893 = vmul.f32 %v2014, %v2014
      %v2894 = vmul.f32 %v2125, %v2125
      %v2895 = vmul.f32 %v2127, %v2127
      %v2896 = vmul.f32 %v2238, %v2238
      %v2897 = vmul.f32 %v2240, %v2240
      %v2898 = vmul.f32 %v2351, %v2351
      %v2899 = vmul.f32 %v2353, %v2353
      %v2900 = vmul.f32 %v2464, %v2464
      %v2901 = vmul.f32 %v2466, %v2466
      %v2902 = vmul.f32 %v2577, %v2577
      %v2903 = vmul.f32 %v2579, %v2579
      %v2904 = vmul.f32 %v2690, %v2690
      %v2905 = vmul.f32 %v2692, %v2692
      %v2906 = vmul.f32 %v1905, %v1905
      %v2907 = vmul.f32 %v1907, %v1907
      %v2908 = vmul.f32 %v2018, %v2018
      %v2909 = vmul.f32 %v2020, %v2020
      %v2910 = vmul.f32 %v2131, %v2131
      %v2911 = vmul.f32 %v2133, %v2133
      %v2912 = vmul.f32 %v2244, %v2244
      %v2913 = vmul.f32 %v2246, %v2246
      %v2914 = vmul.f32 %v2357, %v2357
      %v2915 = vmul.f32 %v2359, %v2359
      %v2916 = vmul.f32 %v2470, %v2470
      %v2917 = vmul.f32 %v2472, %v2472
      %v2918 = vmul.f32 %v2583, %v2583
      %v2919 = vmul.f32 %v2585, %v2585
      %v2920 = vmul.f32 %v2696, %v2696
      %v2921 = vmul.f32 %v2698, %v2698
      %v2922 = vmul.f32 %v1909, %v1909
      %v2923 = vmul.f32 %v1911, %v1911
      %v2924 = vmul.f32 %v2022, %v2022
      %v2925 = vmul.f32 %v2024, %v2024
      %v2926 = vmul.f32 %v2135, %v2135
      %v2927 = vmul.f32 %v2137, %v2137
      %v2928 = vmul.f32 %v2248, %v2248
      %v2929 = vmul.f32 %v2250, %v2250
      %v2930 = vmul.f32 %v2361, %v2361
      %v2931 = vmul.f32 %v2363, %v2363
      %v2932 = vmul.f32 %v2474, %v2474
      %v2933 = vmul.f32 %v2476, %v2476
      %v2934 = vmul.f32 %v2587, %v2587
      %v2935 = vmul.f32 %v2589, %v2589
      %v2936 = vmul.f32 %v2700, %v2700
      %v2937 = vmul.f32 %v2702, %v2702
      %v2938 = vmul.f32 %v1915, %v1915
      %v2939 = vmul.f32 %v1917, %v1917
      %v2940 = vmul.f32 %v2028, %v2028
      %v2941 = vmul.f32 %v2030, %v2030
      %v2942 = vmul.f32 %v2141, %v2141
      %v2943 = vmul.f32 %v2143, %v2143
      %v2944 = vmul.f32 %v2254, %v2254
      %v2945 = vmul.f32 %v2256, %v2256
      %v2946 = vmul.f32 %v2367, %v2367
      %v2947 = vmul.f32 %v2369, %v2369
      %v2948 = vmul.f32 %v2480, %v2480
      %v2949 = vmul.f32 %v2482, %v2482
      %v2950 = vmul.f32 %v2593, %v2593
      %v2951 = vmul.f32 %v2595, %v2595
      %v2952 = vmul.f32 %v2706, %v2706
      %v2953 = vmul.f32 %v2708, %v2708
      %v2954 = vmul.f32 %v1919, %v1919
      %v2955 = vmul.f32 %v1921, %v1921
      %v2956 = vmul.f32 %v2032, %v2032
      %v2957 = vmul.f32 %v2034, %v2034
      %v2958 = vmul.f32 %v2145, %v2145
      %v2959 = vmul.f32 %v2147, %v2147
      %v2960 = vmul.f32 %v2258, %v2258
      %v2961 = vmul.f32 %v2260, %v2260
      %v2962 = vmul.f32 %v2371, %v2371
      %v2963 = vmul.f32 %v2373, %v2373
      %v2964 = vmul.f32 %v2484, %v2484
      %v2965 = vmul.f32 %v2486, %v2486
      %v2966 = vmul.f32 %v2597, %v2597
      %v2967 = vmul.f32 %v2599, %v2599
      %v2968 = vmul.f32 %v2710, %v2710
      %v2969 = vmul.f32 %v2712, %v2712
      %v2970 = vadd.f32 %v2714, %v2722
      %v2971 = vadd.f32 %v2715, %v2723
      %v2972 = vadd.f32 %v2716, %v2724
      %v2973 = vadd.f32 %v2717, %v2725
      %v2974 = vadd.f32 %v2718, %v2726
      %v2975 = vadd.f32 %v2719, %v2727
      %v2976 = vadd.f32 %v2720, %v2728
      %v2977 = vadd.f32 %v2721, %v2729
      %v2978 = vadd.f32 %v2730, %v2738
      %v2979 = vadd.f32 %v2731, %v2739
      %v2980 = vadd.f32 %v2732, %v2740
      %v2981 = vadd.f32 %v2733, %v2741
      %v2982 = vadd.f32 %v2734, %v2742
      %v2983 = vadd.f32 %v2735, %v2743
      %v2984 = vadd.f32 %v2736, %v2744
      %v2985 = vadd.f32 %v2737, %v2745
      %v2986 = vadd.f32 %v2746, %v2754
      %v2987 = vadd.f32 %v2747, %v2755
      %v2988 = vadd.f32 %v2748, %v2756
      %v2989 = vadd.f32 %v2749, %v2757
      %v2990 = vadd.f32 %v2750, %v2758
      %v2991 = vadd.f32 %v2751, %v2759
      %v2992 = vadd.f32 %v2752, %v2760
      %v2993 = vadd.f32 %v2753, %v2761
      %v2994 = vadd.f32 %v2762, %v2770
      %v2995 = vadd.f32 %v2763, %v2771
      %v2996 = vadd.f32 %v2764, %v2772
      %v2997 = vadd.f32 %v2765, %v2773
      %v2998 = vadd.f32 %v2766, %v2774
      %v2999 = vadd.f32 %v2767, %v2775
      %v3000 = vadd.f32 %v2768, %v2776
      %v3001 = vadd.f32 %v2769, %v2777
      %v3002 = vadd.f32 %v2778, %v2786
      %v3003 = vadd.f32 %v2779, %v2787
      %v3004 = vadd.f32 %v2780, %v2788
      %v3005 = vadd.f32 %v2781, %v2789
      %v3006 = vadd.f32 %v2782, %v2790
      %v3007 = vadd.f32 %v2783, %v2791
      %v3008 = vadd.f32 %v2784, %v2792
      %v3009 = vadd.f32 %v2785, %v2793
      %v3010 = vadd.f32 %v2794, %v2802
      %v3011 = vadd.f32 %v2795, %v2803
      %v3012 = vadd.f32 %v2796, %v2804
      %v3013 = vadd.f32 %v2797, %v2805
      %v3014 = vadd.f32 %v2798, %v2806
      %v3015 = vadd.f32 %v2799, %v2807
      %v3016 = vadd.f32 %v2800, %v2808
      %v3017 = vadd.f32 %v2801, %v2809
      %v3018 = vadd.f32 %v2810, %v2818
      %v3019 = vadd.f32 %v2811, %v2819
      %v3020 = vadd.f32 %v2812, %v2820
      %v3021 = vadd.f32 %v2813, %v2821
      %v3022 = vadd.f32 %v2814, %v2822
      %v3023 = vadd.f32 %v2815, %v2823
      %v3024 = vadd.f32 %v2816, %v2824
      %v3025 = vadd.f32 %v2817, %v2825
      %v3026 = vadd.f32 %v2826, %v2834
      %v3027 = vadd.f32 %v2827, %v2835
      %v3028 = vadd.f32 %v2828, %v2836
      %v3029 = vadd.f32 %v2829, %v2837
      %v3030 = vadd.f32 %v2830, %v2838
      %v3031 = vadd.f32 %v2831, %v2839
      %v3032 = vadd.f32 %v2832, %v2840
      %v3033 = vadd.f32 %v2833, %v2841
      %v3034 = vadd.f32 %v2842, %v2850
      %v3035 = vadd.f32 %v2843, %v2851
      %v3036 = vadd.f32 %v2844, %v2852
      %v3037 = vadd.f32 %v2845, %v2853
      %v3038 = vadd.f32 %v2846, %v2854
      %v3039 = vadd.f32 %v2847, %v2855
      %v3040 = vadd.f32 %v2848, %v2856
      %v3041 = vadd.f32 %v2849, %v2857
      %v3042 = vadd.f32 %v2858, %v2866
      %v3043 = vadd.f32 %v2859, %v2867
      %v3044 = vadd.f32 %v2860, %v2868
      %v3045 = vadd.f32 %v2861, %v2869
      %v3046 = vadd.f32 %v2862, %v2870
      %v3047 = vadd.f32 %v2863, %v2871
      %v3048 = vadd.f32 %v2864, %v2872
      %v3049 = vadd.f32 %v2865, %v2873
      %v3050 = vadd.f32 %v2874, %v2882
      %v3051 = vadd.f32 %v2875, %v2883
      %v3052 = vadd.f32 %v2876, %v2884
      %v3053 = vadd.f32 %v2877, %v2885
      %v3054 = vadd.f32 %v2878, %v2886
      %v3055 = vadd.f32 %v2879, %v2887
      %v3056 = vadd.f32 %v2880, %v2888
      %v3057 = vadd.f32 %v2881, %v2889
      %v3058 = vadd.f32 %v2890, %v2898
      %v3059 = vadd.f32 %v2891, %v2899
      %v3060 = vadd.f32 %v2892, %v2900
      %v3061 = vadd.f32 %v2893, %v2901
      %v3062 = vadd.f32 %v2894, %v2902
      %v3063 = vadd.f32 %v2895, %v2903
      %v3064 = vadd.f32 %v2896, %v2904
      %v3065 = vadd.f32 %v2897, %v2905
      %v3066 = vadd.f32 %v2906, %v2914
      %v3067 = vadd.f32 %v2907, %v2915
      %v3068 = vadd.f32 %v2908, %v2916
      %v3069 = vadd.f32 %v2909, %v2917
      %v3070 = vadd.f32 %v2910, %v2918
      %v3071 = vadd.f32 %v2911, %v2919
      %v3072 = vadd.f32 %v2912, %v2920
      %v3073 = vadd.f32 %v2913, %v2921
      %v3074 = vadd.f32 %v2922, %v2930
      %v3075 = vadd.f32 %v2923, %v2931
      %v3076 = vadd.f32 %v2924, %v2932
      %v3077 = vadd.f32 %v2925, %v2933
      %v3078 = vadd.f32 %v2926, %v2934
      %v3079 = vadd.f32 %v2927, %v2935
      %v3080 = vadd.f32 %v2928, %v2936
      %v3081 = vadd.f32 %v2929, %v2937
      %v3082 = vadd.f32 %v2938, %v2946
      %v3083 = vadd.f32 %v2939, %v2947
      %v3084 = vadd.f32 %v2940, %v2948
      %v3085 = vadd.f32 %v2941, %v2949
      %v3086 = vadd.f32 %v2942, %v2950
      %v3087 = vadd.f32 %v2943, %v2951
      %v3088 = vadd.f32 %v2944, %v2952
      %v3089 = vadd.f32 %v2945, %v2953
      %v3090 = vadd.f32 %v2954, %v2962
      %v3091 = vadd.f32 %v2955, %v2963
      %v3092 = vadd.f32 %v2956, %v2964
      %v3093 = vadd.f32 %v2957, %v2965
      %v3094 = vadd.f32 %v2958, %v2966
      %v3095 = vadd.f32 %v2959, %v2967
      %v3096 = vadd.f32 %v2960, %v2968
      %v3097 = vadd.f32 %v2961, %v2969
      %v3098 = vpack.c.bf16 %v2978, %v2970
      %v3099 = vpack.c.bf16 %v2979, %v2971
      %v3100 = vpack.c.bf16 %v2980, %v2972
      %v3101 = vpack.c.bf16 %v2981, %v2973
      %v3102 = vpack.c.bf16 %v2982, %v2974
      %v3103 = vpack.c.bf16 %v2983, %v2975
      %v3104 = vpack.c.bf16 %v2984, %v2976
      %v3105 = vpack.c.bf16 %v2985, %v2977
      %v3106 = vpack.c.bf16 %v2994, %v2986
      %v3107 = vpack.c.bf16 %v2995, %v2987
      %v3108 = vpack.c.bf16 %v2996, %v2988
      %v3109 = vpack.c.bf16 %v2997, %v2989
      %v3110 = vpack.c.bf16 %v2998, %v2990
      %v3111 = vpack.c.bf16 %v2999, %v2991
      %v3112 = vpack.c.bf16 %v3000, %v2992
      %v3113 = vpack.c.bf16 %v3001, %v2993
      %v3114 = vpack.c.bf16 %v3010, %v3002
      %v3115 = vpack.c.bf16 %v3011, %v3003
      %v3116 = vpack.c.bf16 %v3012, %v3004
      %v3117 = vpack.c.bf16 %v3013, %v3005
      %v3118 = vpack.c.bf16 %v3014, %v3006
      %v3119 = vpack.c.bf16 %v3015, %v3007
      %v3120 = vpack.c.bf16 %v3016, %v3008
      %v3121 = vpack.c.bf16 %v3017, %v3009
      %v3122 = vpack.c.bf16 %v3026, %v3018
      %v3123 = vpack.c.bf16 %v3027, %v3019
      %v3124 = vpack.c.bf16 %v3028, %v3020
      %v3125 = vpack.c.bf16 %v3029, %v3021
      %v3126 = vpack.c.bf16 %v3030, %v3022
      %v3127 = vpack.c.bf16 %v3031, %v3023
      %v3128 = vpack.c.bf16 %v3032, %v3024
      %v3129 = vpack.c.bf16 %v3033, %v3025
      %v3130 = vpack.c.bf16 %v3042, %v3034
      %v3131 = vpack.c.bf16 %v3043, %v3035
      %v3132 = vpack.c.bf16 %v3044, %v3036
      %v3133 = vpack.c.bf16 %v3045, %v3037
      %v3134 = vpack.c.bf16 %v3046, %v3038
      %v3135 = vpack.c.bf16 %v3047, %v3039
      %v3136 = vpack.c.bf16 %v3048, %v3040
      %v3137 = vpack.c.bf16 %v3049, %v3041
      %v3138 = vpack.c.bf16 %v3058, %v3050
      %v3139 = vpack.c.bf16 %v3059, %v3051
      %v3140 = vpack.c.bf16 %v3060, %v3052
      %v3141 = vpack.c.bf16 %v3061, %v3053
      %v3142 = vpack.c.bf16 %v3062, %v3054
      %v3143 = vpack.c.bf16 %v3063, %v3055
      %v3144 = vpack.c.bf16 %v3064, %v3056
      %v3145 = vpack.c.bf16 %v3065, %v3057
      %v3146 = vpack.c.bf16 %v3074, %v3066
      %v3147 = vpack.c.bf16 %v3075, %v3067
      %v3148 = vpack.c.bf16 %v3076, %v3068
      %v3149 = vpack.c.bf16 %v3077, %v3069
      %v3150 = vpack.c.bf16 %v3078, %v3070
      %v3151 = vpack.c.bf16 %v3079, %v3071
      %v3152 = vpack.c.bf16 %v3080, %v3072
      %v3153 = vpack.c.bf16 %v3081, %v3073
      %v3154 = vpack.c.bf16 %v3090, %v3082
      %v3155 = vpack.c.bf16 %v3091, %v3083
      %v3156 = vpack.c.bf16 %v3092, %v3084
      %v3157 = vpack.c.bf16 %v3093, %v3085
      %v3158 = vpack.c.bf16 %v3094, %v3086
      %v3159 = vpack.c.bf16 %v3095, %v3087
      %v3160 = vpack.c.bf16 %v3096, %v3088
      %v3161 = vpack.c.bf16 %v3097, %v3089
      %v3162 = vrsqrt.bf16.pop %v3098
      %v3163 = vmul.bf16 %v3098, %v3162
      %vm3165 = vcmp.eq.bf16.partialorder %v3098, 2139127680
      %v3166 = vsel %vm3165, %v3098, %v3163
      %vm3168 = vcmp.eq.bf16.partialorder %v3098, 0
      %v3169 = vand.u32 2147450879, 0
      %v3170 = vand.u32 %v3098, 2147516416
      %v3171 = vor.u32 %v3169, %v3170
      %v3172 = vsel %vm3168, %v3171, %v3166
      %v3173 = vrsqrt.bf16.pop %v3099
      %v3174 = vmul.bf16 %v3099, %v3173
      %vm3176 = vcmp.eq.bf16.partialorder %v3099, 2139127680
      %v3177 = vsel %vm3176, %v3099, %v3174
      %vm3179 = vcmp.eq.bf16.partialorder %v3099, 0
      %v3180 = vand.u32 2147450879, 0
      %v3181 = vand.u32 %v3099, 2147516416
      %v3182 = vor.u32 %v3180, %v3181
      %v3183 = vsel %vm3179, %v3182, %v3177
      %v3184 = vrsqrt.bf16.pop %v3100
      %v3185 = vmul.bf16 %v3100, %v3184
      %vm3187 = vcmp.eq.bf16.partialorder %v3100, 2139127680
      %v3188 = vsel %vm3187, %v3100, %v3185
      %vm3190 = vcmp.eq.bf16.partialorder %v3100, 0
      %v3191 = vand.u32 2147450879, 0
      %v3192 = vand.u32 %v3100, 2147516416
      %v3193 = vor.u32 %v3191, %v3192
      %v3194 = vsel %vm3190, %v3193, %v3188
      %v3195 = vrsqrt.bf16.pop %v3101
      %v3196 = vmul.bf16 %v3101, %v3195
      %vm3198 = vcmp.eq.bf16.partialorder %v3101, 2139127680
      %v3199 = vsel %vm3198, %v3101, %v3196
      %vm3201 = vcmp.eq.bf16.partialorder %v3101, 0
      %v3202 = vand.u32 2147450879, 0
      %v3203 = vand.u32 %v3101, 2147516416
      %v3204 = vor.u32 %v3202, %v3203
      %v3205 = vsel %vm3201, %v3204, %v3199
      %v3206 = vrsqrt.bf16.pop %v3102
      %v3207 = vmul.bf16 %v3102, %v3206
      %vm3209 = vcmp.eq.bf16.partialorder %v3102, 2139127680
      %v3210 = vsel %vm3209, %v3102, %v3207
      %vm3212 = vcmp.eq.bf16.partialorder %v3102, 0
      %v3213 = vand.u32 2147450879, 0
      %v3214 = vand.u32 %v3102, 2147516416
      %v3215 = vor.u32 %v3213, %v3214
      %v3216 = vsel %vm3212, %v3215, %v3210
      %v3217 = vrsqrt.bf16.pop %v3103
      %v3218 = vmul.bf16 %v3103, %v3217
      %vm3220 = vcmp.eq.bf16.partialorder %v3103, 2139127680
      %v3221 = vsel %vm3220, %v3103, %v3218
      %vm3223 = vcmp.eq.bf16.partialorder %v3103, 0
      %v3224 = vand.u32 2147450879, 0
      %v3225 = vand.u32 %v3103, 2147516416
      %v3226 = vor.u32 %v3224, %v3225
      %v3227 = vsel %vm3223, %v3226, %v3221
      %v3228 = vrsqrt.bf16.pop %v3104
      %v3229 = vmul.bf16 %v3104, %v3228
      %vm3231 = vcmp.eq.bf16.partialorder %v3104, 2139127680
      %v3232 = vsel %vm3231, %v3104, %v3229
      %vm3234 = vcmp.eq.bf16.partialorder %v3104, 0
      %v3235 = vand.u32 2147450879, 0
      %v3236 = vand.u32 %v3104, 2147516416
      %v3237 = vor.u32 %v3235, %v3236
      %v3238 = vsel %vm3234, %v3237, %v3232
      %v3239 = vrsqrt.bf16.pop %v3105
      %v3240 = vmul.bf16 %v3105, %v3239
      %vm3242 = vcmp.eq.bf16.partialorder %v3105, 2139127680
      %v3243 = vsel %vm3242, %v3105, %v3240
      %vm3245 = vcmp.eq.bf16.partialorder %v3105, 0
      %v3246 = vand.u32 2147450879, 0
      %v3247 = vand.u32 %v3105, 2147516416
      %v3248 = vor.u32 %v3246, %v3247
      %v3249 = vsel %vm3245, %v3248, %v3243
      %v3250 = vrsqrt.bf16.pop %v3106
      %v3251 = vmul.bf16 %v3106, %v3250
      %vm3253 = vcmp.eq.bf16.partialorder %v3106, 2139127680
      %v3254 = vsel %vm3253, %v3106, %v3251
      %vm3256 = vcmp.eq.bf16.partialorder %v3106, 0
      %v3257 = vand.u32 2147450879, 0
      %v3258 = vand.u32 %v3106, 2147516416
      %v3259 = vor.u32 %v3257, %v3258
      %v3260 = vsel %vm3256, %v3259, %v3254
      %v3261 = vrsqrt.bf16.pop %v3107
      %v3262 = vmul.bf16 %v3107, %v3261
      %vm3264 = vcmp.eq.bf16.partialorder %v3107, 2139127680
      %v3265 = vsel %vm3264, %v3107, %v3262
      %vm3267 = vcmp.eq.bf16.partialorder %v3107, 0
      %v3268 = vand.u32 2147450879, 0
      %v3269 = vand.u32 %v3107, 2147516416
      %v3270 = vor.u32 %v3268, %v3269
      %v3271 = vsel %vm3267, %v3270, %v3265
      %v3272 = vrsqrt.bf16.pop %v3108
      %v3273 = vmul.bf16 %v3108, %v3272
      %vm3275 = vcmp.eq.bf16.partialorder %v3108, 2139127680
      %v3276 = vsel %vm3275, %v3108, %v3273
      %vm3278 = vcmp.eq.bf16.partialorder %v3108, 0
      %v3279 = vand.u32 2147450879, 0
      %v3280 = vand.u32 %v3108, 2147516416
      %v3281 = vor.u32 %v3279, %v3280
      %v3282 = vsel %vm3278, %v3281, %v3276
      %v3283 = vrsqrt.bf16.pop %v3109
      %v3284 = vmul.bf16 %v3109, %v3283
      %vm3286 = vcmp.eq.bf16.partialorder %v3109, 2139127680
      %v3287 = vsel %vm3286, %v3109, %v3284
      %vm3289 = vcmp.eq.bf16.partialorder %v3109, 0
      %v3290 = vand.u32 2147450879, 0
      %v3291 = vand.u32 %v3109, 2147516416
      %v3292 = vor.u32 %v3290, %v3291
      %v3293 = vsel %vm3289, %v3292, %v3287
      %v3294 = vrsqrt.bf16.pop %v3110
      %v3295 = vmul.bf16 %v3110, %v3294
      %vm3297 = vcmp.eq.bf16.partialorder %v3110, 2139127680
      %v3298 = vsel %vm3297, %v3110, %v3295
      %vm3300 = vcmp.eq.bf16.partialorder %v3110, 0
      %v3301 = vand.u32 2147450879, 0
      %v3302 = vand.u32 %v3110, 2147516416
      %v3303 = vor.u32 %v3301, %v3302
      %v3304 = vsel %vm3300, %v3303, %v3298
      %v3305 = vrsqrt.bf16.pop %v3111
      %v3306 = vmul.bf16 %v3111, %v3305
      %vm3308 = vcmp.eq.bf16.partialorder %v3111, 2139127680
      %v3309 = vsel %vm3308, %v3111, %v3306
      %vm3311 = vcmp.eq.bf16.partialorder %v3111, 0
      %v3312 = vand.u32 2147450879, 0
      %v3313 = vand.u32 %v3111, 2147516416
      %v3314 = vor.u32 %v3312, %v3313
      %v3315 = vsel %vm3311, %v3314, %v3309
      %v3316 = vrsqrt.bf16.pop %v3112
      %v3317 = vmul.bf16 %v3112, %v3316
      %vm3319 = vcmp.eq.bf16.partialorder %v3112, 2139127680
      %v3320 = vsel %vm3319, %v3112, %v3317
      %vm3322 = vcmp.eq.bf16.partialorder %v3112, 0
      %v3323 = vand.u32 2147450879, 0
      %v3324 = vand.u32 %v3112, 2147516416
      %v3325 = vor.u32 %v3323, %v3324
      %v3326 = vsel %vm3322, %v3325, %v3320
      %v3327 = vrsqrt.bf16.pop %v3113
      %v3328 = vmul.bf16 %v3113, %v3327
      %vm3330 = vcmp.eq.bf16.partialorder %v3113, 2139127680
      %v3331 = vsel %vm3330, %v3113, %v3328
      %vm3333 = vcmp.eq.bf16.partialorder %v3113, 0
      %v3334 = vand.u32 2147450879, 0
      %v3335 = vand.u32 %v3113, 2147516416
      %v3336 = vor.u32 %v3334, %v3335
      %v3337 = vsel %vm3333, %v3336, %v3331
      %v3338 = vrsqrt.bf16.pop %v3114
      %v3339 = vmul.bf16 %v3114, %v3338
      %vm3341 = vcmp.eq.bf16.partialorder %v3114, 2139127680
      %v3342 = vsel %vm3341, %v3114, %v3339
      %vm3344 = vcmp.eq.bf16.partialorder %v3114, 0
      %v3345 = vand.u32 2147450879, 0
      %v3346 = vand.u32 %v3114, 2147516416
      %v3347 = vor.u32 %v3345, %v3346
      %v3348 = vsel %vm3344, %v3347, %v3342
      %v3349 = vrsqrt.bf16.pop %v3115
      %v3350 = vmul.bf16 %v3115, %v3349
      %vm3352 = vcmp.eq.bf16.partialorder %v3115, 2139127680
      %v3353 = vsel %vm3352, %v3115, %v3350
      %vm3355 = vcmp.eq.bf16.partialorder %v3115, 0
      %v3356 = vand.u32 2147450879, 0
      %v3357 = vand.u32 %v3115, 2147516416
      %v3358 = vor.u32 %v3356, %v3357
      %v3359 = vsel %vm3355, %v3358, %v3353
      %v3360 = vrsqrt.bf16.pop %v3116
      %v3361 = vmul.bf16 %v3116, %v3360
      %vm3363 = vcmp.eq.bf16.partialorder %v3116, 2139127680
      %v3364 = vsel %vm3363, %v3116, %v3361
      %vm3366 = vcmp.eq.bf16.partialorder %v3116, 0
      %v3367 = vand.u32 2147450879, 0
      %v3368 = vand.u32 %v3116, 2147516416
      %v3369 = vor.u32 %v3367, %v3368
      %v3370 = vsel %vm3366, %v3369, %v3364
      %v3371 = vrsqrt.bf16.pop %v3117
      %v3372 = vmul.bf16 %v3117, %v3371
      %vm3374 = vcmp.eq.bf16.partialorder %v3117, 2139127680
      %v3375 = vsel %vm3374, %v3117, %v3372
      %vm3377 = vcmp.eq.bf16.partialorder %v3117, 0
      %v3378 = vand.u32 2147450879, 0
      %v3379 = vand.u32 %v3117, 2147516416
      %v3380 = vor.u32 %v3378, %v3379
      %v3381 = vsel %vm3377, %v3380, %v3375
      %v3382 = vrsqrt.bf16.pop %v3118
      %v3383 = vmul.bf16 %v3118, %v3382
      %vm3385 = vcmp.eq.bf16.partialorder %v3118, 2139127680
      %v3386 = vsel %vm3385, %v3118, %v3383
      %vm3388 = vcmp.eq.bf16.partialorder %v3118, 0
      %v3389 = vand.u32 2147450879, 0
      %v3390 = vand.u32 %v3118, 2147516416
      %v3391 = vor.u32 %v3389, %v3390
      %v3392 = vsel %vm3388, %v3391, %v3386
      %v3393 = vrsqrt.bf16.pop %v3119
      %v3394 = vmul.bf16 %v3119, %v3393
      %vm3396 = vcmp.eq.bf16.partialorder %v3119, 2139127680
      %v3397 = vsel %vm3396, %v3119, %v3394
      %vm3399 = vcmp.eq.bf16.partialorder %v3119, 0
      %v3400 = vand.u32 2147450879, 0
      %v3401 = vand.u32 %v3119, 2147516416
      %v3402 = vor.u32 %v3400, %v3401
      %v3403 = vsel %vm3399, %v3402, %v3397
      %v3404 = vrsqrt.bf16.pop %v3120
      %v3405 = vmul.bf16 %v3120, %v3404
      %vm3407 = vcmp.eq.bf16.partialorder %v3120, 2139127680
      %v3408 = vsel %vm3407, %v3120, %v3405
      %vm3410 = vcmp.eq.bf16.partialorder %v3120, 0
      %v3411 = vand.u32 2147450879, 0
      %v3412 = vand.u32 %v3120, 2147516416
      %v3413 = vor.u32 %v3411, %v3412
      %v3414 = vsel %vm3410, %v3413, %v3408
      %v3415 = vrsqrt.bf16.pop %v3121
      %v3416 = vmul.bf16 %v3121, %v3415
      %vm3418 = vcmp.eq.bf16.partialorder %v3121, 2139127680
      %v3419 = vsel %vm3418, %v3121, %v3416
      %vm3421 = vcmp.eq.bf16.partialorder %v3121, 0
      %v3422 = vand.u32 2147450879, 0
      %v3423 = vand.u32 %v3121, 2147516416
      %v3424 = vor.u32 %v3422, %v3423
      %v3425 = vsel %vm3421, %v3424, %v3419
      %v3426 = vrsqrt.bf16.pop %v3122
      %v3427 = vmul.bf16 %v3122, %v3426
      %vm3429 = vcmp.eq.bf16.partialorder %v3122, 2139127680
      %v3430 = vsel %vm3429, %v3122, %v3427
      %vm3432 = vcmp.eq.bf16.partialorder %v3122, 0
      %v3433 = vand.u32 2147450879, 0
      %v3434 = vand.u32 %v3122, 2147516416
      %v3435 = vor.u32 %v3433, %v3434
      %v3436 = vsel %vm3432, %v3435, %v3430
      %v3437 = vrsqrt.bf16.pop %v3123
      %v3438 = vmul.bf16 %v3123, %v3437
      %vm3440 = vcmp.eq.bf16.partialorder %v3123, 2139127680
      %v3441 = vsel %vm3440, %v3123, %v3438
      %vm3443 = vcmp.eq.bf16.partialorder %v3123, 0
      %v3444 = vand.u32 2147450879, 0
      %v3445 = vand.u32 %v3123, 2147516416
      %v3446 = vor.u32 %v3444, %v3445
      %v3447 = vsel %vm3443, %v3446, %v3441
      %v3448 = vrsqrt.bf16.pop %v3124
      %v3449 = vmul.bf16 %v3124, %v3448
      %vm3451 = vcmp.eq.bf16.partialorder %v3124, 2139127680
      %v3452 = vsel %vm3451, %v3124, %v3449
      %vm3454 = vcmp.eq.bf16.partialorder %v3124, 0
      %v3455 = vand.u32 2147450879, 0
      %v3456 = vand.u32 %v3124, 2147516416
      %v3457 = vor.u32 %v3455, %v3456
      %v3458 = vsel %vm3454, %v3457, %v3452
      %v3459 = vrsqrt.bf16.pop %v3125
      %v3460 = vmul.bf16 %v3125, %v3459
      %vm3462 = vcmp.eq.bf16.partialorder %v3125, 2139127680
      %v3463 = vsel %vm3462, %v3125, %v3460
      %vm3465 = vcmp.eq.bf16.partialorder %v3125, 0
      %v3466 = vand.u32 2147450879, 0
      %v3467 = vand.u32 %v3125, 2147516416
      %v3468 = vor.u32 %v3466, %v3467
      %v3469 = vsel %vm3465, %v3468, %v3463
      %v3470 = vrsqrt.bf16.pop %v3126
      %v3471 = vmul.bf16 %v3126, %v3470
      %vm3473 = vcmp.eq.bf16.partialorder %v3126, 2139127680
      %v3474 = vsel %vm3473, %v3126, %v3471
      %vm3476 = vcmp.eq.bf16.partialorder %v3126, 0
      %v3477 = vand.u32 2147450879, 0
      %v3478 = vand.u32 %v3126, 2147516416
      %v3479 = vor.u32 %v3477, %v3478
      %v3480 = vsel %vm3476, %v3479, %v3474
      %v3481 = vrsqrt.bf16.pop %v3127
      %v3482 = vmul.bf16 %v3127, %v3481
      %vm3484 = vcmp.eq.bf16.partialorder %v3127, 2139127680
      %v3485 = vsel %vm3484, %v3127, %v3482
      %vm3487 = vcmp.eq.bf16.partialorder %v3127, 0
      %v3488 = vand.u32 2147450879, 0
      %v3489 = vand.u32 %v3127, 2147516416
      %v3490 = vor.u32 %v3488, %v3489
      %v3491 = vsel %vm3487, %v3490, %v3485
      %v3492 = vrsqrt.bf16.pop %v3128
      %v3493 = vmul.bf16 %v3128, %v3492
      %vm3495 = vcmp.eq.bf16.partialorder %v3128, 2139127680
      %v3496 = vsel %vm3495, %v3128, %v3493
      %vm3498 = vcmp.eq.bf16.partialorder %v3128, 0
      %v3499 = vand.u32 2147450879, 0
      %v3500 = vand.u32 %v3128, 2147516416
      %v3501 = vor.u32 %v3499, %v3500
      %v3502 = vsel %vm3498, %v3501, %v3496
      %v3503 = vrsqrt.bf16.pop %v3129
      %v3504 = vmul.bf16 %v3129, %v3503
      %vm3506 = vcmp.eq.bf16.partialorder %v3129, 2139127680
      %v3507 = vsel %vm3506, %v3129, %v3504
      %vm3509 = vcmp.eq.bf16.partialorder %v3129, 0
      %v3510 = vand.u32 2147450879, 0
      %v3511 = vand.u32 %v3129, 2147516416
      %v3512 = vor.u32 %v3510, %v3511
      %v3513 = vsel %vm3509, %v3512, %v3507
      %v3514 = vrsqrt.bf16.pop %v3130
      %v3515 = vmul.bf16 %v3130, %v3514
      %vm3517 = vcmp.eq.bf16.partialorder %v3130, 2139127680
      %v3518 = vsel %vm3517, %v3130, %v3515
      %vm3520 = vcmp.eq.bf16.partialorder %v3130, 0
      %v3521 = vand.u32 2147450879, 0
      %v3522 = vand.u32 %v3130, 2147516416
      %v3523 = vor.u32 %v3521, %v3522
      %v3524 = vsel %vm3520, %v3523, %v3518
      %v3525 = vrsqrt.bf16.pop %v3131
      %v3526 = vmul.bf16 %v3131, %v3525
      %vm3528 = vcmp.eq.bf16.partialorder %v3131, 2139127680
      %v3529 = vsel %vm3528, %v3131, %v3526
      %vm3531 = vcmp.eq.bf16.partialorder %v3131, 0
      %v3532 = vand.u32 2147450879, 0
      %v3533 = vand.u32 %v3131, 2147516416
      %v3534 = vor.u32 %v3532, %v3533
      %v3535 = vsel %vm3531, %v3534, %v3529
      %v3536 = vrsqrt.bf16.pop %v3132
      %v3537 = vmul.bf16 %v3132, %v3536
      %vm3539 = vcmp.eq.bf16.partialorder %v3132, 2139127680
      %v3540 = vsel %vm3539, %v3132, %v3537
      %vm3542 = vcmp.eq.bf16.partialorder %v3132, 0
      %v3543 = vand.u32 2147450879, 0
      %v3544 = vand.u32 %v3132, 2147516416
      %v3545 = vor.u32 %v3543, %v3544
      %v3546 = vsel %vm3542, %v3545, %v3540
      %v3547 = vrsqrt.bf16.pop %v3133
      %v3548 = vmul.bf16 %v3133, %v3547
      %vm3550 = vcmp.eq.bf16.partialorder %v3133, 2139127680
      %v3551 = vsel %vm3550, %v3133, %v3548
      %vm3553 = vcmp.eq.bf16.partialorder %v3133, 0
      %v3554 = vand.u32 2147450879, 0
      %v3555 = vand.u32 %v3133, 2147516416
      %v3556 = vor.u32 %v3554, %v3555
      %v3557 = vsel %vm3553, %v3556, %v3551
      %v3558 = vrsqrt.bf16.pop %v3134
      %v3559 = vmul.bf16 %v3134, %v3558
      %vm3561 = vcmp.eq.bf16.partialorder %v3134, 2139127680
      %v3562 = vsel %vm3561, %v3134, %v3559
      %vm3564 = vcmp.eq.bf16.partialorder %v3134, 0
      %v3565 = vand.u32 2147450879, 0
      %v3566 = vand.u32 %v3134, 2147516416
      %v3567 = vor.u32 %v3565, %v3566
      %v3568 = vsel %vm3564, %v3567, %v3562
      %v3569 = vrsqrt.bf16.pop %v3135
      %v3570 = vmul.bf16 %v3135, %v3569
      %vm3572 = vcmp.eq.bf16.partialorder %v3135, 2139127680
      %v3573 = vsel %vm3572, %v3135, %v3570
      %vm3575 = vcmp.eq.bf16.partialorder %v3135, 0
      %v3576 = vand.u32 2147450879, 0
      %v3577 = vand.u32 %v3135, 2147516416
      %v3578 = vor.u32 %v3576, %v3577
      %v3579 = vsel %vm3575, %v3578, %v3573
      %v3580 = vrsqrt.bf16.pop %v3136
      %v3581 = vmul.bf16 %v3136, %v3580
      %vm3583 = vcmp.eq.bf16.partialorder %v3136, 2139127680
      %v3584 = vsel %vm3583, %v3136, %v3581
      %vm3586 = vcmp.eq.bf16.partialorder %v3136, 0
      %v3587 = vand.u32 2147450879, 0
      %v3588 = vand.u32 %v3136, 2147516416
      %v3589 = vor.u32 %v3587, %v3588
      %v3590 = vsel %vm3586, %v3589, %v3584
      %v3591 = vrsqrt.bf16.pop %v3137
      %v3592 = vmul.bf16 %v3137, %v3591
      %vm3594 = vcmp.eq.bf16.partialorder %v3137, 2139127680
      %v3595 = vsel %vm3594, %v3137, %v3592
      %vm3597 = vcmp.eq.bf16.partialorder %v3137, 0
      %v3598 = vand.u32 2147450879, 0
      %v3599 = vand.u32 %v3137, 2147516416
      %v3600 = vor.u32 %v3598, %v3599
      %v3601 = vsel %vm3597, %v3600, %v3595
      %v3602 = vrsqrt.bf16.pop %v3138
      %v3603 = vmul.bf16 %v3138, %v3602
      %vm3605 = vcmp.eq.bf16.partialorder %v3138, 2139127680
      %v3606 = vsel %vm3605, %v3138, %v3603
      %vm3608 = vcmp.eq.bf16.partialorder %v3138, 0
      %v3609 = vand.u32 2147450879, 0
      %v3610 = vand.u32 %v3138, 2147516416
      %v3611 = vor.u32 %v3609, %v3610
      %v3612 = vsel %vm3608, %v3611, %v3606
      %v3613 = vrsqrt.bf16.pop %v3139
      %v3614 = vmul.bf16 %v3139, %v3613
      %vm3616 = vcmp.eq.bf16.partialorder %v3139, 2139127680
      %v3617 = vsel %vm3616, %v3139, %v3614
      %vm3619 = vcmp.eq.bf16.partialorder %v3139, 0
      %v3620 = vand.u32 2147450879, 0
      %v3621 = vand.u32 %v3139, 2147516416
      %v3622 = vor.u32 %v3620, %v3621
      %v3623 = vsel %vm3619, %v3622, %v3617
      %v3624 = vrsqrt.bf16.pop %v3140
      %v3625 = vmul.bf16 %v3140, %v3624
      %vm3627 = vcmp.eq.bf16.partialorder %v3140, 2139127680
      %v3628 = vsel %vm3627, %v3140, %v3625
      %vm3630 = vcmp.eq.bf16.partialorder %v3140, 0
      %v3631 = vand.u32 2147450879, 0
      %v3632 = vand.u32 %v3140, 2147516416
      %v3633 = vor.u32 %v3631, %v3632
      %v3634 = vsel %vm3630, %v3633, %v3628
      %v3635 = vrsqrt.bf16.pop %v3141
      %v3636 = vmul.bf16 %v3141, %v3635
      %vm3638 = vcmp.eq.bf16.partialorder %v3141, 2139127680
      %v3639 = vsel %vm3638, %v3141, %v3636
      %vm3641 = vcmp.eq.bf16.partialorder %v3141, 0
      %v3642 = vand.u32 2147450879, 0
      %v3643 = vand.u32 %v3141, 2147516416
      %v3644 = vor.u32 %v3642, %v3643
      %v3645 = vsel %vm3641, %v3644, %v3639
      %v3646 = vrsqrt.bf16.pop %v3142
      %v3647 = vmul.bf16 %v3142, %v3646
      %vm3649 = vcmp.eq.bf16.partialorder %v3142, 2139127680
      %v3650 = vsel %vm3649, %v3142, %v3647
      %vm3652 = vcmp.eq.bf16.partialorder %v3142, 0
      %v3653 = vand.u32 2147450879, 0
      %v3654 = vand.u32 %v3142, 2147516416
      %v3655 = vor.u32 %v3653, %v3654
      %v3656 = vsel %vm3652, %v3655, %v3650
      %v3657 = vrsqrt.bf16.pop %v3143
      %v3658 = vmul.bf16 %v3143, %v3657
      %vm3660 = vcmp.eq.bf16.partialorder %v3143, 2139127680
      %v3661 = vsel %vm3660, %v3143, %v3658
      %vm3663 = vcmp.eq.bf16.partialorder %v3143, 0
      %v3664 = vand.u32 2147450879, 0
      %v3665 = vand.u32 %v3143, 2147516416
      %v3666 = vor.u32 %v3664, %v3665
      %v3667 = vsel %vm3663, %v3666, %v3661
      %v3668 = vrsqrt.bf16.pop %v3144
      %v3669 = vmul.bf16 %v3144, %v3668
      %vm3671 = vcmp.eq.bf16.partialorder %v3144, 2139127680
      %v3672 = vsel %vm3671, %v3144, %v3669
      %vm3674 = vcmp.eq.bf16.partialorder %v3144, 0
      %v3675 = vand.u32 2147450879, 0
      %v3676 = vand.u32 %v3144, 2147516416
      %v3677 = vor.u32 %v3675, %v3676
      %v3678 = vsel %vm3674, %v3677, %v3672
      %v3679 = vrsqrt.bf16.pop %v3145
      %v3680 = vmul.bf16 %v3145, %v3679
      %vm3682 = vcmp.eq.bf16.partialorder %v3145, 2139127680
      %v3683 = vsel %vm3682, %v3145, %v3680
      %vm3685 = vcmp.eq.bf16.partialorder %v3145, 0
      %v3686 = vand.u32 2147450879, 0
      %v3687 = vand.u32 %v3145, 2147516416
      %v3688 = vor.u32 %v3686, %v3687
      %v3689 = vsel %vm3685, %v3688, %v3683
      %v3690 = vrsqrt.bf16.pop %v3146
      %v3691 = vmul.bf16 %v3146, %v3690
      %vm3693 = vcmp.eq.bf16.partialorder %v3146, 2139127680
      %v3694 = vsel %vm3693, %v3146, %v3691
      %vm3696 = vcmp.eq.bf16.partialorder %v3146, 0
      %v3697 = vand.u32 2147450879, 0
      %v3698 = vand.u32 %v3146, 2147516416
      %v3699 = vor.u32 %v3697, %v3698
      %v3700 = vsel %vm3696, %v3699, %v3694
      %v3701 = vrsqrt.bf16.pop %v3147
      %v3702 = vmul.bf16 %v3147, %v3701
      %vm3704 = vcmp.eq.bf16.partialorder %v3147, 2139127680
      %v3705 = vsel %vm3704, %v3147, %v3702
      %vm3707 = vcmp.eq.bf16.partialorder %v3147, 0
      %v3708 = vand.u32 2147450879, 0
      %v3709 = vand.u32 %v3147, 2147516416
      %v3710 = vor.u32 %v3708, %v3709
      %v3711 = vsel %vm3707, %v3710, %v3705
      %v3712 = vrsqrt.bf16.pop %v3148
      %v3713 = vmul.bf16 %v3148, %v3712
      %vm3715 = vcmp.eq.bf16.partialorder %v3148, 2139127680
      %v3716 = vsel %vm3715, %v3148, %v3713
      %vm3718 = vcmp.eq.bf16.partialorder %v3148, 0
      %v3719 = vand.u32 2147450879, 0
      %v3720 = vand.u32 %v3148, 2147516416
      %v3721 = vor.u32 %v3719, %v3720
      %v3722 = vsel %vm3718, %v3721, %v3716
      %v3723 = vrsqrt.bf16.pop %v3149
      %v3724 = vmul.bf16 %v3149, %v3723
      %vm3726 = vcmp.eq.bf16.partialorder %v3149, 2139127680
      %v3727 = vsel %vm3726, %v3149, %v3724
      %vm3729 = vcmp.eq.bf16.partialorder %v3149, 0
      %v3730 = vand.u32 2147450879, 0
      %v3731 = vand.u32 %v3149, 2147516416
      %v3732 = vor.u32 %v3730, %v3731
      %v3733 = vsel %vm3729, %v3732, %v3727
      %v3734 = vrsqrt.bf16.pop %v3150
      %v3735 = vmul.bf16 %v3150, %v3734
      %vm3737 = vcmp.eq.bf16.partialorder %v3150, 2139127680
      %v3738 = vsel %vm3737, %v3150, %v3735
      %vm3740 = vcmp.eq.bf16.partialorder %v3150, 0
      %v3741 = vand.u32 2147450879, 0
      %v3742 = vand.u32 %v3150, 2147516416
      %v3743 = vor.u32 %v3741, %v3742
      %v3744 = vsel %vm3740, %v3743, %v3738
      %v3745 = vrsqrt.bf16.pop %v3151
      %v3746 = vmul.bf16 %v3151, %v3745
      %vm3748 = vcmp.eq.bf16.partialorder %v3151, 2139127680
      %v3749 = vsel %vm3748, %v3151, %v3746
      %vm3751 = vcmp.eq.bf16.partialorder %v3151, 0
      %v3752 = vand.u32 2147450879, 0
      %v3753 = vand.u32 %v3151, 2147516416
      %v3754 = vor.u32 %v3752, %v3753
      %v3755 = vsel %vm3751, %v3754, %v3749
      %v3756 = vrsqrt.bf16.pop %v3152
      %v3757 = vmul.bf16 %v3152, %v3756
      %vm3759 = vcmp.eq.bf16.partialorder %v3152, 2139127680
      %v3760 = vsel %vm3759, %v3152, %v3757
      %vm3762 = vcmp.eq.bf16.partialorder %v3152, 0
      %v3763 = vand.u32 2147450879, 0
      %v3764 = vand.u32 %v3152, 2147516416
      %v3765 = vor.u32 %v3763, %v3764
      %v3766 = vsel %vm3762, %v3765, %v3760
      %v3767 = vrsqrt.bf16.pop %v3153
      %v3768 = vmul.bf16 %v3153, %v3767
      %vm3770 = vcmp.eq.bf16.partialorder %v3153, 2139127680
      %v3771 = vsel %vm3770, %v3153, %v3768
      %vm3773 = vcmp.eq.bf16.partialorder %v3153, 0
      %v3774 = vand.u32 2147450879, 0
      %v3775 = vand.u32 %v3153, 2147516416
      %v3776 = vor.u32 %v3774, %v3775
      %v3777 = vsel %vm3773, %v3776, %v3771
      %v3778 = vrsqrt.bf16.pop %v3154
      %v3779 = vmul.bf16 %v3154, %v3778
      %vm3781 = vcmp.eq.bf16.partialorder %v3154, 2139127680
      %v3782 = vsel %vm3781, %v3154, %v3779
      %vm3784 = vcmp.eq.bf16.partialorder %v3154, 0
      %v3785 = vand.u32 2147450879, 0
      %v3786 = vand.u32 %v3154, 2147516416
      %v3787 = vor.u32 %v3785, %v3786
      %v3788 = vsel %vm3784, %v3787, %v3782
      %v3789 = vrsqrt.bf16.pop %v3155
      %v3790 = vmul.bf16 %v3155, %v3789
      %vm3792 = vcmp.eq.bf16.partialorder %v3155, 2139127680
      %v3793 = vsel %vm3792, %v3155, %v3790
      %vm3795 = vcmp.eq.bf16.partialorder %v3155, 0
      %v3796 = vand.u32 2147450879, 0
      %v3797 = vand.u32 %v3155, 2147516416
      %v3798 = vor.u32 %v3796, %v3797
      %v3799 = vsel %vm3795, %v3798, %v3793
      %v3800 = vrsqrt.bf16.pop %v3156
      %v3801 = vmul.bf16 %v3156, %v3800
      %vm3803 = vcmp.eq.bf16.partialorder %v3156, 2139127680
      %v3804 = vsel %vm3803, %v3156, %v3801
      %vm3806 = vcmp.eq.bf16.partialorder %v3156, 0
      %v3807 = vand.u32 2147450879, 0
      %v3808 = vand.u32 %v3156, 2147516416
      %v3809 = vor.u32 %v3807, %v3808
      %v3810 = vsel %vm3806, %v3809, %v3804
      %v3811 = vrsqrt.bf16.pop %v3157
      %v3812 = vmul.bf16 %v3157, %v3811
      %vm3814 = vcmp.eq.bf16.partialorder %v3157, 2139127680
      %v3815 = vsel %vm3814, %v3157, %v3812
      %vm3817 = vcmp.eq.bf16.partialorder %v3157, 0
      %v3818 = vand.u32 2147450879, 0
      %v3819 = vand.u32 %v3157, 2147516416
      %v3820 = vor.u32 %v3818, %v3819
      %v3821 = vsel %vm3817, %v3820, %v3815
      %v3822 = vrsqrt.bf16.pop %v3158
      %v3823 = vmul.bf16 %v3158, %v3822
      %vm3825 = vcmp.eq.bf16.partialorder %v3158, 2139127680
      %v3826 = vsel %vm3825, %v3158, %v3823
      %vm3828 = vcmp.eq.bf16.partialorder %v3158, 0
      %v3829 = vand.u32 2147450879, 0
      %v3830 = vand.u32 %v3158, 2147516416
      %v3831 = vor.u32 %v3829, %v3830
      %v3832 = vsel %vm3828, %v3831, %v3826
      %v3833 = vrsqrt.bf16.pop %v3159
      %v3834 = vmul.bf16 %v3159, %v3833
      %vm3836 = vcmp.eq.bf16.partialorder %v3159, 2139127680
      %v3837 = vsel %vm3836, %v3159, %v3834
      %vm3839 = vcmp.eq.bf16.partialorder %v3159, 0
      %v3840 = vand.u32 2147450879, 0
      %v3841 = vand.u32 %v3159, 2147516416
      %v3842 = vor.u32 %v3840, %v3841
      %v3843 = vsel %vm3839, %v3842, %v3837
      %v3844 = vrsqrt.bf16.pop %v3160
      %v3845 = vmul.bf16 %v3160, %v3844
      %vm3847 = vcmp.eq.bf16.partialorder %v3160, 2139127680
      %v3848 = vsel %vm3847, %v3160, %v3845
      %vm3850 = vcmp.eq.bf16.partialorder %v3160, 0
      %v3851 = vand.u32 2147450879, 0
      %v3852 = vand.u32 %v3160, 2147516416
      %v3853 = vor.u32 %v3851, %v3852
      %v3854 = vsel %vm3850, %v3853, %v3848
      %v3855 = vrsqrt.bf16.pop %v3161
      %v3856 = vmul.bf16 %v3161, %v3855
      %vm3858 = vcmp.eq.bf16.partialorder %v3161, 2139127680
      %v3859 = vsel %vm3858, %v3161, %v3856
      %vm3861 = vcmp.eq.bf16.partialorder %v3161, 0
      %v3862 = vand.u32 2147450879, 0
      %v3863 = vand.u32 %v3161, 2147516416
      %v3864 = vor.u32 %v3862, %v3863
      %v3865 = vsel %vm3861, %v3864, %v3859
      %v3866 = vld [vmem:[%s2] sm:$0xf]
      %v3867 = vld [vmem:[%s2 + $0x4] sm:$0xf]
      %v3868 = vld [vmem:[%s2 + $0x8] sm:$0xf]
      %v3869 = vld [vmem:[%s2 + $0xc] sm:$0xf]
      %v3870 = vld [vmem:[%s2 + $0x10] sm:$0xf]
      %v3871 = vld [vmem:[%s2 + $0x14] sm:$0xf]
      %v3872 = vld [vmem:[%s2 + $0x18] sm:$0xf]
      %v3873 = vld [vmem:[%s2 + $0x1c] sm:$0xf]
      %v3874 = vld [vmem:[%s2 + $0x20] sm:$0xf]
      %v3875 = vld [vmem:[%s2 + $0x24] sm:$0xf]
      %v3876 = vld [vmem:[%s2 + $0x28] sm:$0xf]
      %v3877 = vld [vmem:[%s2 + $0x2c] sm:$0xf]
      %v3878 = vld [vmem:[%s2 + $0x30] sm:$0xf]
      %v3879 = vld [vmem:[%s2 + $0x34] sm:$0xf]
      %v3880 = vld [vmem:[%s2 + $0x38] sm:$0xf]
      %v3881 = vld [vmem:[%s2 + $0x3c] sm:$0xf]
      %v3882 = vld [vmem:[%s2 + $0x40] sm:$0xf]
      %v3883 = vld [vmem:[%s2 + $0x44] sm:$0xf]
      %v3884 = vld [vmem:[%s2 + $0x48] sm:$0xf]
      %v3885 = vld [vmem:[%s2 + $0x4c] sm:$0xf]
      %v3886 = vld [vmem:[%s2 + $0x50] sm:$0xf]
      %v3887 = vld [vmem:[%s2 + $0x54] sm:$0xf]
      %v3888 = vld [vmem:[%s2 + $0x58] sm:$0xf]
      %v3889 = vld [vmem:[%s2 + $0x5c] sm:$0xf]
      %v3890 = vld [vmem:[%s2 + $0x60] sm:$0xf]
      %v3891 = vld [vmem:[%s2 + $0x64] sm:$0xf]
      %v3892 = vld [vmem:[%s2 + $0x68] sm:$0xf]
      %v3893 = vld [vmem:[%s2 + $0x6c] sm:$0xf]
      %v3894 = vld [vmem:[%s2 + $0x70] sm:$0xf]
      %v3895 = vld [vmem:[%s2 + $0x74] sm:$0xf]
      %v3896 = vld [vmem:[%s2 + $0x78] sm:$0xf]
      %v3897 = vld [vmem:[%s2 + $0x7c] sm:$0xf]
      %v3898 = vld [vmem:[%s2 + $0x80] sm:$0xf]
      %v3899 = vld [vmem:[%s2 + $0x84] sm:$0xf]
      %v3900 = vld [vmem:[%s2 + $0x88] sm:$0xf]
      %v3901 = vld [vmem:[%s2 + $0x8c] sm:$0xf]
      %v3902 = vld [vmem:[%s2 + $0x90] sm:$0xf]
      %v3903 = vld [vmem:[%s2 + $0x94] sm:$0xf]
      %v3904 = vld [vmem:[%s2 + $0x98] sm:$0xf]
      %v3905 = vld [vmem:[%s2 + $0x9c] sm:$0xf]
      %v3906 = vld [vmem:[%s2 + $0xa0] sm:$0xf]
      %v3907 = vld [vmem:[%s2 + $0xa4] sm:$0xf]
      %v3908 = vld [vmem:[%s2 + $0xa8] sm:$0xf]
      %v3909 = vld [vmem:[%s2 + $0xac] sm:$0xf]
      %v3910 = vld [vmem:[%s2 + $0xb0] sm:$0xf]
      %v3911 = vld [vmem:[%s2 + $0xb4] sm:$0xf]
      %v3912 = vld [vmem:[%s2 + $0xb8] sm:$0xf]
      %v3913 = vld [vmem:[%s2 + $0xbc] sm:$0xf]
      %v3914 = vld [vmem:[%s2 + $0xc0] sm:$0xf]
      %v3915 = vld [vmem:[%s2 + $0xc4] sm:$0xf]
      %v3916 = vld [vmem:[%s2 + $0xc8] sm:$0xf]
      %v3917 = vld [vmem:[%s2 + $0xcc] sm:$0xf]
      %v3918 = vld [vmem:[%s2 + $0xd0] sm:$0xf]
      %v3919 = vld [vmem:[%s2 + $0xd4] sm:$0xf]
      %v3920 = vld [vmem:[%s2 + $0xd8] sm:$0xf]
      %v3921 = vld [vmem:[%s2 + $0xdc] sm:$0xf]
      %v3922 = vld [vmem:[%s2 + $0xe0] sm:$0xf]
      %v3923 = vld [vmem:[%s2 + $0xe4] sm:$0xf]
      %v3924 = vld [vmem:[%s2 + $0xe8] sm:$0xf]
      %v3925 = vld [vmem:[%s2 + $0xec] sm:$0xf]
      %v3926 = vld [vmem:[%s2 + $0xf0] sm:$0xf]
      %v3927 = vld [vmem:[%s2 + $0xf4] sm:$0xf]
      %v3928 = vld [vmem:[%s2 + $0xf8] sm:$0xf]
      %v3929 = vld [vmem:[%s2 + $0xfc] sm:$0xf]
      %v3930 = vld [vmem:[%s2 + $0x100] sm:$0xf]
      %v3931 = vld [vmem:[%s2 + $0x104] sm:$0xf]
      %v3932 = vld [vmem:[%s2 + $0x108] sm:$0xf]
      %v3933 = vld [vmem:[%s2 + $0x10c] sm:$0xf]
      %v3934 = vld [vmem:[%s2 + $0x110] sm:$0xf]
      %v3935 = vld [vmem:[%s2 + $0x114] sm:$0xf]
      %v3936 = vld [vmem:[%s2 + $0x118] sm:$0xf]
      %v3937 = vld [vmem:[%s2 + $0x11c] sm:$0xf]
      %v3938 = vld [vmem:[%s2 + $0x120] sm:$0xf]
      %v3939 = vld [vmem:[%s2 + $0x124] sm:$0xf]
      %v3940 = vld [vmem:[%s2 + $0x128] sm:$0xf]
      %v3941 = vld [vmem:[%s2 + $0x12c] sm:$0xf]
      %v3942 = vld [vmem:[%s2 + $0x130] sm:$0xf]
      %v3943 = vld [vmem:[%s2 + $0x134] sm:$0xf]
      %v3944 = vld [vmem:[%s2 + $0x138] sm:$0xf]
      %v3945 = vld [vmem:[%s2 + $0x13c] sm:$0xf]
      %v3946 = vld [vmem:[%s2 + $0x140] sm:$0xf]
      %v3947 = vld [vmem:[%s2 + $0x144] sm:$0xf]
      %v3948 = vld [vmem:[%s2 + $0x148] sm:$0xf]
      %v3949 = vld [vmem:[%s2 + $0x14c] sm:$0xf]
      %v3950 = vld [vmem:[%s2 + $0x150] sm:$0xf]
      %v3951 = vld [vmem:[%s2 + $0x154] sm:$0xf]
      %v3952 = vld [vmem:[%s2 + $0x158] sm:$0xf]
      %v3953 = vld [vmem:[%s2 + $0x15c] sm:$0xf]
      %v3954 = vld [vmem:[%s2 + $0x160] sm:$0xf]
      %v3955 = vld [vmem:[%s2 + $0x164] sm:$0xf]
      %v3956 = vld [vmem:[%s2 + $0x168] sm:$0xf]
      %v3957 = vld [vmem:[%s2 + $0x16c] sm:$0xf]
      %v3958 = vld [vmem:[%s2 + $0x170] sm:$0xf]
      %v3959 = vld [vmem:[%s2 + $0x174] sm:$0xf]
      %v3960 = vld [vmem:[%s2 + $0x178] sm:$0xf]
      %v3961 = vld [vmem:[%s2 + $0x17c] sm:$0xf]
      %v3962 = vld [vmem:[%s2 + $0x180] sm:$0xf]
      %v3963 = vld [vmem:[%s2 + $0x184] sm:$0xf]
      %v3964 = vld [vmem:[%s2 + $0x188] sm:$0xf]
      %v3965 = vld [vmem:[%s2 + $0x18c] sm:$0xf]
      %v3966 = vld [vmem:[%s2 + $0x190] sm:$0xf]
      %v3967 = vld [vmem:[%s2 + $0x194] sm:$0xf]
      %v3968 = vld [vmem:[%s2 + $0x198] sm:$0xf]
      %v3969 = vld [vmem:[%s2 + $0x19c] sm:$0xf]
      %v3970 = vld [vmem:[%s2 + $0x1a0] sm:$0xf]
      %v3971 = vld [vmem:[%s2 + $0x1a4] sm:$0xf]
      %v3972 = vld [vmem:[%s2 + $0x1a8] sm:$0xf]
      %v3973 = vld [vmem:[%s2 + $0x1ac] sm:$0xf]
      %v3974 = vld [vmem:[%s2 + $0x1b0] sm:$0xf]
      %v3975 = vld [vmem:[%s2 + $0x1b4] sm:$0xf]
      %v3976 = vld [vmem:[%s2 + $0x1b8] sm:$0xf]
      %v3977 = vld [vmem:[%s2 + $0x1bc] sm:$0xf]
      %v3978 = vld [vmem:[%s2 + $0x1c0] sm:$0xf]
      %v3979 = vld [vmem:[%s2 + $0x1c4] sm:$0xf]
      %v3980 = vld [vmem:[%s2 + $0x1c8] sm:$0xf]
      %v3981 = vld [vmem:[%s2 + $0x1cc] sm:$0xf]
      %v3982 = vld [vmem:[%s2 + $0x1d0] sm:$0xf]
      %v3983 = vld [vmem:[%s2 + $0x1d4] sm:$0xf]
      %v3984 = vld [vmem:[%s2 + $0x1d8] sm:$0xf]
      %v3985 = vld [vmem:[%s2 + $0x1dc] sm:$0xf]
      %v3986 = vld [vmem:[%s2 + $0x1e0] sm:$0xf]
      %v3987 = vld [vmem:[%s2 + $0x1e4] sm:$0xf]
      %v3988 = vld [vmem:[%s2 + $0x1e8] sm:$0xf]
      %v3989 = vld [vmem:[%s2 + $0x1ec] sm:$0xf]
      %v3990 = vld [vmem:[%s2 + $0x1f0] sm:$0xf]
      %v3991 = vld [vmem:[%s2 + $0x1f4] sm:$0xf]
      %v3992 = vld [vmem:[%s2 + $0x1f8] sm:$0xf]
      %v3993 = vld [vmem:[%s2 + $0x1fc] sm:$0xf]
      %v4122 = vunpack.c.l.b16 %v3866
      %v4123 = vunpack.c.l.b16 %v3867
      %v4124 = vunpack.c.l.b16 %v3868
      %v4125 = vunpack.c.l.b16 %v3869
      %v4126 = vunpack.c.l.b16 %v3870
      %v4127 = vunpack.c.l.b16 %v3871
      %v4128 = vunpack.c.l.b16 %v3872
      %v4129 = vunpack.c.l.b16 %v3873
      %v4130 = vunpack.c.l.b16 %v3874
      %v4131 = vunpack.c.l.b16 %v3875
      %v4132 = vunpack.c.l.b16 %v3876
      %v4133 = vunpack.c.l.b16 %v3877
      %v4134 = vunpack.c.l.b16 %v3878
      %v4135 = vunpack.c.l.b16 %v3879
      %v4136 = vunpack.c.l.b16 %v3880
      %v4137 = vunpack.c.l.b16 %v3881
      %v4138 = vunpack.c.l.b16 %v3882
      %v4139 = vunpack.c.l.b16 %v3883
      %v4140 = vunpack.c.l.b16 %v3884
      %v4141 = vunpack.c.l.b16 %v3885
      %v4142 = vunpack.c.l.b16 %v3886
      %v4143 = vunpack.c.l.b16 %v3887
      %v4144 = vunpack.c.l.b16 %v3888
      %v4145 = vunpack.c.l.b16 %v3889
      %v4146 = vunpack.c.l.b16 %v3890
      %v4147 = vunpack.c.l.b16 %v3891
      %v4148 = vunpack.c.l.b16 %v3892
      %v4149 = vunpack.c.l.b16 %v3893
      %v4150 = vunpack.c.l.b16 %v3894
      %v4151 = vunpack.c.l.b16 %v3895
      %v4152 = vunpack.c.l.b16 %v3896
      %v4153 = vunpack.c.l.b16 %v3897
      %v4154 = vunpack.c.l.b16 %v3898
      %v4155 = vunpack.c.l.b16 %v3899
      %v4156 = vunpack.c.l.b16 %v3900
      %v4157 = vunpack.c.l.b16 %v3901
      %v4158 = vunpack.c.l.b16 %v3902
      %v4159 = vunpack.c.l.b16 %v3903
      %v4160 = vunpack.c.l.b16 %v3904
      %v4161 = vunpack.c.l.b16 %v3905
      %v4162 = vunpack.c.l.b16 %v3906
      %v4163 = vunpack.c.l.b16 %v3907
      %v4164 = vunpack.c.l.b16 %v3908
      %v4165 = vunpack.c.l.b16 %v3909
      %v4166 = vunpack.c.l.b16 %v3910
      %v4167 = vunpack.c.l.b16 %v3911
      %v4168 = vunpack.c.l.b16 %v3912
      %v4169 = vunpack.c.l.b16 %v3913
      %v4170 = vunpack.c.l.b16 %v3914
      %v4171 = vunpack.c.l.b16 %v3915
      %v4172 = vunpack.c.l.b16 %v3916
      %v4173 = vunpack.c.l.b16 %v3917
      %v4174 = vunpack.c.l.b16 %v3918
      %v4175 = vunpack.c.l.b16 %v3919
      %v4176 = vunpack.c.l.b16 %v3920
      %v4177 = vunpack.c.l.b16 %v3921
      %v4178 = vunpack.c.l.b16 %v3922
      %v4179 = vunpack.c.l.b16 %v3923
      %v4180 = vunpack.c.l.b16 %v3924
      %v4181 = vunpack.c.l.b16 %v3925
      %v4182 = vunpack.c.l.b16 %v3926
      %v4183 = vunpack.c.l.b16 %v3927
      %v4184 = vunpack.c.l.b16 %v3928
      %v4185 = vunpack.c.l.b16 %v3929
      %v4186 = vunpack.c.l.b16 %v3930
      %v4187 = vunpack.c.l.b16 %v3931
      %v4188 = vunpack.c.l.b16 %v3932
      %v4189 = vunpack.c.l.b16 %v3933
      %v4190 = vunpack.c.l.b16 %v3934
      %v4191 = vunpack.c.l.b16 %v3935
      %v4192 = vunpack.c.l.b16 %v3936
      %v4193 = vunpack.c.l.b16 %v3937
      %v4194 = vunpack.c.l.b16 %v3938
      %v4195 = vunpack.c.l.b16 %v3939
      %v4196 = vunpack.c.l.b16 %v3940
      %v4197 = vunpack.c.l.b16 %v3941
      %v4198 = vunpack.c.l.b16 %v3942
      %v4199 = vunpack.c.l.b16 %v3943
      %v4200 = vunpack.c.l.b16 %v3944
      %v4201 = vunpack.c.l.b16 %v3945
      %v4202 = vunpack.c.l.b16 %v3946
      %v4203 = vunpack.c.l.b16 %v3947
      %v4204 = vunpack.c.l.b16 %v3948
      %v4205 = vunpack.c.l.b16 %v3949
      %v4206 = vunpack.c.l.b16 %v3950
      %v4207 = vunpack.c.l.b16 %v3951
      %v4208 = vunpack.c.l.b16 %v3952
      %v4209 = vunpack.c.l.b16 %v3953
      %v4210 = vunpack.c.l.b16 %v3954
      %v4211 = vunpack.c.l.b16 %v3955
      %v4212 = vunpack.c.l.b16 %v3956
      %v4213 = vunpack.c.l.b16 %v3957
      %v4214 = vunpack.c.l.b16 %v3958
      %v4215 = vunpack.c.l.b16 %v3959
      %v4216 = vunpack.c.l.b16 %v3960
      %v4217 = vunpack.c.l.b16 %v3961
      %v4218 = vunpack.c.l.b16 %v3962
      %v4219 = vunpack.c.l.b16 %v3963
      %v4220 = vunpack.c.l.b16 %v3964
      %v4221 = vunpack.c.l.b16 %v3965
      %v4222 = vunpack.c.l.b16 %v3966
      %v4223 = vunpack.c.l.b16 %v3967
      %v4224 = vunpack.c.l.b16 %v3968
      %v4225 = vunpack.c.l.b16 %v3969
      %v4226 = vunpack.c.l.b16 %v3970
      %v4227 = vunpack.c.l.b16 %v3971
      %v4228 = vunpack.c.l.b16 %v3972
      %v4229 = vunpack.c.l.b16 %v3973
      %v4230 = vunpack.c.l.b16 %v3974
      %v4231 = vunpack.c.l.b16 %v3975
      %v4232 = vunpack.c.l.b16 %v3976
      %v4233 = vunpack.c.l.b16 %v3977
      %v4234 = vunpack.c.l.b16 %v3978
      %v4235 = vunpack.c.l.b16 %v3979
      %v4236 = vunpack.c.l.b16 %v3980
      %v4237 = vunpack.c.l.b16 %v3981
      %v4238 = vunpack.c.l.b16 %v3982
      %v4239 = vunpack.c.l.b16 %v3983
      %v4240 = vunpack.c.l.b16 %v3984
      %v4241 = vunpack.c.l.b16 %v3985
      %v4242 = vunpack.c.l.b16 %v3986
      %v4243 = vunpack.c.l.b16 %v3987
      %v4244 = vunpack.c.l.b16 %v3988
      %v4245 = vunpack.c.l.b16 %v3989
      %v4246 = vunpack.c.l.b16 %v3990
      %v4247 = vunpack.c.l.b16 %v3991
      %v4248 = vunpack.c.l.b16 %v3992
      %v4249 = vunpack.c.l.b16 %v3993
      %v4250 = vpack.c.b16 %v4123, %v4122
      %v4251 = vpack.c.b16 %v4125, %v4124
      %v4252 = vpack.c.b16 %v4127, %v4126
      %v4253 = vpack.c.b16 %v4129, %v4128
      %v4254 = vpack.c.b16 %v4131, %v4130
      %v4255 = vpack.c.b16 %v4133, %v4132
      %v4256 = vpack.c.b16 %v4135, %v4134
      %v4257 = vpack.c.b16 %v4137, %v4136
      %v4258 = vpack.c.b16 %v4139, %v4138
      %v4259 = vpack.c.b16 %v4141, %v4140
      %v4260 = vpack.c.b16 %v4143, %v4142
      %v4261 = vpack.c.b16 %v4145, %v4144
      %v4262 = vpack.c.b16 %v4147, %v4146
      %v4263 = vpack.c.b16 %v4149, %v4148
      %v4264 = vpack.c.b16 %v4151, %v4150
      %v4265 = vpack.c.b16 %v4153, %v4152
      %v4266 = vpack.c.b16 %v4155, %v4154
      %v4267 = vpack.c.b16 %v4157, %v4156
      %v4268 = vpack.c.b16 %v4159, %v4158
      %v4269 = vpack.c.b16 %v4161, %v4160
      %v4270 = vpack.c.b16 %v4163, %v4162
      %v4271 = vpack.c.b16 %v4165, %v4164
      %v4272 = vpack.c.b16 %v4167, %v4166
      %v4273 = vpack.c.b16 %v4169, %v4168
      %v4274 = vpack.c.b16 %v4171, %v4170
      %v4275 = vpack.c.b16 %v4173, %v4172
      %v4276 = vpack.c.b16 %v4175, %v4174
      %v4277 = vpack.c.b16 %v4177, %v4176
      %v4278 = vpack.c.b16 %v4179, %v4178
      %v4279 = vpack.c.b16 %v4181, %v4180
      %v4280 = vpack.c.b16 %v4183, %v4182
      %v4281 = vpack.c.b16 %v4185, %v4184
      %v4282 = vpack.c.b16 %v4187, %v4186
      %v4283 = vpack.c.b16 %v4189, %v4188
      %v4284 = vpack.c.b16 %v4191, %v4190
      %v4285 = vpack.c.b16 %v4193, %v4192
      %v4286 = vpack.c.b16 %v4195, %v4194
      %v4287 = vpack.c.b16 %v4197, %v4196
      %v4288 = vpack.c.b16 %v4199, %v4198
      %v4289 = vpack.c.b16 %v4201, %v4200
      %v4290 = vpack.c.b16 %v4203, %v4202
      %v4291 = vpack.c.b16 %v4205, %v4204
      %v4292 = vpack.c.b16 %v4207, %v4206
      %v4293 = vpack.c.b16 %v4209, %v4208
      %v4294 = vpack.c.b16 %v4211, %v4210
      %v4295 = vpack.c.b16 %v4213, %v4212
      %v4296 = vpack.c.b16 %v4215, %v4214
      %v4297 = vpack.c.b16 %v4217, %v4216
      %v4298 = vpack.c.b16 %v4219, %v4218
      %v4299 = vpack.c.b16 %v4221, %v4220
      %v4300 = vpack.c.b16 %v4223, %v4222
      %v4301 = vpack.c.b16 %v4225, %v4224
      %v4302 = vpack.c.b16 %v4227, %v4226
      %v4303 = vpack.c.b16 %v4229, %v4228
      %v4304 = vpack.c.b16 %v4231, %v4230
      %v4305 = vpack.c.b16 %v4233, %v4232
      %v4306 = vpack.c.b16 %v4235, %v4234
      %v4307 = vpack.c.b16 %v4237, %v4236
      %v4308 = vpack.c.b16 %v4239, %v4238
      %v4309 = vpack.c.b16 %v4241, %v4240
      %v4310 = vpack.c.b16 %v4243, %v4242
      %v4311 = vpack.c.b16 %v4245, %v4244
      %v4312 = vpack.c.b16 %v4247, %v4246
      %v4313 = vpack.c.b16 %v4249, %v4248
      %4378 = vmatprep.subr.bf16.mxu0 0
      %4379 = vmatpush1.bf16.msra.mxu0 %v4250
      %4380 = vmatprep.subr.bf16.mxu0 0
      %4381 = vmatpush1.bf16.msra.mxu0 %v4251
      %4382 = vmatprep.subr.bf16.mxu0 0
      %4383 = vmatpush1.bf16.msra.mxu0 %v4252
      %4384 = vmatprep.subr.bf16.mxu0 0
      %4385 = vmatpush1.bf16.msra.mxu0 %v4253
      %4386 = vmatprep.subr.bf16.mxu0 0
      %4387 = vmatpush1.bf16.msra.mxu0 %v4254
      %4388 = vmatprep.subr.bf16.mxu0 0
      %4389 = vmatpush1.bf16.msra.mxu0 %v4255
      %4390 = vmatprep.subr.bf16.mxu0 0
      %4391 = vmatpush1.bf16.msra.mxu0 %v4256
      %4392 = vmatprep.subr.bf16.mxu0 0
      %4393 = vmatpush1.bf16.msra.mxu0 %v4257
      %4394 = vmatprep.subr.bf16.mxu0 0
      %4395 = vmatpush1.bf16.msra.mxu0 %v4258
      %4396 = vmatprep.subr.bf16.mxu0 0
      %4397 = vmatpush1.bf16.msra.mxu0 %v4259
      %4398 = vmatprep.subr.bf16.mxu0 0
      %4399 = vmatpush1.bf16.msra.mxu0 %v4260
      %4400 = vmatprep.subr.bf16.mxu0 0
      %4401 = vmatpush1.bf16.msra.mxu0 %v4261
      %4402 = vmatprep.subr.bf16.mxu0 0
      %4403 = vmatpush1.bf16.msra.mxu0 %v4262
      %4404 = vmatprep.subr.bf16.mxu0 0
      %4405 = vmatpush1.bf16.msra.mxu0 %v4263
      %4406 = vmatprep.subr.bf16.mxu0 0
      %4407 = vmatpush1.bf16.msra.mxu0 %v4264
      %4408 = vmatprep.subr.bf16.mxu0 0
      %4409 = vmatpush1.bf16.msra.mxu0 %v4265
      %4410 = vmatprep.mubr.bf16.mxu0 %v3183
      %4411 = vmatmul.mubr.bf16.gmra.mrb[0].mxu0 %v3172
      %v4412 = vpop.f32.mrb[0].mxu0
      %v4413 = vadd.f32 0.0, %v4412
      %v4414 = vpop.f32.mrb[0].mxu0
      %v4415 = vpop.f32.mrb[0].mxu0
      %v4416 = vadd.f32 0.0, %v4415
      %v4417 = vpop.f32.mrb[0].mxu0
      %4418 = vmatprep.mubr.bf16.mxu0 %v3271
      %4419 = vmatmul.mubr.bf16.gmra.mrb[0].mxu0 %v3260
      %v4420 = vpop.f32.mrb[0].mxu0
      %v4421 = vadd.f32 0.0, %v4420
      %v4422 = vpop.f32.mrb[0].mxu0
      %v4423 = vpop.f32.mrb[0].mxu0
      %v4424 = vadd.f32 0.0, %v4423
      %v4425 = vpop.f32.mrb[0].mxu0
      %4426 = vmatprep.mubr.bf16.mxu0 %v3359
      %4427 = vmatmul.mubr.bf16.gmra.mrb[0].mxu0 %v3348
      %v4428 = vpop.f32.mrb[0].mxu0
      %v4429 = vadd.f32 0.0, %v4428
      %v4430 = vpop.f32.mrb[0].mxu0
      %v4431 = vpop.f32.mrb[0].mxu0
      %v4432 = vadd.f32 0.0, %v4431
      %v4433 = vpop.f32.mrb[0].mxu0
      %4434 = vmatprep.mubr.bf16.mxu0 %v3447
      %4435 = vmatmul.mubr.bf16.gmra.mrb[0].mxu0 %v3436
      %v4436 = vpop.f32.mrb[0].mxu0
      %v4437 = vadd.f32 0.0, %v4436
      %v4438 = vpop.f32.mrb[0].mxu0
      %v4439 = vpop.f32.mrb[0].mxu0
      %v4440 = vadd.f32 0.0, %v4439
      %v4441 = vpop.f32.mrb[0].mxu0
      %4442 = vmatprep.mubr.bf16.mxu0 %v3535
      %4443 = vmatmul.mubr.bf16.gmra.mrb[0].mxu0 %v3524
      %v4444 = vpop.f32.mrb[0].mxu0
      %v4445 = vadd.f32 0.0, %v4444
      %v4446 = vpop.f32.mrb[0].mxu0
      %v4447 = vpop.f32.mrb[0].mxu0
      %v4448 = vadd.f32 0.0, %v4447
      %v4449 = vpop.f32.mrb[0].mxu0
      %4450 = vmatprep.mubr.bf16.mxu0 %v3623
      %4451 = vmatmul.mubr.bf16.gmra.mrb[0].mxu0 %v3612
      %v4452 = vpop.f32.mrb[0].mxu0
      %v4453 = vadd.f32 0.0, %v4452
      %v4454 = vpop.f32.mrb[0].mxu0
      %v4455 = vpop.f32.mrb[0].mxu0
      %v4456 = vadd.f32 0.0, %v4455
      %v4457 = vpop.f32.mrb[0].mxu0
      %4458 = vmatprep.mubr.bf16.mxu0 %v3711
      %4459 = vmatmul.mubr.bf16.gmra.mrb[0].mxu0 %v3700
      %v4460 = vpop.f32.mrb[0].mxu0
      %v4461 = vadd.f32 0.0, %v4460
      %v4462 = vpop.f32.mrb[0].mxu0
      %v4463 = vpop.f32.mrb[0].mxu0
      %v4464 = vadd.f32 0.0, %v4463
      %v4465 = vpop.f32.mrb[0].mxu0
      %4466 = vmatprep.mubr.bf16.mxu0 %v3799
      %4467 = vmatmul.mubr.bf16.gmra.mrb[0].mxu0 %v3788
      %v4468 = vpop.f32.mrb[0].mxu0
      %v4469 = vadd.f32 0.0, %v4468
      %v4470 = vpop.f32.mrb[0].mxu0
      %v4471 = vpop.f32.mrb[0].mxu0
      %v4472 = vadd.f32 0.0, %v4471
      %v4473 = vpop.f32.mrb[0].mxu0
      %4474 = vdwg.mxu0
      %4475 = vmatprep.subr.bf16.mxu0 0
      %4476 = vmatpush1.bf16.msra.mxu0 %v4266
      %4477 = vmatprep.subr.bf16.mxu0 0
      %4478 = vmatpush1.bf16.msra.mxu0 %v4267
      %4479 = vmatprep.subr.bf16.mxu0 0
      %4480 = vmatpush1.bf16.msra.mxu0 %v4268
      %4481 = vmatprep.subr.bf16.mxu0 0
      %4482 = vmatpush1.bf16.msra.mxu0 %v4269
      %4483 = vmatprep.subr.bf16.mxu0 0
      %4484 = vmatpush1.bf16.msra.mxu0 %v4270
      %4485 = vmatprep.subr.bf16.mxu0 0
      %4486 = vmatpush1.bf16.msra.mxu0 %v4271
      %4487 = vmatprep.subr.bf16.mxu0 0
      %4488 = vmatpush1.bf16.msra.mxu0 %v4272
      %4489 = vmatprep.subr.bf16.mxu0 0
      %4490 = vmatpush1.bf16.msra.mxu0 %v4273
      %4491 = vmatprep.subr.bf16.mxu0 0
      %4492 = vmatpush1.bf16.msra.mxu0 %v4274
      %4493 = vmatprep.subr.bf16.mxu0 0
      %4494 = vmatpush1.bf16.msra.mxu0 %v4275
      %4495 = vmatprep.subr.bf16.mxu0 0
      %4496 = vmatpush1.bf16.msra.mxu0 %v4276
      %4497 = vmatprep.subr.bf16.mxu0 0
      %4498 = vmatpush1.bf16.msra.mxu0 %v4277
      %4499 = vmatprep.subr.bf16.mxu0 0
      %4500 = vmatpush1.bf16.msra.mxu0 %v4278
      %4501 = vmatprep.subr.bf16.mxu0 0
      %4502 = vmatpush1.bf16.msra.mxu0 %v4279
      %4503 = vmatprep.subr.bf16.mxu0 0
      %4504 = vmatpush1.bf16.msra.mxu0 %v4280
      %4505 = vmatprep.subr.bf16.mxu0 0
      %4506 = vmatpush1.bf16.msra.mxu0 %v4281
      %4507 = vmatprep.mubr.bf16.mxu0 %v3205
      %4508 = vmatmul.mubr.bf16.gmra.mrb[0].mxu0 %v3194
      %v4509 = vpop.f32.mrb[0].mxu0
      %v4510 = vadd.f32 %v4413, %v4509
      %v4511 = vpop.f32.mrb[0].mxu0
      %v4512 = vpop.f32.mrb[0].mxu0
      %v4513 = vadd.f32 %v4416, %v4512
      %v4514 = vpop.f32.mrb[0].mxu0
      %4515 = vmatprep.mubr.bf16.mxu0 %v3293
      %4516 = vmatmul.mubr.bf16.gmra.mrb[0].mxu0 %v3282
      %v4517 = vpop.f32.mrb[0].mxu0
      %v4518 = vadd.f32 %v4421, %v4517
      %v4519 = vpop.f32.mrb[0].mxu0
      %v4520 = vpop.f32.mrb[0].mxu0
      %v4521 = vadd.f32 %v4424, %v4520
      %v4522 = vpop.f32.mrb[0].mxu0
      %4523 = vmatprep.mubr.bf16.mxu0 %v3381
      %4524 = vmatmul.mubr.bf16.gmra.mrb[0].mxu0 %v3370
      %v4525 = vpop.f32.mrb[0].mxu0
      %v4526 = vadd.f32 %v4429, %v4525
      %v4527 = vpop.f32.mrb[0].mxu0
      %v4528 = vpop.f32.mrb[0].mxu0
      %v4529 = vadd.f32 %v4432, %v4528
      %v4530 = vpop.f32.mrb[0].mxu0
      %4531 = vmatprep.mubr.bf16.mxu0 %v3469
      %4532 = vmatmul.mubr.bf16.gmra.mrb[0].mxu0 %v3458
      %v4533 = vpop.f32.mrb[0].mxu0
      %v4534 = vadd.f32 %v4437, %v4533
      %v4535 = vpop.f32.mrb[0].mxu0
      %v4536 = vpop.f32.mrb[0].mxu0
      %v4537 = vadd.f32 %v4440, %v4536
      %v4538 = vpop.f32.mrb[0].mxu0
      %4539 = vmatprep.mubr.bf16.mxu0 %v3557
      %4540 = vmatmul.mubr.bf16.gmra.mrb[0].mxu0 %v3546
      %v4541 = vpop.f32.mrb[0].mxu0
      %v4542 = vadd.f32 %v4445, %v4541
      %v4543 = vpop.f32.mrb[0].mxu0
      %v4544 = vpop.f32.mrb[0].mxu0
      %v4545 = vadd.f32 %v4448, %v4544
      %v4546 = vpop.f32.mrb[0].mxu0
      %4547 = vmatprep.mubr.bf16.mxu0 %v3645
      %4548 = vmatmul.mubr.bf16.gmra.mrb[0].mxu0 %v3634
      %v4549 = vpop.f32.mrb[0].mxu0
      %v4550 = vadd.f32 %v4453, %v4549
      %v4551 = vpop.f32.mrb[0].mxu0
      %v4552 = vpop.f32.mrb[0].mxu0
      %v4553 = vadd.f32 %v4456, %v4552
      %v4554 = vpop.f32.mrb[0].mxu0
      %4555 = vmatprep.mubr.bf16.mxu0 %v3733
      %4556 = vmatmul.mubr.bf16.gmra.mrb[0].mxu0 %v3722
      %v4557 = vpop.f32.mrb[0].mxu0
      %v4558 = vadd.f32 %v4461, %v4557
      %v4559 = vpop.f32.mrb[0].mxu0
      %v4560 = vpop.f32.mrb[0].mxu0
      %v4561 = vadd.f32 %v4464, %v4560
      %v4562 = vpop.f32.mrb[0].mxu0
      %4563 = vmatprep.mubr.bf16.mxu0 %v3821
      %4564 = vmatmul.mubr.bf16.gmra.mrb[0].mxu0 %v3810
      %v4565 = vpop.f32.mrb[0].mxu0
      %v4566 = vadd.f32 %v4469, %v4565
      %v4567 = vpop.f32.mrb[0].mxu0
      %v4568 = vpop.f32.mrb[0].mxu0
      %v4569 = vadd.f32 %v4472, %v4568
      %v4570 = vpop.f32.mrb[0].mxu0
      %4571 = vdwg.mxu0
      %4572 = vmatprep.subr.bf16.mxu0 0
      %4573 = vmatpush1.bf16.msra.mxu0 %v4282
      %4574 = vmatprep.subr.bf16.mxu0 0
      %4575 = vmatpush1.bf16.msra.mxu0 %v4283
      %4576 = vmatprep.subr.bf16.mxu0 0
      %4577 = vmatpush1.bf16.msra.mxu0 %v4284
      %4578 = vmatprep.subr.bf16.mxu0 0
      %4579 = vmatpush1.bf16.msra.mxu0 %v4285
      %4580 = vmatprep.subr.bf16.mxu0 0
      %4581 = vmatpush1.bf16.msra.mxu0 %v4286
      %4582 = vmatprep.subr.bf16.mxu0 0
      %4583 = vmatpush1.bf16.msra.mxu0 %v4287
      %4584 = vmatprep.subr.bf16.mxu0 0
      %4585 = vmatpush1.bf16.msra.mxu0 %v4288
      %4586 = vmatprep.subr.bf16.mxu0 0
      %4587 = vmatpush1.bf16.msra.mxu0 %v4289
      %4588 = vmatprep.subr.bf16.mxu0 0
      %4589 = vmatpush1.bf16.msra.mxu0 %v4290
      %4590 = vmatprep.subr.bf16.mxu0 0
      %4591 = vmatpush1.bf16.msra.mxu0 %v4291
      %4592 = vmatprep.subr.bf16.mxu0 0
      %4593 = vmatpush1.bf16.msra.mxu0 %v4292
      %4594 = vmatprep.subr.bf16.mxu0 0
      %4595 = vmatpush1.bf16.msra.mxu0 %v4293
      %4596 = vmatprep.subr.bf16.mxu0 0
      %4597 = vmatpush1.bf16.msra.mxu0 %v4294
      %4598 = vmatprep.subr.bf16.mxu0 0
      %4599 = vmatpush1.bf16.msra.mxu0 %v4295
      %4600 = vmatprep.subr.bf16.mxu0 0
      %4601 = vmatpush1.bf16.msra.mxu0 %v4296
      %4602 = vmatprep.subr.bf16.mxu0 0
      %4603 = vmatpush1.bf16.msra.mxu0 %v4297
      %4604 = vmatprep.mubr.bf16.mxu0 %v3227
      %4605 = vmatmul.mubr.bf16.gmra.mrb[0].mxu0 %v3216
      %v4606 = vpop.f32.mrb[0].mxu0
      %v4607 = vadd.f32 %v4510, %v4606
      %v4608 = vpop.f32.mrb[0].mxu0
      %v4609 = vpop.f32.mrb[0].mxu0
      %v4610 = vadd.f32 %v4513, %v4609
      %v4611 = vpop.f32.mrb[0].mxu0
      %4612 = vmatprep.mubr.bf16.mxu0 %v3315
      %4613 = vmatmul.mubr.bf16.gmra.mrb[0].mxu0 %v3304
      %v4614 = vpop.f32.mrb[0].mxu0
      %v4615 = vadd.f32 %v4518, %v4614
      %v4616 = vpop.f32.mrb[0].mxu0
      %v4617 = vpop.f32.mrb[0].mxu0
      %v4618 = vadd.f32 %v4521, %v4617
      %v4619 = vpop.f32.mrb[0].mxu0
      %4620 = vmatprep.mubr.bf16.mxu0 %v3403
      %4621 = vmatmul.mubr.bf16.gmra.mrb[0].mxu0 %v3392
      %v4622 = vpop.f32.mrb[0].mxu0
      %v4623 = vadd.f32 %v4526, %v4622
      %v4624 = vpop.f32.mrb[0].mxu0
      %v4625 = vpop.f32.mrb[0].mxu0
      %v4626 = vadd.f32 %v4529, %v4625
      %v4627 = vpop.f32.mrb[0].mxu0
      %4628 = vmatprep.mubr.bf16.mxu0 %v3491
      %4629 = vmatmul.mubr.bf16.gmra.mrb[0].mxu0 %v3480
      %v4630 = vpop.f32.mrb[0].mxu0
      %v4631 = vadd.f32 %v4534, %v4630
      %v4632 = vpop.f32.mrb[0].mxu0
      %v4633 = vpop.f32.mrb[0].mxu0
      %v4634 = vadd.f32 %v4537, %v4633
      %v4635 = vpop.f32.mrb[0].mxu0
      %4636 = vmatprep.mubr.bf16.mxu0 %v3579
      %4637 = vmatmul.mubr.bf16.gmra.mrb[0].mxu0 %v3568
      %v4638 = vpop.f32.mrb[0].mxu0
      %v4639 = vadd.f32 %v4542, %v4638
      %v4640 = vpop.f32.mrb[0].mxu0
      %v4641 = vpop.f32.mrb[0].mxu0
      %v4642 = vadd.f32 %v4545, %v4641
      %v4643 = vpop.f32.mrb[0].mxu0
      %4644 = vmatprep.mubr.bf16.mxu0 %v3667
      %4645 = vmatmul.mubr.bf16.gmra.mrb[0].mxu0 %v3656
      %v4646 = vpop.f32.mrb[0].mxu0
      %v4647 = vadd.f32 %v4550, %v4646
      %v4648 = vpop.f32.mrb[0].mxu0
      %v4649 = vpop.f32.mrb[0].mxu0
      %v4650 = vadd.f32 %v4553, %v4649
      %v4651 = vpop.f32.mrb[0].mxu0
      %4652 = vmatprep.mubr.bf16.mxu0 %v3755
      %4653 = vmatmul.mubr.bf16.gmra.mrb[0].mxu0 %v3744
      %v4654 = vpop.f32.mrb[0].mxu0
      %v4655 = vadd.f32 %v4558, %v4654
      %v4656 = vpop.f32.mrb[0].mxu0
      %v4657 = vpop.f32.mrb[0].mxu0
      %v4658 = vadd.f32 %v4561, %v4657
      %v4659 = vpop.f32.mrb[0].mxu0
      %4660 = vmatprep.mubr.bf16.mxu0 %v3843
      %4661 = vmatmul.mubr.bf16.gmra.mrb[0].mxu0 %v3832
      %v4662 = vpop.f32.mrb[0].mxu0
      %v4663 = vadd.f32 %v4566, %v4662
      %v4664 = vpop.f32.mrb[0].mxu0
      %v4665 = vpop.f32.mrb[0].mxu0
      %v4666 = vadd.f32 %v4569, %v4665
      %v4667 = vpop.f32.mrb[0].mxu0
      %4668 = vdwg.mxu0
      %4669 = vmatprep.subr.bf16.mxu0 0
      %4670 = vmatpush1.bf16.msra.mxu0 %v4298
      %4671 = vmatprep.subr.bf16.mxu0 0
      %4672 = vmatpush1.bf16.msra.mxu0 %v4299
      %4673 = vmatprep.subr.bf16.mxu0 0
      %4674 = vmatpush1.bf16.msra.mxu0 %v4300
      %4675 = vmatprep.subr.bf16.mxu0 0
      %4676 = vmatpush1.bf16.msra.mxu0 %v4301
      %4677 = vmatprep.subr.bf16.mxu0 0
      %4678 = vmatpush1.bf16.msra.mxu0 %v4302
      %4679 = vmatprep.subr.bf16.mxu0 0
      %4680 = vmatpush1.bf16.msra.mxu0 %v4303
      %4681 = vmatprep.subr.bf16.mxu0 0
      %4682 = vmatpush1.bf16.msra.mxu0 %v4304
      %4683 = vmatprep.subr.bf16.mxu0 0
      %4684 = vmatpush1.bf16.msra.mxu0 %v4305
      %4685 = vmatprep.subr.bf16.mxu0 0
      %4686 = vmatpush1.bf16.msra.mxu0 %v4306
      %4687 = vmatprep.subr.bf16.mxu0 0
      %4688 = vmatpush1.bf16.msra.mxu0 %v4307
      %4689 = vmatprep.subr.bf16.mxu0 0
      %4690 = vmatpush1.bf16.msra.mxu0 %v4308
      %4691 = vmatprep.subr.bf16.mxu0 0
      %4692 = vmatpush1.bf16.msra.mxu0 %v4309
      %4693 = vmatprep.subr.bf16.mxu0 0
      %4694 = vmatpush1.bf16.msra.mxu0 %v4310
      %4695 = vmatprep.subr.bf16.mxu0 0
      %4696 = vmatpush1.bf16.msra.mxu0 %v4311
      %4697 = vmatprep.subr.bf16.mxu0 0
      %4698 = vmatpush1.bf16.msra.mxu0 %v4312
      %4699 = vmatprep.subr.bf16.mxu0 0
      %4700 = vmatpush1.bf16.msra.mxu0 %v4313
      %4701 = vmatprep.mubr.bf16.mxu0 %v3249
      %4702 = vmatmul.mubr.bf16.gmra.mrb[0].mxu0 %v3238
      %v4703 = vpop.f32.mrb[0].mxu0
      %v4704 = vadd.f32 %v4607, %v4703
      %v4705 = vpop.f32.mrb[0].mxu0
      %v4706 = vpop.f32.mrb[0].mxu0
      %v4707 = vadd.f32 %v4610, %v4706
      %v4708 = vpop.f32.mrb[0].mxu0
      %4709 = vmatprep.mubr.bf16.mxu0 %v3337
      %4710 = vmatmul.mubr.bf16.gmra.mrb[0].mxu0 %v3326
      %v4711 = vpop.f32.mrb[0].mxu0
      %v4712 = vadd.f32 %v4615, %v4711
      %v4713 = vpop.f32.mrb[0].mxu0
      %v4714 = vpop.f32.mrb[0].mxu0
      %v4715 = vadd.f32 %v4618, %v4714
      %v4716 = vpop.f32.mrb[0].mxu0
      %4717 = vmatprep.mubr.bf16.mxu0 %v3425
      %4718 = vmatmul.mubr.bf16.gmra.mrb[0].mxu0 %v3414
      %v4719 = vpop.f32.mrb[0].mxu0
      %v4720 = vadd.f32 %v4623, %v4719
      %v4721 = vpop.f32.mrb[0].mxu0
      %v4722 = vpop.f32.mrb[0].mxu0
      %v4723 = vadd.f32 %v4626, %v4722
      %v4724 = vpop.f32.mrb[0].mxu0
      %4725 = vmatprep.mubr.bf16.mxu0 %v3513
      %4726 = vmatmul.mubr.bf16.gmra.mrb[0].mxu0 %v3502
      %v4727 = vpop.f32.mrb[0].mxu0
      %v4728 = vadd.f32 %v4631, %v4727
      %v4729 = vpop.f32.mrb[0].mxu0
      %v4730 = vpop.f32.mrb[0].mxu0
      %v4731 = vadd.f32 %v4634, %v4730
      %v4732 = vpop.f32.mrb[0].mxu0
      %4733 = vmatprep.mubr.bf16.mxu0 %v3601
      %4734 = vmatmul.mubr.bf16.gmra.mrb[0].mxu0 %v3590
      %v4735 = vpop.f32.mrb[0].mxu0
      %v4736 = vadd.f32 %v4639, %v4735
      %v4737 = vpop.f32.mrb[0].mxu0
      %v4738 = vpop.f32.mrb[0].mxu0
      %v4739 = vadd.f32 %v4642, %v4738
      %v4740 = vpop.f32.mrb[0].mxu0
      %4741 = vmatprep.mubr.bf16.mxu0 %v3689
      %4742 = vmatmul.mubr.bf16.gmra.mrb[0].mxu0 %v3678
      %v4743 = vpop.f32.mrb[0].mxu0
      %v4744 = vadd.f32 %v4647, %v4743
      %v4745 = vpop.f32.mrb[0].mxu0
      %v4746 = vpop.f32.mrb[0].mxu0
      %v4747 = vadd.f32 %v4650, %v4746
      %v4748 = vpop.f32.mrb[0].mxu0
      %4749 = vmatprep.mubr.bf16.mxu0 %v3777
      %4750 = vmatmul.mubr.bf16.gmra.mrb[0].mxu0 %v3766
      %v4751 = vpop.f32.mrb[0].mxu0
      %v4752 = vadd.f32 %v4655, %v4751
      %v4753 = vpop.f32.mrb[0].mxu0
      %v4754 = vpop.f32.mrb[0].mxu0
      %v4755 = vadd.f32 %v4658, %v4754
      %v4756 = vpop.f32.mrb[0].mxu0
      %4757 = vmatprep.mubr.bf16.mxu0 %v3865
      %4758 = vmatmul.mubr.bf16.gmra.mrb[0].mxu0 %v3854
      %v4759 = vpop.f32.mrb[0].mxu0
      %v4760 = vadd.f32 %v4663, %v4759
      %v4761 = vpop.f32.mrb[0].mxu0
      %v4762 = vpop.f32.mrb[0].mxu0
      %v4763 = vadd.f32 %v4666, %v4762
      %v4764 = vpop.f32.mrb[0].mxu0
      %4765 = vdwg.mxu0
      %v4766 = vadd.f32 %v4704, 1.0
      %v4767 = vlog2.pop %v4766
      %v4768 = vmul.f32 %v4767, 0.6931472
      %v4769 = vmul.f32 -0.5, %v4704
      %v4770 = vadd.f32 %v4769, 1.0
      %v4771 = vmul.f32 %v4770, %v4704
      %v4772 = vand.u32 2147483647, %v4704
      %vm4773 = vcmp.lt.f32.partialorder %v4772, 0.0004427343
      %v4774 = vsel %vm4773, %v4771, %v4768
      %v4775 = vadd.f32 %v4707, 1.0
      %v4776 = vlog2.pop %v4775
      %v4777 = vmul.f32 %v4776, 0.6931472
      %v4778 = vmul.f32 -0.5, %v4707
      %v4779 = vadd.f32 %v4778, 1.0
      %v4780 = vmul.f32 %v4779, %v4707
      %v4781 = vand.u32 2147483647, %v4707
      %vm4782 = vcmp.lt.f32.partialorder %v4781, 0.0004427343
      %v4783 = vsel %vm4782, %v4780, %v4777
      %v4784 = vadd.f32 %v4712, 1.0
      %v4785 = vlog2.pop %v4784
      %v4786 = vmul.f32 %v4785, 0.6931472
      %v4787 = vmul.f32 -0.5, %v4712
      %v4788 = vadd.f32 %v4787, 1.0
      %v4789 = vmul.f32 %v4788, %v4712
      %v4790 = vand.u32 2147483647, %v4712
      %vm4791 = vcmp.lt.f32.partialorder %v4790, 0.0004427343
      %v4792 = vsel %vm4791, %v4789, %v4786
      %v4793 = vadd.f32 %v4715, 1.0
      %v4794 = vlog2.pop %v4793
      %v4795 = vmul.f32 %v4794, 0.6931472
      %v4796 = vmul.f32 -0.5, %v4715
      %v4797 = vadd.f32 %v4796, 1.0
      %v4798 = vmul.f32 %v4797, %v4715
      %v4799 = vand.u32 2147483647, %v4715
      %vm4800 = vcmp.lt.f32.partialorder %v4799, 0.0004427343
      %v4801 = vsel %vm4800, %v4798, %v4795
      %v4802 = vadd.f32 %v4720, 1.0
      %v4803 = vlog2.pop %v4802
      %v4804 = vmul.f32 %v4803, 0.6931472
      %v4805 = vmul.f32 -0.5, %v4720
      %v4806 = vadd.f32 %v4805, 1.0
      %v4807 = vmul.f32 %v4806, %v4720
      %v4808 = vand.u32 2147483647, %v4720
      %vm4809 = vcmp.lt.f32.partialorder %v4808, 0.0004427343
      %v4810 = vsel %vm4809, %v4807, %v4804
      %v4811 = vadd.f32 %v4723, 1.0
      %v4812 = vlog2.pop %v4811
      %v4813 = vmul.f32 %v4812, 0.6931472
      %v4814 = vmul.f32 -0.5, %v4723
      %v4815 = vadd.f32 %v4814, 1.0
      %v4816 = vmul.f32 %v4815, %v4723
      %v4817 = vand.u32 2147483647, %v4723
      %vm4818 = vcmp.lt.f32.partialorder %v4817, 0.0004427343
      %v4819 = vsel %vm4818, %v4816, %v4813
      %v4820 = vadd.f32 %v4728, 1.0
      %v4821 = vlog2.pop %v4820
      %v4822 = vmul.f32 %v4821, 0.6931472
      %v4823 = vmul.f32 -0.5, %v4728
      %v4824 = vadd.f32 %v4823, 1.0
      %v4825 = vmul.f32 %v4824, %v4728
      %v4826 = vand.u32 2147483647, %v4728
      %vm4827 = vcmp.lt.f32.partialorder %v4826, 0.0004427343
      %v4828 = vsel %vm4827, %v4825, %v4822
      %v4829 = vadd.f32 %v4731, 1.0
      %v4830 = vlog2.pop %v4829
      %v4831 = vmul.f32 %v4830, 0.6931472
      %v4832 = vmul.f32 -0.5, %v4731
      %v4833 = vadd.f32 %v4832, 1.0
      %v4834 = vmul.f32 %v4833, %v4731
      %v4835 = vand.u32 2147483647, %v4731
      %vm4836 = vcmp.lt.f32.partialorder %v4835, 0.0004427343
      %v4837 = vsel %vm4836, %v4834, %v4831
      %v4838 = vadd.f32 %v4736, 1.0
      %v4839 = vlog2.pop %v4838
      %v4840 = vmul.f32 %v4839, 0.6931472
      %v4841 = vmul.f32 -0.5, %v4736
      %v4842 = vadd.f32 %v4841, 1.0
      %v4843 = vmul.f32 %v4842, %v4736
      %v4844 = vand.u32 2147483647, %v4736
      %vm4845 = vcmp.lt.f32.partialorder %v4844, 0.0004427343
      %v4846 = vsel %vm4845, %v4843, %v4840
      %v4847 = vadd.f32 %v4739, 1.0
      %v4848 = vlog2.pop %v4847
      %v4849 = vmul.f32 %v4848, 0.6931472
      %v4850 = vmul.f32 -0.5, %v4739
      %v4851 = vadd.f32 %v4850, 1.0
      %v4852 = vmul.f32 %v4851, %v4739
      %v4853 = vand.u32 2147483647, %v4739
      %vm4854 = vcmp.lt.f32.partialorder %v4853, 0.0004427343
      %v4855 = vsel %vm4854, %v4852, %v4849
      %v4856 = vadd.f32 %v4744, 1.0
      %v4857 = vlog2.pop %v4856
      %v4858 = vmul.f32 %v4857, 0.6931472
      %v4859 = vmul.f32 -0.5, %v4744
      %v4860 = vadd.f32 %v4859, 1.0
      %v4861 = vmul.f32 %v4860, %v4744
      %v4862 = vand.u32 2147483647, %v4744
      %vm4863 = vcmp.lt.f32.partialorder %v4862, 0.0004427343
      %v4864 = vsel %vm4863, %v4861, %v4858
      %v4865 = vadd.f32 %v4747, 1.0
      %v4866 = vlog2.pop %v4865
      %v4867 = vmul.f32 %v4866, 0.6931472
      %v4868 = vmul.f32 -0.5, %v4747
      %v4869 = vadd.f32 %v4868, 1.0
      %v4870 = vmul.f32 %v4869, %v4747
      %v4871 = vand.u32 2147483647, %v4747
      %vm4872 = vcmp.lt.f32.partialorder %v4871, 0.0004427343
      %v4873 = vsel %vm4872, %v4870, %v4867
      %v4874 = vadd.f32 %v4752, 1.0
      %v4875 = vlog2.pop %v4874
      %v4876 = vmul.f32 %v4875, 0.6931472
      %v4877 = vmul.f32 -0.5, %v4752
      %v4878 = vadd.f32 %v4877, 1.0
      %v4879 = vmul.f32 %v4878, %v4752
      %v4880 = vand.u32 2147483647, %v4752
      %vm4881 = vcmp.lt.f32.partialorder %v4880, 0.0004427343
      %v4882 = vsel %vm4881, %v4879, %v4876
      %v4883 = vadd.f32 %v4755, 1.0
      %v4884 = vlog2.pop %v4883
      %v4885 = vmul.f32 %v4884, 0.6931472
      %v4886 = vmul.f32 -0.5, %v4755
      %v4887 = vadd.f32 %v4886, 1.0
      %v4888 = vmul.f32 %v4887, %v4755
      %v4889 = vand.u32 2147483647, %v4755
      %vm4890 = vcmp.lt.f32.partialorder %v4889, 0.0004427343
      %v4891 = vsel %vm4890, %v4888, %v4885
      %v4892 = vadd.f32 %v4760, 1.0
      %v4893 = vlog2.pop %v4892
      %v4894 = vmul.f32 %v4893, 0.6931472
      %v4895 = vmul.f32 -0.5, %v4760
      %v4896 = vadd.f32 %v4895, 1.0
      %v4897 = vmul.f32 %v4896, %v4760
      %v4898 = vand.u32 2147483647, %v4760
      %vm4899 = vcmp.lt.f32.partialorder %v4898, 0.0004427343
      %v4900 = vsel %vm4899, %v4897, %v4894
      %v4901 = vadd.f32 %v4763, 1.0
      %v4902 = vlog2.pop %v4901
      %v4903 = vmul.f32 %v4902, 0.6931472
      %v4904 = vmul.f32 -0.5, %v4763
      %v4905 = vadd.f32 %v4904, 1.0
      %v4906 = vmul.f32 %v4905, %v4763
      %v4907 = vand.u32 2147483647, %v4763
      %vm4908 = vcmp.lt.f32.partialorder %v4907, 0.0004427343
      %v4909 = vsel %vm4908, %v4906, %v4903
      %v4910 = vmul.f32 %v4774, 0.4342945
      %v4911 = vmul.f32 %v4783, 0.4342945
      %v4912 = vmul.f32 %v4792, 0.4342945
      %v4913 = vmul.f32 %v4801, 0.4342945
      %v4914 = vmul.f32 %v4810, 0.4342945
      %v4915 = vmul.f32 %v4819, 0.4342945
      %v4916 = vmul.f32 %v4828, 0.4342945
      %v4917 = vmul.f32 %v4837, 0.4342945
      %v4918 = vmul.f32 %v4846, 0.4342945
      %v4919 = vmul.f32 %v4855, 0.4342945
      %v4920 = vmul.f32 %v4864, 0.4342945
      %v4921 = vmul.f32 %v4873, 0.4342945
      %v4922 = vmul.f32 %v4882, 0.4342945
      %v4923 = vmul.f32 %v4891, 0.4342945
      %v4924 = vmul.f32 %v4900, 0.4342945
      %v4925 = vmul.f32 %v4909, 0.4342945
      %4926 = vst [vmem:[%s175] sm:$0xff] %v4910
      %4927 = vst [vmem:[%s175 + $0x8] sm:$0xff] %v4911
      %4928 = vst [vmem:[%s175 + $0x10] sm:$0xff] %v4912
      %4929 = vst [vmem:[%s175 + $0x18] sm:$0xff] %v4913
      %4930 = vst [vmem:[%s175 + $0x20] sm:$0xff] %v4914
      %4931 = vst [vmem:[%s175 + $0x28] sm:$0xff] %v4915
      %4932 = vst [vmem:[%s175 + $0x30] sm:$0xff] %v4916
      %4933 = vst [vmem:[%s175 + $0x38] sm:$0xff] %v4917
      %4934 = vst [vmem:[%s175 + $0x40] sm:$0xff] %v4918
      %4935 = vst [vmem:[%s175 + $0x48] sm:$0xff] %v4919
      %4936 = vst [vmem:[%s175 + $0x50] sm:$0xff] %v4920
      %4937 = vst [vmem:[%s175 + $0x58] sm:$0xff] %v4921
      %4938 = vst [vmem:[%s175 + $0x60] sm:$0xff] %v4922
      %4939 = vst [vmem:[%s175 + $0x68] sm:$0xff] %v4923
      %4940 = vst [vmem:[%s175 + $0x70] sm:$0xff] %v4924
      %4941 = vst [vmem:[%s175 + $0x78] sm:$0xff] %v4925
      %s4942 = smul.u32 16, %s14
      %p4943 = scmp.lt.s32.totalorder %s4942, 31
      %s4944 = scalar_select %p4943, %s4942, 31
      %s4945 = smul.addr %s4944, 8
      %s4946 = scalar_lea.vmem %s3, %s4945
      // Predicated region
      $region33: #{fwd.2} parent=31 // pred_check
        %p4947 = pneg %p100
      $region34: #{fwd.2} parent=31 // pred_check_branch
        %4949 = sbr.rel (%p4947) target = $region36
      $region35: #{fwd.2} parent=31 // pred_region
        %s4950 = smul.u32 16, %s14
      $region36: #{fwd.2} parent=31 // pred_fallthru
        _
    $region32: #{fwd.2} parent=5 // pred_fallthru
      _
    %p4951 = scmp.le.s32.totalorder 2, %s9
    // Predicated region
    $region37: #{fwd.2} parent=5 // pred_check
      %p4952 = pneg %p4951
    $region38: #{fwd.2} parent=5 // pred_check_branch
      %4954 = sbr.rel (%p4952) target = $region40
    $region39: #{fwd.2} parent=5 // pred_region
      %s4955 = ssub.s32 %s9, 2
      // Predicated region
      $region41: #{fwd.2} parent=39 // pred_check
        %p4956 = pneg %p106
      $region42: #{fwd.2} parent=39 // pred_check_branch
        %4958 = sbr.rel (%p4956) target = $region44
      $region43: #{fwd.2} parent=39 // pred_region
        %s4959 = smul.u32 16, %s15
        %p4960 = scmp.lt.s32.totalorder %s4959, 31
        %s4961 = scalar_select %p4960, %s4959, 31
        %s4962 = smul.addr %s4961, 8
        %s4963 = scalar_lea.vmem %s3, %s4962
      $region44: #{fwd.2} parent=39 // pred_fallthru
        _
    $region40: #{fwd.2} parent=5 // pred_fallthru
      _
  $region6: #{fwd.2} parent=0 // loop_footer
    %s13 = sadd.s32 1, %s9
  $region7: #{fwd.2} parent=0 // loop_footer_branch
    %8 = sbr.rel target = $region3
  $region8: #{fwd.2} parent=0 // loop_exit
    _

// kernel: fwd.3
$region0: #{fwd.3}
  #allocation0 [shape = 'u32[]', space=smem, size = 0x4, offset = 0x4, fixed_abs, tag = 'smem constant byte address 0x4 - core index']
  #allocation1 [shape = 'u32[144,128]{1,0:T(1,128)}', space=vmem, size = 0x12000, scoped, tag = 'internal scratch']
  %s0 = inlined_call_operand.vmem [shape: bf16[128,512], index: 0, kind: input, shape index: {}]
  %s1 = inlined_call_operand.vmem [shape: bf16[512,2048], index: 1, kind: input, shape index: {}]
  %s2 = inlined_call_operand.vmem [shape: bf16[1024,128], index: 2, kind: input, shape index: {}]
  %s3 = inlined_call_operand.vmem [shape: f32[128,128], index: 3, kind: output, shape index: {}]
  %s4 = sld [smem:[#allocation0]]
  $region22: #{fwd.3} parent=0
    _
  %s6 = ssub.s32 1, %s4
  %s7 = scalar_select 0, %s6, %s4
  // Predicated region
  $region2: #{fwd.3} parent=0 // pred_check
    _
  $region3: #{fwd.3} parent=0 // pred_check_branch
    %9 = sbr.rel (0) target = $region5
  $region4: #{fwd.3} parent=0 // pred_region
    _
  $region5: #{fwd.3} parent=0 // pred_fallthru
    _
  // Predicated region
  $region6: #{fwd.3} parent=0 // pred_check
    _
  $region7: #{fwd.3} parent=0 // pred_check_branch
    %11 = sbr.rel (0) target = $region9
  $region8: #{fwd.3} parent=0 // pred_region
    _
  $region9: #{fwd.3} parent=0 // pred_fallthru
    _
  // Predicated region
  $region10: #{fwd.3} parent=0 // pred_check
    _
  $region11: #{fwd.3} parent=0 // pred_check_branch
    %13 = sbr.rel (0) target = $region13
  $region12: #{fwd.3} parent=0 // pred_region
    _
  $region13: #{fwd.3} parent=0 // pred_fallthru
    _
  %v15 = vld [vmem:[%s0] sm:$0xff]
  %v16 = vld [vmem:[%s0 + $0x8] sm:$0xff]
  %v17 = vld [vmem:[%s0 + $0x10] sm:$0xff]
  %v18 = vld [vmem:[%s0 + $0x18] sm:$0xff]
  %v19 = vld [vmem:[%s0 + $0x20] sm:$0xff]
  %v20 = vld [vmem:[%s0 + $0x28] sm:$0xff]
  %v21 = vld [vmem:[%s0 + $0x30] sm:$0xff]
  %v22 = vld [vmem:[%s0 + $0x38] sm:$0xff]
  %v23 = vld [vmem:[%s0 + $0x40] sm:$0xff]
  %v24 = vld [vmem:[%s0 + $0x48] sm:$0xff]
  %v25 = vld [vmem:[%s0 + $0x50] sm:$0xff]
  %v26 = vld [vmem:[%s0 + $0x58] sm:$0xff]
  %v27 = vld [vmem:[%s0 + $0x60] sm:$0xff]
  %v28 = vld [vmem:[%s0 + $0x68] sm:$0xff]
  %v29 = vld [vmem:[%s0 + $0x70] sm:$0xff]
  %v30 = vld [vmem:[%s0 + $0x78] sm:$0xff]
  %v31 = vld [vmem:[%s0 + $0x80] sm:$0xff]
  %v32 = vld [vmem:[%s0 + $0x88] sm:$0xff]
  %v33 = vld [vmem:[%s0 + $0x90] sm:$0xff]
  %v34 = vld [vmem:[%s0 + $0x98] sm:$0xff]
  %v35 = vld [vmem:[%s0 + $0xa0] sm:$0xff]
  %v36 = vld [vmem:[%s0 + $0xa8] sm:$0xff]
  %v37 = vld [vmem:[%s0 + $0xb0] sm:$0xff]
  %v38 = vld [vmem:[%s0 + $0xb8] sm:$0xff]
  %v39 = vld [vmem:[%s0 + $0xc0] sm:$0xff]
  %v40 = vld [vmem:[%s0 + $0xc8] sm:$0xff]
  %v41 = vld [vmem:[%s0 + $0xd0] sm:$0xff]
  %v42 = vld [vmem:[%s0 + $0xd8] sm:$0xff]
  %v43 = vld [vmem:[%s0 + $0xe0] sm:$0xff]
  %v44 = vld [vmem:[%s0 + $0xe8] sm:$0xff]
  %v45 = vld [vmem:[%s0 + $0xf0] sm:$0xff]
  %v46 = vld [vmem:[%s0 + $0xf8] sm:$0xff]
  %v47 = vld [vmem:[%s1] sm:$0xff]
  %v48 = vld [vmem:[%s1 + $0x8] sm:$0xff]
  %v49 = vld [vmem:[%s1 + $0x10] sm:$0xff]
  %v50 = vld [vmem:[%s1 + $0x18] sm:$0xff]
  %v51 = vld [vmem:[%s1 + $0x20] sm:$0xff]
  %v52 = vld [vmem:[%s1 + $0x28] sm:$0xff]
  %v53 = vld [vmem:[%s1 + $0x30] sm:$0xff]
  %v54 = vld [vmem:[%s1 + $0x38] sm:$0xff]
  %v55 = vld [vmem:[%s1 + $0x40] sm:$0xff]
  %v56 = vld [vmem:[%s1 + $0x48] sm:$0xff]
  %v57 = vld [vmem:[%s1 + $0x50] sm:$0xff]
  %v58 = vld [vmem:[%s1 + $0x58] sm:$0xff]
  %v59 = vld [vmem:[%s1 + $0x60] sm:$0xff]
  %v60 = vld [vmem:[%s1 + $0x68] sm:$0xff]
  %v61 = vld [vmem:[%s1 + $0x70] sm:$0xff]
  %v62 = vld [vmem:[%s1 + $0x78] sm:$0xff]
  %v63 = vld [vmem:[%s1 + $0x80] sm:$0xff]
  %v64 = vld [vmem:[%s1 + $0x88] sm:$0xff]
  %v65 = vld [vmem:[%s1 + $0x90] sm:$0xff]
  %v66 = vld [vmem:[%s1 + $0x98] sm:$0xff]
  %v67 = vld [vmem:[%s1 + $0xa0] sm:$0xff]
  %v68 = vld [vmem:[%s1 + $0xa8] sm:$0xff]
  %v69 = vld [vmem:[%s1 + $0xb0] sm:$0xff]
  %v70 = vld [vmem:[%s1 + $0xb8] sm:$0xff]
  %v71 = vld [vmem:[%s1 + $0xc0] sm:$0xff]
  %v72 = vld [vmem:[%s1 + $0xc8] sm:$0xff]
  %v73 = vld [vmem:[%s1 + $0xd0] sm:$0xff]
  %v74 = vld [vmem:[%s1 + $0xd8] sm:$0xff]
  %v75 = vld [vmem:[%s1 + $0xe0] sm:$0xff]
  %v76 = vld [vmem:[%s1 + $0xe8] sm:$0xff]
  %v77 = vld [vmem:[%s1 + $0xf0] sm:$0xff]
  %v78 = vld [vmem:[%s1 + $0xf8] sm:$0xff]
  %v79 = vld [vmem:[%s1 + $0x100] sm:$0xff]
  %v80 = vld [vmem:[%s1 + $0x108] sm:$0xff]
  %v81 = vld [vmem:[%s1 + $0x110] sm:$0xff]
  %v82 = vld [vmem:[%s1 + $0x118] sm:$0xff]
  %v83 = vld [vmem:[%s1 + $0x120] sm:$0xff]
  %v84 = vld [vmem:[%s1 + $0x128] sm:$0xff]
  %v85 = vld [vmem:[%s1 + $0x130] sm:$0xff]
  %v86 = vld [vmem:[%s1 + $0x138] sm:$0xff]
  %v87 = vld [vmem:[%s1 + $0x140] sm:$0xff]
  %v88 = vld [vmem:[%s1 + $0x148] sm:$0xff]
  %v89 = vld [vmem:[%s1 + $0x150] sm:$0xff]
  %v90 = vld [vmem:[%s1 + $0x158] sm:$0xff]
  %v91 = vld [vmem:[%s1 + $0x160] sm:$0xff]
  %v92 = vld [vmem:[%s1 + $0x168] sm:$0xff]
  %v93 = vld [vmem:[%s1 + $0x170] sm:$0xff]
  %v94 = vld [vmem:[%s1 + $0x178] sm:$0xff]
  %v95 = vld [vmem:[%s1 + $0x180] sm:$0xff]
  %v96 = vld [vmem:[%s1 + $0x188] sm:$0xff]
  %v97 = vld [vmem:[%s1 + $0x190] sm:$0xff]
  %v98 = vld [vmem:[%s1 + $0x198] sm:$0xff]
  %v99 = vld [vmem:[%s1 + $0x1a0] sm:$0xff]
  %v100 = vld [vmem:[%s1 + $0x1a8] sm:$0xff]
  %v101 = vld [vmem:[%s1 + $0x1b0] sm:$0xff]
  %v102 = vld [vmem:[%s1 + $0x1b8] sm:$0xff]
  %v103 = vld [vmem:[%s1 + $0x1c0] sm:$0xff]
  %v104 = vld [vmem:[%s1 + $0x1c8] sm:$0xff]
  %v105 = vld [vmem:[%s1 + $0x1d0] sm:$0xff]
  %v106 = vld [vmem:[%s1 + $0x1d8] sm:$0xff]
  %v107 = vld [vmem:[%s1 + $0x1e0] sm:$0xff]
  %v108 = vld [vmem:[%s1 + $0x1e8] sm:$0xff]
  %v109 = vld [vmem:[%s1 + $0x1f0] sm:$0xff]
  %v110 = vld [vmem:[%s1 + $0x1f8] sm:$0xff]
  %v111 = vld [vmem:[%s1 + $0x200] sm:$0xff]
  %v112 = vld [vmem:[%s1 + $0x208] sm:$0xff]
  %v113 = vld [vmem:[%s1 + $0x210] sm:$0xff]
  %v114 = vld [vmem:[%s1 + $0x218] sm:$0xff]
  %v115 = vld [vmem:[%s1 + $0x220] sm:$0xff]
  %v116 = vld [vmem:[%s1 + $0x228] sm:$0xff]
  %v117 = vld [vmem:[%s1 + $0x230] sm:$0xff]
  %v118 = vld [vmem:[%s1 + $0x238] sm:$0xff]
  %v119 = vld [vmem:[%s1 + $0x240] sm:$0xff]
  %v120 = vld [vmem:[%s1 + $0x248] sm:$0xff]
  %v121 = vld [vmem:[%s1 + $0x250] sm:$0xff]
  %v122 = vld [vmem:[%s1 + $0x258] sm:$0xff]
  %v123 = vld [vmem:[%s1 + $0x260] sm:$0xff]
  %v124 = vld [vmem:[%s1 + $0x268] sm:$0xff]
  %v125 = vld [vmem:[%s1 + $0x270] sm:$0xff]
  %v126 = vld [vmem:[%s1 + $0x278] sm:$0xff]
  %v127 = vld [vmem:[%s1 + $0x280] sm:$0xff]
  %v128 = vld [vmem:[%s1 + $0x288] sm:$0xff]
  %v129 = vld [vmem:[%s1 + $0x290] sm:$0xff]
  %v130 = vld [vmem:[%s1 + $0x298] sm:$0xff]
  %v131 = vld [vmem:[%s1 + $0x2a0] sm:$0xff]
  %v132 = vld [vmem:[%s1 + $0x2a8] sm:$0xff]
  %v133 = vld [vmem:[%s1 + $0x2b0] sm:$0xff]
  %v134 = vld [vmem:[%s1 + $0x2b8] sm:$0xff]
  %v135 = vld [vmem:[%s1 + $0x2c0] sm:$0xff]
  %v136 = vld [vmem:[%s1 + $0x2c8] sm:$0xff]
  %v137 = vld [vmem:[%s1 + $0x2d0] sm:$0xff]
  %v138 = vld [vmem:[%s1 + $0x2d8] sm:$0xff]
  %v139 = vld [vmem:[%s1 + $0x2e0] sm:$0xff]
  %v140 = vld [vmem:[%s1 + $0x2e8] sm:$0xff]
  %v141 = vld [vmem:[%s1 + $0x2f0] sm:$0xff]
  %v142 = vld [vmem:[%s1 + $0x2f8] sm:$0xff]
  %v143 = vld [vmem:[%s1 + $0x300] sm:$0xff]
  %v144 = vld [vmem:[%s1 + $0x308] sm:$0xff]
  %v145 = vld [vmem:[%s1 + $0x310] sm:$0xff]
  %v146 = vld [vmem:[%s1 + $0x318] sm:$0xff]
  %v147 = vld [vmem:[%s1 + $0x320] sm:$0xff]
  %v148 = vld [vmem:[%s1 + $0x328] sm:$0xff]
  %v149 = vld [vmem:[%s1 + $0x330] sm:$0xff]
  %v150 = vld [vmem:[%s1 + $0x338] sm:$0xff]
  %v151 = vld [vmem:[%s1 + $0x340] sm:$0xff]
  %v152 = vld [vmem:[%s1 + $0x348] sm:$0xff]
  %v153 = vld [vmem:[%s1 + $0x350] sm:$0xff]
  %v154 = vld [vmem:[%s1 + $0x358] sm:$0xff]
  %v155 = vld [vmem:[%s1 + $0x360] sm:$0xff]
  %v156 = vld [vmem:[%s1 + $0x368] sm:$0xff]
  %v157 = vld [vmem:[%s1 + $0x370] sm:$0xff]
  %v158 = vld [vmem:[%s1 + $0x378] sm:$0xff]
  %v159 = vld [vmem:[%s1 + $0x380] sm:$0xff]
  %v160 = vld [vmem:[%s1 + $0x388] sm:$0xff]
  %v161 = vld [vmem:[%s1 + $0x390] sm:$0xff]
  %v162 = vld [vmem:[%s1 + $0x398] sm:$0xff]
  %v163 = vld [vmem:[%s1 + $0x3a0] sm:$0xff]
  %v164 = vld [vmem:[%s1 + $0x3a8] sm:$0xff]
  %v165 = vld [vmem:[%s1 + $0x3b0] sm:$0xff]
  %v166 = vld [vmem:[%s1 + $0x3b8] sm:$0xff]
  %v167 = vld [vmem:[%s1 + $0x3c0] sm:$0xff]
  %v168 = vld [vmem:[%s1 + $0x3c8] sm:$0xff]
  %v169 = vld [vmem:[%s1 + $0x3d0] sm:$0xff]
  %v170 = vld [vmem:[%s1 + $0x3d8] sm:$0xff]
  %v171 = vld [vmem:[%s1 + $0x3e0] sm:$0xff]
  %v172 = vld [vmem:[%s1 + $0x3e8] sm:$0xff]
  %v173 = vld [vmem:[%s1 + $0x3f0] sm:$0xff]
  %v174 = vld [vmem:[%s1 + $0x3f8] sm:$0xff]
  %v175 = vld [vmem:[%s1 + $0x400] sm:$0xff]
  %v176 = vld [vmem:[%s1 + $0x408] sm:$0xff]
  %v177 = vld [vmem:[%s1 + $0x410] sm:$0xff]
  %v178 = vld [vmem:[%s1 + $0x418] sm:$0xff]
  %v179 = vld [vmem:[%s1 + $0x420] sm:$0xff]
  %v180 = vld [vmem:[%s1 + $0x428] sm:$0xff]
  %v181 = vld [vmem:[%s1 + $0x430] sm:$0xff]
  %v182 = vld [vmem:[%s1 + $0x438] sm:$0xff]
  %v183 = vld [vmem:[%s1 + $0x440] sm:$0xff]
  %v184 = vld [vmem:[%s1 + $0x448] sm:$0xff]
  %v185 = vld [vmem:[%s1 + $0x450] sm:$0xff]
  %v186 = vld [vmem:[%s1 + $0x458] sm:$0xff]
  %v187 = vld [vmem:[%s1 + $0x460] sm:$0xff]
  %v188 = vld [vmem:[%s1 + $0x468] sm:$0xff]
  %v189 = vld [vmem:[%s1 + $0x470] sm:$0xff]
  %v190 = vld [vmem:[%s1 + $0x478] sm:$0xff]
  %v191 = vld [vmem:[%s1 + $0x480] sm:$0xff]
  %v192 = vld [vmem:[%s1 + $0x488] sm:$0xff]
  %v193 = vld [vmem:[%s1 + $0x490] sm:$0xff]
  %v194 = vld [vmem:[%s1 + $0x498] sm:$0xff]
  %v195 = vld [vmem:[%s1 + $0x4a0] sm:$0xff]
  %v196 = vld [vmem:[%s1 + $0x4a8] sm:$0xff]
  %v197 = vld [vmem:[%s1 + $0x4b0] sm:$0xff]
  %v198 = vld [vmem:[%s1 + $0x4b8] sm:$0xff]
  %v199 = vld [vmem:[%s1 + $0x4c0] sm:$0xff]
  %v200 = vld [vmem:[%s1 + $0x4c8] sm:$0xff]
  %v201 = vld [vmem:[%s1 + $0x4d0] sm:$0xff]
  %v202 = vld [vmem:[%s1 + $0x4d8] sm:$0xff]
  %v203 = vld [vmem:[%s1 + $0x4e0] sm:$0xff]
  %v204 = vld [vmem:[%s1 + $0x4e8] sm:$0xff]
  %v205 = vld [vmem:[%s1 + $0x4f0] sm:$0xff]
  %v206 = vld [vmem:[%s1 + $0x4f8] sm:$0xff]
  %v207 = vld [vmem:[%s1 + $0x500] sm:$0xff]
  %v208 = vld [vmem:[%s1 + $0x508] sm:$0xff]
  %v209 = vld [vmem:[%s1 + $0x510] sm:$0xff]
  %v210 = vld [vmem:[%s1 + $0x518] sm:$0xff]
  %v211 = vld [vmem:[%s1 + $0x520] sm:$0xff]
  %v212 = vld [vmem:[%s1 + $0x528] sm:$0xff]
  %v213 = vld [vmem:[%s1 + $0x530] sm:$0xff]
  %v214 = vld [vmem:[%s1 + $0x538] sm:$0xff]
  %v215 = vld [vmem:[%s1 + $0x540] sm:$0xff]
  %v216 = vld [vmem:[%s1 + $0x548] sm:$0xff]
  %v217 = vld [vmem:[%s1 + $0x550] sm:$0xff]
  %v218 = vld [vmem:[%s1 + $0x558] sm:$0xff]
  %v219 = vld [vmem:[%s1 + $0x560] sm:$0xff]
  %v220 = vld [vmem:[%s1 + $0x568] sm:$0xff]
  %v221 = vld [vmem:[%s1 + $0x570] sm:$0xff]
  %v222 = vld [vmem:[%s1 + $0x578] sm:$0xff]
  %v223 = vld [vmem:[%s1 + $0x580] sm:$0xff]
  %v224 = vld [vmem:[%s1 + $0x588] sm:$0xff]
  %v225 = vld [vmem:[%s1 + $0x590] sm:$0xff]
  %v226 = vld [vmem:[%s1 + $0x598] sm:$0xff]
  %v227 = vld [vmem:[%s1 + $0x5a0] sm:$0xff]
  %v228 = vld [vmem:[%s1 + $0x5a8] sm:$0xff]
  %v229 = vld [vmem:[%s1 + $0x5b0] sm:$0xff]
  %v230 = vld [vmem:[%s1 + $0x5b8] sm:$0xff]
  %v231 = vld [vmem:[%s1 + $0x5c0] sm:$0xff]
  %v232 = vld [vmem:[%s1 + $0x5c8] sm:$0xff]
  %v233 = vld [vmem:[%s1 + $0x5d0] sm:$0xff]
  %v234 = vld [vmem:[%s1 + $0x5d8] sm:$0xff]
  %v235 = vld [vmem:[%s1 + $0x5e0] sm:$0xff]
  %v236 = vld [vmem:[%s1 + $0x5e8] sm:$0xff]
  %v237 = vld [vmem:[%s1 + $0x5f0] sm:$0xff]
  %v238 = vld [vmem:[%s1 + $0x5f8] sm:$0xff]
  %v239 = vld [vmem:[%s1 + $0x600] sm:$0xff]
  %v240 = vld [vmem:[%s1 + $0x608] sm:$0xff]
  %v241 = vld [vmem:[%s1 + $0x610] sm:$0xff]
  %v242 = vld [vmem:[%s1 + $0x618] sm:$0xff]
  %v243 = vld [vmem:[%s1 + $0x620] sm:$0xff]
  %v244 = vld [vmem:[%s1 + $0x628] sm:$0xff]
  %v245 = vld [vmem:[%s1 + $0x630] sm:$0xff]
  %v246 = vld [vmem:[%s1 + $0x638] sm:$0xff]
  %v247 = vld [vmem:[%s1 + $0x640] sm:$0xff]
  %v248 = vld [vmem:[%s1 + $0x648] sm:$0xff]
  %v249 = vld [vmem:[%s1 + $0x650] sm:$0xff]
  %v250 = vld [vmem:[%s1 + $0x658] sm:$0xff]
  %v251 = vld [vmem:[%s1 + $0x660] sm:$0xff]
  %v252 = vld [vmem:[%s1 + $0x668] sm:$0xff]
  %v253 = vld [vmem:[%s1 + $0x670] sm:$0xff]
  %v254 = vld [vmem:[%s1 + $0x678] sm:$0xff]
  %v255 = vld [vmem:[%s1 + $0x680] sm:$0xff]
  %v256 = vld [vmem:[%s1 + $0x688] sm:$0xff]
  %v257 = vld [vmem:[%s1 + $0x690] sm:$0xff]
  %v258 = vld [vmem:[%s1 + $0x698] sm:$0xff]
  %v259 = vld [vmem:[%s1 + $0x6a0] sm:$0xff]
  %v260 = vld [vmem:[%s1 + $0x6a8] sm:$0xff]
  %v261 = vld [vmem:[%s1 + $0x6b0] sm:$0xff]
  %v262 = vld [vmem:[%s1 + $0x6b8] sm:$0xff]
  %v263 = vld [vmem:[%s1 + $0x6c0] sm:$0xff]
  %v264 = vld [vmem:[%s1 + $0x6c8] sm:$0xff]
  %v265 = vld [vmem:[%s1 + $0x6d0] sm:$0xff]
  %v266 = vld [vmem:[%s1 + $0x6d8] sm:$0xff]
  %v267 = vld [vmem:[%s1 + $0x6e0] sm:$0xff]
  %v268 = vld [vmem:[%s1 + $0x6e8] sm:$0xff]
  %v269 = vld [vmem:[%s1 + $0x6f0] sm:$0xff]
  %v270 = vld [vmem:[%s1 + $0x6f8] sm:$0xff]
  %v271 = vld [vmem:[%s1 + $0x700] sm:$0xff]
  %v272 = vld [vmem:[%s1 + $0x708] sm:$0xff]
  %v273 = vld [vmem:[%s1 + $0x710] sm:$0xff]
  %v274 = vld [vmem:[%s1 + $0x718] sm:$0xff]
  %v275 = vld [vmem:[%s1 + $0x720] sm:$0xff]
  %v276 = vld [vmem:[%s1 + $0x728] sm:$0xff]
  %v277 = vld [vmem:[%s1 + $0x730] sm:$0xff]
  %v278 = vld [vmem:[%s1 + $0x738] sm:$0xff]
  %v279 = vld [vmem:[%s1 + $0x740] sm:$0xff]
  %v280 = vld [vmem:[%s1 + $0x748] sm:$0xff]
  %v281 = vld [vmem:[%s1 + $0x750] sm:$0xff]
  %v282 = vld [vmem:[%s1 + $0x758] sm:$0xff]
  %v283 = vld [vmem:[%s1 + $0x760] sm:$0xff]
  %v284 = vld [vmem:[%s1 + $0x768] sm:$0xff]
  %v285 = vld [vmem:[%s1 + $0x770] sm:$0xff]
  %v286 = vld [vmem:[%s1 + $0x778] sm:$0xff]
  %v287 = vld [vmem:[%s1 + $0x780] sm:$0xff]
  %v288 = vld [vmem:[%s1 + $0x788] sm:$0xff]
  %v289 = vld [vmem:[%s1 + $0x790] sm:$0xff]
  %v290 = vld [vmem:[%s1 + $0x798] sm:$0xff]
  %v291 = vld [vmem:[%s1 + $0x7a0] sm:$0xff]
  %v292 = vld [vmem:[%s1 + $0x7a8] sm:$0xff]
  %v293 = vld [vmem:[%s1 + $0x7b0] sm:$0xff]
  %v294 = vld [vmem:[%s1 + $0x7b8] sm:$0xff]
  %v295 = vld [vmem:[%s1 + $0x7c0] sm:$0xff]
  %v296 = vld [vmem:[%s1 + $0x7c8] sm:$0xff]
  %v297 = vld [vmem:[%s1 + $0x7d0] sm:$0xff]
  %v298 = vld [vmem:[%s1 + $0x7d8] sm:$0xff]
  %v299 = vld [vmem:[%s1 + $0x7e0] sm:$0xff]
  %v300 = vld [vmem:[%s1 + $0x7e8] sm:$0xff]
  %v301 = vld [vmem:[%s1 + $0x7f0] sm:$0xff]
  %v302 = vld [vmem:[%s1 + $0x7f8] sm:$0xff]
  %v303 = vld [vmem:[%s1 + $0x800] sm:$0xff]
  %v304 = vld [vmem:[%s1 + $0x808] sm:$0xff]
  %v305 = vld [vmem:[%s1 + $0x810] sm:$0xff]
  %v306 = vld [vmem:[%s1 + $0x818] sm:$0xff]
  %v307 = vld [vmem:[%s1 + $0x820] sm:$0xff]
  %v308 = vld [vmem:[%s1 + $0x828] sm:$0xff]
  %v309 = vld [vmem:[%s1 + $0x830] sm:$0xff]
  %v310 = vld [vmem:[%s1 + $0x838] sm:$0xff]
  %v311 = vld [vmem:[%s1 + $0x840] sm:$0xff]
  %v312 = vld [vmem:[%s1 + $0x848] sm:$0xff]
  %v313 = vld [vmem:[%s1 + $0x850] sm:$0xff]
  %v314 = vld [vmem:[%s1 + $0x858] sm:$0xff]
  %v315 = vld [vmem:[%s1 + $0x860] sm:$0xff]
  %v316 = vld [vmem:[%s1 + $0x868] sm:$0xff]
  %v317 = vld [vmem:[%s1 + $0x870] sm:$0xff]
  %v318 = vld [vmem:[%s1 + $0x878] sm:$0xff]
  %v319 = vld [vmem:[%s1 + $0x880] sm:$0xff]
  %v320 = vld [vmem:[%s1 + $0x888] sm:$0xff]
  %v321 = vld [vmem:[%s1 + $0x890] sm:$0xff]
  %v322 = vld [vmem:[%s1 + $0x898] sm:$0xff]
  %v323 = vld [vmem:[%s1 + $0x8a0] sm:$0xff]
  %v324 = vld [vmem:[%s1 + $0x8a8] sm:$0xff]
  %v325 = vld [vmem:[%s1 + $0x8b0] sm:$0xff]
  %v326 = vld [vmem:[%s1 + $0x8b8] sm:$0xff]
  %v327 = vld [vmem:[%s1 + $0x8c0] sm:$0xff]
  %v328 = vld [vmem:[%s1 + $0x8c8] sm:$0xff]
  %v329 = vld [vmem:[%s1 + $0x8d0] sm:$0xff]
  %v330 = vld [vmem:[%s1 + $0x8d8] sm:$0xff]
  %v331 = vld [vmem:[%s1 + $0x8e0] sm:$0xff]
  %v332 = vld [vmem:[%s1 + $0x8e8] sm:$0xff]
  %v333 = vld [vmem:[%s1 + $0x8f0] sm:$0xff]
  %v334 = vld [vmem:[%s1 + $0x8f8] sm:$0xff]
  %v335 = vld [vmem:[%s1 + $0x900] sm:$0xff]
  %v336 = vld [vmem:[%s1 + $0x908] sm:$0xff]
  %v337 = vld [vmem:[%s1 + $0x910] sm:$0xff]
  %v338 = vld [vmem:[%s1 + $0x918] sm:$0xff]
  %v339 = vld [vmem:[%s1 + $0x920] sm:$0xff]
  %v340 = vld [vmem:[%s1 + $0x928] sm:$0xff]
  %v341 = vld [vmem:[%s1 + $0x930] sm:$0xff]
  %v342 = vld [vmem:[%s1 + $0x938] sm:$0xff]
  %v343 = vld [vmem:[%s1 + $0x940] sm:$0xff]
  %v344 = vld [vmem:[%s1 + $0x948] sm:$0xff]
  %v345 = vld [vmem:[%s1 + $0x950] sm:$0xff]
  %v346 = vld [vmem:[%s1 + $0x958] sm:$0xff]
  %v347 = vld [vmem:[%s1 + $0x960] sm:$0xff]
  %v348 = vld [vmem:[%s1 + $0x968] sm:$0xff]
  %v349 = vld [vmem:[%s1 + $0x970] sm:$0xff]
  %v350 = vld [vmem:[%s1 + $0x978] sm:$0xff]
  %v351 = vld [vmem:[%s1 + $0x980] sm:$0xff]
  %v352 = vld [vmem:[%s1 + $0x988] sm:$0xff]
  %v353 = vld [vmem:[%s1 + $0x990] sm:$0xff]
  %v354 = vld [vmem:[%s1 + $0x998] sm:$0xff]
  %v355 = vld [vmem:[%s1 + $0x9a0] sm:$0xff]
  %v356 = vld [vmem:[%s1 + $0x9a8] sm:$0xff]
  %v357 = vld [vmem:[%s1 + $0x9b0] sm:$0xff]
  %v358 = vld [vmem:[%s1 + $0x9b8] sm:$0xff]
  %v359 = vld [vmem:[%s1 + $0x9c0] sm:$0xff]
  %v360 = vld [vmem:[%s1 + $0x9c8] sm:$0xff]
  %v361 = vld [vmem:[%s1 + $0x9d0] sm:$0xff]
  %v362 = vld [vmem:[%s1 + $0x9d8] sm:$0xff]
  %v363 = vld [vmem:[%s1 + $0x9e0] sm:$0xff]
  %v364 = vld [vmem:[%s1 + $0x9e8] sm:$0xff]
  %v365 = vld [vmem:[%s1 + $0x9f0] sm:$0xff]
  %v366 = vld [vmem:[%s1 + $0x9f8] sm:$0xff]
  %v367 = vld [vmem:[%s1 + $0xa00] sm:$0xff]
  %v368 = vld [vmem:[%s1 + $0xa08] sm:$0xff]
  %v369 = vld [vmem:[%s1 + $0xa10] sm:$0xff]
  %v370 = vld [vmem:[%s1 + $0xa18] sm:$0xff]
  %v371 = vld [vmem:[%s1 + $0xa20] sm:$0xff]
  %v372 = vld [vmem:[%s1 + $0xa28] sm:$0xff]
  %v373 = vld [vmem:[%s1 + $0xa30] sm:$0xff]
  %v374 = vld [vmem:[%s1 + $0xa38] sm:$0xff]
  %v375 = vld [vmem:[%s1 + $0xa40] sm:$0xff]
  %v376 = vld [vmem:[%s1 + $0xa48] sm:$0xff]
  %v377 = vld [vmem:[%s1 + $0xa50] sm:$0xff]
  %v378 = vld [vmem:[%s1 + $0xa58] sm:$0xff]
  %v379 = vld [vmem:[%s1 + $0xa60] sm:$0xff]
  %v380 = vld [vmem:[%s1 + $0xa68] sm:$0xff]
  %v381 = vld [vmem:[%s1 + $0xa70] sm:$0xff]
  %v382 = vld [vmem:[%s1 + $0xa78] sm:$0xff]
  %v383 = vld [vmem:[%s1 + $0xa80] sm:$0xff]
  %v384 = vld [vmem:[%s1 + $0xa88] sm:$0xff]
  %v385 = vld [vmem:[%s1 + $0xa90] sm:$0xff]
  %v386 = vld [vmem:[%s1 + $0xa98] sm:$0xff]
  %v387 = vld [vmem:[%s1 + $0xaa0] sm:$0xff]
  %v388 = vld [vmem:[%s1 + $0xaa8] sm:$0xff]
  %v389 = vld [vmem:[%s1 + $0xab0] sm:$0xff]
  %v390 = vld [vmem:[%s1 + $0xab8] sm:$0xff]
  %v391 = vld [vmem:[%s1 + $0xac0] sm:$0xff]
  %v392 = vld [vmem:[%s1 + $0xac8] sm:$0xff]
  %v393 = vld [vmem:[%s1 + $0xad0] sm:$0xff]
  %v394 = vld [vmem:[%s1 + $0xad8] sm:$0xff]
  %v395 = vld [vmem:[%s1 + $0xae0] sm:$0xff]
  %v396 = vld [vmem:[%s1 + $0xae8] sm:$0xff]
  %v397 = vld [vmem:[%s1 + $0xaf0] sm:$0xff]
  %v398 = vld [vmem:[%s1 + $0xaf8] sm:$0xff]
  %v399 = vld [vmem:[%s1 + $0xb00] sm:$0xff]
  %v400 = vld [vmem:[%s1 + $0xb08] sm:$0xff]
  %v401 = vld [vmem:[%s1 + $0xb10] sm:$0xff]
  %v402 = vld [vmem:[%s1 + $0xb18] sm:$0xff]
  %v403 = vld [vmem:[%s1 + $0xb20] sm:$0xff]
  %v404 = vld [vmem:[%s1 + $0xb28] sm:$0xff]
  %v405 = vld [vmem:[%s1 + $0xb30] sm:$0xff]
  %v406 = vld [vmem:[%s1 + $0xb38] sm:$0xff]
  %v407 = vld [vmem:[%s1 + $0xb40] sm:$0xff]
  %v408 = vld [vmem:[%s1 + $0xb48] sm:$0xff]
  %v409 = vld [vmem:[%s1 + $0xb50] sm:$0xff]
  %v410 = vld [vmem:[%s1 + $0xb58] sm:$0xff]
  %v411 = vld [vmem:[%s1 + $0xb60] sm:$0xff]
  %v412 = vld [vmem:[%s1 + $0xb68] sm:$0xff]
  %v413 = vld [vmem:[%s1 + $0xb70] sm:$0xff]
  %v414 = vld [vmem:[%s1 + $0xb78] sm:$0xff]
  %v415 = vld [vmem:[%s1 + $0xb80] sm:$0xff]
  %v416 = vld [vmem:[%s1 + $0xb88] sm:$0xff]
  %v417 = vld [vmem:[%s1 + $0xb90] sm:$0xff]
  %v418 = vld [vmem:[%s1 + $0xb98] sm:$0xff]
  %v419 = vld [vmem:[%s1 + $0xba0] sm:$0xff]
  %v420 = vld [vmem:[%s1 + $0xba8] sm:$0xff]
  %v421 = vld [vmem:[%s1 + $0xbb0] sm:$0xff]
  %v422 = vld [vmem:[%s1 + $0xbb8] sm:$0xff]
  %v423 = vld [vmem:[%s1 + $0xbc0] sm:$0xff]
  %v424 = vld [vmem:[%s1 + $0xbc8] sm:$0xff]
  %v425 = vld [vmem:[%s1 + $0xbd0] sm:$0xff]
  %v426 = vld [vmem:[%s1 + $0xbd8] sm:$0xff]
  %v427 = vld [vmem:[%s1 + $0xbe0] sm:$0xff]
  %v428 = vld [vmem:[%s1 + $0xbe8] sm:$0xff]
  %v429 = vld [vmem:[%s1 + $0xbf0] sm:$0xff]
  %v430 = vld [vmem:[%s1 + $0xbf8] sm:$0xff]
  %v431 = vld [vmem:[%s1 + $0xc00] sm:$0xff]
  %v432 = vld [vmem:[%s1 + $0xc08] sm:$0xff]
  %v433 = vld [vmem:[%s1 + $0xc10] sm:$0xff]
  %v434 = vld [vmem:[%s1 + $0xc18] sm:$0xff]
  %v435 = vld [vmem:[%s1 + $0xc20] sm:$0xff]
  %v436 = vld [vmem:[%s1 + $0xc28] sm:$0xff]
  %v437 = vld [vmem:[%s1 + $0xc30] sm:$0xff]
  %v438 = vld [vmem:[%s1 + $0xc38] sm:$0xff]
  %v439 = vld [vmem:[%s1 + $0xc40] sm:$0xff]
  %v440 = vld [vmem:[%s1 + $0xc48] sm:$0xff]
  %v441 = vld [vmem:[%s1 + $0xc50] sm:$0xff]
  %v442 = vld [vmem:[%s1 + $0xc58] sm:$0xff]
  %v443 = vld [vmem:[%s1 + $0xc60] sm:$0xff]
  %v444 = vld [vmem:[%s1 + $0xc68] sm:$0xff]
  %v445 = vld [vmem:[%s1 + $0xc70] sm:$0xff]
  %v446 = vld [vmem:[%s1 + $0xc78] sm:$0xff]
  %v447 = vld [vmem:[%s1 + $0xc80] sm:$0xff]
  %v448 = vld [vmem:[%s1 + $0xc88] sm:$0xff]
  %v449 = vld [vmem:[%s1 + $0xc90] sm:$0xff]
  %v450 = vld [vmem:[%s1 + $0xc98] sm:$0xff]
  %v451 = vld [vmem:[%s1 + $0xca0] sm:$0xff]
  %v452 = vld [vmem:[%s1 + $0xca8] sm:$0xff]
  %v453 = vld [vmem:[%s1 + $0xcb0] sm:$0xff]
  %v454 = vld [vmem:[%s1 + $0xcb8] sm:$0xff]
  %v455 = vld [vmem:[%s1 + $0xcc0] sm:$0xff]
  %v456 = vld [vmem:[%s1 + $0xcc8] sm:$0xff]
  %v457 = vld [vmem:[%s1 + $0xcd0] sm:$0xff]
  %v458 = vld [vmem:[%s1 + $0xcd8] sm:$0xff]
  %v459 = vld [vmem:[%s1 + $0xce0] sm:$0xff]
  %v460 = vld [vmem:[%s1 + $0xce8] sm:$0xff]
  %v461 = vld [vmem:[%s1 + $0xcf0] sm:$0xff]
  %v462 = vld [vmem:[%s1 + $0xcf8] sm:$0xff]
  %v463 = vld [vmem:[%s1 + $0xd00] sm:$0xff]
  %v464 = vld [vmem:[%s1 + $0xd08] sm:$0xff]
  %v465 = vld [vmem:[%s1 + $0xd10] sm:$0xff]
  %v466 = vld [vmem:[%s1 + $0xd18] sm:$0xff]
  %v467 = vld [vmem:[%s1 + $0xd20] sm:$0xff]
  %v468 = vld [vmem:[%s1 + $0xd28] sm:$0xff]
  %v469 = vld [vmem:[%s1 + $0xd30] sm:$0xff]
  %v470 = vld [vmem:[%s1 + $0xd38] sm:$0xff]
  %v471 = vld [vmem:[%s1 + $0xd40] sm:$0xff]
  %v472 = vld [vmem:[%s1 + $0xd48] sm:$0xff]
  %v473 = vld [vmem:[%s1 + $0xd50] sm:$0xff]
  %v474 = vld [vmem:[%s1 + $0xd58] sm:$0xff]
  %v475 = vld [vmem:[%s1 + $0xd60] sm:$0xff]
  %v476 = vld [vmem:[%s1 + $0xd68] sm:$0xff]
  %v477 = vld [vmem:[%s1 + $0xd70] sm:$0xff]
  %v478 = vld [vmem:[%s1 + $0xd78] sm:$0xff]
  %v479 = vld [vmem:[%s1 + $0xd80] sm:$0xff]
  %v480 = vld [vmem:[%s1 + $0xd88] sm:$0xff]
  %v481 = vld [vmem:[%s1 + $0xd90] sm:$0xff]
  %v482 = vld [vmem:[%s1 + $0xd98] sm:$0xff]
  %v483 = vld [vmem:[%s1 + $0xda0] sm:$0xff]
  %v484 = vld [vmem:[%s1 + $0xda8] sm:$0xff]
  %v485 = vld [vmem:[%s1 + $0xdb0] sm:$0xff]
  %v486 = vld [vmem:[%s1 + $0xdb8] sm:$0xff]
  %v487 = vld [vmem:[%s1 + $0xdc0] sm:$0xff]
  %v488 = vld [vmem:[%s1 + $0xdc8] sm:$0xff]
  %v489 = vld [vmem:[%s1 + $0xdd0] sm:$0xff]
  %v490 = vld [vmem:[%s1 + $0xdd8] sm:$0xff]
  %v491 = vld [vmem:[%s1 + $0xde0] sm:$0xff]
  %v492 = vld [vmem:[%s1 + $0xde8] sm:$0xff]
  %v493 = vld [vmem:[%s1 + $0xdf0] sm:$0xff]
  %v494 = vld [vmem:[%s1 + $0xdf8] sm:$0xff]
  %v495 = vld [vmem:[%s1 + $0xe00] sm:$0xff]
  %v496 = vld [vmem:[%s1 + $0xe08] sm:$0xff]
  %v497 = vld [vmem:[%s1 + $0xe10] sm:$0xff]
  %v498 = vld [vmem:[%s1 + $0xe18] sm:$0xff]
  %v499 = vld [vmem:[%s1 + $0xe20] sm:$0xff]
  %v500 = vld [vmem:[%s1 + $0xe28] sm:$0xff]
  %v501 = vld [vmem:[%s1 + $0xe30] sm:$0xff]
  %v502 = vld [vmem:[%s1 + $0xe38] sm:$0xff]
  %v503 = vld [vmem:[%s1 + $0xe40] sm:$0xff]
  %v504 = vld [vmem:[%s1 + $0xe48] sm:$0xff]
  %v505 = vld [vmem:[%s1 + $0xe50] sm:$0xff]
  %v506 = vld [vmem:[%s1 + $0xe58] sm:$0xff]
  %v507 = vld [vmem:[%s1 + $0xe60] sm:$0xff]
  %v508 = vld [vmem:[%s1 + $0xe68] sm:$0xff]
  %v509 = vld [vmem:[%s1 + $0xe70] sm:$0xff]
  %v510 = vld [vmem:[%s1 + $0xe78] sm:$0xff]
  %v511 = vld [vmem:[%s1 + $0xe80] sm:$0xff]
  %v512 = vld [vmem:[%s1 + $0xe88] sm:$0xff]
  %v513 = vld [vmem:[%s1 + $0xe90] sm:$0xff]
  %v514 = vld [vmem:[%s1 + $0xe98] sm:$0xff]
  %v515 = vld [vmem:[%s1 + $0xea0] sm:$0xff]
  %v516 = vld [vmem:[%s1 + $0xea8] sm:$0xff]
  %v517 = vld [vmem:[%s1 + $0xeb0] sm:$0xff]
  %v518 = vld [vmem:[%s1 + $0xeb8] sm:$0xff]
  %v519 = vld [vmem:[%s1 + $0xec0] sm:$0xff]
  %v520 = vld [vmem:[%s1 + $0xec8] sm:$0xff]
  %v521 = vld [vmem:[%s1 + $0xed0] sm:$0xff]
  %v522 = vld [vmem:[%s1 + $0xed8] sm:$0xff]
  %v523 = vld [vmem:[%s1 + $0xee0] sm:$0xff]
  %v524 = vld [vmem:[%s1 + $0xee8] sm:$0xff]
  %v525 = vld [vmem:[%s1 + $0xef0] sm:$0xff]
  %v526 = vld [vmem:[%s1 + $0xef8] sm:$0xff]
  %v527 = vld [vmem:[%s1 + $0xf00] sm:$0xff]
  %v528 = vld [vmem:[%s1 + $0xf08] sm:$0xff]
  %v529 = vld [vmem:[%s1 + $0xf10] sm:$0xff]
  %v530 = vld [vmem:[%s1 + $0xf18] sm:$0xff]
  %v531 = vld [vmem:[%s1 + $0xf20] sm:$0xff]
  %v532 = vld [vmem:[%s1 + $0xf28] sm:$0xff]
  %v533 = vld [vmem:[%s1 + $0xf30] sm:$0xff]
  %v534 = vld [vmem:[%s1 + $0xf38] sm:$0xff]
  %v535 = vld [vmem:[%s1 + $0xf40] sm:$0xff]
  %v536 = vld [vmem:[%s1 + $0xf48] sm:$0xff]
  %v537 = vld [vmem:[%s1 + $0xf50] sm:$0xff]
  %v538 = vld [vmem:[%s1 + $0xf58] sm:$0xff]
  %v539 = vld [vmem:[%s1 + $0xf60] sm:$0xff]
  %v540 = vld [vmem:[%s1 + $0xf68] sm:$0xff]
  %v541 = vld [vmem:[%s1 + $0xf70] sm:$0xff]
  %v542 = vld [vmem:[%s1 + $0xf78] sm:$0xff]
  %v543 = vld [vmem:[%s1 + $0xf80] sm:$0xff]
  %v544 = vld [vmem:[%s1 + $0xf88] sm:$0xff]
  %v545 = vld [vmem:[%s1 + $0xf90] sm:$0xff]
  %v546 = vld [vmem:[%s1 + $0xf98] sm:$0xff]
  %v547 = vld [vmem:[%s1 + $0xfa0] sm:$0xff]
  %v548 = vld [vmem:[%s1 + $0xfa8] sm:$0xff]
  %v549 = vld [vmem:[%s1 + $0xfb0] sm:$0xff]
  %v550 = vld [vmem:[%s1 + $0xfb8] sm:$0xff]
  %v551 = vld [vmem:[%s1 + $0xfc0] sm:$0xff]
  %v552 = vld [vmem:[%s1 + $0xfc8] sm:$0xff]
  %v553 = vld [vmem:[%s1 + $0xfd0] sm:$0xff]
  %v554 = vld [vmem:[%s1 + $0xfd8] sm:$0xff]
  %v555 = vld [vmem:[%s1 + $0xfe0] sm:$0xff]
  %v556 = vld [vmem:[%s1 + $0xfe8] sm:$0xff]
  %v557 = vld [vmem:[%s1 + $0xff0] sm:$0xff]
  %v558 = vld [vmem:[%s1 + $0xff8] sm:$0xff]
  %v591 = vunpack.c.l.b16 %v15
  %v592 = vunpack.c.h.b16 %v15
  %v593 = vunpack.c.l.b16 %v16
  %v594 = vunpack.c.h.b16 %v16
  %v595 = vunpack.c.l.b16 %v17
  %v596 = vunpack.c.h.b16 %v17
  %v597 = vunpack.c.l.b16 %v18
  %v598 = vunpack.c.h.b16 %v18
  %v599 = vunpack.c.l.b16 %v19
  %v600 = vunpack.c.h.b16 %v19
  %v601 = vunpack.c.l.b16 %v20
  %v602 = vunpack.c.h.b16 %v20
  %v603 = vunpack.c.l.b16 %v21
  %v604 = vunpack.c.h.b16 %v21
  %v605 = vunpack.c.l.b16 %v22
  %v606 = vunpack.c.h.b16 %v22
  %v607 = vunpack.c.l.b16 %v23
  %v608 = vunpack.c.h.b16 %v23
  %v609 = vunpack.c.l.b16 %v24
  %v610 = vunpack.c.h.b16 %v24
  %v611 = vunpack.c.l.b16 %v25
  %v612 = vunpack.c.h.b16 %v25
  %v613 = vunpack.c.l.b16 %v26
  %v614 = vunpack.c.h.b16 %v26
  %v615 = vunpack.c.l.b16 %v27
  %v616 = vunpack.c.h.b16 %v27
  %v617 = vunpack.c.l.b16 %v28
  %v618 = vunpack.c.h.b16 %v28
  %v619 = vunpack.c.l.b16 %v29
  %v620 = vunpack.c.h.b16 %v29
  %v621 = vunpack.c.l.b16 %v30
  %v622 = vunpack.c.h.b16 %v30
  %v623 = vunpack.c.l.b16 %v31
  %v624 = vunpack.c.h.b16 %v31
  %v625 = vunpack.c.l.b16 %v32
  %v626 = vunpack.c.h.b16 %v32
  %v627 = vunpack.c.l.b16 %v33
  %v628 = vunpack.c.h.b16 %v33
  %v629 = vunpack.c.l.b16 %v34
  %v630 = vunpack.c.h.b16 %v34
  %v631 = vunpack.c.l.b16 %v35
  %v632 = vunpack.c.h.b16 %v35
  %v633 = vunpack.c.l.b16 %v36
  %v634 = vunpack.c.h.b16 %v36
  %v635 = vunpack.c.l.b16 %v37
  %v636 = vunpack.c.h.b16 %v37
  %v637 = vunpack.c.l.b16 %v38
  %v638 = vunpack.c.h.b16 %v38
  %v639 = vunpack.c.l.b16 %v39
  %v640 = vunpack.c.h.b16 %v39
  %v641 = vunpack.c.l.b16 %v40
  %v642 = vunpack.c.h.b16 %v40
  %v643 = vunpack.c.l.b16 %v41
  %v644 = vunpack.c.h.b16 %v41
  %v645 = vunpack.c.l.b16 %v42
  %v646 = vunpack.c.h.b16 %v42
  %v647 = vunpack.c.l.b16 %v43
  %v648 = vunpack.c.h.b16 %v43
  %v649 = vunpack.c.l.b16 %v44
  %v650 = vunpack.c.h.b16 %v44
  %v651 = vunpack.c.l.b16 %v45
  %v652 = vunpack.c.h.b16 %v45
  %v653 = vunpack.c.l.b16 %v46
  %v654 = vunpack.c.h.b16 %v46
  %v655 = vpack.c.b16 %v595, %v591
  %v656 = vpack.c.b16 %v596, %v592
  %v657 = vpack.c.b16 %v597, %v593
  %v658 = vpack.c.b16 %v598, %v594
  %v659 = vpack.c.b16 %v603, %v599
  %v660 = vpack.c.b16 %v604, %v600
  %v661 = vpack.c.b16 %v605, %v601
  %v662 = vpack.c.b16 %v606, %v602
  %v663 = vpack.c.b16 %v611, %v607
  %v664 = vpack.c.b16 %v612, %v608
  %v665 = vpack.c.b16 %v613, %v609
  %v666 = vpack.c.b16 %v614, %v610
  %v667 = vpack.c.b16 %v619, %v615
  %v668 = vpack.c.b16 %v620, %v616
  %v669 = vpack.c.b16 %v621, %v617
  %v670 = vpack.c.b16 %v622, %v618
  %v671 = vpack.c.b16 %v627, %v623
  %v672 = vpack.c.b16 %v628, %v624
  %v673 = vpack.c.b16 %v629, %v625
  %v674 = vpack.c.b16 %v630, %v626
  %v675 = vpack.c.b16 %v635, %v631
  %v676 = vpack.c.b16 %v636, %v632
  %v677 = vpack.c.b16 %v637, %v633
  %v678 = vpack.c.b16 %v638, %v634
  %v679 = vpack.c.b16 %v643, %v639
  %v680 = vpack.c.b16 %v644, %v640
  %v681 = vpack.c.b16 %v645, %v641
  %v682 = vpack.c.b16 %v646, %v642
  %v683 = vpack.c.b16 %v651, %v647
  %v684 = vpack.c.b16 %v652, %v648
  %v685 = vpack.c.b16 %v653, %v649
  %v686 = vpack.c.b16 %v654, %v650
  %v1231 = vunpack.c.l.b16 %v47
  %v1232 = vunpack.c.h.b16 %v47
  %v1233 = vunpack.c.l.b16 %v48
  %v1234 = vunpack.c.h.b16 %v48
  %v1235 = vunpack.c.l.b16 %v49
  %v1236 = vunpack.c.h.b16 %v49
  %v1237 = vunpack.c.l.b16 %v50
  %v1238 = vunpack.c.h.b16 %v50
  %v1239 = vunpack.c.l.b16 %v51
  %v1240 = vunpack.c.h.b16 %v51
  %v1241 = vunpack.c.l.b16 %v52
  %v1242 = vunpack.c.h.b16 %v52
  %v1243 = vunpack.c.l.b16 %v53
  %v1244 = vunpack.c.h.b16 %v53
  %v1245 = vunpack.c.l.b16 %v54
  %v1246 = vunpack.c.h.b16 %v54
  %v1247 = vunpack.c.l.b16 %v55
  %v1248 = vunpack.c.h.b16 %v55
  %v1249 = vunpack.c.l.b16 %v56
  %v1250 = vunpack.c.h.b16 %v56
  %v1251 = vunpack.c.l.b16 %v57
  %v1252 = vunpack.c.h.b16 %v57
  %v1253 = vunpack.c.l.b16 %v58
  %v1254 = vunpack.c.h.b16 %v58
  %v1255 = vunpack.c.l.b16 %v59
  %v1256 = vunpack.c.h.b16 %v59
  %v1257 = vunpack.c.l.b16 %v60
  %v1258 = vunpack.c.h.b16 %v60
  %v1259 = vunpack.c.l.b16 %v61
  %v1260 = vunpack.c.h.b16 %v61
  %v1261 = vunpack.c.l.b16 %v62
  %v1262 = vunpack.c.h.b16 %v62
  %v1263 = vunpack.c.l.b16 %v63
  %v1264 = vunpack.c.h.b16 %v63
  %v1265 = vunpack.c.l.b16 %v64
  %v1266 = vunpack.c.h.b16 %v64
  %v1267 = vunpack.c.l.b16 %v65
  %v1268 = vunpack.c.h.b16 %v65
  %v1269 = vunpack.c.l.b16 %v66
  %v1270 = vunpack.c.h.b16 %v66
  %v1271 = vunpack.c.l.b16 %v67
  %v1272 = vunpack.c.h.b16 %v67
  %v1273 = vunpack.c.l.b16 %v68
  %v1274 = vunpack.c.h.b16 %v68
  %v1275 = vunpack.c.l.b16 %v69
  %v1276 = vunpack.c.h.b16 %v69
  %v1277 = vunpack.c.l.b16 %v70
  %v1278 = vunpack.c.h.b16 %v70
  %v1279 = vunpack.c.l.b16 %v71
  %v1280 = vunpack.c.h.b16 %v71
  %v1281 = vunpack.c.l.b16 %v72
  %v1282 = vunpack.c.h.b16 %v72
  %v1283 = vunpack.c.l.b16 %v73
  %v1284 = vunpack.c.h.b16 %v73
  %v1285 = vunpack.c.l.b16 %v74
  %v1286 = vunpack.c.h.b16 %v74
  %v1287 = vunpack.c.l.b16 %v75
  %v1288 = vunpack.c.h.b16 %v75
  %v1289 = vunpack.c.l.b16 %v76
  %v1290 = vunpack.c.h.b16 %v76
  %v1291 = vunpack.c.l.b16 %v77
  %v1292 = vunpack.c.h.b16 %v77
  %v1293 = vunpack.c.l.b16 %v78
  %v1294 = vunpack.c.h.b16 %v78
  %v1295 = vunpack.c.l.b16 %v79
  %v1296 = vunpack.c.h.b16 %v79
  %v1297 = vunpack.c.l.b16 %v80
  %v1298 = vunpack.c.h.b16 %v80
  %v1299 = vunpack.c.l.b16 %v81
  %v1300 = vunpack.c.h.b16 %v81
  %v1301 = vunpack.c.l.b16 %v82
  %v1302 = vunpack.c.h.b16 %v82
  %v1303 = vunpack.c.l.b16 %v83
  %v1304 = vunpack.c.h.b16 %v83
  %v1305 = vunpack.c.l.b16 %v84
  %v1306 = vunpack.c.h.b16 %v84
  %v1307 = vunpack.c.l.b16 %v85
  %v1308 = vunpack.c.h.b16 %v85
  %v1309 = vunpack.c.l.b16 %v86
  %v1310 = vunpack.c.h.b16 %v86
  %v1311 = vunpack.c.l.b16 %v87
  %v1312 = vunpack.c.h.b16 %v87
  %v1313 = vunpack.c.l.b16 %v88
  %v1314 = vunpack.c.h.b16 %v88
  %v1315 = vunpack.c.l.b16 %v89
  %v1316 = vunpack.c.h.b16 %v89
  %v1317 = vunpack.c.l.b16 %v90
  %v1318 = vunpack.c.h.b16 %v90
  %v1319 = vunpack.c.l.b16 %v91
  %v1320 = vunpack.c.h.b16 %v91
  %v1321 = vunpack.c.l.b16 %v92
  %v1322 = vunpack.c.h.b16 %v92
  %v1323 = vunpack.c.l.b16 %v93
  %v1324 = vunpack.c.h.b16 %v93
  %v1325 = vunpack.c.l.b16 %v94
  %v1326 = vunpack.c.h.b16 %v94
  %v1327 = vunpack.c.l.b16 %v95
  %v1328 = vunpack.c.h.b16 %v95
  %v1329 = vunpack.c.l.b16 %v96
  %v1330 = vunpack.c.h.b16 %v96
  %v1331 = vunpack.c.l.b16 %v97
  %v1332 = vunpack.c.h.b16 %v97
  %v1333 = vunpack.c.l.b16 %v98
  %v1334 = vunpack.c.h.b16 %v98
  %v1335 = vunpack.c.l.b16 %v99
  %v1336 = vunpack.c.h.b16 %v99
  %v1337 = vunpack.c.l.b16 %v100
  %v1338 = vunpack.c.h.b16 %v100
  %v1339 = vunpack.c.l.b16 %v101
  %v1340 = vunpack.c.h.b16 %v101
  %v1341 = vunpack.c.l.b16 %v102
  %v1342 = vunpack.c.h.b16 %v102
  %v1343 = vunpack.c.l.b16 %v103
  %v1344 = vunpack.c.h.b16 %v103
  %v1345 = vunpack.c.l.b16 %v104
  %v1346 = vunpack.c.h.b16 %v104
  %v1347 = vunpack.c.l.b16 %v105
  %v1348 = vunpack.c.h.b16 %v105
  %v1349 = vunpack.c.l.b16 %v106
  %v1350 = vunpack.c.h.b16 %v106
  %v1351 = vunpack.c.l.b16 %v107
  %v1352 = vunpack.c.h.b16 %v107
  %v1353 = vunpack.c.l.b16 %v108
  %v1354 = vunpack.c.h.b16 %v108
  %v1355 = vunpack.c.l.b16 %v109
  %v1356 = vunpack.c.h.b16 %v109
  %v1357 = vunpack.c.l.b16 %v110
  %v1358 = vunpack.c.h.b16 %v110
  %v1359 = vunpack.c.l.b16 %v111
  %v1360 = vunpack.c.h.b16 %v111
  %v1361 = vunpack.c.l.b16 %v112
  %v1362 = vunpack.c.h.b16 %v112
  %v1363 = vunpack.c.l.b16 %v113
  %v1364 = vunpack.c.h.b16 %v113
  %v1365 = vunpack.c.l.b16 %v114
  %v1366 = vunpack.c.h.b16 %v114
  %v1367 = vunpack.c.l.b16 %v115
  %v1368 = vunpack.c.h.b16 %v115
  %v1369 = vunpack.c.l.b16 %v116
  %v1370 = vunpack.c.h.b16 %v116
  %v1371 = vunpack.c.l.b16 %v117
  %v1372 = vunpack.c.h.b16 %v117
  %v1373 = vunpack.c.l.b16 %v118
  %v1374 = vunpack.c.h.b16 %v118
  %v1375 = vunpack.c.l.b16 %v119
  %v1376 = vunpack.c.h.b16 %v119
  %v1377 = vunpack.c.l.b16 %v120
  %v1378 = vunpack.c.h.b16 %v120
  %v1379 = vunpack.c.l.b16 %v121
  %v1380 = vunpack.c.h.b16 %v121
  %v1381 = vunpack.c.l.b16 %v122
  %v1382 = vunpack.c.h.b16 %v122
  %v1383 = vunpack.c.l.b16 %v123
  %v1384 = vunpack.c.h.b16 %v123
  %v1385 = vunpack.c.l.b16 %v124
  %v1386 = vunpack.c.h.b16 %v124
  %v1387 = vunpack.c.l.b16 %v125
  %v1388 = vunpack.c.h.b16 %v125
  %v1389 = vunpack.c.l.b16 %v126
  %v1390 = vunpack.c.h.b16 %v126
  %v1391 = vunpack.c.l.b16 %v127
  %v1392 = vunpack.c.h.b16 %v127
  %v1393 = vunpack.c.l.b16 %v128
  %v1394 = vunpack.c.h.b16 %v128
  %v1395 = vunpack.c.l.b16 %v129
  %v1396 = vunpack.c.h.b16 %v129
  %v1397 = vunpack.c.l.b16 %v130
  %v1398 = vunpack.c.h.b16 %v130
  %v1399 = vunpack.c.l.b16 %v131
  %v1400 = vunpack.c.h.b16 %v131
  %v1401 = vunpack.c.l.b16 %v132
  %v1402 = vunpack.c.h.b16 %v132
  %v1403 = vunpack.c.l.b16 %v133
  %v1404 = vunpack.c.h.b16 %v133
  %v1405 = vunpack.c.l.b16 %v134
  %v1406 = vunpack.c.h.b16 %v134
  %v1407 = vunpack.c.l.b16 %v135
  %v1408 = vunpack.c.h.b16 %v135
  %v1409 = vunpack.c.l.b16 %v136
  %v1410 = vunpack.c.h.b16 %v136
  %v1411 = vunpack.c.l.b16 %v137
  %v1412 = vunpack.c.h.b16 %v137
  %v1413 = vunpack.c.l.b16 %v138
  %v1414 = vunpack.c.h.b16 %v138
  %v1415 = vunpack.c.l.b16 %v139
  %v1416 = vunpack.c.h.b16 %v139
  %v1417 = vunpack.c.l.b16 %v140
  %v1418 = vunpack.c.h.b16 %v140
  %v1419 = vunpack.c.l.b16 %v141
  %v1420 = vunpack.c.h.b16 %v141
  %v1421 = vunpack.c.l.b16 %v142
  %v1422 = vunpack.c.h.b16 %v142
  %v1423 = vunpack.c.l.b16 %v143
  %v1424 = vunpack.c.h.b16 %v143
  %v1425 = vunpack.c.l.b16 %v144
  %v1426 = vunpack.c.h.b16 %v144
  %v1427 = vunpack.c.l.b16 %v145
  %v1428 = vunpack.c.h.b16 %v145
  %v1429 = vunpack.c.l.b16 %v146
  %v1430 = vunpack.c.h.b16 %v146
  %v1431 = vunpack.c.l.b16 %v147
  %v1432 = vunpack.c.h.b16 %v147
  %v1433 = vunpack.c.l.b16 %v148
  %v1434 = vunpack.c.h.b16 %v148
  %v1435 = vunpack.c.l.b16 %v149
  %v1436 = vunpack.c.h.b16 %v149
  %v1437 = vunpack.c.l.b16 %v150
  %v1438 = vunpack.c.h.b16 %v150
  %v1439 = vunpack.c.l.b16 %v151
  %v1440 = vunpack.c.h.b16 %v151
  %v1441 = vunpack.c.l.b16 %v152
  %v1442 = vunpack.c.h.b16 %v152
  %v1443 = vunpack.c.l.b16 %v153
  %v1444 = vunpack.c.h.b16 %v153
  %v1445 = vunpack.c.l.b16 %v154
  %v1446 = vunpack.c.h.b16 %v154
  %v1447 = vunpack.c.l.b16 %v155
  %v1448 = vunpack.c.h.b16 %v155
  %v1449 = vunpack.c.l.b16 %v156
  %v1450 = vunpack.c.h.b16 %v156
  %v1451 = vunpack.c.l.b16 %v157
  %v1452 = vunpack.c.h.b16 %v157
  %v1453 = vunpack.c.l.b16 %v158
  %v1454 = vunpack.c.h.b16 %v158
  %v1455 = vunpack.c.l.b16 %v159
  %v1456 = vunpack.c.h.b16 %v159
  %v1457 = vunpack.c.l.b16 %v160
  %v1458 = vunpack.c.h.b16 %v160
  %v1459 = vunpack.c.l.b16 %v161
  %v1460 = vunpack.c.h.b16 %v161
  %v1461 = vunpack.c.l.b16 %v162
  %v1462 = vunpack.c.h.b16 %v162
  %v1463 = vunpack.c.l.b16 %v163
  %v1464 = vunpack.c.h.b16 %v163
  %v1465 = vunpack.c.l.b16 %v164
  %v1466 = vunpack.c.h.b16 %v164
  %v1467 = vunpack.c.l.b16 %v165
  %v1468 = vunpack.c.h.b16 %v165
  %v1469 = vunpack.c.l.b16 %v166
  %v1470 = vunpack.c.h.b16 %v166
  %v1471 = vunpack.c.l.b16 %v167
  %v1472 = vunpack.c.h.b16 %v167
  %v1473 = vunpack.c.l.b16 %v168
  %v1474 = vunpack.c.h.b16 %v168
  %v1475 = vunpack.c.l.b16 %v169
  %v1476 = vunpack.c.h.b16 %v169
  %v1477 = vunpack.c.l.b16 %v170
  %v1478 = vunpack.c.h.b16 %v170
  %v1479 = vunpack.c.l.b16 %v171
  %v1480 = vunpack.c.h.b16 %v171
  %v1481 = vunpack.c.l.b16 %v172
  %v1482 = vunpack.c.h.b16 %v172
  %v1483 = vunpack.c.l.b16 %v173
  %v1484 = vunpack.c.h.b16 %v173
  %v1485 = vunpack.c.l.b16 %v174
  %v1486 = vunpack.c.h.b16 %v174
  %v1487 = vunpack.c.l.b16 %v175
  %v1488 = vunpack.c.h.b16 %v175
  %v1489 = vunpack.c.l.b16 %v176
  %v1490 = vunpack.c.h.b16 %v176
  %v1491 = vunpack.c.l.b16 %v177
  %v1492 = vunpack.c.h.b16 %v177
  %v1493 = vunpack.c.l.b16 %v178
  %v1494 = vunpack.c.h.b16 %v178
  %v1495 = vunpack.c.l.b16 %v179
  %v1496 = vunpack.c.h.b16 %v179
  %v1497 = vunpack.c.l.b16 %v180
  %v1498 = vunpack.c.h.b16 %v180
  %v1499 = vunpack.c.l.b16 %v181
  %v1500 = vunpack.c.h.b16 %v181
  %v1501 = vunpack.c.l.b16 %v182
  %v1502 = vunpack.c.h.b16 %v182
  %v1503 = vunpack.c.l.b16 %v183
  %v1504 = vunpack.c.h.b16 %v183
  %v1505 = vunpack.c.l.b16 %v184
  %v1506 = vunpack.c.h.b16 %v184
  %v1507 = vunpack.c.l.b16 %v185
  %v1508 = vunpack.c.h.b16 %v185
  %v1509 = vunpack.c.l.b16 %v186
  %v1510 = vunpack.c.h.b16 %v186
  %v1511 = vunpack.c.l.b16 %v187
  %v1512 = vunpack.c.h.b16 %v187
  %v1513 = vunpack.c.l.b16 %v188
  %v1514 = vunpack.c.h.b16 %v188
  %v1515 = vunpack.c.l.b16 %v189
  %v1516 = vunpack.c.h.b16 %v189
  %v1517 = vunpack.c.l.b16 %v190
  %v1518 = vunpack.c.h.b16 %v190
  %v1519 = vunpack.c.l.b16 %v191
  %v1520 = vunpack.c.h.b16 %v191
  %v1521 = vunpack.c.l.b16 %v192
  %v1522 = vunpack.c.h.b16 %v192
  %v1523 = vunpack.c.l.b16 %v193
  %v1524 = vunpack.c.h.b16 %v193
  %v1525 = vunpack.c.l.b16 %v194
  %v1526 = vunpack.c.h.b16 %v194
  %v1527 = vunpack.c.l.b16 %v195
  %v1528 = vunpack.c.h.b16 %v195
  %v1529 = vunpack.c.l.b16 %v196
  %v1530 = vunpack.c.h.b16 %v196
  %v1531 = vunpack.c.l.b16 %v197
  %v1532 = vunpack.c.h.b16 %v197
  %v1533 = vunpack.c.l.b16 %v198
  %v1534 = vunpack.c.h.b16 %v198
  %v1535 = vunpack.c.l.b16 %v199
  %v1536 = vunpack.c.h.b16 %v199
  %v1537 = vunpack.c.l.b16 %v200
  %v1538 = vunpack.c.h.b16 %v200
  %v1539 = vunpack.c.l.b16 %v201
  %v1540 = vunpack.c.h.b16 %v201
  %v1541 = vunpack.c.l.b16 %v202
  %v1542 = vunpack.c.h.b16 %v202
  %v1543 = vunpack.c.l.b16 %v203
  %v1544 = vunpack.c.h.b16 %v203
  %v1545 = vunpack.c.l.b16 %v204
  %v1546 = vunpack.c.h.b16 %v204
  %v1547 = vunpack.c.l.b16 %v205
  %v1548 = vunpack.c.h.b16 %v205
  %v1549 = vunpack.c.l.b16 %v206
  %v1550 = vunpack.c.h.b16 %v206
  %v1551 = vunpack.c.l.b16 %v207
  %v1552 = vunpack.c.h.b16 %v207
  %v1553 = vunpack.c.l.b16 %v208
  %v1554 = vunpack.c.h.b16 %v208
  %v1555 = vunpack.c.l.b16 %v209
  %v1556 = vunpack.c.h.b16 %v209
  %v1557 = vunpack.c.l.b16 %v210
  %v1558 = vunpack.c.h.b16 %v210
  %v1559 = vunpack.c.l.b16 %v211
  %v1560 = vunpack.c.h.b16 %v211
  %v1561 = vunpack.c.l.b16 %v212
  %v1562 = vunpack.c.h.b16 %v212
  %v1563 = vunpack.c.l.b16 %v213
  %v1564 = vunpack.c.h.b16 %v213
  %v1565 = vunpack.c.l.b16 %v214
  %v1566 = vunpack.c.h.b16 %v214
  %v1567 = vunpack.c.l.b16 %v215
  %v1568 = vunpack.c.h.b16 %v215
  %v1569 = vunpack.c.l.b16 %v216
  %v1570 = vunpack.c.h.b16 %v216
  %v1571 = vunpack.c.l.b16 %v217
  %v1572 = vunpack.c.h.b16 %v217
  %v1573 = vunpack.c.l.b16 %v218
  %v1574 = vunpack.c.h.b16 %v218
  %v1575 = vunpack.c.l.b16 %v219
  %v1576 = vunpack.c.h.b16 %v219
  %v1577 = vunpack.c.l.b16 %v220
  %v1578 = vunpack.c.h.b16 %v220
  %v1579 = vunpack.c.l.b16 %v221
  %v1580 = vunpack.c.h.b16 %v221
  %v1581 = vunpack.c.l.b16 %v222
  %v1582 = vunpack.c.h.b16 %v222
  %v1583 = vunpack.c.l.b16 %v223
  %v1584 = vunpack.c.h.b16 %v223
  %v1585 = vunpack.c.l.b16 %v224
  %v1586 = vunpack.c.h.b16 %v224
  %v1587 = vunpack.c.l.b16 %v225
  %v1588 = vunpack.c.h.b16 %v225
  %v1589 = vunpack.c.l.b16 %v226
  %v1590 = vunpack.c.h.b16 %v226
  %v1591 = vunpack.c.l.b16 %v227
  %v1592 = vunpack.c.h.b16 %v227
  %v1593 = vunpack.c.l.b16 %v228
  %v1594 = vunpack.c.h.b16 %v228
  %v1595 = vunpack.c.l.b16 %v229
  %v1596 = vunpack.c.h.b16 %v229
  %v1597 = vunpack.c.l.b16 %v230
  %v1598 = vunpack.c.h.b16 %v230
  %v1599 = vunpack.c.l.b16 %v231
  %v1600 = vunpack.c.h.b16 %v231
  %v1601 = vunpack.c.l.b16 %v232
  %v1602 = vunpack.c.h.b16 %v232
  %v1603 = vunpack.c.l.b16 %v233
  %v1604 = vunpack.c.h.b16 %v233
  %v1605 = vunpack.c.l.b16 %v234
  %v1606 = vunpack.c.h.b16 %v234
  %v1607 = vunpack.c.l.b16 %v235
  %v1608 = vunpack.c.h.b16 %v235
  %v1609 = vunpack.c.l.b16 %v236
  %v1610 = vunpack.c.h.b16 %v236
  %v1611 = vunpack.c.l.b16 %v237
  %v1612 = vunpack.c.h.b16 %v237
  %v1613 = vunpack.c.l.b16 %v238
  %v1614 = vunpack.c.h.b16 %v238
  %v1615 = vunpack.c.l.b16 %v239
  %v1616 = vunpack.c.h.b16 %v239
  %v1617 = vunpack.c.l.b16 %v240
  %v1618 = vunpack.c.h.b16 %v240
  %v1619 = vunpack.c.l.b16 %v241
  %v1620 = vunpack.c.h.b16 %v241
  %v1621 = vunpack.c.l.b16 %v242
  %v1622 = vunpack.c.h.b16 %v242
  %v1623 = vunpack.c.l.b16 %v243
  %v1624 = vunpack.c.h.b16 %v243
  %v1625 = vunpack.c.l.b16 %v244
  %v1626 = vunpack.c.h.b16 %v244
  %v1627 = vunpack.c.l.b16 %v245
  %v1628 = vunpack.c.h.b16 %v245
  %v1629 = vunpack.c.l.b16 %v246
  %v1630 = vunpack.c.h.b16 %v246
  %v1631 = vunpack.c.l.b16 %v247
  %v1632 = vunpack.c.h.b16 %v247
  %v1633 = vunpack.c.l.b16 %v248
  %v1634 = vunpack.c.h.b16 %v248
  %v1635 = vunpack.c.l.b16 %v249
  %v1636 = vunpack.c.h.b16 %v249
  %v1637 = vunpack.c.l.b16 %v250
  %v1638 = vunpack.c.h.b16 %v250
  %v1639 = vunpack.c.l.b16 %v251
  %v1640 = vunpack.c.h.b16 %v251
  %v1641 = vunpack.c.l.b16 %v252
  %v1642 = vunpack.c.h.b16 %v252
  %v1643 = vunpack.c.l.b16 %v253
  %v1644 = vunpack.c.h.b16 %v253
  %v1645 = vunpack.c.l.b16 %v254
  %v1646 = vunpack.c.h.b16 %v254
  %v1647 = vunpack.c.l.b16 %v255
  %v1648 = vunpack.c.h.b16 %v255
  %v1649 = vunpack.c.l.b16 %v256
  %v1650 = vunpack.c.h.b16 %v256
  %v1651 = vunpack.c.l.b16 %v257
  %v1652 = vunpack.c.h.b16 %v257
  %v1653 = vunpack.c.l.b16 %v258
  %v1654 = vunpack.c.h.b16 %v258
  %v1655 = vunpack.c.l.b16 %v259
  %v1656 = vunpack.c.h.b16 %v259
  %v1657 = vunpack.c.l.b16 %v260
  %v1658 = vunpack.c.h.b16 %v260
  %v1659 = vunpack.c.l.b16 %v261
  %v1660 = vunpack.c.h.b16 %v261
  %v1661 = vunpack.c.l.b16 %v262
  %v1662 = vunpack.c.h.b16 %v262
  %v1663 = vunpack.c.l.b16 %v263
  %v1664 = vunpack.c.h.b16 %v263
  %v1665 = vunpack.c.l.b16 %v264
  %v1666 = vunpack.c.h.b16 %v264
  %v1667 = vunpack.c.l.b16 %v265
  %v1668 = vunpack.c.h.b16 %v265
  %v1669 = vunpack.c.l.b16 %v266
  %v1670 = vunpack.c.h.b16 %v266
  %v1671 = vunpack.c.l.b16 %v267
  %v1672 = vunpack.c.h.b16 %v267
  %v1673 = vunpack.c.l.b16 %v268
  %v1674 = vunpack.c.h.b16 %v268
  %v1675 = vunpack.c.l.b16 %v269
  %v1676 = vunpack.c.h.b16 %v269
  %v1677 = vunpack.c.l.b16 %v270
  %v1678 = vunpack.c.h.b16 %v270
  %v1679 = vunpack.c.l.b16 %v271
  %v1680 = vunpack.c.h.b16 %v271
  %v1681 = vunpack.c.l.b16 %v272
  %v1682 = vunpack.c.h.b16 %v272
  %v1683 = vunpack.c.l.b16 %v273
  %v1684 = vunpack.c.h.b16 %v273
  %v1685 = vunpack.c.l.b16 %v274
  %v1686 = vunpack.c.h.b16 %v274
  %v1687 = vunpack.c.l.b16 %v275
  %v1688 = vunpack.c.h.b16 %v275
  %v1689 = vunpack.c.l.b16 %v276
  %v1690 = vunpack.c.h.b16 %v276
  %v1691 = vunpack.c.l.b16 %v277
  %v1692 = vunpack.c.h.b16 %v277
  %v1693 = vunpack.c.l.b16 %v278
  %v1694 = vunpack.c.h.b16 %v278
  %v1695 = vunpack.c.l.b16 %v279
  %v1696 = vunpack.c.h.b16 %v279
  %v1697 = vunpack.c.l.b16 %v280
  %v1698 = vunpack.c.h.b16 %v280
  %v1699 = vunpack.c.l.b16 %v281
  %v1700 = vunpack.c.h.b16 %v281
  %v1701 = vunpack.c.l.b16 %v282
  %v1702 = vunpack.c.h.b16 %v282
  %v1703 = vunpack.c.l.b16 %v283
  %v1704 = vunpack.c.h.b16 %v283
  %v1705 = vunpack.c.l.b16 %v284
  %v1706 = vunpack.c.h.b16 %v284
  %v1707 = vunpack.c.l.b16 %v285
  %v1708 = vunpack.c.h.b16 %v285
  %v1709 = vunpack.c.l.b16 %v286
  %v1710 = vunpack.c.h.b16 %v286
  %v1711 = vunpack.c.l.b16 %v287
  %v1712 = vunpack.c.h.b16 %v287
  %v1713 = vunpack.c.l.b16 %v288
  %v1714 = vunpack.c.h.b16 %v288
  %v1715 = vunpack.c.l.b16 %v289
  %v1716 = vunpack.c.h.b16 %v289
  %v1717 = vunpack.c.l.b16 %v290
  %v1718 = vunpack.c.h.b16 %v290
  %v1719 = vunpack.c.l.b16 %v291
  %v1720 = vunpack.c.h.b16 %v291
  %v1721 = vunpack.c.l.b16 %v292
  %v1722 = vunpack.c.h.b16 %v292
  %v1723 = vunpack.c.l.b16 %v293
  %v1724 = vunpack.c.h.b16 %v293
  %v1725 = vunpack.c.l.b16 %v294
  %v1726 = vunpack.c.h.b16 %v294
  %v1727 = vunpack.c.l.b16 %v295
  %v1728 = vunpack.c.h.b16 %v295
  %v1729 = vunpack.c.l.b16 %v296
  %v1730 = vunpack.c.h.b16 %v296
  %v1731 = vunpack.c.l.b16 %v297
  %v1732 = vunpack.c.h.b16 %v297
  %v1733 = vunpack.c.l.b16 %v298
  %v1734 = vunpack.c.h.b16 %v298
  %v1735 = vunpack.c.l.b16 %v299
  %v1736 = vunpack.c.h.b16 %v299
  %v1737 = vunpack.c.l.b16 %v300
  %v1738 = vunpack.c.h.b16 %v300
  %v1739 = vunpack.c.l.b16 %v301
  %v1740 = vunpack.c.h.b16 %v301
  %v1741 = vunpack.c.l.b16 %v302
  %v1742 = vunpack.c.h.b16 %v302
  %v1743 = vunpack.c.l.b16 %v303
  %v1744 = vunpack.c.h.b16 %v303
  %v1745 = vunpack.c.l.b16 %v304
  %v1746 = vunpack.c.h.b16 %v304
  %v1747 = vunpack.c.l.b16 %v305
  %v1748 = vunpack.c.h.b16 %v305
  %v1749 = vunpack.c.l.b16 %v306
  %v1750 = vunpack.c.h.b16 %v306
  %v1751 = vunpack.c.l.b16 %v307
  %v1752 = vunpack.c.h.b16 %v307
  %v1753 = vunpack.c.l.b16 %v308
  %v1754 = vunpack.c.h.b16 %v308
  %v1755 = vunpack.c.l.b16 %v309
  %v1756 = vunpack.c.h.b16 %v309
  %v1757 = vunpack.c.l.b16 %v310
  %v1758 = vunpack.c.h.b16 %v310
  %v1759 = vunpack.c.l.b16 %v311
  %v1760 = vunpack.c.h.b16 %v311
  %v1761 = vunpack.c.l.b16 %v312
  %v1762 = vunpack.c.h.b16 %v312
  %v1763 = vunpack.c.l.b16 %v313
  %v1764 = vunpack.c.h.b16 %v313
  %v1765 = vunpack.c.l.b16 %v314
  %v1766 = vunpack.c.h.b16 %v314
  %v1767 = vunpack.c.l.b16 %v315
  %v1768 = vunpack.c.h.b16 %v315
  %v1769 = vunpack.c.l.b16 %v316
  %v1770 = vunpack.c.h.b16 %v316
  %v1771 = vunpack.c.l.b16 %v317
  %v1772 = vunpack.c.h.b16 %v317
  %v1773 = vunpack.c.l.b16 %v318
  %v1774 = vunpack.c.h.b16 %v318
  %v1775 = vunpack.c.l.b16 %v319
  %v1776 = vunpack.c.h.b16 %v319
  %v1777 = vunpack.c.l.b16 %v320
  %v1778 = vunpack.c.h.b16 %v320
  %v1779 = vunpack.c.l.b16 %v321
  %v1780 = vunpack.c.h.b16 %v321
  %v1781 = vunpack.c.l.b16 %v322
  %v1782 = vunpack.c.h.b16 %v322
  %v1783 = vunpack.c.l.b16 %v323
  %v1784 = vunpack.c.h.b16 %v323
  %v1785 = vunpack.c.l.b16 %v324
  %v1786 = vunpack.c.h.b16 %v324
  %v1787 = vunpack.c.l.b16 %v325
  %v1788 = vunpack.c.h.b16 %v325
  %v1789 = vunpack.c.l.b16 %v326
  %v1790 = vunpack.c.h.b16 %v326
  %v1791 = vunpack.c.l.b16 %v327
  %v1792 = vunpack.c.h.b16 %v327
  %v1793 = vunpack.c.l.b16 %v328
  %v1794 = vunpack.c.h.b16 %v328
  %v1795 = vunpack.c.l.b16 %v329
  %v1796 = vunpack.c.h.b16 %v329
  %v1797 = vunpack.c.l.b16 %v330
  %v1798 = vunpack.c.h.b16 %v330
  %v1799 = vunpack.c.l.b16 %v331
  %v1800 = vunpack.c.h.b16 %v331
  %v1801 = vunpack.c.l.b16 %v332
  %v1802 = vunpack.c.h.b16 %v332
  %v1803 = vunpack.c.l.b16 %v333
  %v1804 = vunpack.c.h.b16 %v333
  %v1805 = vunpack.c.l.b16 %v334
  %v1806 = vunpack.c.h.b16 %v334
  %v1807 = vunpack.c.l.b16 %v335
  %v1808 = vunpack.c.h.b16 %v335
  %v1809 = vunpack.c.l.b16 %v336
  %v1810 = vunpack.c.h.b16 %v336
  %v1811 = vunpack.c.l.b16 %v337
  %v1812 = vunpack.c.h.b16 %v337
  %v1813 = vunpack.c.l.b16 %v338
  %v1814 = vunpack.c.h.b16 %v338
  %v1815 = vunpack.c.l.b16 %v339
  %v1816 = vunpack.c.h.b16 %v339
  %v1817 = vunpack.c.l.b16 %v340
  %v1818 = vunpack.c.h.b16 %v340
  %v1819 = vunpack.c.l.b16 %v341
  %v1820 = vunpack.c.h.b16 %v341
  %v1821 = vunpack.c.l.b16 %v342
  %v1822 = vunpack.c.h.b16 %v342
  %v1823 = vunpack.c.l.b16 %v343
  %v1824 = vunpack.c.h.b16 %v343
  %v1825 = vunpack.c.l.b16 %v344
  %v1826 = vunpack.c.h.b16 %v344
  %v1827 = vunpack.c.l.b16 %v345
  %v1828 = vunpack.c.h.b16 %v345
  %v1829 = vunpack.c.l.b16 %v346
  %v1830 = vunpack.c.h.b16 %v346
  %v1831 = vunpack.c.l.b16 %v347
  %v1832 = vunpack.c.h.b16 %v347
  %v1833 = vunpack.c.l.b16 %v348
  %v1834 = vunpack.c.h.b16 %v348
  %v1835 = vunpack.c.l.b16 %v349
  %v1836 = vunpack.c.h.b16 %v349
  %v1837 = vunpack.c.l.b16 %v350
  %v1838 = vunpack.c.h.b16 %v350
  %v1839 = vunpack.c.l.b16 %v351
  %v1840 = vunpack.c.h.b16 %v351
  %v1841 = vunpack.c.l.b16 %v352
  %v1842 = vunpack.c.h.b16 %v352
  %v1843 = vunpack.c.l.b16 %v353
  %v1844 = vunpack.c.h.b16 %v353
  %v1845 = vunpack.c.l.b16 %v354
  %v1846 = vunpack.c.h.b16 %v354
  %v1847 = vunpack.c.l.b16 %v355
  %v1848 = vunpack.c.h.b16 %v355
  %v1849 = vunpack.c.l.b16 %v356
  %v1850 = vunpack.c.h.b16 %v356
  %v1851 = vunpack.c.l.b16 %v357
  %v1852 = vunpack.c.h.b16 %v357
  %v1853 = vunpack.c.l.b16 %v358
  %v1854 = vunpack.c.h.b16 %v358
  %v1855 = vunpack.c.l.b16 %v359
  %v1856 = vunpack.c.h.b16 %v359
  %v1857 = vunpack.c.l.b16 %v360
  %v1858 = vunpack.c.h.b16 %v360
  %v1859 = vunpack.c.l.b16 %v361
  %v1860 = vunpack.c.h.b16 %v361
  %v1861 = vunpack.c.l.b16 %v362
  %v1862 = vunpack.c.h.b16 %v362
  %v1863 = vunpack.c.l.b16 %v363
  %v1864 = vunpack.c.h.b16 %v363
  %v1865 = vunpack.c.l.b16 %v364
  %v1866 = vunpack.c.h.b16 %v364
  %v1867 = vunpack.c.l.b16 %v365
  %v1868 = vunpack.c.h.b16 %v365
  %v1869 = vunpack.c.l.b16 %v366
  %v1870 = vunpack.c.h.b16 %v366
  %v1871 = vunpack.c.l.b16 %v367
  %v1872 = vunpack.c.h.b16 %v367
  %v1873 = vunpack.c.l.b16 %v368
  %v1874 = vunpack.c.h.b16 %v368
  %v1875 = vunpack.c.l.b16 %v369
  %v1876 = vunpack.c.h.b16 %v369
  %v1877 = vunpack.c.l.b16 %v370
  %v1878 = vunpack.c.h.b16 %v370
  %v1879 = vunpack.c.l.b16 %v371
  %v1880 = vunpack.c.h.b16 %v371
  %v1881 = vunpack.c.l.b16 %v372
  %v1882 = vunpack.c.h.b16 %v372
  %v1883 = vunpack.c.l.b16 %v373
  %v1884 = vunpack.c.h.b16 %v373
  %v1885 = vunpack.c.l.b16 %v374
  %v1886 = vunpack.c.h.b16 %v374
  %v1887 = vunpack.c.l.b16 %v375
  %v1888 = vunpack.c.h.b16 %v375
  %v1889 = vunpack.c.l.b16 %v376
  %v1890 = vunpack.c.h.b16 %v376
  %v1891 = vunpack.c.l.b16 %v377
  %v1892 = vunpack.c.h.b16 %v377
  %v1893 = vunpack.c.l.b16 %v378
  %v1894 = vunpack.c.h.b16 %v378
  %v1895 = vunpack.c.l.b16 %v379
  %v1896 = vunpack.c.h.b16 %v379
  %v1897 = vunpack.c.l.b16 %v380
  %v1898 = vunpack.c.h.b16 %v380
  %v1899 = vunpack.c.l.b16 %v381
  %v1900 = vunpack.c.h.b16 %v381
  %v1901 = vunpack.c.l.b16 %v382
  %v1902 = vunpack.c.h.b16 %v382
  %v1903 = vunpack.c.l.b16 %v383
  %v1904 = vunpack.c.h.b16 %v383
  %v1905 = vunpack.c.l.b16 %v384
  %v1906 = vunpack.c.h.b16 %v384
  %v1907 = vunpack.c.l.b16 %v385
  %v1908 = vunpack.c.h.b16 %v385
  %v1909 = vunpack.c.l.b16 %v386
  %v1910 = vunpack.c.h.b16 %v386
  %v1911 = vunpack.c.l.b16 %v387
  %v1912 = vunpack.c.h.b16 %v387
  %v1913 = vunpack.c.l.b16 %v388
  %v1914 = vunpack.c.h.b16 %v388
  %v1915 = vunpack.c.l.b16 %v389
  %v1916 = vunpack.c.h.b16 %v389
  %v1917 = vunpack.c.l.b16 %v390
  %v1918 = vunpack.c.h.b16 %v390
  %v1919 = vunpack.c.l.b16 %v391
  %v1920 = vunpack.c.h.b16 %v391
  %v1921 = vunpack.c.l.b16 %v392
  %v1922 = vunpack.c.h.b16 %v392
  %v1923 = vunpack.c.l.b16 %v393
  %v1924 = vunpack.c.h.b16 %v393
  %v1925 = vunpack.c.l.b16 %v394
  %v1926 = vunpack.c.h.b16 %v394
  %v1927 = vunpack.c.l.b16 %v395
  %v1928 = vunpack.c.h.b16 %v395
  %v1929 = vunpack.c.l.b16 %v396
  %v1930 = vunpack.c.h.b16 %v396
  %v1931 = vunpack.c.l.b16 %v397
  %v1932 = vunpack.c.h.b16 %v397
  %v1933 = vunpack.c.l.b16 %v398
  %v1934 = vunpack.c.h.b16 %v398
  %v1935 = vunpack.c.l.b16 %v399
  %v1936 = vunpack.c.h.b16 %v399
  %v1937 = vunpack.c.l.b16 %v400
  %v1938 = vunpack.c.h.b16 %v400
  %v1939 = vunpack.c.l.b16 %v401
  %v1940 = vunpack.c.h.b16 %v401
  %v1941 = vunpack.c.l.b16 %v402
  %v1942 = vunpack.c.h.b16 %v402
  %v1943 = vunpack.c.l.b16 %v403
  %v1944 = vunpack.c.h.b16 %v403
  %v1945 = vunpack.c.l.b16 %v404
  %v1946 = vunpack.c.h.b16 %v404
  %v1947 = vunpack.c.l.b16 %v405
  %v1948 = vunpack.c.h.b16 %v405
  %v1949 = vunpack.c.l.b16 %v406
  %v1950 = vunpack.c.h.b16 %v406
  %v1951 = vunpack.c.l.b16 %v407
  %v1952 = vunpack.c.h.b16 %v407
  %v1953 = vunpack.c.l.b16 %v408
  %v1954 = vunpack.c.h.b16 %v408
  %v1955 = vunpack.c.l.b16 %v409
  %v1956 = vunpack.c.h.b16 %v409
  %v1957 = vunpack.c.l.b16 %v410
  %v1958 = vunpack.c.h.b16 %v410
  %v1959 = vunpack.c.l.b16 %v411
  %v1960 = vunpack.c.h.b16 %v411
  %v1961 = vunpack.c.l.b16 %v412
  %v1962 = vunpack.c.h.b16 %v412
  %v1963 = vunpack.c.l.b16 %v413
  %v1964 = vunpack.c.h.b16 %v413
  %v1965 = vunpack.c.l.b16 %v414
  %v1966 = vunpack.c.h.b16 %v414
  %v1967 = vunpack.c.l.b16 %v415
  %v1968 = vunpack.c.h.b16 %v415
  %v1969 = vunpack.c.l.b16 %v416
  %v1970 = vunpack.c.h.b16 %v416
  %v1971 = vunpack.c.l.b16 %v417
  %v1972 = vunpack.c.h.b16 %v417
  %v1973 = vunpack.c.l.b16 %v418
  %v1974 = vunpack.c.h.b16 %v418
  %v1975 = vunpack.c.l.b16 %v419
  %v1976 = vunpack.c.h.b16 %v419
  %v1977 = vunpack.c.l.b16 %v420
  %v1978 = vunpack.c.h.b16 %v420
  %v1979 = vunpack.c.l.b16 %v421
  %v1980 = vunpack.c.h.b16 %v421
  %v1981 = vunpack.c.l.b16 %v422
  %v1982 = vunpack.c.h.b16 %v422
  %v1983 = vunpack.c.l.b16 %v423
  %v1984 = vunpack.c.h.b16 %v423
  %v1985 = vunpack.c.l.b16 %v424
  %v1986 = vunpack.c.h.b16 %v424
  %v1987 = vunpack.c.l.b16 %v425
  %v1988 = vunpack.c.h.b16 %v425
  %v1989 = vunpack.c.l.b16 %v426
  %v1990 = vunpack.c.h.b16 %v426
  %v1991 = vunpack.c.l.b16 %v427
  %v1992 = vunpack.c.h.b16 %v427
  %v1993 = vunpack.c.l.b16 %v428
  %v1994 = vunpack.c.h.b16 %v428
  %v1995 = vunpack.c.l.b16 %v429
  %v1996 = vunpack.c.h.b16 %v429
  %v1997 = vunpack.c.l.b16 %v430
  %v1998 = vunpack.c.h.b16 %v430
  %v1999 = vunpack.c.l.b16 %v431
  %v2000 = vunpack.c.h.b16 %v431
  %v2001 = vunpack.c.l.b16 %v432
  %v2002 = vunpack.c.h.b16 %v432
  %v2003 = vunpack.c.l.b16 %v433
  %v2004 = vunpack.c.h.b16 %v433
  %v2005 = vunpack.c.l.b16 %v434
  %v2006 = vunpack.c.h.b16 %v434
  %v2007 = vunpack.c.l.b16 %v435
  %v2008 = vunpack.c.h.b16 %v435
  %v2009 = vunpack.c.l.b16 %v436
  %v2010 = vunpack.c.h.b16 %v436
  %v2011 = vunpack.c.l.b16 %v437
  %v2012 = vunpack.c.h.b16 %v437
  %v2013 = vunpack.c.l.b16 %v438
  %v2014 = vunpack.c.h.b16 %v438
  %v2015 = vunpack.c.l.b16 %v439
  %v2016 = vunpack.c.h.b16 %v439
  %v2017 = vunpack.c.l.b16 %v440
  %v2018 = vunpack.c.h.b16 %v440
  %v2019 = vunpack.c.l.b16 %v441
  %v2020 = vunpack.c.h.b16 %v441
  %v2021 = vunpack.c.l.b16 %v442
  %v2022 = vunpack.c.h.b16 %v442
  %v2023 = vunpack.c.l.b16 %v443
  %v2024 = vunpack.c.h.b16 %v443
  %v2025 = vunpack.c.l.b16 %v444
  %v2026 = vunpack.c.h.b16 %v444
  %v2027 = vunpack.c.l.b16 %v445
  %v2028 = vunpack.c.h.b16 %v445
  %v2029 = vunpack.c.l.b16 %v446
  %v2030 = vunpack.c.h.b16 %v446
  %v2031 = vunpack.c.l.b16 %v447
  %v2032 = vunpack.c.h.b16 %v447
  %v2033 = vunpack.c.l.b16 %v448
  %v2034 = vunpack.c.h.b16 %v448
  %v2035 = vunpack.c.l.b16 %v449
  %v2036 = vunpack.c.h.b16 %v449
  %v2037 = vunpack.c.l.b16 %v450
  %v2038 = vunpack.c.h.b16 %v450
  %v2039 = vunpack.c.l.b16 %v451
  %v2040 = vunpack.c.h.b16 %v451
  %v2041 = vunpack.c.l.b16 %v452
  %v2042 = vunpack.c.h.b16 %v452
  %v2043 = vunpack.c.l.b16 %v453
  %v2044 = vunpack.c.h.b16 %v453
  %v2045 = vunpack.c.l.b16 %v454
  %v2046 = vunpack.c.h.b16 %v454
  %v2047 = vunpack.c.l.b16 %v455
  %v2048 = vunpack.c.h.b16 %v455
  %v2049 = vunpack.c.l.b16 %v456
  %v2050 = vunpack.c.h.b16 %v456
  %v2051 = vunpack.c.l.b16 %v457
  %v2052 = vunpack.c.h.b16 %v457
  %v2053 = vunpack.c.l.b16 %v458
  %v2054 = vunpack.c.h.b16 %v458
  %v2055 = vunpack.c.l.b16 %v459
  %v2056 = vunpack.c.h.b16 %v459
  %v2057 = vunpack.c.l.b16 %v460
  %v2058 = vunpack.c.h.b16 %v460
  %v2059 = vunpack.c.l.b16 %v461
  %v2060 = vunpack.c.h.b16 %v461
  %v2061 = vunpack.c.l.b16 %v462
  %v2062 = vunpack.c.h.b16 %v462
  %v2063 = vunpack.c.l.b16 %v463
  %v2064 = vunpack.c.h.b16 %v463
  %v2065 = vunpack.c.l.b16 %v464
  %v2066 = vunpack.c.h.b16 %v464
  %v2067 = vunpack.c.l.b16 %v465
  %v2068 = vunpack.c.h.b16 %v465
  %v2069 = vunpack.c.l.b16 %v466
  %v2070 = vunpack.c.h.b16 %v466
  %v2071 = vunpack.c.l.b16 %v467
  %v2072 = vunpack.c.h.b16 %v467
  %v2073 = vunpack.c.l.b16 %v468
  %v2074 = vunpack.c.h.b16 %v468
  %v2075 = vunpack.c.l.b16 %v469
  %v2076 = vunpack.c.h.b16 %v469
  %v2077 = vunpack.c.l.b16 %v470
  %v2078 = vunpack.c.h.b16 %v470
  %v2079 = vunpack.c.l.b16 %v471
  %v2080 = vunpack.c.h.b16 %v471
  %v2081 = vunpack.c.l.b16 %v472
  %v2082 = vunpack.c.h.b16 %v472
  %v2083 = vunpack.c.l.b16 %v473
  %v2084 = vunpack.c.h.b16 %v473
  %v2085 = vunpack.c.l.b16 %v474
  %v2086 = vunpack.c.h.b16 %v474
  %v2087 = vunpack.c.l.b16 %v475
  %v2088 = vunpack.c.h.b16 %v475
  %v2089 = vunpack.c.l.b16 %v476
  %v2090 = vunpack.c.h.b16 %v476
  %v2091 = vunpack.c.l.b16 %v477
  %v2092 = vunpack.c.h.b16 %v477
  %v2093 = vunpack.c.l.b16 %v478
  %v2094 = vunpack.c.h.b16 %v478
  %v2095 = vunpack.c.l.b16 %v479
  %v2096 = vunpack.c.h.b16 %v479
  %v2097 = vunpack.c.l.b16 %v480
  %v2098 = vunpack.c.h.b16 %v480
  %v2099 = vunpack.c.l.b16 %v481
  %v2100 = vunpack.c.h.b16 %v481
  %v2101 = vunpack.c.l.b16 %v482
  %v2102 = vunpack.c.h.b16 %v482
  %v2103 = vunpack.c.l.b16 %v483
  %v2104 = vunpack.c.h.b16 %v483
  %v2105 = vunpack.c.l.b16 %v484
  %v2106 = vunpack.c.h.b16 %v484
  %v2107 = vunpack.c.l.b16 %v485
  %v2108 = vunpack.c.h.b16 %v485
  %v2109 = vunpack.c.l.b16 %v486
  %v2110 = vunpack.c.h.b16 %v486
  %v2111 = vunpack.c.l.b16 %v487
  %v2112 = vunpack.c.h.b16 %v487
  %v2113 = vunpack.c.l.b16 %v488
  %v2114 = vunpack.c.h.b16 %v488
  %v2115 = vunpack.c.l.b16 %v489
  %v2116 = vunpack.c.h.b16 %v489
  %v2117 = vunpack.c.l.b16 %v490
  %v2118 = vunpack.c.h.b16 %v490
  %v2119 = vunpack.c.l.b16 %v491
  %v2120 = vunpack.c.h.b16 %v491
  %v2121 = vunpack.c.l.b16 %v492
  %v2122 = vunpack.c.h.b16 %v492
  %v2123 = vunpack.c.l.b16 %v493
  %v2124 = vunpack.c.h.b16 %v493
  %v2125 = vunpack.c.l.b16 %v494
  %v2126 = vunpack.c.h.b16 %v494
  %v2127 = vunpack.c.l.b16 %v495
  %v2128 = vunpack.c.h.b16 %v495
  %v2129 = vunpack.c.l.b16 %v496
  %v2130 = vunpack.c.h.b16 %v496
  %v2131 = vunpack.c.l.b16 %v497
  %v2132 = vunpack.c.h.b16 %v497
  %v2133 = vunpack.c.l.b16 %v498
  %v2134 = vunpack.c.h.b16 %v498
  %v2135 = vunpack.c.l.b16 %v499
  %v2136 = vunpack.c.h.b16 %v499
  %v2137 = vunpack.c.l.b16 %v500
  %v2138 = vunpack.c.h.b16 %v500
  %v2139 = vunpack.c.l.b16 %v501
  %v2140 = vunpack.c.h.b16 %v501
  %v2141 = vunpack.c.l.b16 %v502
  %v2142 = vunpack.c.h.b16 %v502
  %v2143 = vunpack.c.l.b16 %v503
  %v2144 = vunpack.c.h.b16 %v503
  %v2145 = vunpack.c.l.b16 %v504
  %v2146 = vunpack.c.h.b16 %v504
  %v2147 = vunpack.c.l.b16 %v505
  %v2148 = vunpack.c.h.b16 %v505
  %v2149 = vunpack.c.l.b16 %v506
  %v2150 = vunpack.c.h.b16 %v506
  %v2151 = vunpack.c.l.b16 %v507
  %v2152 = vunpack.c.h.b16 %v507
  %v2153 = vunpack.c.l.b16 %v508
  %v2154 = vunpack.c.h.b16 %v508
  %v2155 = vunpack.c.l.b16 %v509
  %v2156 = vunpack.c.h.b16 %v509
  %v2157 = vunpack.c.l.b16 %v510
  %v2158 = vunpack.c.h.b16 %v510
  %v2159 = vunpack.c.l.b16 %v511
  %v2160 = vunpack.c.h.b16 %v511
  %v2161 = vunpack.c.l.b16 %v512
  %v2162 = vunpack.c.h.b16 %v512
  %v2163 = vunpack.c.l.b16 %v513
  %v2164 = vunpack.c.h.b16 %v513
  %v2165 = vunpack.c.l.b16 %v514
  %v2166 = vunpack.c.h.b16 %v514
  %v2167 = vunpack.c.l.b16 %v515
  %v2168 = vunpack.c.h.b16 %v515
  %v2169 = vunpack.c.l.b16 %v516
  %v2170 = vunpack.c.h.b16 %v516
  %v2171 = vunpack.c.l.b16 %v517
  %v2172 = vunpack.c.h.b16 %v517
  %v2173 = vunpack.c.l.b16 %v518
  %v2174 = vunpack.c.h.b16 %v518
  %v2175 = vunpack.c.l.b16 %v519
  %v2176 = vunpack.c.h.b16 %v519
  %v2177 = vunpack.c.l.b16 %v520
  %v2178 = vunpack.c.h.b16 %v520
  %v2179 = vunpack.c.l.b16 %v521
  %v2180 = vunpack.c.h.b16 %v521
  %v2181 = vunpack.c.l.b16 %v522
  %v2182 = vunpack.c.h.b16 %v522
  %v2183 = vunpack.c.l.b16 %v523
  %v2184 = vunpack.c.h.b16 %v523
  %v2185 = vunpack.c.l.b16 %v524
  %v2186 = vunpack.c.h.b16 %v524
  %v2187 = vunpack.c.l.b16 %v525
  %v2188 = vunpack.c.h.b16 %v525
  %v2189 = vunpack.c.l.b16 %v526
  %v2190 = vunpack.c.h.b16 %v526
  %v2191 = vunpack.c.l.b16 %v527
  %v2192 = vunpack.c.h.b16 %v527
  %v2193 = vunpack.c.l.b16 %v528
  %v2194 = vunpack.c.h.b16 %v528
  %v2195 = vunpack.c.l.b16 %v529
  %v2196 = vunpack.c.h.b16 %v529
  %v2197 = vunpack.c.l.b16 %v530
  %v2198 = vunpack.c.h.b16 %v530
  %v2199 = vunpack.c.l.b16 %v531
  %v2200 = vunpack.c.h.b16 %v531
  %v2201 = vunpack.c.l.b16 %v532
  %v2202 = vunpack.c.h.b16 %v532
  %v2203 = vunpack.c.l.b16 %v533
  %v2204 = vunpack.c.h.b16 %v533
  %v2205 = vunpack.c.l.b16 %v534
  %v2206 = vunpack.c.h.b16 %v534
  %v2207 = vunpack.c.l.b16 %v535
  %v2208 = vunpack.c.h.b16 %v535
  %v2209 = vunpack.c.l.b16 %v536
  %v2210 = vunpack.c.h.b16 %v536
  %v2211 = vunpack.c.l.b16 %v537
  %v2212 = vunpack.c.h.b16 %v537
  %v2213 = vunpack.c.l.b16 %v538
  %v2214 = vunpack.c.h.b16 %v538
  %v2215 = vunpack.c.l.b16 %v539
  %v2216 = vunpack.c.h.b16 %v539
  %v2217 = vunpack.c.l.b16 %v540
  %v2218 = vunpack.c.h.b16 %v540
  %v2219 = vunpack.c.l.b16 %v541
  %v2220 = vunpack.c.h.b16 %v541
  %v2221 = vunpack.c.l.b16 %v542
  %v2222 = vunpack.c.h.b16 %v542
  %v2223 = vunpack.c.l.b16 %v543
  %v2224 = vunpack.c.h.b16 %v543
  %v2225 = vunpack.c.l.b16 %v544
  %v2226 = vunpack.c.h.b16 %v544
  %v2227 = vunpack.c.l.b16 %v545
  %v2228 = vunpack.c.h.b16 %v545
  %v2229 = vunpack.c.l.b16 %v546
  %v2230 = vunpack.c.h.b16 %v546
  %v2231 = vunpack.c.l.b16 %v547
  %v2232 = vunpack.c.h.b16 %v547
  %v2233 = vunpack.c.l.b16 %v548
  %v2234 = vunpack.c.h.b16 %v548
  %v2235 = vunpack.c.l.b16 %v549
  %v2236 = vunpack.c.h.b16 %v549
  %v2237 = vunpack.c.l.b16 %v550
  %v2238 = vunpack.c.h.b16 %v550
  %v2239 = vunpack.c.l.b16 %v551
  %v2240 = vunpack.c.h.b16 %v551
  %v2241 = vunpack.c.l.b16 %v552
  %v2242 = vunpack.c.h.b16 %v552
  %v2243 = vunpack.c.l.b16 %v553
  %v2244 = vunpack.c.h.b16 %v553
  %v2245 = vunpack.c.l.b16 %v554
  %v2246 = vunpack.c.h.b16 %v554
  %v2247 = vunpack.c.l.b16 %v555
  %v2248 = vunpack.c.h.b16 %v555
  %v2249 = vunpack.c.l.b16 %v556
  %v2250 = vunpack.c.h.b16 %v556
  %v2251 = vunpack.c.l.b16 %v557
  %v2252 = vunpack.c.h.b16 %v557
  %v2253 = vunpack.c.l.b16 %v558
  %v2254 = vunpack.c.h.b16 %v558
  %v2255 = vpack.c.b16 %v1247, %v1231
  %v2256 = vpack.c.b16 %v1248, %v1232
  %v2257 = vpack.c.b16 %v1249, %v1233
  %v2258 = vpack.c.b16 %v1250, %v1234
  %v2259 = vpack.c.b16 %v1251, %v1235
  %v2260 = vpack.c.b16 %v1252, %v1236
  %v2261 = vpack.c.b16 %v1253, %v1237
  %v2262 = vpack.c.b16 %v1254, %v1238
  %v2263 = vpack.c.b16 %v1255, %v1239
  %v2264 = vpack.c.b16 %v1256, %v1240
  %v2265 = vpack.c.b16 %v1257, %v1241
  %v2266 = vpack.c.b16 %v1258, %v1242
  %v2267 = vpack.c.b16 %v1259, %v1243
  %v2268 = vpack.c.b16 %v1260, %v1244
  %v2269 = vpack.c.b16 %v1261, %v1245
  %v2270 = vpack.c.b16 %v1262, %v1246
  %v2271 = vpack.c.b16 %v1279, %v1263
  %v2272 = vpack.c.b16 %v1280, %v1264
  %v2273 = vpack.c.b16 %v1281, %v1265
  %v2274 = vpack.c.b16 %v1282, %v1266
  %v2275 = vpack.c.b16 %v1283, %v1267
  %v2276 = vpack.c.b16 %v1284, %v1268
  %v2277 = vpack.c.b16 %v1285, %v1269
  %v2278 = vpack.c.b16 %v1286, %v1270
  %v2279 = vpack.c.b16 %v1287, %v1271
  %v2280 = vpack.c.b16 %v1288, %v1272
  %v2281 = vpack.c.b16 %v1289, %v1273
  %v2282 = vpack.c.b16 %v1290, %v1274
  %v2283 = vpack.c.b16 %v1291, %v1275
  %v2284 = vpack.c.b16 %v1292, %v1276
  %v2285 = vpack.c.b16 %v1293, %v1277
  %v2286 = vpack.c.b16 %v1294, %v1278
  %v2287 = vpack.c.b16 %v1311, %v1295
  %v2288 = vpack.c.b16 %v1312, %v1296
  %v2289 = vpack.c.b16 %v1313, %v1297
  %v2290 = vpack.c.b16 %v1314, %v1298
  %v2291 = vpack.c.b16 %v1315, %v1299
  %v2292 = vpack.c.b16 %v1316, %v1300
  %v2293 = vpack.c.b16 %v1317, %v1301
  %v2294 = vpack.c.b16 %v1318, %v1302
  %v2295 = vpack.c.b16 %v1319, %v1303
  %v2296 = vpack.c.b16 %v1320, %v1304
  %v2297 = vpack.c.b16 %v1321, %v1305
  %v2298 = vpack.c.b16 %v1322, %v1306
  %v2299 = vpack.c.b16 %v1323, %v1307
  %v2300 = vpack.c.b16 %v1324, %v1308
  %v2301 = vpack.c.b16 %v1325, %v1309
  %v2302 = vpack.c.b16 %v1326, %v1310
  %v2303 = vpack.c.b16 %v1343, %v1327
  %v2304 = vpack.c.b16 %v1344, %v1328
  %v2305 = vpack.c.b16 %v1345, %v1329
  %v2306 = vpack.c.b16 %v1346, %v1330
  %v2307 = vpack.c.b16 %v1347, %v1331
  %v2308 = vpack.c.b16 %v1348, %v1332
  %v2309 = vpack.c.b16 %v1349, %v1333
  %v2310 = vpack.c.b16 %v1350, %v1334
  %v2311 = vpack.c.b16 %v1351, %v1335
  %v2312 = vpack.c.b16 %v1352, %v1336
  %v2313 = vpack.c.b16 %v1353, %v1337
  %v2314 = vpack.c.b16 %v1354, %v1338
  %v2315 = vpack.c.b16 %v1355, %v1339
  %v2316 = vpack.c.b16 %v1356, %v1340
  %v2317 = vpack.c.b16 %v1357, %v1341
  %v2318 = vpack.c.b16 %v1358, %v1342
  %v2319 = vpack.c.b16 %v1375, %v1359
  %v2320 = vpack.c.b16 %v1376, %v1360
  %v2321 = vpack.c.b16 %v1377, %v1361
  %v2322 = vpack.c.b16 %v1378, %v1362
  %v2323 = vpack.c.b16 %v1379, %v1363
  %v2324 = vpack.c.b16 %v1380, %v1364
  %v2325 = vpack.c.b16 %v1381, %v1365
  %v2326 = vpack.c.b16 %v1382, %v1366
  %v2327 = vpack.c.b16 %v1383, %v1367
  %v2328 = vpack.c.b16 %v1384, %v1368
  %v2329 = vpack.c.b16 %v1385, %v1369
  %v2330 = vpack.c.b16 %v1386, %v1370
  %v2331 = vpack.c.b16 %v1387, %v1371
  %v2332 = vpack.c.b16 %v1388, %v1372
  %v2333 = vpack.c.b16 %v1389, %v1373
  %v2334 = vpack.c.b16 %v1390, %v1374
  %v2335 = vpack.c.b16 %v1407, %v1391
  %v2336 = vpack.c.b16 %v1408, %v1392
  %v2337 = vpack.c.b16 %v1409, %v1393
  %v2338 = vpack.c.b16 %v1410, %v1394
  %v2339 = vpack.c.b16 %v1411, %v1395
  %v2340 = vpack.c.b16 %v1412, %v1396
  %v2341 = vpack.c.b16 %v1413, %v1397
  %v2342 = vpack.c.b16 %v1414, %v1398
  %v2343 = vpack.c.b16 %v1415, %v1399
  %v2344 = vpack.c.b16 %v1416, %v1400
  %v2345 = vpack.c.b16 %v1417, %v1401
  %v2346 = vpack.c.b16 %v1418, %v1402
  %v2347 = vpack.c.b16 %v1419, %v1403
  %v2348 = vpack.c.b16 %v1420, %v1404
  %v2349 = vpack.c.b16 %v1421, %v1405
  %v2350 = vpack.c.b16 %v1422, %v1406
  %v2351 = vpack.c.b16 %v1439, %v1423
  %v2352 = vpack.c.b16 %v1440, %v1424
  %v2353 = vpack.c.b16 %v1441, %v1425
  %v2354 = vpack.c.b16 %v1442, %v1426
  %v2355 = vpack.c.b16 %v1443, %v1427
  %v2356 = vpack.c.b16 %v1444, %v1428
  %v2357 = vpack.c.b16 %v1445, %v1429
  %v2358 = vpack.c.b16 %v1446, %v1430
  %v2359 = vpack.c.b16 %v1447, %v1431
  %v2360 = vpack.c.b16 %v1448, %v1432
  %v2361 = vpack.c.b16 %v1449, %v1433
  %v2362 = vpack.c.b16 %v1450, %v1434
  %v2363 = vpack.c.b16 %v1451, %v1435
  %v2364 = vpack.c.b16 %v1452, %v1436
  %v2365 = vpack.c.b16 %v1453, %v1437
  %v2366 = vpack.c.b16 %v1454, %v1438
  %v2367 = vpack.c.b16 %v1471, %v1455
  %v2368 = vpack.c.b16 %v1472, %v1456
  %v2369 = vpack.c.b16 %v1473, %v1457
  %v2370 = vpack.c.b16 %v1474, %v1458
  %v2371 = vpack.c.b16 %v1475, %v1459
  %v2372 = vpack.c.b16 %v1476, %v1460
  %v2373 = vpack.c.b16 %v1477, %v1461
  %v2374 = vpack.c.b16 %v1478, %v1462
  %v2375 = vpack.c.b16 %v1479, %v1463
  %v2376 = vpack.c.b16 %v1480, %v1464
  %v2377 = vpack.c.b16 %v1481, %v1465
  %v2378 = vpack.c.b16 %v1482, %v1466
  %v2379 = vpack.c.b16 %v1483, %v1467
  %v2380 = vpack.c.b16 %v1484, %v1468
  %v2381 = vpack.c.b16 %v1485, %v1469
  %v2382 = vpack.c.b16 %v1486, %v1470
  %v2383 = vpack.c.b16 %v1503, %v1487
  %v2384 = vpack.c.b16 %v1504, %v1488
  %v2385 = vpack.c.b16 %v1505, %v1489
  %v2386 = vpack.c.b16 %v1506, %v1490
  %v2387 = vpack.c.b16 %v1507, %v1491
  %v2388 = vpack.c.b16 %v1508, %v1492
  %v2389 = vpack.c.b16 %v1509, %v1493
  %v2390 = vpack.c.b16 %v1510, %v1494
  %v2391 = vpack.c.b16 %v1511, %v1495
  %v2392 = vpack.c.b16 %v1512, %v1496
  %v2393 = vpack.c.b16 %v1513, %v1497
  %v2394 = vpack.c.b16 %v1514, %v1498
  %v2395 = vpack.c.b16 %v1515, %v1499
  %v2396 = vpack.c.b16 %v1516, %v1500
  %v2397 = vpack.c.b16 %v1517, %v1501
  %v2398 = vpack.c.b16 %v1518, %v1502
  %v2399 = vpack.c.b16 %v1535, %v1519
  %v2400 = vpack.c.b16 %v1536, %v1520
  %v2401 = vpack.c.b16 %v1537, %v1521
  %v2402 = vpack.c.b16 %v1538, %v1522
  %v2403 = vpack.c.b16 %v1539, %v1523
  %v2404 = vpack.c.b16 %v1540, %v1524
  %v2405 = vpack.c.b16 %v1541, %v1525
  %v2406 = vpack.c.b16 %v1542, %v1526
  %v2407 = vpack.c.b16 %v1543, %v1527
  %v2408 = vpack.c.b16 %v1544, %v1528
  %v2409 = vpack.c.b16 %v1545, %v1529
  %v2410 = vpack.c.b16 %v1546, %v1530
  %v2411 = vpack.c.b16 %v1547, %v1531
  %v2412 = vpack.c.b16 %v1548, %v1532
  %v2413 = vpack.c.b16 %v1549, %v1533
  %v2414 = vpack.c.b16 %v1550, %v1534
  %v2415 = vpack.c.b16 %v1567, %v1551
  %v2416 = vpack.c.b16 %v1568, %v1552
  %v2417 = vpack.c.b16 %v1569, %v1553
  %v2418 = vpack.c.b16 %v1570, %v1554
  %v2419 = vpack.c.b16 %v1571, %v1555
  %v2420 = vpack.c.b16 %v1572, %v1556
  %v2421 = vpack.c.b16 %v1573, %v1557
  %v2422 = vpack.c.b16 %v1574, %v1558
  %v2423 = vpack.c.b16 %v1575, %v1559
  %v2424 = vpack.c.b16 %v1576, %v1560
  %v2425 = vpack.c.b16 %v1577, %v1561
  %v2426 = vpack.c.b16 %v1578, %v1562
  %v2427 = vpack.c.b16 %v1579, %v1563
  %v2428 = vpack.c.b16 %v1580, %v1564
  %v2429 = vpack.c.b16 %v1581, %v1565
  %v2430 = vpack.c.b16 %v1582, %v1566
  %v2431 = vpack.c.b16 %v1599, %v1583
  %v2432 = vpack.c.b16 %v1600, %v1584
  %v2433 = vpack.c.b16 %v1601, %v1585
  %v2434 = vpack.c.b16 %v1602, %v1586
  %v2435 = vpack.c.b16 %v1603, %v1587
  %v2436 = vpack.c.b16 %v1604, %v1588
  %v2437 = vpack.c.b16 %v1605, %v1589
  %v2438 = vpack.c.b16 %v1606, %v1590
  %v2439 = vpack.c.b16 %v1607, %v1591
  %v2440 = vpack.c.b16 %v1608, %v1592
  %v2441 = vpack.c.b16 %v1609, %v1593
  %v2442 = vpack.c.b16 %v1610, %v1594
  %v2443 = vpack.c.b16 %v1611, %v1595
  %v2444 = vpack.c.b16 %v1612, %v1596
  %v2445 = vpack.c.b16 %v1613, %v1597
  %v2446 = vpack.c.b16 %v1614, %v1598
  %v2447 = vpack.c.b16 %v1631, %v1615
  %v2448 = vpack.c.b16 %v1632, %v1616
  %v2449 = vpack.c.b16 %v1633, %v1617
  %v2450 = vpack.c.b16 %v1634, %v1618
  %v2451 = vpack.c.b16 %v1635, %v1619
  %v2452 = vpack.c.b16 %v1636, %v1620
  %v2453 = vpack.c.b16 %v1637, %v1621
  %v2454 = vpack.c.b16 %v1638, %v1622
  %v2455 = vpack.c.b16 %v1639, %v1623
  %v2456 = vpack.c.b16 %v1640, %v1624
  %v2457 = vpack.c.b16 %v1641, %v1625
  %v2458 = vpack.c.b16 %v1642, %v1626
  %v2459 = vpack.c.b16 %v1643, %v1627
  %v2460 = vpack.c.b16 %v1644, %v1628
  %v2461 = vpack.c.b16 %v1645, %v1629
  %v2462 = vpack.c.b16 %v1646, %v1630
  %v2463 = vpack.c.b16 %v1663, %v1647
  %v2464 = vpack.c.b16 %v1664, %v1648
  %v2465 = vpack.c.b16 %v1665, %v1649
  %v2466 = vpack.c.b16 %v1666, %v1650
  %v2467 = vpack.c.b16 %v1667, %v1651
  %v2468 = vpack.c.b16 %v1668, %v1652
  %v2469 = vpack.c.b16 %v1669, %v1653
  %v2470 = vpack.c.b16 %v1670, %v1654
  %v2471 = vpack.c.b16 %v1671, %v1655
  %v2472 = vpack.c.b16 %v1672, %v1656
  %v2473 = vpack.c.b16 %v1673, %v1657
  %v2474 = vpack.c.b16 %v1674, %v1658
  %v2475 = vpack.c.b16 %v1675, %v1659
  %v2476 = vpack.c.b16 %v1676, %v1660
  %v2477 = vpack.c.b16 %v1677, %v1661
  %v2478 = vpack.c.b16 %v1678, %v1662
  %v2479 = vpack.c.b16 %v1695, %v1679
  %v2480 = vpack.c.b16 %v1696, %v1680
  %v2481 = vpack.c.b16 %v1697, %v1681
  %v2482 = vpack.c.b16 %v1698, %v1682
  %v2483 = vpack.c.b16 %v1699, %v1683
  %v2484 = vpack.c.b16 %v1700, %v1684
  %v2485 = vpack.c.b16 %v1701, %v1685
  %v2486 = vpack.c.b16 %v1702, %v1686
  %v2487 = vpack.c.b16 %v1703, %v1687
  %v2488 = vpack.c.b16 %v1704, %v1688
  %v2489 = vpack.c.b16 %v1705, %v1689
  %v2490 = vpack.c.b16 %v1706, %v1690
  %v2491 = vpack.c.b16 %v1707, %v1691
  %v2492 = vpack.c.b16 %v1708, %v1692
  %v2493 = vpack.c.b16 %v1709, %v1693
  %v2494 = vpack.c.b16 %v1710, %v1694
  %v2495 = vpack.c.b16 %v1727, %v1711
  %v2496 = vpack.c.b16 %v1728, %v1712
  %v2497 = vpack.c.b16 %v1729, %v1713
  %v2498 = vpack.c.b16 %v1730, %v1714
  %v2499 = vpack.c.b16 %v1731, %v1715
  %v2500 = vpack.c.b16 %v1732, %v1716
  %v2501 = vpack.c.b16 %v1733, %v1717
  %v2502 = vpack.c.b16 %v1734, %v1718
  %v2503 = vpack.c.b16 %v1735, %v1719
  %v2504 = vpack.c.b16 %v1736, %v1720
  %v2505 = vpack.c.b16 %v1737, %v1721
  %v2506 = vpack.c.b16 %v1738, %v1722
  %v2507 = vpack.c.b16 %v1739, %v1723
  %v2508 = vpack.c.b16 %v1740, %v1724
  %v2509 = vpack.c.b16 %v1741, %v1725
  %v2510 = vpack.c.b16 %v1742, %v1726
  %v2511 = vpack.c.b16 %v1759, %v1743
  %v2512 = vpack.c.b16 %v1760, %v1744
  %v2513 = vpack.c.b16 %v1761, %v1745
  %v2514 = vpack.c.b16 %v1762, %v1746
  %v2515 = vpack.c.b16 %v1763, %v1747
  %v2516 = vpack.c.b16 %v1764, %v1748
  %v2517 = vpack.c.b16 %v1765, %v1749
  %v2518 = vpack.c.b16 %v1766, %v1750
  %v2519 = vpack.c.b16 %v1767, %v1751
  %v2520 = vpack.c.b16 %v1768, %v1752
  %v2521 = vpack.c.b16 %v1769, %v1753
  %v2522 = vpack.c.b16 %v1770, %v1754
  %v2523 = vpack.c.b16 %v1771, %v1755
  %v2524 = vpack.c.b16 %v1772, %v1756
  %v2525 = vpack.c.b16 %v1773, %v1757
  %v2526 = vpack.c.b16 %v1774, %v1758
  %v2527 = vpack.c.b16 %v1791, %v1775
  %v2528 = vpack.c.b16 %v1792, %v1776
  %v2529 = vpack.c.b16 %v1793, %v1777
  %v2530 = vpack.c.b16 %v1794, %v1778
  %v2531 = vpack.c.b16 %v1795, %v1779
  %v2532 = vpack.c.b16 %v1796, %v1780
  %v2533 = vpack.c.b16 %v1797, %v1781
  %v2534 = vpack.c.b16 %v1798, %v1782
  %v2535 = vpack.c.b16 %v1799, %v1783
  %v2536 = vpack.c.b16 %v1800, %v1784
  %v2537 = vpack.c.b16 %v1801, %v1785
  %v2538 = vpack.c.b16 %v1802, %v1786
  %v2539 = vpack.c.b16 %v1803, %v1787
  %v2540 = vpack.c.b16 %v1804, %v1788
  %v2541 = vpack.c.b16 %v1805, %v1789
  %v2542 = vpack.c.b16 %v1806, %v1790
  %v2543 = vpack.c.b16 %v1823, %v1807
  %v2544 = vpack.c.b16 %v1824, %v1808
  %v2545 = vpack.c.b16 %v1825, %v1809
  %v2546 = vpack.c.b16 %v1826, %v1810
  %v2547 = vpack.c.b16 %v1827, %v1811
  %v2548 = vpack.c.b16 %v1828, %v1812
  %v2549 = vpack.c.b16 %v1829, %v1813
  %v2550 = vpack.c.b16 %v1830, %v1814
  %v2551 = vpack.c.b16 %v1831, %v1815
  %v2552 = vpack.c.b16 %v1832, %v1816
  %v2553 = vpack.c.b16 %v1833, %v1817
  %v2554 = vpack.c.b16 %v1834, %v1818
  %v2555 = vpack.c.b16 %v1835, %v1819
  %v2556 = vpack.c.b16 %v1836, %v1820
  %v2557 = vpack.c.b16 %v1837, %v1821
  %v2558 = vpack.c.b16 %v1838, %v1822
  %v2559 = vpack.c.b16 %v1855, %v1839
  %v2560 = vpack.c.b16 %v1856, %v1840
  %v2561 = vpack.c.b16 %v1857, %v1841
  %v2562 = vpack.c.b16 %v1858, %v1842
  %v2563 = vpack.c.b16 %v1859, %v1843
  %v2564 = vpack.c.b16 %v1860, %v1844
  %v2565 = vpack.c.b16 %v1861, %v1845
  %v2566 = vpack.c.b16 %v1862, %v1846
  %v2567 = vpack.c.b16 %v1863, %v1847
  %v2568 = vpack.c.b16 %v1864, %v1848
  %v2569 = vpack.c.b16 %v1865, %v1849
  %v2570 = vpack.c.b16 %v1866, %v1850
  %v2571 = vpack.c.b16 %v1867, %v1851
  %v2572 = vpack.c.b16 %v1868, %v1852
  %v2573 = vpack.c.b16 %v1869, %v1853
  %v2574 = vpack.c.b16 %v1870, %v1854
  %v2575 = vpack.c.b16 %v1887, %v1871
  %v2576 = vpack.c.b16 %v1888, %v1872
  %v2577 = vpack.c.b16 %v1889, %v1873
  %v2578 = vpack.c.b16 %v1890, %v1874
  %v2579 = vpack.c.b16 %v1891, %v1875
  %v2580 = vpack.c.b16 %v1892, %v1876
  %v2581 = vpack.c.b16 %v1893, %v1877
  %v2582 = vpack.c.b16 %v1894, %v1878
  %v2583 = vpack.c.b16 %v1895, %v1879
  %v2584 = vpack.c.b16 %v1896, %v1880
  %v2585 = vpack.c.b16 %v1897, %v1881
  %v2586 = vpack.c.b16 %v1898, %v1882
  %v2587 = vpack.c.b16 %v1899, %v1883
  %v2588 = vpack.c.b16 %v1900, %v1884
  %v2589 = vpack.c.b16 %v1901, %v1885
  %v2590 = vpack.c.b16 %v1902, %v1886
  %v2591 = vpack.c.b16 %v1919, %v1903
  %v2592 = vpack.c.b16 %v1920, %v1904
  %v2593 = vpack.c.b16 %v1921, %v1905
  %v2594 = vpack.c.b16 %v1922, %v1906
  %v2595 = vpack.c.b16 %v1923, %v1907
  %v2596 = vpack.c.b16 %v1924, %v1908
  %v2597 = vpack.c.b16 %v1925, %v1909
  %v2598 = vpack.c.b16 %v1926, %v1910
  %v2599 = vpack.c.b16 %v1927, %v1911
  %v2600 = vpack.c.b16 %v1928, %v1912
  %v2601 = vpack.c.b16 %v1929, %v1913
  %v2602 = vpack.c.b16 %v1930, %v1914
  %v2603 = vpack.c.b16 %v1931, %v1915
  %v2604 = vpack.c.b16 %v1932, %v1916
  %v2605 = vpack.c.b16 %v1933, %v1917
  %v2606 = vpack.c.b16 %v1934, %v1918
  %v2607 = vpack.c.b16 %v1951, %v1935
  %v2608 = vpack.c.b16 %v1952, %v1936
  %v2609 = vpack.c.b16 %v1953, %v1937
  %v2610 = vpack.c.b16 %v1954, %v1938
  %v2611 = vpack.c.b16 %v1955, %v1939
  %v2612 = vpack.c.b16 %v1956, %v1940
  %v2613 = vpack.c.b16 %v1957, %v1941
  %v2614 = vpack.c.b16 %v1958, %v1942
  %v2615 = vpack.c.b16 %v1959, %v1943
  %v2616 = vpack.c.b16 %v1960, %v1944
  %v2617 = vpack.c.b16 %v1961, %v1945
  %v2618 = vpack.c.b16 %v1962, %v1946
  %v2619 = vpack.c.b16 %v1963, %v1947
  %v2620 = vpack.c.b16 %v1964, %v1948
  %v2621 = vpack.c.b16 %v1965, %v1949
  %v2622 = vpack.c.b16 %v1966, %v1950
  %v2623 = vpack.c.b16 %v1983, %v1967
  %v2624 = vpack.c.b16 %v1984, %v1968
  %v2625 = vpack.c.b16 %v1985, %v1969
  %v2626 = vpack.c.b16 %v1986, %v1970
  %v2627 = vpack.c.b16 %v1987, %v1971
  %v2628 = vpack.c.b16 %v1988, %v1972
  %v2629 = vpack.c.b16 %v1989, %v1973
  %v2630 = vpack.c.b16 %v1990, %v1974
  %v2631 = vpack.c.b16 %v1991, %v1975
  %v2632 = vpack.c.b16 %v1992, %v1976
  %v2633 = vpack.c.b16 %v1993, %v1977
  %v2634 = vpack.c.b16 %v1994, %v1978
  %v2635 = vpack.c.b16 %v1995, %v1979
  %v2636 = vpack.c.b16 %v1996, %v1980
  %v2637 = vpack.c.b16 %v1997, %v1981
  %v2638 = vpack.c.b16 %v1998, %v1982
  %v2639 = vpack.c.b16 %v2015, %v1999
  %v2640 = vpack.c.b16 %v2016, %v2000
  %v2641 = vpack.c.b16 %v2017, %v2001
  %v2642 = vpack.c.b16 %v2018, %v2002
  %v2643 = vpack.c.b16 %v2019, %v2003
  %v2644 = vpack.c.b16 %v2020, %v2004
  %v2645 = vpack.c.b16 %v2021, %v2005
  %v2646 = vpack.c.b16 %v2022, %v2006
  %v2647 = vpack.c.b16 %v2023, %v2007
  %v2648 = vpack.c.b16 %v2024, %v2008
  %v2649 = vpack.c.b16 %v2025, %v2009
  %v2650 = vpack.c.b16 %v2026, %v2010
  %v2651 = vpack.c.b16 %v2027, %v2011
  %v2652 = vpack.c.b16 %v2028, %v2012
  %v2653 = vpack.c.b16 %v2029, %v2013
  %v2654 = vpack.c.b16 %v2030, %v2014
  %v2655 = vpack.c.b16 %v2047, %v2031
  %v2656 = vpack.c.b16 %v2048, %v2032
  %v2657 = vpack.c.b16 %v2049, %v2033
  %v2658 = vpack.c.b16 %v2050, %v2034
  %v2659 = vpack.c.b16 %v2051, %v2035
  %v2660 = vpack.c.b16 %v2052, %v2036
  %v2661 = vpack.c.b16 %v2053, %v2037
  %v2662 = vpack.c.b16 %v2054, %v2038
  %v2663 = vpack.c.b16 %v2055, %v2039
  %v2664 = vpack.c.b16 %v2056, %v2040
  %v2665 = vpack.c.b16 %v2057, %v2041
  %v2666 = vpack.c.b16 %v2058, %v2042
  %v2667 = vpack.c.b16 %v2059, %v2043
  %v2668 = vpack.c.b16 %v2060, %v2044
  %v2669 = vpack.c.b16 %v2061, %v2045
  %v2670 = vpack.c.b16 %v2062, %v2046
  %v2671 = vpack.c.b16 %v2079, %v2063
  %v2672 = vpack.c.b16 %v2080, %v2064
  %v2673 = vpack.c.b16 %v2081, %v2065
  %v2674 = vpack.c.b16 %v2082, %v2066
  %v2675 = vpack.c.b16 %v2083, %v2067
  %v2676 = vpack.c.b16 %v2084, %v2068
  %v2677 = vpack.c.b16 %v2085, %v2069
  %v2678 = vpack.c.b16 %v2086, %v2070
  %v2679 = vpack.c.b16 %v2087, %v2071
  %v2680 = vpack.c.b16 %v2088, %v2072
  %v2681 = vpack.c.b16 %v2089, %v2073
  %v2682 = vpack.c.b16 %v2090, %v2074
  %v2683 = vpack.c.b16 %v2091, %v2075
  %v2684 = vpack.c.b16 %v2092, %v2076
  %v2685 = vpack.c.b16 %v2093, %v2077
  %v2686 = vpack.c.b16 %v2094, %v2078
  %v2687 = vpack.c.b16 %v2111, %v2095
  %v2688 = vpack.c.b16 %v2112, %v2096
  %v2689 = vpack.c.b16 %v2113, %v2097
  %v2690 = vpack.c.b16 %v2114, %v2098
  %v2691 = vpack.c.b16 %v2115, %v2099
  %v2692 = vpack.c.b16 %v2116, %v2100
  %v2693 = vpack.c.b16 %v2117, %v2101
  %v2694 = vpack.c.b16 %v2118, %v2102
  %v2695 = vpack.c.b16 %v2119, %v2103
  %v2696 = vpack.c.b16 %v2120, %v2104
  %v2697 = vpack.c.b16 %v2121, %v2105
  %v2698 = vpack.c.b16 %v2122, %v2106
  %v2699 = vpack.c.b16 %v2123, %v2107
  %v2700 = vpack.c.b16 %v2124, %v2108
  %v2701 = vpack.c.b16 %v2125, %v2109
  %v2702 = vpack.c.b16 %v2126, %v2110
  %v2703 = vpack.c.b16 %v2143, %v2127
  %v2704 = vpack.c.b16 %v2144, %v2128
  %v2705 = vpack.c.b16 %v2145, %v2129
  %v2706 = vpack.c.b16 %v2146, %v2130
  %v2707 = vpack.c.b16 %v2147, %v2131
  %v2708 = vpack.c.b16 %v2148, %v2132
  %v2709 = vpack.c.b16 %v2149, %v2133
  %v2710 = vpack.c.b16 %v2150, %v2134
  %v2711 = vpack.c.b16 %v2151, %v2135
  %v2712 = vpack.c.b16 %v2152, %v2136
  %v2713 = vpack.c.b16 %v2153, %v2137
  %v2714 = vpack.c.b16 %v2154, %v2138
  %v2715 = vpack.c.b16 %v2155, %v2139
  %v2716 = vpack.c.b16 %v2156, %v2140
  %v2717 = vpack.c.b16 %v2157, %v2141
  %v2718 = vpack.c.b16 %v2158, %v2142
  %v2719 = vpack.c.b16 %v2175, %v2159
  %v2720 = vpack.c.b16 %v2176, %v2160
  %v2721 = vpack.c.b16 %v2177, %v2161
  %v2722 = vpack.c.b16 %v2178, %v2162
  %v2723 = vpack.c.b16 %v2179, %v2163
  %v2724 = vpack.c.b16 %v2180, %v2164
  %v2725 = vpack.c.b16 %v2181, %v2165
  %v2726 = vpack.c.b16 %v2182, %v2166
  %v2727 = vpack.c.b16 %v2183, %v2167
  %v2728 = vpack.c.b16 %v2184, %v2168
  %v2729 = vpack.c.b16 %v2185, %v2169
  %v2730 = vpack.c.b16 %v2186, %v2170
  %v2731 = vpack.c.b16 %v2187, %v2171
  %v2732 = vpack.c.b16 %v2188, %v2172
  %v2733 = vpack.c.b16 %v2189, %v2173
  %v2734 = vpack.c.b16 %v2190, %v2174
  %v2735 = vpack.c.b16 %v2207, %v2191
  %v2736 = vpack.c.b16 %v2208, %v2192
  %v2737 = vpack.c.b16 %v2209, %v2193
  %v2738 = vpack.c.b16 %v2210, %v2194
  %v2739 = vpack.c.b16 %v2211, %v2195
  %v2740 = vpack.c.b16 %v2212, %v2196
  %v2741 = vpack.c.b16 %v2213, %v2197
  %v2742 = vpack.c.b16 %v2214, %v2198
  %v2743 = vpack.c.b16 %v2215, %v2199
  %v2744 = vpack.c.b16 %v2216, %v2200
  %v2745 = vpack.c.b16 %v2217, %v2201
  %v2746 = vpack.c.b16 %v2218, %v2202
  %v2747 = vpack.c.b16 %v2219, %v2203
  %v2748 = vpack.c.b16 %v2220, %v2204
  %v2749 = vpack.c.b16 %v2221, %v2205
  %v2750 = vpack.c.b16 %v2222, %v2206
  %v2751 = vpack.c.b16 %v2239, %v2223
  %v2752 = vpack.c.b16 %v2240, %v2224
  %v2753 = vpack.c.b16 %v2241, %v2225
  %v2754 = vpack.c.b16 %v2242, %v2226
  %v2755 = vpack.c.b16 %v2243, %v2227
  %v2756 = vpack.c.b16 %v2244, %v2228
  %v2757 = vpack.c.b16 %v2245, %v2229
  %v2758 = vpack.c.b16 %v2246, %v2230
  %v2759 = vpack.c.b16 %v2247, %v2231
  %v2760 = vpack.c.b16 %v2248, %v2232
  %v2761 = vpack.c.b16 %v2249, %v2233
  %v2762 = vpack.c.b16 %v2250, %v2234
  %v2763 = vpack.c.b16 %v2251, %v2235
  %v2764 = vpack.c.b16 %v2252, %v2236
  %v2765 = vpack.c.b16 %v2253, %v2237
  %v2766 = vpack.c.b16 %v2254, %v2238
  %3279 = vmatprep.subr.bf16.mxu0 %v2256
  %3280 = vmatpush1.bf16.msra.mxu0 %v2255
  %3281 = vmatprep.subr.bf16.mxu0 %v2272
  %3282 = vmatpush1.bf16.msra.mxu0 %v2271
  %3283 = vmatprep.subr.bf16.mxu0 %v2288
  %3284 = vmatpush1.bf16.msra.mxu0 %v2287
  %3285 = vmatprep.subr.bf16.mxu0 %v2304
  %3286 = vmatpush1.bf16.msra.mxu0 %v2303
  %3287 = vmatprep.subr.bf16.mxu0 %v2320
  %3288 = vmatpush1.bf16.msra.mxu0 %v2319
  %3289 = vmatprep.subr.bf16.mxu0 %v2336
  %3290 = vmatpush1.bf16.msra.mxu0 %v2335
  %3291 = vmatprep.subr.bf16.mxu0 %v2352
  %3292 = vmatpush1.bf16.msra.mxu0 %v2351
  %3293 = vmatprep.subr.bf16.mxu0 %v2368
  %3294 = vmatpush1.bf16.msra.mxu0 %v2367
  %3295 = vmatprep.subr.bf16.mxu0 %v2384
  %3296 = vmatpush1.bf16.msra.mxu0 %v2383
  %3297 = vmatprep.subr.bf16.mxu0 %v2400
  %3298 = vmatpush1.bf16.msra.mxu0 %v2399
  %3299 = vmatprep.subr.bf16.mxu0 %v2416
  %3300 = vmatpush1.bf16.msra.mxu0 %v2415
  %3301 = vmatprep.subr.bf16.mxu0 %v2432
  %3302 = vmatpush1.bf16.msra.mxu0 %v2431
  %3303 = vmatprep.subr.bf16.mxu0 %v2448
  %3304 = vmatpush1.bf16.msra.mxu0 %v2447
  %3305 = vmatprep.subr.bf16.mxu0 %v2464
  %3306 = vmatpush1.bf16.msra.mxu0 %v2463
  %3307 = vmatprep.subr.bf16.mxu0 %v2480
  %3308 = vmatpush1.bf16.msra.mxu0 %v2479
  %3309 = vmatprep.subr.bf16.mxu0 %v2496
  %3310 = vmatpush1.bf16.msra.mxu0 %v2495
  %3311 = vmatprep.mubr.bf16.mxu0 %v656
  %3312 = vmatmul.mubr.bf16.gmra.mrb[0].mxu0 %v655
  %v3313 = vpop.f32.mrb[0].mxu0
  %v3314 = vadd.f32 0.0, %v3313
  %v3315 = vpop.f32.mrb[0].mxu0
  %v3316 = vadd.f32 0.0, %v3315
  %v3317 = vpop.f32.mrb[0].mxu0
  %v3318 = vadd.f32 0.0, %v3317
  %v3319 = vpop.f32.mrb[0].mxu0
  %v3320 = vadd.f32 0.0, %v3319
  %3321 = vmatprep.mubr.bf16.mxu0 %v660
  %3322 = vmatmul.mubr.bf16.gmra.mrb[0].mxu0 %v659
  %v3323 = vpop.f32.mrb[0].mxu0
  %v3324 = vadd.f32 0.0, %v3323
  %v3325 = vpop.f32.mrb[0].mxu0
  %v3326 = vadd.f32 0.0, %v3325
  %v3327 = vpop.f32.mrb[0].mxu0
  %v3328 = vadd.f32 0.0, %v3327
  %v3329 = vpop.f32.mrb[0].mxu0
  %v3330 = vadd.f32 0.0, %v3329
  %3331 = vmatprep.mubr.bf16.mxu0 %v664
  %3332 = vmatmul.mubr.bf16.gmra.mrb[0].mxu0 %v663
  %v3333 = vpop.f32.mrb[0].mxu0
  %v3334 = vadd.f32 0.0, %v3333
  %v3335 = vpop.f32.mrb[0].mxu0
  %v3336 = vadd.f32 0.0, %v3335
  %v3337 = vpop.f32.mrb[0].mxu0
  %v3338 = vadd.f32 0.0, %v3337
  %v3339 = vpop.f32.mrb[0].mxu0
  %v3340 = vadd.f32 0.0, %v3339
  %3341 = vmatprep.mubr.bf16.mxu0 %v668
  %3342 = vmatmul.mubr.bf16.gmra.mrb[0].mxu0 %v667
  %v3343 = vpop.f32.mrb[0].mxu0
  %v3344 = vadd.f32 0.0, %v3343
  %v3345 = vpop.f32.mrb[0].mxu0
  %v3346 = vadd.f32 0.0, %v3345
  %v3347 = vpop.f32.mrb[0].mxu0
  %v3348 = vadd.f32 0.0, %v3347
  %v3349 = vpop.f32.mrb[0].mxu0
  %v3350 = vadd.f32 0.0, %v3349
  %3351 = vmatprep.mubr.bf16.mxu0 %v672
  %3352 = vmatmul.mubr.bf16.gmra.mrb[0].mxu0 %v671
  %v3353 = vpop.f32.mrb[0].mxu0
  %v3354 = vadd.f32 0.0, %v3353
  %v3355 = vpop.f32.mrb[0].mxu0
  %v3356 = vadd.f32 0.0, %v3355
  %v3357 = vpop.f32.mrb[0].mxu0
  %v3358 = vadd.f32 0.0, %v3357
  %v3359 = vpop.f32.mrb[0].mxu0
  %v3360 = vadd.f32 0.0, %v3359
  %3361 = vmatprep.mubr.bf16.mxu0 %v676
  %3362 = vmatmul.mubr.bf16.gmra.mrb[0].mxu0 %v675
  %v3363 = vpop.f32.mrb[0].mxu0
  %v3364 = vadd.f32 0.0, %v3363
  %v3365 = vpop.f32.mrb[0].mxu0
  %v3366 = vadd.f32 0.0, %v3365
  %v3367 = vpop.f32.mrb[0].mxu0
  %v3368 = vadd.f32 0.0, %v3367
  %v3369 = vpop.f32.mrb[0].mxu0
  %v3370 = vadd.f32 0.0, %v3369
  %3371 = vmatprep.mubr.bf16.mxu0 %v680
  %3372 = vmatmul.mubr.bf16.gmra.mrb[0].mxu0 %v679
  %v3373 = vpop.f32.mrb[0].mxu0
  %v3374 = vadd.f32 0.0, %v3373
  %v3375 = vpop.f32.mrb[0].mxu0
  %v3376 = vadd.f32 0.0, %v3375
  %v3377 = vpop.f32.mrb[0].mxu0
  %v3378 = vadd.f32 0.0, %v3377
  %v3379 = vpop.f32.mrb[0].mxu0
  %v3380 = vadd.f32 0.0, %v3379
  %3381 = vmatprep.mubr.bf16.mxu0 %v684
  %3382 = vmatmul.mubr.bf16.gmra.mrb[0].mxu0 %v683
  %v3383 = vpop.f32.mrb[0].mxu0
  %v3384 = vadd.f32 0.0, %v3383
  %v3385 = vpop.f32.mrb[0].mxu0
  %v3386 = vadd.f32 0.0, %v3385
  %v3387 = vpop.f32.mrb[0].mxu0
  %v3388 = vadd.f32 0.0, %v3387
  %v3389 = vpop.f32.mrb[0].mxu0
  %v3390 = vadd.f32 0.0, %v3389
  %3391 = vdwg.mxu0
  %3392 = vmatprep.subr.bf16.mxu0 %v2512
  %3393 = vmatpush1.bf16.msra.mxu0 %v2511
  %3394 = vmatprep.subr.bf16.mxu0 %v2528
  %3395 = vmatpush1.bf16.msra.mxu0 %v2527
  %3396 = vmatprep.subr.bf16.mxu0 %v2544
  %3397 = vmatpush1.bf16.msra.mxu0 %v2543
  %3398 = vmatprep.subr.bf16.mxu0 %v2560
  %3399 = vmatpush1.bf16.msra.mxu0 %v2559
  %3400 = vmatprep.subr.bf16.mxu0 %v2576
  %3401 = vmatpush1.bf16.msra.mxu0 %v2575
  %3402 = vmatprep.subr.bf16.mxu0 %v2592
  %3403 = vmatpush1.bf16.msra.mxu0 %v2591
  %3404 = vmatprep.subr.bf16.mxu0 %v2608
  %3405 = vmatpush1.bf16.msra.mxu0 %v2607
  %3406 = vmatprep.subr.bf16.mxu0 %v2624
  %3407 = vmatpush1.bf16.msra.mxu0 %v2623
  %3408 = vmatprep.subr.bf16.mxu0 %v2640
  %3409 = vmatpush1.bf16.msra.mxu0 %v2639
  %3410 = vmatprep.subr.bf16.mxu0 %v2656
  %3411 = vmatpush1.bf16.msra.mxu0 %v2655
  %3412 = vmatprep.subr.bf16.mxu0 %v2672
  %3413 = vmatpush1.bf16.msra.mxu0 %v2671
  %3414 = vmatprep.subr.bf16.mxu0 %v2688
  %3415 = vmatpush1.bf16.msra.mxu0 %v2687
  %3416 = vmatprep.subr.bf16.mxu0 %v2704
  %3417 = vmatpush1.bf16.msra.mxu0 %v2703
  %3418 = vmatprep.subr.bf16.mxu0 %v2720
  %3419 = vmatpush1.bf16.msra.mxu0 %v2719
  %3420 = vmatprep.subr.bf16.mxu0 %v2736
  %3421 = vmatpush1.bf16.msra.mxu0 %v2735
  %3422 = vmatprep.subr.bf16.mxu0 %v2752
  %3423 = vmatpush1.bf16.msra.mxu0 %v2751
  %3424 = vmatprep.mubr.bf16.mxu0 %v658
  %3425 = vmatmul.mubr.bf16.gmra.mrb[0].mxu0 %v657
  %v3426 = vpop.f32.mrb[0].mxu0
  %v3427 = vadd.f32 %v3314, %v3426
  %v3428 = vpop.f32.mrb[0].mxu0
  %v3429 = vadd.f32 %v3316, %v3428
  %v3430 = vpop.f32.mrb[0].mxu0
  %v3431 = vadd.f32 %v3318, %v3430
  %v3432 = vpop.f32.mrb[0].mxu0
  %v3433 = vadd.f32 %v3320, %v3432
  %3434 = vmatprep.mubr.bf16.mxu0 %v662
  %3435 = vmatmul.mubr.bf16.gmra.mrb[0].mxu0 %v661
  %v3436 = vpop.f32.mrb[0].mxu0
  %v3437 = vadd.f32 %v3324, %v3436
  %v3438 = vpop.f32.mrb[0].mxu0
  %v3439 = vadd.f32 %v3326, %v3438
  %v3440 = vpop.f32.mrb[0].mxu0
  %v3441 = vadd.f32 %v3328, %v3440
  %v3442 = vpop.f32.mrb[0].mxu0
  %v3443 = vadd.f32 %v3330, %v3442
  %3444 = vmatprep.mubr.bf16.mxu0 %v666
  %3445 = vmatmul.mubr.bf16.gmra.mrb[0].mxu0 %v665
  %v3446 = vpop.f32.mrb[0].mxu0
  %v3447 = vadd.f32 %v3334, %v3446
  %v3448 = vpop.f32.mrb[0].mxu0
  %v3449 = vadd.f32 %v3336, %v3448
  %v3450 = vpop.f32.mrb[0].mxu0
  %v3451 = vadd.f32 %v3338, %v3450
  %v3452 = vpop.f32.mrb[0].mxu0
  %v3453 = vadd.f32 %v3340, %v3452
  %3454 = vmatprep.mubr.bf16.mxu0 %v670
  %3455 = vmatmul.mubr.bf16.gmra.mrb[0].mxu0 %v669
  %v3456 = vpop.f32.mrb[0].mxu0
  %v3457 = vadd.f32 %v3344, %v3456
  %v3458 = vpop.f32.mrb[0].mxu0
  %v3459 = vadd.f32 %v3346, %v3458
  %v3460 = vpop.f32.mrb[0].mxu0
  %v3461 = vadd.f32 %v3348, %v3460
  %v3462 = vpop.f32.mrb[0].mxu0
  %v3463 = vadd.f32 %v3350, %v3462
  %3464 = vmatprep.mubr.bf16.mxu0 %v674
  %3465 = vmatmul.mubr.bf16.gmra.mrb[0].mxu0 %v673
  %v3466 = vpop.f32.mrb[0].mxu0
  %v3467 = vadd.f32 %v3354, %v3466
  %v3468 = vpop.f32.mrb[0].mxu0
  %v3469 = vadd.f32 %v3356, %v3468
  %v3470 = vpop.f32.mrb[0].mxu0
  %v3471 = vadd.f32 %v3358, %v3470
  %v3472 = vpop.f32.mrb[0].mxu0
  %v3473 = vadd.f32 %v3360, %v3472
  %3474 = vmatprep.mubr.bf16.mxu0 %v678
  %3475 = vmatmul.mubr.bf16.gmra.mrb[0].mxu0 %v677
  %v3476 = vpop.f32.mrb[0].mxu0
  %v3477 = vadd.f32 %v3364, %v3476
  %v3478 = vpop.f32.mrb[0].mxu0
  %v3479 = vadd.f32 %v3366, %v3478
  %v3480 = vpop.f32.mrb[0].mxu0
  %v3481 = vadd.f32 %v3368, %v3480
  %v3482 = vpop.f32.mrb[0].mxu0
  %v3483 = vadd.f32 %v3370, %v3482
  %3484 = vmatprep.mubr.bf16.mxu0 %v682
  %3485 = vmatmul.mubr.bf16.gmra.mrb[0].mxu0 %v681
  %v3486 = vpop.f32.mrb[0].mxu0
  %v3487 = vadd.f32 %v3374, %v3486
  %v3488 = vpop.f32.mrb[0].mxu0
  %v3489 = vadd.f32 %v3376, %v3488
  %v3490 = vpop.f32.mrb[0].mxu0
  %v3491 = vadd.f32 %v3378, %v3490
  %v3492 = vpop.f32.mrb[0].mxu0
  %v3493 = vadd.f32 %v3380, %v3492
  %3494 = vmatprep.mubr.bf16.mxu0 %v686
  %3495 = vmatmul.mubr.bf16.gmra.mrb[0].mxu0 %v685
  %v3496 = vpop.f32.mrb[0].mxu0
  %v3497 = vadd.f32 %v3384, %v3496
  %v3498 = vpop.f32.mrb[0].mxu0
  %v3499 = vadd.f32 %v3386, %v3498
  %v3500 = vpop.f32.mrb[0].mxu0
  %v3501 = vadd.f32 %v3388, %v3500
  %v3502 = vpop.f32.mrb[0].mxu0
  %v3503 = vadd.f32 %v3390, %v3502
  %3504 = vdwg.mxu0
  %3505 = vmatprep.subr.bf16.mxu0 %v2258
  %3506 = vmatpush1.bf16.msra.mxu0 %v2257
  %3507 = vmatprep.subr.bf16.mxu0 %v2274
  %3508 = vmatpush1.bf16.msra.mxu0 %v2273
  %3509 = vmatprep.subr.bf16.mxu0 %v2290
  %3510 = vmatpush1.bf16.msra.mxu0 %v2289
  %3511 = vmatprep.subr.bf16.mxu0 %v2306
  %3512 = vmatpush1.bf16.msra.mxu0 %v2305
  %3513 = vmatprep.subr.bf16.mxu0 %v2322
  %3514 = vmatpush1.bf16.msra.mxu0 %v2321
  %3515 = vmatprep.subr.bf16.mxu0 %v2338
  %3516 = vmatpush1.bf16.msra.mxu0 %v2337
  %3517 = vmatprep.subr.bf16.mxu0 %v2354
  %3518 = vmatpush1.bf16.msra.mxu0 %v2353
  %3519 = vmatprep.subr.bf16.mxu0 %v2370
  %3520 = vmatpush1.bf16.msra.mxu0 %v2369
  %3521 = vmatprep.subr.bf16.mxu0 %v2386
  %3522 = vmatpush1.bf16.msra.mxu0 %v2385
  %3523 = vmatprep.subr.bf16.mxu0 %v2402
  %3524 = vmatpush1.bf16.msra.mxu0 %v2401
  %3525 = vmatprep.subr.bf16.mxu0 %v2418
  %3526 = vmatpush1.bf16.msra.mxu0 %v2417
  %3527 = vmatprep.subr.bf16.mxu0 %v2434
  %3528 = vmatpush1.bf16.msra.mxu0 %v2433
  %3529 = vmatprep.subr.bf16.mxu0 %v2450
  %3530 = vmatpush1.bf16.msra.mxu0 %v2449
  %3531 = vmatprep.subr.bf16.mxu0 %v2466
  %3532 = vmatpush1.bf16.msra.mxu0 %v2465
  %3533 = vmatprep.subr.bf16.mxu0 %v2482
  %3534 = vmatpush1.bf16.msra.mxu0 %v2481
  %3535 = vmatprep.subr.bf16.mxu0 %v2498
  %3536 = vmatpush1.bf16.msra.mxu0 %v2497
  %3537 = vmatprep.mubr.bf16.mxu0 %v656
  %3538 = vmatmul.mubr.bf16.gmra.mrb[0].mxu0 %v655
  %v3539 = vpop.f32.mrb[0].mxu0
  %v3540 = vadd.f32 0.0, %v3539
  %v3541 = vpop.f32.mrb[0].mxu0
  %v3542 = vadd.f32 0.0, %v3541
  %v3543 = vpop.f32.mrb[0].mxu0
  %v3544 = vadd.f32 0.0, %v3543
  %v3545 = vpop.f32.mrb[0].mxu0
  %v3546 = vadd.f32 0.0, %v3545
  %3547 = vmatprep.mubr.bf16.mxu0 %v660
  %3548 = vmatmul.mubr.bf16.gmra.mrb[0].mxu0 %v659
  %v3549 = vpop.f32.mrb[0].mxu0
  %v3550 = vadd.f32 0.0, %v3549
  %v3551 = vpop.f32.mrb[0].mxu0
  %v3552 = vadd.f32 0.0, %v3551
  %v3553 = vpop.f32.mrb[0].mxu0
  %v3554 = vadd.f32 0.0, %v3553
  %v3555 = vpop.f32.mrb[0].mxu0
  %v3556 = vadd.f32 0.0, %v3555
  %3557 = vmatprep.mubr.bf16.mxu0 %v664
  %3558 = vmatmul.mubr.bf16.gmra.mrb[0].mxu0 %v663
  %v3559 = vpop.f32.mrb[0].mxu0
  %v3560 = vadd.f32 0.0, %v3559
  %v3561 = vpop.f32.mrb[0].mxu0
  %v3562 = vadd.f32 0.0, %v3561
  %v3563 = vpop.f32.mrb[0].mxu0
  %v3564 = vadd.f32 0.0, %v3563
  %v3565 = vpop.f32.mrb[0].mxu0
  %v3566 = vadd.f32 0.0, %v3565
  %3567 = vmatprep.mubr.bf16.mxu0 %v668
  %3568 = vmatmul.mubr.bf16.gmra.mrb[0].mxu0 %v667
  %v3569 = vpop.f32.mrb[0].mxu0
  %v3570 = vadd.f32 0.0, %v3569
  %v3571 = vpop.f32.mrb[0].mxu0
  %v3572 = vadd.f32 0.0, %v3571
  %v3573 = vpop.f32.mrb[0].mxu0
  %v3574 = vadd.f32 0.0, %v3573
  %v3575 = vpop.f32.mrb[0].mxu0
  %v3576 = vadd.f32 0.0, %v3575
  %3577 = vmatprep.mubr.bf16.mxu0 %v672
  %3578 = vmatmul.mubr.bf16.gmra.mrb[0].mxu0 %v671
  %v3579 = vpop.f32.mrb[0].mxu0
  %v3580 = vadd.f32 0.0, %v3579
  %v3581 = vpop.f32.mrb[0].mxu0
  %v3582 = vadd.f32 0.0, %v3581
  %v3583 = vpop.f32.mrb[0].mxu0
  %v3584 = vadd.f32 0.0, %v3583
  %v3585 = vpop.f32.mrb[0].mxu0
  %v3586 = vadd.f32 0.0, %v3585
  %3587 = vmatprep.mubr.bf16.mxu0 %v676
  %3588 = vmatmul.mubr.bf16.gmra.mrb[0].mxu0 %v675
  %v3589 = vpop.f32.mrb[0].mxu0
  %v3590 = vadd.f32 0.0, %v3589
  %v3591 = vpop.f32.mrb[0].mxu0
  %v3592 = vadd.f32 0.0, %v3591
  %v3593 = vpop.f32.mrb[0].mxu0
  %v3594 = vadd.f32 0.0, %v3593
  %v3595 = vpop.f32.mrb[0].mxu0
  %v3596 = vadd.f32 0.0, %v3595
  %3597 = vmatprep.mubr.bf16.mxu0 %v680
  %3598 = vmatmul.mubr.bf16.gmra.mrb[0].mxu0 %v679
  %v3599 = vpop.f32.mrb[0].mxu0
  %v3600 = vadd.f32 0.0, %v3599
  %v3601 = vpop.f32.mrb[0].mxu0
  %v3602 = vadd.f32 0.0, %v3601
  %v3603 = vpop.f32.mrb[0].mxu0
  %v3604 = vadd.f32 0.0, %v3603
  %v3605 = vpop.f32.mrb[0].mxu0
  %v3606 = vadd.f32 0.0, %v3605
  %3607 = vmatprep.mubr.bf16.mxu0 %v684
  %3608 = vmatmul.mubr.bf16.gmra.mrb[0].mxu0 %v683
  %v3609 = vpop.f32.mrb[0].mxu0
  %v3610 = vadd.f32 0.0, %v3609
  %v3611 = vpop.f32.mrb[0].mxu0
  %v3612 = vadd.f32 0.0, %v3611
  %v3613 = vpop.f32.mrb[0].mxu0
  %v3614 = vadd.f32 0.0, %v3613
  %v3615 = vpop.f32.mrb[0].mxu0
  %v3616 = vadd.f32 0.0, %v3615
  %3617 = vdwg.mxu0
  %3618 = vmatprep.subr.bf16.mxu0 %v2514
  %3619 = vmatpush1.bf16.msra.mxu0 %v2513
  %3620 = vmatprep.subr.bf16.mxu0 %v2530
  %3621 = vmatpush1.bf16.msra.mxu0 %v2529
  %3622 = vmatprep.subr.bf16.mxu0 %v2546
  %3623 = vmatpush1.bf16.msra.mxu0 %v2545
  %3624 = vmatprep.subr.bf16.mxu0 %v2562
  %3625 = vmatpush1.bf16.msra.mxu0 %v2561
  %3626 = vmatprep.subr.bf16.mxu0 %v2578
  %3627 = vmatpush1.bf16.msra.mxu0 %v2577
  %3628 = vmatprep.subr.bf16.mxu0 %v2594
  %3629 = vmatpush1.bf16.msra.mxu0 %v2593
  %3630 = vmatprep.subr.bf16.mxu0 %v2610
  %3631 = vmatpush1.bf16.msra.mxu0 %v2609
  %3632 = vmatprep.subr.bf16.mxu0 %v2626
  %3633 = vmatpush1.bf16.msra.mxu0 %v2625
  %3634 = vmatprep.subr.bf16.mxu0 %v2642
  %3635 = vmatpush1.bf16.msra.mxu0 %v2641
  %3636 = vmatprep.subr.bf16.mxu0 %v2658
  %3637 = vmatpush1.bf16.msra.mxu0 %v2657
  %3638 = vmatprep.subr.bf16.mxu0 %v2674
  %3639 = vmatpush1.bf16.msra.mxu0 %v2673
  %3640 = vmatprep.subr.bf16.mxu0 %v2690
  %3641 = vmatpush1.bf16.msra.mxu0 %v2689
  %3642 = vmatprep.subr.bf16.mxu0 %v2706
  %3643 = vmatpush1.bf16.msra.mxu0 %v2705
  %3644 = vmatprep.subr.bf16.mxu0 %v2722
  %3645 = vmatpush1.bf16.msra.mxu0 %v2721
  %3646 = vmatprep.subr.bf16.mxu0 %v2738
  %3647 = vmatpush1.bf16.msra.mxu0 %v2737
  %3648 = vmatprep.subr.bf16.mxu0 %v2754
  %3649 = vmatpush1.bf16.msra.mxu0 %v2753
  %3650 = vmatprep.mubr.bf16.mxu0 %v658
  %3651 = vmatmul.mubr.bf16.gmra.mrb[0].mxu0 %v657
  %v3652 = vpop.f32.mrb[0].mxu0
  %v3653 = vadd.f32 %v3540, %v3652
  %v3654 = vpop.f32.mrb[0].mxu0
  %v3655 = vadd.f32 %v3542, %v3654
  %v3656 = vpop.f32.mrb[0].mxu0
  %v3657 = vadd.f32 %v3544, %v3656
  %v3658 = vpop.f32.mrb[0].mxu0
  %v3659 = vadd.f32 %v3546, %v3658
  %3660 = vmatprep.mubr.bf16.mxu0 %v662
  %3661 = vmatmul.mubr.bf16.gmra.mrb[0].mxu0 %v661
  %v3662 = vpop.f32.mrb[0].mxu0
  %v3663 = vadd.f32 %v3550, %v3662
  %v3664 = vpop.f32.mrb[0].mxu0
  %v3665 = vadd.f32 %v3552, %v3664
  %v3666 = vpop.f32.mrb[0].mxu0
  %v3667 = vadd.f32 %v3554, %v3666
  %v3668 = vpop.f32.mrb[0].mxu0
  %v3669 = vadd.f32 %v3556, %v3668
  %3670 = vmatprep.mubr.bf16.mxu0 %v666
  %3671 = vmatmul.mubr.bf16.gmra.mrb[0].mxu0 %v665
  %v3672 = vpop.f32.mrb[0].mxu0
  %v3673 = vadd.f32 %v3560, %v3672
  %v3674 = vpop.f32.mrb[0].mxu0
  %v3675 = vadd.f32 %v3562, %v3674
  %v3676 = vpop.f32.mrb[0].mxu0
  %v3677 = vadd.f32 %v3564, %v3676
  %v3678 = vpop.f32.mrb[0].mxu0
  %v3679 = vadd.f32 %v3566, %v3678
  %3680 = vmatprep.mubr.bf16.mxu0 %v670
  %3681 = vmatmul.mubr.bf16.gmra.mrb[0].mxu0 %v669
  %v3682 = vpop.f32.mrb[0].mxu0
  %v3683 = vadd.f32 %v3570, %v3682
  %v3684 = vpop.f32.mrb[0].mxu0
  %v3685 = vadd.f32 %v3572, %v3684
  %v3686 = vpop.f32.mrb[0].mxu0
  %v3687 = vadd.f32 %v3574, %v3686
  %v3688 = vpop.f32.mrb[0].mxu0
  %v3689 = vadd.f32 %v3576, %v3688
  %3690 = vmatprep.mubr.bf16.mxu0 %v674
  %3691 = vmatmul.mubr.bf16.gmra.mrb[0].mxu0 %v673
  %v3692 = vpop.f32.mrb[0].mxu0
  %v3693 = vadd.f32 %v3580, %v3692
  %v3694 = vpop.f32.mrb[0].mxu0
  %v3695 = vadd.f32 %v3582, %v3694
  %v3696 = vpop.f32.mrb[0].mxu0
  %v3697 = vadd.f32 %v3584, %v3696
  %v3698 = vpop.f32.mrb[0].mxu0
  %v3699 = vadd.f32 %v3586, %v3698
  %3700 = vmatprep.mubr.bf16.mxu0 %v678
  %3701 = vmatmul.mubr.bf16.gmra.mrb[0].mxu0 %v677
  %v3702 = vpop.f32.mrb[0].mxu0
  %v3703 = vadd.f32 %v3590, %v3702
  %v3704 = vpop.f32.mrb[0].mxu0
  %v3705 = vadd.f32 %v3592, %v3704
  %v3706 = vpop.f32.mrb[0].mxu0
  %v3707 = vadd.f32 %v3594, %v3706
  %v3708 = vpop.f32.mrb[0].mxu0
  %v3709 = vadd.f32 %v3596, %v3708
  %3710 = vmatprep.mubr.bf16.mxu0 %v682
  %3711 = vmatmul.mubr.bf16.gmra.mrb[0].mxu0 %v681
  %v3712 = vpop.f32.mrb[0].mxu0
  %v3713 = vadd.f32 %v3600, %v3712
  %v3714 = vpop.f32.mrb[0].mxu0
  %v3715 = vadd.f32 %v3602, %v3714
  %v3716 = vpop.f32.mrb[0].mxu0
  %v3717 = vadd.f32 %v3604, %v3716
  %v3718 = vpop.f32.mrb[0].mxu0
  %v3719 = vadd.f32 %v3606, %v3718
  %3720 = vmatprep.mubr.bf16.mxu0 %v686
  %3721 = vmatmul.mubr.bf16.gmra.mrb[0].mxu0 %v685
  %v3722 = vpop.f32.mrb[0].mxu0
  %v3723 = vadd.f32 %v3610, %v3722
  %v3724 = vpop.f32.mrb[0].mxu0
  %v3725 = vadd.f32 %v3612, %v3724
  %v3726 = vpop.f32.mrb[0].mxu0
  %v3727 = vadd.f32 %v3614, %v3726
  %v3728 = vpop.f32.mrb[0].mxu0
  %v3729 = vadd.f32 %v3616, %v3728
  %3730 = vdwg.mxu0
  %3731 = vmatprep.subr.bf16.mxu0 %v2260
  %3732 = vmatpush1.bf16.msra.mxu0 %v2259
  %3733 = vmatprep.subr.bf16.mxu0 %v2276
  %3734 = vmatpush1.bf16.msra.mxu0 %v2275
  %3735 = vmatprep.subr.bf16.mxu0 %v2292
  %3736 = vmatpush1.bf16.msra.mxu0 %v2291
  %3737 = vmatprep.subr.bf16.mxu0 %v2308
  %3738 = vmatpush1.bf16.msra.mxu0 %v2307
  %3739 = vmatprep.subr.bf16.mxu0 %v2324
  %3740 = vmatpush1.bf16.msra.mxu0 %v2323
  %3741 = vmatprep.subr.bf16.mxu0 %v2340
  %3742 = vmatpush1.bf16.msra.mxu0 %v2339
  %3743 = vmatprep.subr.bf16.mxu0 %v2356
  %3744 = vmatpush1.bf16.msra.mxu0 %v2355
  %3745 = vmatprep.subr.bf16.mxu0 %v2372
  %3746 = vmatpush1.bf16.msra.mxu0 %v2371
  %3747 = vmatprep.subr.bf16.mxu0 %v2388
  %3748 = vmatpush1.bf16.msra.mxu0 %v2387
  %3749 = vmatprep.subr.bf16.mxu0 %v2404
  %3750 = vmatpush1.bf16.msra.mxu0 %v2403
  %3751 = vmatprep.subr.bf16.mxu0 %v2420
  %3752 = vmatpush1.bf16.msra.mxu0 %v2419
  %3753 = vmatprep.subr.bf16.mxu0 %v2436
  %3754 = vmatpush1.bf16.msra.mxu0 %v2435
  %3755 = vmatprep.subr.bf16.mxu0 %v2452
  %3756 = vmatpush1.bf16.msra.mxu0 %v2451
  %3757 = vmatprep.subr.bf16.mxu0 %v2468
  %3758 = vmatpush1.bf16.msra.mxu0 %v2467
  %3759 = vmatprep.subr.bf16.mxu0 %v2484
  %3760 = vmatpush1.bf16.msra.mxu0 %v2483
  %3761 = vmatprep.subr.bf16.mxu0 %v2500
  %3762 = vmatpush1.bf16.msra.mxu0 %v2499
  %3763 = vmatprep.mubr.bf16.mxu0 %v656
  %3764 = vmatmul.mubr.bf16.gmra.mrb[0].mxu0 %v655
  %v3765 = vpop.f32.mrb[0].mxu0
  %v3766 = vadd.f32 0.0, %v3765
  %v3767 = vpop.f32.mrb[0].mxu0
  %v3768 = vadd.f32 0.0, %v3767
  %v3769 = vpop.f32.mrb[0].mxu0
  %v3770 = vadd.f32 0.0, %v3769
  %v3771 = vpop.f32.mrb[0].mxu0
  %v3772 = vadd.f32 0.0, %v3771
  %3773 = vmatprep.mubr.bf16.mxu0 %v660
  %3774 = vmatmul.mubr.bf16.gmra.mrb[0].mxu0 %v659
  %v3775 = vpop.f32.mrb[0].mxu0
  %v3776 = vadd.f32 0.0, %v3775
  %v3777 = vpop.f32.mrb[0].mxu0
  %v3778 = vadd.f32 0.0, %v3777
  %v3779 = vpop.f32.mrb[0].mxu0
  %v3780 = vadd.f32 0.0, %v3779
  %v3781 = vpop.f32.mrb[0].mxu0
  %v3782 = vadd.f32 0.0, %v3781
  %3783 = vmatprep.mubr.bf16.mxu0 %v664
  %3784 = vmatmul.mubr.bf16.gmra.mrb[0].mxu0 %v663
  %v3785 = vpop.f32.mrb[0].mxu0
  %v3786 = vadd.f32 0.0, %v3785
  %v3787 = vpop.f32.mrb[0].mxu0
  %v3788 = vadd.f32 0.0, %v3787
  %v3789 = vpop.f32.mrb[0].mxu0
  %v3790 = vadd.f32 0.0, %v3789
  %v3791 = vpop.f32.mrb[0].mxu0
  %v3792 = vadd.f32 0.0, %v3791
  %3793 = vmatprep.mubr.bf16.mxu0 %v668
  %3794 = vmatmul.mubr.bf16.gmra.mrb[0].mxu0 %v667
  %v3795 = vpop.f32.mrb[0].mxu0
  %v3796 = vadd.f32 0.0, %v3795
  %v3797 = vpop.f32.mrb[0].mxu0
  %v3798 = vadd.f32 0.0, %v3797
  %v3799 = vpop.f32.mrb[0].mxu0
  %v3800 = vadd.f32 0.0, %v3799
  %v3801 = vpop.f32.mrb[0].mxu0
  %v3802 = vadd.f32 0.0, %v3801
  %3803 = vmatprep.mubr.bf16.mxu0 %v672
  %3804 = vmatmul.mubr.bf16.gmra.mrb[0].mxu0 %v671
  %v3805 = vpop.f32.mrb[0].mxu0
  %v3806 = vadd.f32 0.0, %v3805
  %v3807 = vpop.f32.mrb[0].mxu0
  %v3808 = vadd.f32 0.0, %v3807
  %v3809 = vpop.f32.mrb[0].mxu0
  %v3810 = vadd.f32 0.0, %v3809
  %v3811 = vpop.f32.mrb[0].mxu0
  %v3812 = vadd.f32 0.0, %v3811
  %3813 = vmatprep.mubr.bf16.mxu0 %v676
  %3814 = vmatmul.mubr.bf16.gmra.mrb[0].mxu0 %v675
  %v3815 = vpop.f32.mrb[0].mxu0
  %v3816 = vadd.f32 0.0, %v3815
  %v3817 = vpop.f32.mrb[0].mxu0
  %v3818 = vadd.f32 0.0, %v3817
  %v3819 = vpop.f32.mrb[0].mxu0
  %v3820 = vadd.f32 0.0, %v3819
  %v3821 = vpop.f32.mrb[0].mxu0
  %v3822 = vadd.f32 0.0, %v3821
  %3823 = vmatprep.mubr.bf16.mxu0 %v680
  %3824 = vmatmul.mubr.bf16.gmra.mrb[0].mxu0 %v679
  %v3825 = vpop.f32.mrb[0].mxu0
  %v3826 = vadd.f32 0.0, %v3825
  %v3827 = vpop.f32.mrb[0].mxu0
  %v3828 = vadd.f32 0.0, %v3827
  %v3829 = vpop.f32.mrb[0].mxu0
  %v3830 = vadd.f32 0.0, %v3829
  %v3831 = vpop.f32.mrb[0].mxu0
  %v3832 = vadd.f32 0.0, %v3831
  %3833 = vmatprep.mubr.bf16.mxu0 %v684
  %3834 = vmatmul.mubr.bf16.gmra.mrb[0].mxu0 %v683
  %v3835 = vpop.f32.mrb[0].mxu0
  %v3836 = vadd.f32 0.0, %v3835
  %v3837 = vpop.f32.mrb[0].mxu0
  %v3838 = vadd.f32 0.0, %v3837
  %v3839 = vpop.f32.mrb[0].mxu0
  %v3840 = vadd.f32 0.0, %v3839
  %v3841 = vpop.f32.mrb[0].mxu0
  %v3842 = vadd.f32 0.0, %v3841
  %3843 = vdwg.mxu0
  %3844 = vmatprep.subr.bf16.mxu0 %v2516
  %3845 = vmatpush1.bf16.msra.mxu0 %v2515
  %3846 = vmatprep.subr.bf16.mxu0 %v2532
  %3847 = vmatpush1.bf16.msra.mxu0 %v2531
  %3848 = vmatprep.subr.bf16.mxu0 %v2548
  %3849 = vmatpush1.bf16.msra.mxu0 %v2547
  %3850 = vmatprep.subr.bf16.mxu0 %v2564
  %3851 = vmatpush1.bf16.msra.mxu0 %v2563
  %3852 = vmatprep.subr.bf16.mxu0 %v2580
  %3853 = vmatpush1.bf16.msra.mxu0 %v2579
  %3854 = vmatprep.subr.bf16.mxu0 %v2596
  %3855 = vmatpush1.bf16.msra.mxu0 %v2595
  %3856 = vmatprep.subr.bf16.mxu0 %v2612
  %3857 = vmatpush1.bf16.msra.mxu0 %v2611
  %3858 = vmatprep.subr.bf16.mxu0 %v2628
  %3859 = vmatpush1.bf16.msra.mxu0 %v2627
  %3860 = vmatprep.subr.bf16.mxu0 %v2644
  %3861 = vmatpush1.bf16.msra.mxu0 %v2643
  %3862 = vmatprep.subr.bf16.mxu0 %v2660
  %3863 = vmatpush1.bf16.msra.mxu0 %v2659
  %3864 = vmatprep.subr.bf16.mxu0 %v2676
  %3865 = vmatpush1.bf16.msra.mxu0 %v2675
  %3866 = vmatprep.subr.bf16.mxu0 %v2692
  %3867 = vmatpush1.bf16.msra.mxu0 %v2691
  %3868 = vmatprep.subr.bf16.mxu0 %v2708
  %3869 = vmatpush1.bf16.msra.mxu0 %v2707
  %3870 = vmatprep.subr.bf16.mxu0 %v2724
  %3871 = vmatpush1.bf16.msra.mxu0 %v2723
  %3872 = vmatprep.subr.bf16.mxu0 %v2740
  %3873 = vmatpush1.bf16.msra.mxu0 %v2739
  %3874 = vmatprep.subr.bf16.mxu0 %v2756
  %3875 = vmatpush1.bf16.msra.mxu0 %v2755
  %3876 = vmatprep.mubr.bf16.mxu0 %v658
  %3877 = vmatmul.mubr.bf16.gmra.mrb[0].mxu0 %v657
  %v3878 = vpop.f32.mrb[0].mxu0
  %v3879 = vadd.f32 %v3766, %v3878
  %v3880 = vpop.f32.mrb[0].mxu0
  %v3881 = vadd.f32 %v3768, %v3880
  %v3882 = vpop.f32.mrb[0].mxu0
  %v3883 = vadd.f32 %v3770, %v3882
  %v3884 = vpop.f32.mrb[0].mxu0
  %v3885 = vadd.f32 %v3772, %v3884
  %3886 = vmatprep.mubr.bf16.mxu0 %v662
  %3887 = vmatmul.mubr.bf16.gmra.mrb[0].mxu0 %v661
  %v3888 = vpop.f32.mrb[0].mxu0
  %v3889 = vadd.f32 %v3776, %v3888
  %v3890 = vpop.f32.mrb[0].mxu0
  %v3891 = vadd.f32 %v3778, %v3890
  %v3892 = vpop.f32.mrb[0].mxu0
  %v3893 = vadd.f32 %v3780, %v3892
  %v3894 = vpop.f32.mrb[0].mxu0
  %v3895 = vadd.f32 %v3782, %v3894
  %3896 = vmatprep.mubr.bf16.mxu0 %v666
  %3897 = vmatmul.mubr.bf16.gmra.mrb[0].mxu0 %v665
  %v3898 = vpop.f32.mrb[0].mxu0
  %v3899 = vadd.f32 %v3786, %v3898
  %v3900 = vpop.f32.mrb[0].mxu0
  %v3901 = vadd.f32 %v3788, %v3900
  %v3902 = vpop.f32.mrb[0].mxu0
  %v3903 = vadd.f32 %v3790, %v3902
  %v3904 = vpop.f32.mrb[0].mxu0
  %v3905 = vadd.f32 %v3792, %v3904
  %3906 = vmatprep.mubr.bf16.mxu0 %v670
  %3907 = vmatmul.mubr.bf16.gmra.mrb[0].mxu0 %v669
  %v3908 = vpop.f32.mrb[0].mxu0
  %v3909 = vadd.f32 %v3796, %v3908
  %v3910 = vpop.f32.mrb[0].mxu0
  %v3911 = vadd.f32 %v3798, %v3910
  %v3912 = vpop.f32.mrb[0].mxu0
  %v3913 = vadd.f32 %v3800, %v3912
  %v3914 = vpop.f32.mrb[0].mxu0
  %v3915 = vadd.f32 %v3802, %v3914
  %3916 = vmatprep.mubr.bf16.mxu0 %v674
  %3917 = vmatmul.mubr.bf16.gmra.mrb[0].mxu0 %v673
  %v3918 = vpop.f32.mrb[0].mxu0
  %v3919 = vadd.f32 %v3806, %v3918
  %v3920 = vpop.f32.mrb[0].mxu0
  %v3921 = vadd.f32 %v3808, %v3920
  %v3922 = vpop.f32.mrb[0].mxu0
  %v3923 = vadd.f32 %v3810, %v3922
  %v3924 = vpop.f32.mrb[0].mxu0
  %v3925 = vadd.f32 %v3812, %v3924
  %3926 = vmatprep.mubr.bf16.mxu0 %v678
  %3927 = vmatmul.mubr.bf16.gmra.mrb[0].mxu0 %v677
  %v3928 = vpop.f32.mrb[0].mxu0
  %v3929 = vadd.f32 %v3816, %v3928
  %v3930 = vpop.f32.mrb[0].mxu0
  %v3931 = vadd.f32 %v3818, %v3930
  %v3932 = vpop.f32.mrb[0].mxu0
  %v3933 = vadd.f32 %v3820, %v3932
  %v3934 = vpop.f32.mrb[0].mxu0
  %v3935 = vadd.f32 %v3822, %v3934
  %3936 = vmatprep.mubr.bf16.mxu0 %v682
  %3937 = vmatmul.mubr.bf16.gmra.mrb[0].mxu0 %v681
  %v3938 = vpop.f32.mrb[0].mxu0
  %v3939 = vadd.f32 %v3826, %v3938
  %v3940 = vpop.f32.mrb[0].mxu0
  %v3941 = vadd.f32 %v3828, %v3940
  %v3942 = vpop.f32.mrb[0].mxu0
  %v3943 = vadd.f32 %v3830, %v3942
  %v3944 = vpop.f32.mrb[0].mxu0
  %v3945 = vadd.f32 %v3832, %v3944
  %3946 = vmatprep.mubr.bf16.mxu0 %v686
  %3947 = vmatmul.mubr.bf16.gmra.mrb[0].mxu0 %v685
  %v3948 = vpop.f32.mrb[0].mxu0
  %v3949 = vadd.f32 %v3836, %v3948
  %v3950 = vpop.f32.mrb[0].mxu0
  %v3951 = vadd.f32 %v3838, %v3950
  %v3952 = vpop.f32.mrb[0].mxu0
  %v3953 = vadd.f32 %v3840, %v3952
  %v3954 = vpop.f32.mrb[0].mxu0
  %v3955 = vadd.f32 %v3842, %v3954
  %3956 = vdwg.mxu0
  %3957 = vmatprep.subr.bf16.mxu0 %v2262
  %3958 = vmatpush1.bf16.msra.mxu0 %v2261
  %3959 = vmatprep.subr.bf16.mxu0 %v2278
  %3960 = vmatpush1.bf16.msra.mxu0 %v2277
  %3961 = vmatprep.subr.bf16.mxu0 %v2294
  %3962 = vmatpush1.bf16.msra.mxu0 %v2293
  %3963 = vmatprep.subr.bf16.mxu0 %v2310
  %3964 = vmatpush1.bf16.msra.mxu0 %v2309
  %3965 = vmatprep.subr.bf16.mxu0 %v2326
  %3966 = vmatpush1.bf16.msra.mxu0 %v2325
  %3967 = vmatprep.subr.bf16.mxu0 %v2342
  %3968 = vmatpush1.bf16.msra.mxu0 %v2341
  %3969 = vmatprep.subr.bf16.mxu0 %v2358
  %3970 = vmatpush1.bf16.msra.mxu0 %v2357
  %3971 = vmatprep.subr.bf16.mxu0 %v2374
  %3972 = vmatpush1.bf16.msra.mxu0 %v2373
  %3973 = vmatprep.subr.bf16.mxu0 %v2390
  %3974 = vmatpush1.bf16.msra.mxu0 %v2389
  %3975 = vmatprep.subr.bf16.mxu0 %v2406
  %3976 = vmatpush1.bf16.msra.mxu0 %v2405
  %3977 = vmatprep.subr.bf16.mxu0 %v2422
  %3978 = vmatpush1.bf16.msra.mxu0 %v2421
  %3979 = vmatprep.subr.bf16.mxu0 %v2438
  %3980 = vmatpush1.bf16.msra.mxu0 %v2437
  %3981 = vmatprep.subr.bf16.mxu0 %v2454
  %3982 = vmatpush1.bf16.msra.mxu0 %v2453
  %3983 = vmatprep.subr.bf16.mxu0 %v2470
  %3984 = vmatpush1.bf16.msra.mxu0 %v2469
  %3985 = vmatprep.subr.bf16.mxu0 %v2486
  %3986 = vmatpush1.bf16.msra.mxu0 %v2485
  %3987 = vmatprep.subr.bf16.mxu0 %v2502
  %3988 = vmatpush1.bf16.msra.mxu0 %v2501
  %3989 = vmatprep.mubr.bf16.mxu0 %v656
  %3990 = vmatmul.mubr.bf16.gmra.mrb[0].mxu0 %v655
  %v3991 = vpop.f32.mrb[0].mxu0
  %v3992 = vadd.f32 0.0, %v3991
  %v3993 = vpop.f32.mrb[0].mxu0
  %v3994 = vadd.f32 0.0, %v3993
  %v3995 = vpop.f32.mrb[0].mxu0
  %v3996 = vadd.f32 0.0, %v3995
  %v3997 = vpop.f32.mrb[0].mxu0
  %v3998 = vadd.f32 0.0, %v3997
  %3999 = vmatprep.mubr.bf16.mxu0 %v660
  %4000 = vmatmul.mubr.bf16.gmra.mrb[0].mxu0 %v659
  %v4001 = vpop.f32.mrb[0].mxu0
  %v4002 = vadd.f32 0.0, %v4001
  %v4003 = vpop.f32.mrb[0].mxu0
  %v4004 = vadd.f32 0.0, %v4003
  %v4005 = vpop.f32.mrb[0].mxu0
  %v4006 = vadd.f32 0.0, %v4005
  %v4007 = vpop.f32.mrb[0].mxu0
  %v4008 = vadd.f32 0.0, %v4007
  %4009 = vmatprep.mubr.bf16.mxu0 %v664
  %4010 = vmatmul.mubr.bf16.gmra.mrb[0].mxu0 %v663
  %v4011 = vpop.f32.mrb[0].mxu0
  %v4012 = vadd.f32 0.0, %v4011
  %v4013 = vpop.f32.mrb[0].mxu0
  %v4014 = vadd.f32 0.0, %v4013
  %v4015 = vpop.f32.mrb[0].mxu0
  %v4016 = vadd.f32 0.0, %v4015
  %v4017 = vpop.f32.mrb[0].mxu0
  %v4018 = vadd.f32 0.0, %v4017
  %4019 = vmatprep.mubr.bf16.mxu0 %v668
  %4020 = vmatmul.mubr.bf16.gmra.mrb[0].mxu0 %v667
  %v4021 = vpop.f32.mrb[0].mxu0
  %v4022 = vadd.f32 0.0, %v4021
  %v4023 = vpop.f32.mrb[0].mxu0
  %v4024 = vadd.f32 0.0, %v4023
  %v4025 = vpop.f32.mrb[0].mxu0
  %v4026 = vadd.f32 0.0, %v4025
  %v4027 = vpop.f32.mrb[0].mxu0
  %v4028 = vadd.f32 0.0, %v4027
  %4029 = vmatprep.mubr.bf16.mxu0 %v672
  %4030 = vmatmul.mubr.bf16.gmra.mrb[0].mxu0 %v671
  %v4031 = vpop.f32.mrb[0].mxu0
  %v4032 = vadd.f32 0.0, %v4031
  %v4033 = vpop.f32.mrb[0].mxu0
  %v4034 = vadd.f32 0.0, %v4033
  %v4035 = vpop.f32.mrb[0].mxu0
  %v4036 = vadd.f32 0.0, %v4035
  %v4037 = vpop.f32.mrb[0].mxu0
  %v4038 = vadd.f32 0.0, %v4037
  %4039 = vmatprep.mubr.bf16.mxu0 %v676
  %4040 = vmatmul.mubr.bf16.gmra.mrb[0].mxu0 %v675
  %v4041 = vpop.f32.mrb[0].mxu0
  %v4042 = vadd.f32 0.0, %v4041
  %v4043 = vpop.f32.mrb[0].mxu0
  %v4044 = vadd.f32 0.0, %v4043
  %v4045 = vpop.f32.mrb[0].mxu0
  %v4046 = vadd.f32 0.0, %v4045
  %v4047 = vpop.f32.mrb[0].mxu0
  %v4048 = vadd.f32 0.0, %v4047
  %4049 = vmatprep.mubr.bf16.mxu0 %v680
  %4050 = vmatmul.mubr.bf16.gmra.mrb[0].mxu0 %v679
  %v4051 = vpop.f32.mrb[0].mxu0
  %v4052 = vadd.f32 0.0, %v4051
  %v4053 = vpop.f32.mrb[0].mxu0
  %v4054 = vadd.f32 0.0, %v4053
  %v4055 = vpop.f32.mrb[0].mxu0
  %v4056 = vadd.f32 0.0, %v4055
  %v4057 = vpop.f32.mrb[0].mxu0
  %v4058 = vadd.f32 0.0, %v4057
  %4059 = vmatprep.mubr.bf16.mxu0 %v684
  %4060 = vmatmul.mubr.bf16.gmra.mrb[0].mxu0 %v683
  %v4061 = vpop.f32.mrb[0].mxu0
  %v4062 = vadd.f32 0.0, %v4061
  %v4063 = vpop.f32.mrb[0].mxu0
  %v4064 = vadd.f32 0.0, %v4063
  %v4065 = vpop.f32.mrb[0].mxu0
  %v4066 = vadd.f32 0.0, %v4065
  %v4067 = vpop.f32.mrb[0].mxu0
  %v4068 = vadd.f32 0.0, %v4067
  %4069 = vdwg.mxu0
  %4070 = vmatprep.subr.bf16.mxu0 %v2518
  %4071 = vmatpush1.bf16.msra.mxu0 %v2517
  %4072 = vmatprep.subr.bf16.mxu0 %v2534
  %4073 = vmatpush1.bf16.msra.mxu0 %v2533
  %4074 = vmatprep.subr.bf16.mxu0 %v2550
  %4075 = vmatpush1.bf16.msra.mxu0 %v2549
  %4076 = vmatprep.subr.bf16.mxu0 %v2566
  %4077 = vmatpush1.bf16.msra.mxu0 %v2565
  %4078 = vmatprep.subr.bf16.mxu0 %v2582
  %4079 = vmatpush1.bf16.msra.mxu0 %v2581
  %4080 = vmatprep.subr.bf16.mxu0 %v2598
  %4081 = vmatpush1.bf16.msra.mxu0 %v2597
  %4082 = vmatprep.subr.bf16.mxu0 %v2614
  %4083 = vmatpush1.bf16.msra.mxu0 %v2613
  %4084 = vmatprep.subr.bf16.mxu0 %v2630
  %4085 = vmatpush1.bf16.msra.mxu0 %v2629
  %4086 = vmatprep.subr.bf16.mxu0 %v2646
  %4087 = vmatpush1.bf16.msra.mxu0 %v2645
  %4088 = vmatprep.subr.bf16.mxu0 %v2662
  %4089 = vmatpush1.bf16.msra.mxu0 %v2661
  %4090 = vmatprep.subr.bf16.mxu0 %v2678
  %4091 = vmatpush1.bf16.msra.mxu0 %v2677
  %4092 = vmatprep.subr.bf16.mxu0 %v2694
  %4093 = vmatpush1.bf16.msra.mxu0 %v2693
  %4094 = vmatprep.subr.bf16.mxu0 %v2710
  %4095 = vmatpush1.bf16.msra.mxu0 %v2709
  %4096 = vmatprep.subr.bf16.mxu0 %v2726
  %4097 = vmatpush1.bf16.msra.mxu0 %v2725
  %4098 = vmatprep.subr.bf16.mxu0 %v2742
  %4099 = vmatpush1.bf16.msra.mxu0 %v2741
  %4100 = vmatprep.subr.bf16.mxu0 %v2758
  %4101 = vmatpush1.bf16.msra.mxu0 %v2757
  %4102 = vmatprep.mubr.bf16.mxu0 %v658
  %4103 = vmatmul.mubr.bf16.gmra.mrb[0].mxu0 %v657
  %v4104 = vpop.f32.mrb[0].mxu0
  %v4105 = vadd.f32 %v3992, %v4104
  %v4106 = vpop.f32.mrb[0].mxu0
  %v4107 = vadd.f32 %v3994, %v4106
  %v4108 = vpop.f32.mrb[0].mxu0
  %v4109 = vadd.f32 %v3996, %v4108
  %v4110 = vpop.f32.mrb[0].mxu0
  %v4111 = vadd.f32 %v3998, %v4110
  %4112 = vmatprep.mubr.bf16.mxu0 %v662
  %4113 = vmatmul.mubr.bf16.gmra.mrb[0].mxu0 %v661
  %v4114 = vpop.f32.mrb[0].mxu0
  %v4115 = vadd.f32 %v4002, %v4114
  %v4116 = vpop.f32.mrb[0].mxu0
  %v4117 = vadd.f32 %v4004, %v4116
  %v4118 = vpop.f32.mrb[0].mxu0
  %v4119 = vadd.f32 %v4006, %v4118
  %v4120 = vpop.f32.mrb[0].mxu0
  %v4121 = vadd.f32 %v4008, %v4120
  %4122 = vmatprep.mubr.bf16.mxu0 %v666
  %4123 = vmatmul.mubr.bf16.gmra.mrb[0].mxu0 %v665
  %v4124 = vpop.f32.mrb[0].mxu0
  %v4125 = vadd.f32 %v4012, %v4124
  %v4126 = vpop.f32.mrb[0].mxu0
  %v4127 = vadd.f32 %v4014, %v4126
  %v4128 = vpop.f32.mrb[0].mxu0
  %v4129 = vadd.f32 %v4016, %v4128
  %v4130 = vpop.f32.mrb[0].mxu0
  %v4131 = vadd.f32 %v4018, %v4130
  %4132 = vmatprep.mubr.bf16.mxu0 %v670
  %4133 = vmatmul.mubr.bf16.gmra.mrb[0].mxu0 %v669
  %v4134 = vpop.f32.mrb[0].mxu0
  %v4135 = vadd.f32 %v4022, %v4134
  %v4136 = vpop.f32.mrb[0].mxu0
  %v4137 = vadd.f32 %v4024, %v4136
  %v4138 = vpop.f32.mrb[0].mxu0
  %v4139 = vadd.f32 %v4026, %v4138
  %v4140 = vpop.f32.mrb[0].mxu0
  %v4141 = vadd.f32 %v4028, %v4140
  %4142 = vmatprep.mubr.bf16.mxu0 %v674
  %4143 = vmatmul.mubr.bf16.gmra.mrb[0].mxu0 %v673
  %v4144 = vpop.f32.mrb[0].mxu0
  %v4145 = vadd.f32 %v4032, %v4144
  %v4146 = vpop.f32.mrb[0].mxu0
  %v4147 = vadd.f32 %v4034, %v4146
  %v4148 = vpop.f32.mrb[0].mxu0
  %v4149 = vadd.f32 %v4036, %v4148
  %v4150 = vpop.f32.mrb[0].mxu0
  %v4151 = vadd.f32 %v4038, %v4150
  %4152 = vmatprep.mubr.bf16.mxu0 %v678
  %4153 = vmatmul.mubr.bf16.gmra.mrb[0].mxu0 %v677
  %v4154 = vpop.f32.mrb[0].mxu0
  %v4155 = vadd.f32 %v4042, %v4154
  %v4156 = vpop.f32.mrb[0].mxu0
  %v4157 = vadd.f32 %v4044, %v4156
  %v4158 = vpop.f32.mrb[0].mxu0
  %v4159 = vadd.f32 %v4046, %v4158
  %v4160 = vpop.f32.mrb[0].mxu0
  %v4161 = vadd.f32 %v4048, %v4160
  %4162 = vmatprep.mubr.bf16.mxu0 %v682
  %4163 = vmatmul.mubr.bf16.gmra.mrb[0].mxu0 %v681
  %v4164 = vpop.f32.mrb[0].mxu0
  %v4165 = vadd.f32 %v4052, %v4164
  %v4166 = vpop.f32.mrb[0].mxu0
  %v4167 = vadd.f32 %v4054, %v4166
  %v4168 = vpop.f32.mrb[0].mxu0
  %v4169 = vadd.f32 %v4056, %v4168
  %v4170 = vpop.f32.mrb[0].mxu0
  %v4171 = vadd.f32 %v4058, %v4170
  %4172 = vmatprep.mubr.bf16.mxu0 %v686
  %4173 = vmatmul.mubr.bf16.gmra.mrb[0].mxu0 %v685
  %v4174 = vpop.f32.mrb[0].mxu0
  %v4175 = vadd.f32 %v4062, %v4174
  %v4176 = vpop.f32.mrb[0].mxu0
  %v4177 = vadd.f32 %v4064, %v4176
  %v4178 = vpop.f32.mrb[0].mxu0
  %v4179 = vadd.f32 %v4066, %v4178
  %v4180 = vpop.f32.mrb[0].mxu0
  %v4181 = vadd.f32 %v4068, %v4180
  %4182 = vdwg.mxu0
  %4183 = vmatprep.subr.bf16.mxu0 %v2264
  %4184 = vmatpush1.bf16.msra.mxu0 %v2263
  %4185 = vmatprep.subr.bf16.mxu0 %v2280
  %4186 = vmatpush1.bf16.msra.mxu0 %v2279
  %4187 = vmatprep.subr.bf16.mxu0 %v2296
  %4188 = vmatpush1.bf16.msra.mxu0 %v2295
  %4189 = vmatprep.subr.bf16.mxu0 %v2312
  %4190 = vmatpush1.bf16.msra.mxu0 %v2311
  %4191 = vmatprep.subr.bf16.mxu0 %v2328
  %4192 = vmatpush1.bf16.msra.mxu0 %v2327
  %4193 = vmatprep.subr.bf16.mxu0 %v2344
  %4194 = vmatpush1.bf16.msra.mxu0 %v2343
  %4195 = vmatprep.subr.bf16.mxu0 %v2360
  %4196 = vmatpush1.bf16.msra.mxu0 %v2359
  %4197 = vmatprep.subr.bf16.mxu0 %v2376
  %4198 = vmatpush1.bf16.msra.mxu0 %v2375
  %4199 = vmatprep.subr.bf16.mxu0 %v2392
  %4200 = vmatpush1.bf16.msra.mxu0 %v2391
  %4201 = vmatprep.subr.bf16.mxu0 %v2408
  %4202 = vmatpush1.bf16.msra.mxu0 %v2407
  %4203 = vmatprep.subr.bf16.mxu0 %v2424
  %4204 = vmatpush1.bf16.msra.mxu0 %v2423
  %4205 = vmatprep.subr.bf16.mxu0 %v2440
  %4206 = vmatpush1.bf16.msra.mxu0 %v2439
  %4207 = vmatprep.subr.bf16.mxu0 %v2456
  %4208 = vmatpush1.bf16.msra.mxu0 %v2455
  %4209 = vmatprep.subr.bf16.mxu0 %v2472
  %4210 = vmatpush1.bf16.msra.mxu0 %v2471
  %4211 = vmatprep.subr.bf16.mxu0 %v2488
  %4212 = vmatpush1.bf16.msra.mxu0 %v2487
  %4213 = vmatprep.subr.bf16.mxu0 %v2504
  %4214 = vmatpush1.bf16.msra.mxu0 %v2503
  %4215 = vmatprep.mubr.bf16.mxu0 %v656
  %4216 = vmatmul.mubr.bf16.gmra.mrb[0].mxu0 %v655
  %v4217 = vpop.f32.mrb[0].mxu0
  %v4218 = vadd.f32 0.0, %v4217
  %v4219 = vpop.f32.mrb[0].mxu0
  %v4220 = vadd.f32 0.0, %v4219
  %v4221 = vpop.f32.mrb[0].mxu0
  %v4222 = vadd.f32 0.0, %v4221
  %v4223 = vpop.f32.mrb[0].mxu0
  %v4224 = vadd.f32 0.0, %v4223
  %4225 = vmatprep.mubr.bf16.mxu0 %v660
  %4226 = vmatmul.mubr.bf16.gmra.mrb[0].mxu0 %v659
  %v4227 = vpop.f32.mrb[0].mxu0
  %v4228 = vadd.f32 0.0, %v4227
  %v4229 = vpop.f32.mrb[0].mxu0
  %v4230 = vadd.f32 0.0, %v4229
  %v4231 = vpop.f32.mrb[0].mxu0
  %v4232 = vadd.f32 0.0, %v4231
  %v4233 = vpop.f32.mrb[0].mxu0
  %v4234 = vadd.f32 0.0, %v4233
  %4235 = vmatprep.mubr.bf16.mxu0 %v664
  %4236 = vmatmul.mubr.bf16.gmra.mrb[0].mxu0 %v663
  %v4237 = vpop.f32.mrb[0].mxu0
  %v4238 = vadd.f32 0.0, %v4237
  %v4239 = vpop.f32.mrb[0].mxu0
  %v4240 = vadd.f32 0.0, %v4239
  %v4241 = vpop.f32.mrb[0].mxu0
  %v4242 = vadd.f32 0.0, %v4241
  %v4243 = vpop.f32.mrb[0].mxu0
  %v4244 = vadd.f32 0.0, %v4243
  %4245 = vmatprep.mubr.bf16.mxu0 %v668
  %4246 = vmatmul.mubr.bf16.gmra.mrb[0].mxu0 %v667
  %v4247 = vpop.f32.mrb[0].mxu0
  %v4248 = vadd.f32 0.0, %v4247
  %v4249 = vpop.f32.mrb[0].mxu0
  %v4250 = vadd.f32 0.0, %v4249
  %v4251 = vpop.f32.mrb[0].mxu0
  %v4252 = vadd.f32 0.0, %v4251
  %v4253 = vpop.f32.mrb[0].mxu0
  %v4254 = vadd.f32 0.0, %v4253
  %4255 = vmatprep.mubr.bf16.mxu0 %v672
  %4256 = vmatmul.mubr.bf16.gmra.mrb[0].mxu0 %v671
  %v4257 = vpop.f32.mrb[0].mxu0
  %v4258 = vadd.f32 0.0, %v4257
  %v4259 = vpop.f32.mrb[0].mxu0
  %v4260 = vadd.f32 0.0, %v4259
  %v4261 = vpop.f32.mrb[0].mxu0
  %v4262 = vadd.f32 0.0, %v4261
  %v4263 = vpop.f32.mrb[0].mxu0
  %v4264 = vadd.f32 0.0, %v4263
  %4265 = vmatprep.mubr.bf16.mxu0 %v676
  %4266 = vmatmul.mubr.bf16.gmra.mrb[0].mxu0 %v675
  %v4267 = vpop.f32.mrb[0].mxu0
  %v4268 = vadd.f32 0.0, %v4267
  %v4269 = vpop.f32.mrb[0].mxu0
  %v4270 = vadd.f32 0.0, %v4269
  %v4271 = vpop.f32.mrb[0].mxu0
  %v4272 = vadd.f32 0.0, %v4271
  %v4273 = vpop.f32.mrb[0].mxu0
  %v4274 = vadd.f32 0.0, %v4273
  %4275 = vmatprep.mubr.bf16.mxu0 %v680
  %4276 = vmatmul.mubr.bf16.gmra.mrb[0].mxu0 %v679
  %v4277 = vpop.f32.mrb[0].mxu0
  %v4278 = vadd.f32 0.0, %v4277
  %v4279 = vpop.f32.mrb[0].mxu0
  %v4280 = vadd.f32 0.0, %v4279
  %v4281 = vpop.f32.mrb[0].mxu0
  %v4282 = vadd.f32 0.0, %v4281
  %v4283 = vpop.f32.mrb[0].mxu0
  %v4284 = vadd.f32 0.0, %v4283
  %4285 = vmatprep.mubr.bf16.mxu0 %v684
  %4286 = vmatmul.mubr.bf16.gmra.mrb[0].mxu0 %v683
  %v4287 = vpop.f32.mrb[0].mxu0
  %v4288 = vadd.f32 0.0, %v4287
  %v4289 = vpop.f32.mrb[0].mxu0
  %v4290 = vadd.f32 0.0, %v4289
  %v4291 = vpop.f32.mrb[0].mxu0
  %v4292 = vadd.f32 0.0, %v4291
  %v4293 = vpop.f32.mrb[0].mxu0
  %v4294 = vadd.f32 0.0, %v4293
  %4295 = vdwg.mxu0
  %4296 = vmatprep.subr.bf16.mxu0 %v2520
  %4297 = vmatpush1.bf16.msra.mxu0 %v2519
  %4298 = vmatprep.subr.bf16.mxu0 %v2536
  %4299 = vmatpush1.bf16.msra.mxu0 %v2535
  %4300 = vmatprep.subr.bf16.mxu0 %v2552
  %4301 = vmatpush1.bf16.msra.mxu0 %v2551
  %4302 = vmatprep.subr.bf16.mxu0 %v2568
  %4303 = vmatpush1.bf16.msra.mxu0 %v2567
  %4304 = vmatprep.subr.bf16.mxu0 %v2584
  %4305 = vmatpush1.bf16.msra.mxu0 %v2583
  %4306 = vmatprep.subr.bf16.mxu0 %v2600
  %4307 = vmatpush1.bf16.msra.mxu0 %v2599
  %4308 = vmatprep.subr.bf16.mxu0 %v2616
  %4309 = vmatpush1.bf16.msra.mxu0 %v2615
  %4310 = vmatprep.subr.bf16.mxu0 %v2632
  %4311 = vmatpush1.bf16.msra.mxu0 %v2631
  %4312 = vmatprep.subr.bf16.mxu0 %v2648
  %4313 = vmatpush1.bf16.msra.mxu0 %v2647
  %4314 = vmatprep.subr.bf16.mxu0 %v2664
  %4315 = vmatpush1.bf16.msra.mxu0 %v2663
  %4316 = vmatprep.subr.bf16.mxu0 %v2680
  %4317 = vmatpush1.bf16.msra.mxu0 %v2679
  %4318 = vmatprep.subr.bf16.mxu0 %v2696
  %4319 = vmatpush1.bf16.msra.mxu0 %v2695
  %4320 = vmatprep.subr.bf16.mxu0 %v2712
  %4321 = vmatpush1.bf16.msra.mxu0 %v2711
  %4322 = vmatprep.subr.bf16.mxu0 %v2728
  %4323 = vmatpush1.bf16.msra.mxu0 %v2727
  %4324 = vmatprep.subr.bf16.mxu0 %v2744
  %4325 = vmatpush1.bf16.msra.mxu0 %v2743
  %4326 = vmatprep.subr.bf16.mxu0 %v2760
  %4327 = vmatpush1.bf16.msra.mxu0 %v2759
  %4328 = vmatprep.mubr.bf16.mxu0 %v658
  %4329 = vmatmul.mubr.bf16.gmra.mrb[0].mxu0 %v657
  %v4330 = vpop.f32.mrb[0].mxu0
  %v4331 = vadd.f32 %v4218, %v4330
  %v4332 = vpop.f32.mrb[0].mxu0
  %v4333 = vadd.f32 %v4220, %v4332
  %v4334 = vpop.f32.mrb[0].mxu0
  %v4335 = vadd.f32 %v4222, %v4334
  %v4336 = vpop.f32.mrb[0].mxu0
  %v4337 = vadd.f32 %v4224, %v4336
  %4338 = vmatprep.mubr.bf16.mxu0 %v662
  %4339 = vmatmul.mubr.bf16.gmra.mrb[0].mxu0 %v661
  %v4340 = vpop.f32.mrb[0].mxu0
  %v4341 = vadd.f32 %v4228, %v4340
  %v4342 = vpop.f32.mrb[0].mxu0
  %v4343 = vadd.f32 %v4230, %v4342
  %v4344 = vpop.f32.mrb[0].mxu0
  %v4345 = vadd.f32 %v4232, %v4344
  %v4346 = vpop.f32.mrb[0].mxu0
  %v4347 = vadd.f32 %v4234, %v4346
  %4348 = vmatprep.mubr.bf16.mxu0 %v666
  %4349 = vmatmul.mubr.bf16.gmra.mrb[0].mxu0 %v665
  %v4350 = vpop.f32.mrb[0].mxu0
  %v4351 = vadd.f32 %v4238, %v4350
  %v4352 = vpop.f32.mrb[0].mxu0
  %v4353 = vadd.f32 %v4240, %v4352
  %v4354 = vpop.f32.mrb[0].mxu0
  %v4355 = vadd.f32 %v4242, %v4354
  %v4356 = vpop.f32.mrb[0].mxu0
  %v4357 = vadd.f32 %v4244, %v4356
  %4358 = vmatprep.mubr.bf16.mxu0 %v670
  %4359 = vmatmul.mubr.bf16.gmra.mrb[0].mxu0 %v669
  %v4360 = vpop.f32.mrb[0].mxu0
  %v4361 = vadd.f32 %v4248, %v4360
  %v4362 = vpop.f32.mrb[0].mxu0
  %v4363 = vadd.f32 %v4250, %v4362
  %v4364 = vpop.f32.mrb[0].mxu0
  %v4365 = vadd.f32 %v4252, %v4364
  %v4366 = vpop.f32.mrb[0].mxu0
  %v4367 = vadd.f32 %v4254, %v4366
  %4368 = vmatprep.mubr.bf16.mxu0 %v674
  %4369 = vmatmul.mubr.bf16.gmra.mrb[0].mxu0 %v673
  %v4370 = vpop.f32.mrb[0].mxu0
  %v4371 = vadd.f32 %v4258, %v4370
  %v4372 = vpop.f32.mrb[0].mxu0
  %v4373 = vadd.f32 %v4260, %v4372
  %v4374 = vpop.f32.mrb[0].mxu0
  %v4375 = vadd.f32 %v4262, %v4374
  %v4376 = vpop.f32.mrb[0].mxu0
  %v4377 = vadd.f32 %v4264, %v4376
  %4378 = vmatprep.mubr.bf16.mxu0 %v678
  %4379 = vmatmul.mubr.bf16.gmra.mrb[0].mxu0 %v677
  %v4380 = vpop.f32.mrb[0].mxu0
  %v4381 = vadd.f32 %v4268, %v4380
  %v4382 = vpop.f32.mrb[0].mxu0
  %v4383 = vadd.f32 %v4270, %v4382
  %v4384 = vpop.f32.mrb[0].mxu0
  %v4385 = vadd.f32 %v4272, %v4384
  %v4386 = vpop.f32.mrb[0].mxu0
  %v4387 = vadd.f32 %v4274, %v4386
  %4388 = vmatprep.mubr.bf16.mxu0 %v682
  %4389 = vmatmul.mubr.bf16.gmra.mrb[0].mxu0 %v681
  %v4390 = vpop.f32.mrb[0].mxu0
  %v4391 = vadd.f32 %v4278, %v4390
  %v4392 = vpop.f32.mrb[0].mxu0
  %v4393 = vadd.f32 %v4280, %v4392
  %v4394 = vpop.f32.mrb[0].mxu0
  %v4395 = vadd.f32 %v4282, %v4394
  %v4396 = vpop.f32.mrb[0].mxu0
  %v4397 = vadd.f32 %v4284, %v4396
  %4398 = vmatprep.mubr.bf16.mxu0 %v686
  %4399 = vmatmul.mubr.bf16.gmra.mrb[0].mxu0 %v685
  %v4400 = vpop.f32.mrb[0].mxu0
  %v4401 = vadd.f32 %v4288, %v4400
  %v4402 = vpop.f32.mrb[0].mxu0
  %v4403 = vadd.f32 %v4290, %v4402
  %v4404 = vpop.f32.mrb[0].mxu0
  %v4405 = vadd.f32 %v4292, %v4404
  %v4406 = vpop.f32.mrb[0].mxu0
  %v4407 = vadd.f32 %v4294, %v4406
  %4408 = vdwg.mxu0
  %4409 = vmatprep.subr.bf16.mxu0 %v2266
  %4410 = vmatpush1.bf16.msra.mxu0 %v2265
  %4411 = vmatprep.subr.bf16.mxu0 %v2282
  %4412 = vmatpush1.bf16.msra.mxu0 %v2281
  %4413 = vmatprep.subr.bf16.mxu0 %v2298
  %4414 = vmatpush1.bf16.msra.mxu0 %v2297
  %4415 = vmatprep.subr.bf16.mxu0 %v2314
  %4416 = vmatpush1.bf16.msra.mxu0 %v2313
  %4417 = vmatprep.subr.bf16.mxu0 %v2330
  %4418 = vmatpush1.bf16.msra.mxu0 %v2329
  %4419 = vmatprep.subr.bf16.mxu0 %v2346
  %4420 = vmatpush1.bf16.msra.mxu0 %v2345
  %4421 = vmatprep.subr.bf16.mxu0 %v2362
  %4422 = vmatpush1.bf16.msra.mxu0 %v2361
  %4423 = vmatprep.subr.bf16.mxu0 %v2378
  %4424 = vmatpush1.bf16.msra.mxu0 %v2377
  %4425 = vmatprep.subr.bf16.mxu0 %v2394
  %4426 = vmatpush1.bf16.msra.mxu0 %v2393
  %4427 = vmatprep.subr.bf16.mxu0 %v2410
  %4428 = vmatpush1.bf16.msra.mxu0 %v2409
  %4429 = vmatprep.subr.bf16.mxu0 %v2426
  %4430 = vmatpush1.bf16.msra.mxu0 %v2425
  %4431 = vmatprep.subr.bf16.mxu0 %v2442
  %4432 = vmatpush1.bf16.msra.mxu0 %v2441
  %4433 = vmatprep.subr.bf16.mxu0 %v2458
  %4434 = vmatpush1.bf16.msra.mxu0 %v2457
  %4435 = vmatprep.subr.bf16.mxu0 %v2474
  %4436 = vmatpush1.bf16.msra.mxu0 %v2473
  %4437 = vmatprep.subr.bf16.mxu0 %v2490
  %4438 = vmatpush1.bf16.msra.mxu0 %v2489
  %4439 = vmatprep.subr.bf16.mxu0 %v2506
  %4440 = vmatpush1.bf16.msra.mxu0 %v2505
  %4441 = vmatprep.mubr.bf16.mxu0 %v656
  %4442 = vmatmul.mubr.bf16.gmra.mrb[0].mxu0 %v655
  %v4443 = vpop.f32.mrb[0].mxu0
  %v4444 = vadd.f32 0.0, %v4443
  %v4445 = vpop.f32.mrb[0].mxu0
  %v4446 = vadd.f32 0.0, %v4445
  %v4447 = vpop.f32.mrb[0].mxu0
  %v4448 = vadd.f32 0.0, %v4447
  %v4449 = vpop.f32.mrb[0].mxu0
  %v4450 = vadd.f32 0.0, %v4449
  %4451 = vmatprep.mubr.bf16.mxu0 %v660
  %4452 = vmatmul.mubr.bf16.gmra.mrb[0].mxu0 %v659
  %v4453 = vpop.f32.mrb[0].mxu0
  %v4454 = vadd.f32 0.0, %v4453
  %v4455 = vpop.f32.mrb[0].mxu0
  %v4456 = vadd.f32 0.0, %v4455
  %v4457 = vpop.f32.mrb[0].mxu0
  %v4458 = vadd.f32 0.0, %v4457
  %v4459 = vpop.f32.mrb[0].mxu0
  %v4460 = vadd.f32 0.0, %v4459
  %4461 = vmatprep.mubr.bf16.mxu0 %v664
  %4462 = vmatmul.mubr.bf16.gmra.mrb[0].mxu0 %v663
  %v4463 = vpop.f32.mrb[0].mxu0
  %v4464 = vadd.f32 0.0, %v4463
  %v4465 = vpop.f32.mrb[0].mxu0
  %v4466 = vadd.f32 0.0, %v4465
  %v4467 = vpop.f32.mrb[0].mxu0
  %v4468 = vadd.f32 0.0, %v4467
  %v4469 = vpop.f32.mrb[0].mxu0
  %v4470 = vadd.f32 0.0, %v4469
  %4471 = vmatprep.mubr.bf16.mxu0 %v668
  %4472 = vmatmul.mubr.bf16.gmra.mrb[0].mxu0 %v667
  %v4473 = vpop.f32.mrb[0].mxu0
  %v4474 = vadd.f32 0.0, %v4473
  %v4475 = vpop.f32.mrb[0].mxu0
  %v4476 = vadd.f32 0.0, %v4475
  %v4477 = vpop.f32.mrb[0].mxu0
  %v4478 = vadd.f32 0.0, %v4477
  %v4479 = vpop.f32.mrb[0].mxu0
  %v4480 = vadd.f32 0.0, %v4479
  %4481 = vmatprep.mubr.bf16.mxu0 %v672
  %4482 = vmatmul.mubr.bf16.gmra.mrb[0].mxu0 %v671
  %v4483 = vpop.f32.mrb[0].mxu0
  %v4484 = vadd.f32 0.0, %v4483
  %v4485 = vpop.f32.mrb[0].mxu0
  %v4486 = vadd.f32 0.0, %v4485
  %v4487 = vpop.f32.mrb[0].mxu0
  %v4488 = vadd.f32 0.0, %v4487
  %v4489 = vpop.f32.mrb[0].mxu0
  %v4490 = vadd.f32 0.0, %v4489
  %4491 = vmatprep.mubr.bf16.mxu0 %v676
  %4492 = vmatmul.mubr.bf16.gmra.mrb[0].mxu0 %v675
  %v4493 = vpop.f32.mrb[0].mxu0
  %v4494 = vadd.f32 0.0, %v4493
  %v4495 = vpop.f32.mrb[0].mxu0
  %v4496 = vadd.f32 0.0, %v4495
  %v4497 = vpop.f32.mrb[0].mxu0
  %v4498 = vadd.f32 0.0, %v4497
  %v4499 = vpop.f32.mrb[0].mxu0
  %v4500 = vadd.f32 0.0, %v4499
  %4501 = vmatprep.mubr.bf16.mxu0 %v680
  %4502 = vmatmul.mubr.bf16.gmra.mrb[0].mxu0 %v679
  %v4503 = vpop.f32.mrb[0].mxu0
  %v4504 = vadd.f32 0.0, %v4503
  %v4505 = vpop.f32.mrb[0].mxu0
  %v4506 = vadd.f32 0.0, %v4505
  %v4507 = vpop.f32.mrb[0].mxu0
  %v4508 = vadd.f32 0.0, %v4507
  %v4509 = vpop.f32.mrb[0].mxu0
  %v4510 = vadd.f32 0.0, %v4509
  %4511 = vmatprep.mubr.bf16.mxu0 %v684
  %4512 = vmatmul.mubr.bf16.gmra.mrb[0].mxu0 %v683
  %v4513 = vpop.f32.mrb[0].mxu0
  %v4514 = vadd.f32 0.0, %v4513
  %v4515 = vpop.f32.mrb[0].mxu0
  %v4516 = vadd.f32 0.0, %v4515
  %v4517 = vpop.f32.mrb[0].mxu0
  %v4518 = vadd.f32 0.0, %v4517
  %v4519 = vpop.f32.mrb[0].mxu0
  %v4520 = vadd.f32 0.0, %v4519
  %4521 = vdwg.mxu0
  %4522 = vmatprep.subr.bf16.mxu0 %v2522
  %4523 = vmatpush1.bf16.msra.mxu0 %v2521
  %4524 = vmatprep.subr.bf16.mxu0 %v2538
  %4525 = vmatpush1.bf16.msra.mxu0 %v2537
  %4526 = vmatprep.subr.bf16.mxu0 %v2554
  %4527 = vmatpush1.bf16.msra.mxu0 %v2553
  %4528 = vmatprep.subr.bf16.mxu0 %v2570
  %4529 = vmatpush1.bf16.msra.mxu0 %v2569
  %4530 = vmatprep.subr.bf16.mxu0 %v2586
  %4531 = vmatpush1.bf16.msra.mxu0 %v2585
  %4532 = vmatprep.subr.bf16.mxu0 %v2602
  %4533 = vmatpush1.bf16.msra.mxu0 %v2601
  %4534 = vmatprep.subr.bf16.mxu0 %v2618
  %4535 = vmatpush1.bf16.msra.mxu0 %v2617
  %4536 = vmatprep.subr.bf16.mxu0 %v2634
  %4537 = vmatpush1.bf16.msra.mxu0 %v2633
  %4538 = vmatprep.subr.bf16.mxu0 %v2650
  %4539 = vmatpush1.bf16.msra.mxu0 %v2649
  %4540 = vmatprep.subr.bf16.mxu0 %v2666
  %4541 = vmatpush1.bf16.msra.mxu0 %v2665
  %4542 = vmatprep.subr.bf16.mxu0 %v2682
  %4543 = vmatpush1.bf16.msra.mxu0 %v2681
  %4544 = vmatprep.subr.bf16.mxu0 %v2698
  %4545 = vmatpush1.bf16.msra.mxu0 %v2697
  %4546 = vmatprep.subr.bf16.mxu0 %v2714
  %4547 = vmatpush1.bf16.msra.mxu0 %v2713
  %4548 = vmatprep.subr.bf16.mxu0 %v2730
  %4549 = vmatpush1.bf16.msra.mxu0 %v2729
  %4550 = vmatprep.subr.bf16.mxu0 %v2746
  %4551 = vmatpush1.bf16.msra.mxu0 %v2745
  %4552 = vmatprep.subr.bf16.mxu0 %v2762
  %4553 = vmatpush1.bf16.msra.mxu0 %v2761
  %4554 = vmatprep.mubr.bf16.mxu0 %v658
  %4555 = vmatmul.mubr.bf16.gmra.mrb[0].mxu0 %v657
  %v4556 = vpop.f32.mrb[0].mxu0
  %v4557 = vadd.f32 %v4444, %v4556
  %v4558 = vpop.f32.mrb[0].mxu0
  %v4559 = vadd.f32 %v4446, %v4558
  %v4560 = vpop.f32.mrb[0].mxu0
  %v4561 = vadd.f32 %v4448, %v4560
  %v4562 = vpop.f32.mrb[0].mxu0
  %v4563 = vadd.f32 %v4450, %v4562
  %4564 = vmatprep.mubr.bf16.mxu0 %v662
  %4565 = vmatmul.mubr.bf16.gmra.mrb[0].mxu0 %v661
  %v4566 = vpop.f32.mrb[0].mxu0
  %v4567 = vadd.f32 %v4454, %v4566
  %v4568 = vpop.f32.mrb[0].mxu0
  %v4569 = vadd.f32 %v4456, %v4568
  %v4570 = vpop.f32.mrb[0].mxu0
  %v4571 = vadd.f32 %v4458, %v4570
  %v4572 = vpop.f32.mrb[0].mxu0
  %v4573 = vadd.f32 %v4460, %v4572
  %4574 = vmatprep.mubr.bf16.mxu0 %v666
  %4575 = vmatmul.mubr.bf16.gmra.mrb[0].mxu0 %v665
  %v4576 = vpop.f32.mrb[0].mxu0
  %v4577 = vadd.f32 %v4464, %v4576
  %v4578 = vpop.f32.mrb[0].mxu0
  %v4579 = vadd.f32 %v4466, %v4578
  %v4580 = vpop.f32.mrb[0].mxu0
  %v4581 = vadd.f32 %v4468, %v4580
  %v4582 = vpop.f32.mrb[0].mxu0
  %v4583 = vadd.f32 %v4470, %v4582
  %4584 = vmatprep.mubr.bf16.mxu0 %v670
  %4585 = vmatmul.mubr.bf16.gmra.mrb[0].mxu0 %v669
  %v4586 = vpop.f32.mrb[0].mxu0
  %v4587 = vadd.f32 %v4474, %v4586
  %v4588 = vpop.f32.mrb[0].mxu0
  %v4589 = vadd.f32 %v4476, %v4588
  %v4590 = vpop.f32.mrb[0].mxu0
  %v4591 = vadd.f32 %v4478, %v4590
  %v4592 = vpop.f32.mrb[0].mxu0
  %v4593 = vadd.f32 %v4480, %v4592
  %4594 = vmatprep.mubr.bf16.mxu0 %v674
  %4595 = vmatmul.mubr.bf16.gmra.mrb[0].mxu0 %v673
  %v4596 = vpop.f32.mrb[0].mxu0
  %v4597 = vadd.f32 %v4484, %v4596
  %v4598 = vpop.f32.mrb[0].mxu0
  %v4599 = vadd.f32 %v4486, %v4598
  %v4600 = vpop.f32.mrb[0].mxu0
  %v4601 = vadd.f32 %v4488, %v4600
  %v4602 = vpop.f32.mrb[0].mxu0
  %v4603 = vadd.f32 %v4490, %v4602
  %4604 = vmatprep.mubr.bf16.mxu0 %v678
  %4605 = vmatmul.mubr.bf16.gmra.mrb[0].mxu0 %v677
  %v4606 = vpop.f32.mrb[0].mxu0
  %v4607 = vadd.f32 %v4494, %v4606
  %v4608 = vpop.f32.mrb[0].mxu0
  %v4609 = vadd.f32 %v4496, %v4608
  %v4610 = vpop.f32.mrb[0].mxu0
  %v4611 = vadd.f32 %v4498, %v4610
  %v4612 = vpop.f32.mrb[0].mxu0
  %v4613 = vadd.f32 %v4500, %v4612
  %4614 = vmatprep.mubr.bf16.mxu0 %v682
  %4615 = vmatmul.mubr.bf16.gmra.mrb[0].mxu0 %v681
  %v4616 = vpop.f32.mrb[0].mxu0
  %v4617 = vadd.f32 %v4504, %v4616
  %v4618 = vpop.f32.mrb[0].mxu0
  %v4619 = vadd.f32 %v4506, %v4618
  %v4620 = vpop.f32.mrb[0].mxu0
  %v4621 = vadd.f32 %v4508, %v4620
  %v4622 = vpop.f32.mrb[0].mxu0
  %v4623 = vadd.f32 %v4510, %v4622
  %4624 = vmatprep.mubr.bf16.mxu0 %v686
  %4625 = vmatmul.mubr.bf16.gmra.mrb[0].mxu0 %v685
  %v4626 = vpop.f32.mrb[0].mxu0
  %v4627 = vadd.f32 %v4514, %v4626
  %v4628 = vpop.f32.mrb[0].mxu0
  %v4629 = vadd.f32 %v4516, %v4628
  %v4630 = vpop.f32.mrb[0].mxu0
  %v4631 = vadd.f32 %v4518, %v4630
  %v4632 = vpop.f32.mrb[0].mxu0
  %v4633 = vadd.f32 %v4520, %v4632
  %4634 = vdwg.mxu0
  %4635 = vmatprep.subr.bf16.mxu0 %v2268
  %4636 = vmatpush1.bf16.msra.mxu0 %v2267
  %4637 = vmatprep.subr.bf16.mxu0 %v2284
  %4638 = vmatpush1.bf16.msra.mxu0 %v2283
  %4639 = vmatprep.subr.bf16.mxu0 %v2300
  %4640 = vmatpush1.bf16.msra.mxu0 %v2299
  %4641 = vmatprep.subr.bf16.mxu0 %v2316
  %4642 = vmatpush1.bf16.msra.mxu0 %v2315
  %4643 = vmatprep.subr.bf16.mxu0 %v2332
  %4644 = vmatpush1.bf16.msra.mxu0 %v2331
  %4645 = vmatprep.subr.bf16.mxu0 %v2348
  %4646 = vmatpush1.bf16.msra.mxu0 %v2347
  %4647 = vmatprep.subr.bf16.mxu0 %v2364
  %4648 = vmatpush1.bf16.msra.mxu0 %v2363
  %4649 = vmatprep.subr.bf16.mxu0 %v2380
  %4650 = vmatpush1.bf16.msra.mxu0 %v2379
  %4651 = vmatprep.subr.bf16.mxu0 %v2396
  %4652 = vmatpush1.bf16.msra.mxu0 %v2395
  %4653 = vmatprep.subr.bf16.mxu0 %v2412
  %4654 = vmatpush1.bf16.msra.mxu0 %v2411
  %4655 = vmatprep.subr.bf16.mxu0 %v2428
  %4656 = vmatpush1.bf16.msra.mxu0 %v2427
  %4657 = vmatprep.subr.bf16.mxu0 %v2444
  %4658 = vmatpush1.bf16.msra.mxu0 %v2443
  %4659 = vmatprep.subr.bf16.mxu0 %v2460
  %4660 = vmatpush1.bf16.msra.mxu0 %v2459
  %4661 = vmatprep.subr.bf16.mxu0 %v2476
  %4662 = vmatpush1.bf16.msra.mxu0 %v2475
  %4663 = vmatprep.subr.bf16.mxu0 %v2492
  %4664 = vmatpush1.bf16.msra.mxu0 %v2491
  %4665 = vmatprep.subr.bf16.mxu0 %v2508
  %4666 = vmatpush1.bf16.msra.mxu0 %v2507
  %4667 = vmatprep.mubr.bf16.mxu0 %v656
  %4668 = vmatmul.mubr.bf16.gmra.mrb[0].mxu0 %v655
  %v4669 = vpop.f32.mrb[0].mxu0
  %v4670 = vadd.f32 0.0, %v4669
  %v4671 = vpop.f32.mrb[0].mxu0
  %v4672 = vadd.f32 0.0, %v4671
  %v4673 = vpop.f32.mrb[0].mxu0
  %v4674 = vadd.f32 0.0, %v4673
  %v4675 = vpop.f32.mrb[0].mxu0
  %v4676 = vadd.f32 0.0, %v4675
  %4677 = vmatprep.mubr.bf16.mxu0 %v660
  %4678 = vmatmul.mubr.bf16.gmra.mrb[0].mxu0 %v659
  %v4679 = vpop.f32.mrb[0].mxu0
  %v4680 = vadd.f32 0.0, %v4679
  %v4681 = vpop.f32.mrb[0].mxu0
  %v4682 = vadd.f32 0.0, %v4681
  %v4683 = vpop.f32.mrb[0].mxu0
  %v4684 = vadd.f32 0.0, %v4683
  %v4685 = vpop.f32.mrb[0].mxu0
  %v4686 = vadd.f32 0.0, %v4685
  %4687 = vmatprep.mubr.bf16.mxu0 %v664
  %4688 = vmatmul.mubr.bf16.gmra.mrb[0].mxu0 %v663
  %v4689 = vpop.f32.mrb[0].mxu0
  %v4690 = vadd.f32 0.0, %v4689
  %v4691 = vpop.f32.mrb[0].mxu0
  %v4692 = vadd.f32 0.0, %v4691
  %v4693 = vpop.f32.mrb[0].mxu0
  %v4694 = vadd.f32 0.0, %v4693
  %v4695 = vpop.f32.mrb[0].mxu0
  %v4696 = vadd.f32 0.0, %v4695
  %4697 = vmatprep.mubr.bf16.mxu0 %v668
  %4698 = vmatmul.mubr.bf16.gmra.mrb[0].mxu0 %v667
  %v4699 = vpop.f32.mrb[0].mxu0
  %v4700 = vadd.f32 0.0, %v4699
  %v4701 = vpop.f32.mrb[0].mxu0
  %v4702 = vadd.f32 0.0, %v4701
  %v4703 = vpop.f32.mrb[0].mxu0
  %v4704 = vadd.f32 0.0, %v4703
  %v4705 = vpop.f32.mrb[0].mxu0
  %v4706 = vadd.f32 0.0, %v4705
  %4707 = vmatprep.mubr.bf16.mxu0 %v672
  %4708 = vmatmul.mubr.bf16.gmra.mrb[0].mxu0 %v671
  %v4709 = vpop.f32.mrb[0].mxu0
  %v4710 = vadd.f32 0.0, %v4709
  %v4711 = vpop.f32.mrb[0].mxu0
  %v4712 = vadd.f32 0.0, %v4711
  %v4713 = vpop.f32.mrb[0].mxu0
  %v4714 = vadd.f32 0.0, %v4713
  %v4715 = vpop.f32.mrb[0].mxu0
  %v4716 = vadd.f32 0.0, %v4715
  %4717 = vmatprep.mubr.bf16.mxu0 %v676
  %4718 = vmatmul.mubr.bf16.gmra.mrb[0].mxu0 %v675
  %v4719 = vpop.f32.mrb[0].mxu0
  %v4720 = vadd.f32 0.0, %v4719
  %v4721 = vpop.f32.mrb[0].mxu0
  %v4722 = vadd.f32 0.0, %v4721
  %v4723 = vpop.f32.mrb[0].mxu0
  %v4724 = vadd.f32 0.0, %v4723
  %v4725 = vpop.f32.mrb[0].mxu0
  %v4726 = vadd.f32 0.0, %v4725
  %4727 = vmatprep.mubr.bf16.mxu0 %v680
  %4728 = vmatmul.mubr.bf16.gmra.mrb[0].mxu0 %v679
  %v4729 = vpop.f32.mrb[0].mxu0
  %v4730 = vadd.f32 0.0, %v4729
  %v4731 = vpop.f32.mrb[0].mxu0
  %v4732 = vadd.f32 0.0, %v4731
  %v4733 = vpop.f32.mrb[0].mxu0
  %v4734 = vadd.f32 0.0, %v4733
  %v4735 = vpop.f32.mrb[0].mxu0
  %v4736 = vadd.f32 0.0, %v4735
  %4737 = vmatprep.mubr.bf16.mxu0 %v684
  %4738 = vmatmul.mubr.bf16.gmra.mrb[0].mxu0 %v683
  %v4739 = vpop.f32.mrb[0].mxu0
  %v4740 = vadd.f32 0.0, %v4739
  %v4741 = vpop.f32.mrb[0].mxu0
  %v4742 = vadd.f32 0.0, %v4741
  %v4743 = vpop.f32.mrb[0].mxu0
  %v4744 = vadd.f32 0.0, %v4743
  %v4745 = vpop.f32.mrb[0].mxu0
  %v4746 = vadd.f32 0.0, %v4745
  %4747 = vdwg.mxu0
  %4748 = vmatprep.subr.bf16.mxu0 %v2524
  %4749 = vmatpush1.bf16.msra.mxu0 %v2523
  %4750 = vmatprep.subr.bf16.mxu0 %v2540
  %4751 = vmatpush1.bf16.msra.mxu0 %v2539
  %4752 = vmatprep.subr.bf16.mxu0 %v2556
  %4753 = vmatpush1.bf16.msra.mxu0 %v2555
  %4754 = vmatprep.subr.bf16.mxu0 %v2572
  %4755 = vmatpush1.bf16.msra.mxu0 %v2571
  %4756 = vmatprep.subr.bf16.mxu0 %v2588
  %4757 = vmatpush1.bf16.msra.mxu0 %v2587
  %4758 = vmatprep.subr.bf16.mxu0 %v2604
  %4759 = vmatpush1.bf16.msra.mxu0 %v2603
  %4760 = vmatprep.subr.bf16.mxu0 %v2620
  %4761 = vmatpush1.bf16.msra.mxu0 %v2619
  %4762 = vmatprep.subr.bf16.mxu0 %v2636
  %4763 = vmatpush1.bf16.msra.mxu0 %v2635
  %4764 = vmatprep.subr.bf16.mxu0 %v2652
  %4765 = vmatpush1.bf16.msra.mxu0 %v2651
  %4766 = vmatprep.subr.bf16.mxu0 %v2668
  %4767 = vmatpush1.bf16.msra.mxu0 %v2667
  %4768 = vmatprep.subr.bf16.mxu0 %v2684
  %4769 = vmatpush1.bf16.msra.mxu0 %v2683
  %4770 = vmatprep.subr.bf16.mxu0 %v2700
  %4771 = vmatpush1.bf16.msra.mxu0 %v2699
  %4772 = vmatprep.subr.bf16.mxu0 %v2716
  %4773 = vmatpush1.bf16.msra.mxu0 %v2715
  %4774 = vmatprep.subr.bf16.mxu0 %v2732
  %4775 = vmatpush1.bf16.msra.mxu0 %v2731
  %4776 = vmatprep.subr.bf16.mxu0 %v2748
  %4777 = vmatpush1.bf16.msra.mxu0 %v2747
  %4778 = vmatprep.subr.bf16.mxu0 %v2764
  %4779 = vmatpush1.bf16.msra.mxu0 %v2763
  %4780 = vmatprep.mubr.bf16.mxu0 %v658
  %4781 = vmatmul.mubr.bf16.gmra.mrb[0].mxu0 %v657
  %v4782 = vpop.f32.mrb[0].mxu0
  %v4783 = vadd.f32 %v4670, %v4782
  %v4784 = vpop.f32.mrb[0].mxu0
  %v4785 = vadd.f32 %v4672, %v4784
  %v4786 = vpop.f32.mrb[0].mxu0
  %v4787 = vadd.f32 %v4674, %v4786
  %v4788 = vpop.f32.mrb[0].mxu0
  %v4789 = vadd.f32 %v4676, %v4788
  %4790 = vmatprep.mubr.bf16.mxu0 %v662
  %4791 = vmatmul.mubr.bf16.gmra.mrb[0].mxu0 %v661
  %v4792 = vpop.f32.mrb[0].mxu0
  %v4793 = vadd.f32 %v4680, %v4792
  %v4794 = vpop.f32.mrb[0].mxu0
  %v4795 = vadd.f32 %v4682, %v4794
  %v4796 = vpop.f32.mrb[0].mxu0
  %v4797 = vadd.f32 %v4684, %v4796
  %v4798 = vpop.f32.mrb[0].mxu0
  %v4799 = vadd.f32 %v4686, %v4798
  %4800 = vmatprep.mubr.bf16.mxu0 %v666
  %4801 = vmatmul.mubr.bf16.gmra.mrb[0].mxu0 %v665
  %v4802 = vpop.f32.mrb[0].mxu0
  %v4803 = vadd.f32 %v4690, %v4802
  %v4804 = vpop.f32.mrb[0].mxu0
  %v4805 = vadd.f32 %v4692, %v4804
  %v4806 = vpop.f32.mrb[0].mxu0
  %v4807 = vadd.f32 %v4694, %v4806
  %v4808 = vpop.f32.mrb[0].mxu0
  %v4809 = vadd.f32 %v4696, %v4808
  %4810 = vmatprep.mubr.bf16.mxu0 %v670
  %4811 = vmatmul.mubr.bf16.gmra.mrb[0].mxu0 %v669
  %v4812 = vpop.f32.mrb[0].mxu0
  %v4813 = vadd.f32 %v4700, %v4812
  %v4814 = vpop.f32.mrb[0].mxu0
  %v4815 = vadd.f32 %v4702, %v4814
  %v4816 = vpop.f32.mrb[0].mxu0
  %v4817 = vadd.f32 %v4704, %v4816
  %v4818 = vpop.f32.mrb[0].mxu0
  %v4819 = vadd.f32 %v4706, %v4818
  %4820 = vmatprep.mubr.bf16.mxu0 %v674
  %4821 = vmatmul.mubr.bf16.gmra.mrb[0].mxu0 %v673
  %v4822 = vpop.f32.mrb[0].mxu0
  %v4823 = vadd.f32 %v4710, %v4822
  %v4824 = vpop.f32.mrb[0].mxu0
  %v4825 = vadd.f32 %v4712, %v4824
  %v4826 = vpop.f32.mrb[0].mxu0
  %v4827 = vadd.f32 %v4714, %v4826
  %v4828 = vpop.f32.mrb[0].mxu0
  %v4829 = vadd.f32 %v4716, %v4828
  %4830 = vmatprep.mubr.bf16.mxu0 %v678
  %4831 = vmatmul.mubr.bf16.gmra.mrb[0].mxu0 %v677
  %v4832 = vpop.f32.mrb[0].mxu0
  %v4833 = vadd.f32 %v4720, %v4832
  %v4834 = vpop.f32.mrb[0].mxu0
  %v4835 = vadd.f32 %v4722, %v4834
  %v4836 = vpop.f32.mrb[0].mxu0
  %v4837 = vadd.f32 %v4724, %v4836
  %v4838 = vpop.f32.mrb[0].mxu0
  %v4839 = vadd.f32 %v4726, %v4838
  %4840 = vmatprep.mubr.bf16.mxu0 %v682
  %4841 = vmatmul.mubr.bf16.gmra.mrb[0].mxu0 %v681
  %v4842 = vpop.f32.mrb[0].mxu0
  %v4843 = vadd.f32 %v4730, %v4842
  %v4844 = vpop.f32.mrb[0].mxu0
  %v4845 = vadd.f32 %v4732, %v4844
  %v4846 = vpop.f32.mrb[0].mxu0
  %v4847 = vadd.f32 %v4734, %v4846
  %v4848 = vpop.f32.mrb[0].mxu0
  %v4849 = vadd.f32 %v4736, %v4848
  %4850 = vmatprep.mubr.bf16.mxu0 %v686
  %4851 = vmatmul.mubr.bf16.gmra.mrb[0].mxu0 %v685
  %v4852 = vpop.f32.mrb[0].mxu0
  %v4853 = vadd.f32 %v4740, %v4852
  %v4854 = vpop.f32.mrb[0].mxu0
  %v4855 = vadd.f32 %v4742, %v4854
  %v4856 = vpop.f32.mrb[0].mxu0
  %v4857 = vadd.f32 %v4744, %v4856
  %v4858 = vpop.f32.mrb[0].mxu0
  %v4859 = vadd.f32 %v4746, %v4858
  %4860 = vdwg.mxu0
  %4861 = vmatprep.subr.bf16.mxu0 %v2270
  %4862 = vmatpush1.bf16.msra.mxu0 %v2269
  %4863 = vmatprep.subr.bf16.mxu0 %v2286
  %4864 = vmatpush1.bf16.msra.mxu0 %v2285
  %4865 = vmatprep.subr.bf16.mxu0 %v2302
  %4866 = vmatpush1.bf16.msra.mxu0 %v2301
  %4867 = vmatprep.subr.bf16.mxu0 %v2318
  %4868 = vmatpush1.bf16.msra.mxu0 %v2317
  %4869 = vmatprep.subr.bf16.mxu0 %v2334
  %4870 = vmatpush1.bf16.msra.mxu0 %v2333
  %4871 = vmatprep.subr.bf16.mxu0 %v2350
  %4872 = vmatpush1.bf16.msra.mxu0 %v2349
  %4873 = vmatprep.subr.bf16.mxu0 %v2366
  %4874 = vmatpush1.bf16.msra.mxu0 %v2365
  %4875 = vmatprep.subr.bf16.mxu0 %v2382
  %4876 = vmatpush1.bf16.msra.mxu0 %v2381
  %4877 = vmatprep.subr.bf16.mxu0 %v2398
  %4878 = vmatpush1.bf16.msra.mxu0 %v2397
  %4879 = vmatprep.subr.bf16.mxu0 %v2414
  %4880 = vmatpush1.bf16.msra.mxu0 %v2413
  %4881 = vmatprep.subr.bf16.mxu0 %v2430
  %4882 = vmatpush1.bf16.msra.mxu0 %v2429
  %4883 = vmatprep.subr.bf16.mxu0 %v2446
  %4884 = vmatpush1.bf16.msra.mxu0 %v2445
  %4885 = vmatprep.subr.bf16.mxu0 %v2462
  %4886 = vmatpush1.bf16.msra.mxu0 %v2461
  %4887 = vmatprep.subr.bf16.mxu0 %v2478
  %4888 = vmatpush1.bf16.msra.mxu0 %v2477
  %4889 = vmatprep.subr.bf16.mxu0 %v2494
  %4890 = vmatpush1.bf16.msra.mxu0 %v2493
  %4891 = vmatprep.subr.bf16.mxu0 %v2510
  %4892 = vmatpush1.bf16.msra.mxu0 %v2509
  %4893 = vmatprep.mubr.bf16.mxu0 %v656
  %4894 = vmatmul.mubr.bf16.gmra.mrb[0].mxu0 %v655
  %v4895 = vpop.f32.mrb[0].mxu0
  %v4896 = vadd.f32 0.0, %v4895
  %v4897 = vpop.f32.mrb[0].mxu0
  %v4898 = vadd.f32 0.0, %v4897
  %v4899 = vpop.f32.mrb[0].mxu0
  %v4900 = vadd.f32 0.0, %v4899
  %v4901 = vpop.f32.mrb[0].mxu0
  %v4902 = vadd.f32 0.0, %v4901
  %4903 = vmatprep.mubr.bf16.mxu0 %v660
  %4904 = vmatmul.mubr.bf16.gmra.mrb[0].mxu0 %v659
  %v4905 = vpop.f32.mrb[0].mxu0
  %v4906 = vadd.f32 0.0, %v4905
  %v4907 = vpop.f32.mrb[0].mxu0
  %v4908 = vadd.f32 0.0, %v4907
  %v4909 = vpop.f32.mrb[0].mxu0
  %v4910 = vadd.f32 0.0, %v4909
  %v4911 = vpop.f32.mrb[0].mxu0
  %v4912 = vadd.f32 0.0, %v4911
  %4913 = vmatprep.mubr.bf16.mxu0 %v664
  %4914 = vmatmul.mubr.bf16.gmra.mrb[0].mxu0 %v663
  %v4915 = vpop.f32.mrb[0].mxu0
  %v4916 = vadd.f32 0.0, %v4915
  %v4917 = vpop.f32.mrb[0].mxu0
  %v4918 = vadd.f32 0.0, %v4917
  %v4919 = vpop.f32.mrb[0].mxu0
  %v4920 = vadd.f32 0.0, %v4919
  %v4921 = vpop.f32.mrb[0].mxu0
  %v4922 = vadd.f32 0.0, %v4921
  %4923 = vmatprep.mubr.bf16.mxu0 %v668
  %4924 = vmatmul.mubr.bf16.gmra.mrb[0].mxu0 %v667
  %v4925 = vpop.f32.mrb[0].mxu0
  %v4926 = vadd.f32 0.0, %v4925
  %v4927 = vpop.f32.mrb[0].mxu0
  %v4928 = vadd.f32 0.0, %v4927
  %v4929 = vpop.f32.mrb[0].mxu0
  %v4930 = vadd.f32 0.0, %v4929
  %v4931 = vpop.f32.mrb[0].mxu0
  %v4932 = vadd.f32 0.0, %v4931
  %4933 = vmatprep.mubr.bf16.mxu0 %v672
  %4934 = vmatmul.mubr.bf16.gmra.mrb[0].mxu0 %v671
  %v4935 = vpop.f32.mrb[0].mxu0
  %v4936 = vadd.f32 0.0, %v4935
  %v4937 = vpop.f32.mrb[0].mxu0
  %v4938 = vadd.f32 0.0, %v4937
  %v4939 = vpop.f32.mrb[0].mxu0
  %v4940 = vadd.f32 0.0, %v4939
  %v4941 = vpop.f32.mrb[0].mxu0
  %v4942 = vadd.f32 0.0, %v4941
  %4943 = vmatprep.mubr.bf16.mxu0 %v676
  %4944 = vmatmul.mubr.bf16.gmra.mrb[0].mxu0 %v675
  %v4945 = vpop.f32.mrb[0].mxu0
  %v4946 = vadd.f32 0.0, %v4945
  %v4947 = vpop.f32.mrb[0].mxu0
  %v4948 = vadd.f32 0.0, %v4947
  %v4949 = vpop.f32.mrb[0].mxu0
  %v4950 = vadd.f32 0.0, %v4949
  %v4951 = vpop.f32.mrb[0].mxu0
  %v4952 = vadd.f32 0.0, %v4951
  %4953 = vmatprep.mubr.bf16.mxu0 %v680
  %4954 = vmatmul.mubr.bf16.gmra.mrb[0].mxu0 %v679
  %v4955 = vpop.f32.mrb[0].mxu0
  %v4956 = vadd.f32 0.0, %v4955
  %v4957 = vpop.f32.mrb[0].mxu0
  %v4958 = vadd.f32 0.0, %v4957
  %v4959 = vpop.f32.mrb[0].mxu0
  %v4960 = vadd.f32 0.0, %v4959
  %v4961 = vpop.f32.mrb[0].mxu0
  %v4962 = vadd.f32 0.0, %v4961
  %4963 = vmatprep.mubr.bf16.mxu0 %v684
  %4964 = vmatmul.mubr.bf16.gmra.mrb[0].mxu0 %v683
  %v4965 = vpop.f32.mrb[0].mxu0
  %v4966 = vadd.f32 0.0, %v4965
  %v4967 = vpop.f32.mrb[0].mxu0
  %v4968 = vadd.f32 0.0, %v4967
  %v4969 = vpop.f32.mrb[0].mxu0
  %v4970 = vadd.f32 0.0, %v4969
  %v4971 = vpop.f32.mrb[0].mxu0
  %v4972 = vadd.f32 0.0, %v4971
  %4973 = vdwg.mxu0
  %4974 = vmatprep.subr.bf16.mxu0 %v2526
  %4975 = vmatpush1.bf16.msra.mxu0 %v2525
  %4976 = vmatprep.subr.bf16.mxu0 %v2542
  %4977 = vmatpush1.bf16.msra.mxu0 %v2541
  %4978 = vmatprep.subr.bf16.mxu0 %v2558
  %4979 = vmatpush1.bf16.msra.mxu0 %v2557
  %4980 = vmatprep.subr.bf16.mxu0 %v2574
  %4981 = vmatpush1.bf16.msra.mxu0 %v2573
  %4982 = vmatprep.subr.bf16.mxu0 %v2590
  %4983 = vmatpush1.bf16.msra.mxu0 %v2589
  %4984 = vmatprep.subr.bf16.mxu0 %v2606
  %4985 = vmatpush1.bf16.msra.mxu0 %v2605
  %4986 = vmatprep.subr.bf16.mxu0 %v2622
  %4987 = vmatpush1.bf16.msra.mxu0 %v2621
  %4988 = vmatprep.subr.bf16.mxu0 %v2638
  %4989 = vmatpush1.bf16.msra.mxu0 %v2637
  %4990 = vmatprep.subr.bf16.mxu0 %v2654
  %4991 = vmatpush1.bf16.msra.mxu0 %v2653
  %4992 = vmatprep.subr.bf16.mxu0 %v2670
  %4993 = vmatpush1.bf16.msra.mxu0 %v2669
  %4994 = vmatprep.subr.bf16.mxu0 %v2686
  %4995 = vmatpush1.bf16.msra.mxu0 %v2685
  %4996 = vmatprep.subr.bf16.mxu0 %v2702
  %4997 = vmatpush1.bf16.msra.mxu0 %v2701
  %4998 = vmatprep.subr.bf16.mxu0 %v2718
  %4999 = vmatpush1.bf16.msra.mxu0 %v2717
  %5000 = vmatprep.subr.bf16.mxu0 %v2734
  %5001 = vmatpush1.bf16.msra.mxu0 %v2733
  %5002 = vmatprep.subr.bf16.mxu0 %v2750
  %5003 = vmatpush1.bf16.msra.mxu0 %v2749
  %5004 = vmatprep.subr.bf16.mxu0 %v2766
  %5005 = vmatpush1.bf16.msra.mxu0 %v2765
  %5006 = vmatprep.mubr.bf16.mxu0 %v658
  %5007 = vmatmul.mubr.bf16.gmra.mrb[0].mxu0 %v657
  %v5008 = vpop.f32.mrb[0].mxu0
  %v5009 = vadd.f32 %v4896, %v5008
  %v5010 = vpop.f32.mrb[0].mxu0
  %v5011 = vadd.f32 %v4898, %v5010
  %v5012 = vpop.f32.mrb[0].mxu0
  %v5013 = vadd.f32 %v4900, %v5012
  %v5014 = vpop.f32.mrb[0].mxu0
  %v5015 = vadd.f32 %v4902, %v5014
  %5016 = vmatprep.mubr.bf16.mxu0 %v662
  %5017 = vmatmul.mubr.bf16.gmra.mrb[0].mxu0 %v661
  %v5018 = vpop.f32.mrb[0].mxu0
  %v5019 = vadd.f32 %v4906, %v5018
  %v5020 = vpop.f32.mrb[0].mxu0
  %v5021 = vadd.f32 %v4908, %v5020
  %v5022 = vpop.f32.mrb[0].mxu0
  %v5023 = vadd.f32 %v4910, %v5022
  %v5024 = vpop.f32.mrb[0].mxu0
  %v5025 = vadd.f32 %v4912, %v5024
  %5026 = vmatprep.mubr.bf16.mxu0 %v666
  %5027 = vmatmul.mubr.bf16.gmra.mrb[0].mxu0 %v665
  %v5028 = vpop.f32.mrb[0].mxu0
  %v5029 = vadd.f32 %v4916, %v5028
  %v5030 = vpop.f32.mrb[0].mxu0
  %v5031 = vadd.f32 %v4918, %v5030
  %v5032 = vpop.f32.mrb[0].mxu0
  %v5033 = vadd.f32 %v4920, %v5032
  %v5034 = vpop.f32.mrb[0].mxu0
  %v5035 = vadd.f32 %v4922, %v5034
  %5036 = vmatprep.mubr.bf16.mxu0 %v670
  %5037 = vmatmul.mubr.bf16.gmra.mrb[0].mxu0 %v669
  %v5038 = vpop.f32.mrb[0].mxu0
  %v5039 = vadd.f32 %v4926, %v5038
  %v5040 = vpop.f32.mrb[0].mxu0
  %v5041 = vadd.f32 %v4928, %v5040
  %v5042 = vpop.f32.mrb[0].mxu0
  %v5043 = vadd.f32 %v4930, %v5042
  %v5044 = vpop.f32.mrb[0].mxu0
  %v5045 = vadd.f32 %v4932, %v5044
  %5046 = vmatprep.mubr.bf16.mxu0 %v674
  %5047 = vmatmul.mubr.bf16.gmra.mrb[0].mxu0 %v673
  %v5048 = vpop.f32.mrb[0].mxu0
  %v5049 = vadd.f32 %v4936, %v5048
  %v5050 = vpop.f32.mrb[0].mxu0
  %v5051 = vadd.f32 %v4938, %v5050
  %v5052 = vpop.f32.mrb[0].mxu0
  %v5053 = vadd.f32 %v4940, %v5052
  %v5054 = vpop.f32.mrb[0].mxu0
  %v5055 = vadd.f32 %v4942, %v5054
  %5056 = vmatprep.mubr.bf16.mxu0 %v678
  %5057 = vmatmul.mubr.bf16.gmra.mrb[0].mxu0 %v677
  %v5058 = vpop.f32.mrb[0].mxu0
  %v5059 = vadd.f32 %v4946, %v5058
  %v5060 = vpop.f32.mrb[0].mxu0
  %v5061 = vadd.f32 %v4948, %v5060
  %v5062 = vpop.f32.mrb[0].mxu0
  %v5063 = vadd.f32 %v4950, %v5062
  %v5064 = vpop.f32.mrb[0].mxu0
  %v5065 = vadd.f32 %v4952, %v5064
  %5066 = vmatprep.mubr.bf16.mxu0 %v682
  %5067 = vmatmul.mubr.bf16.gmra.mrb[0].mxu0 %v681
  %v5068 = vpop.f32.mrb[0].mxu0
  %v5069 = vadd.f32 %v4956, %v5068
  %v5070 = vpop.f32.mrb[0].mxu0
  %v5071 = vadd.f32 %v4958, %v5070
  %v5072 = vpop.f32.mrb[0].mxu0
  %v5073 = vadd.f32 %v4960, %v5072
  %v5074 = vpop.f32.mrb[0].mxu0
  %v5075 = vadd.f32 %v4962, %v5074
  %5076 = vmatprep.mubr.bf16.mxu0 %v686
  %5077 = vmatmul.mubr.bf16.gmra.mrb[0].mxu0 %v685
  %v5078 = vpop.f32.mrb[0].mxu0
  %v5079 = vadd.f32 %v4966, %v5078
  %v5080 = vpop.f32.mrb[0].mxu0
  %v5081 = vadd.f32 %v4968, %v5080
  %v5082 = vpop.f32.mrb[0].mxu0
  %v5083 = vadd.f32 %v4970, %v5082
  %v5084 = vpop.f32.mrb[0].mxu0
  %v5085 = vadd.f32 %v4972, %v5084
  %5086 = vdwg.mxu0
  %v5087 = vmul.f32 %v3427, %v3427
  %v5088 = vmul.f32 %v3429, %v3429
  %v5089 = vmul.f32 %v3653, %v3653
  %v5090 = vmul.f32 %v3655, %v3655
  %v5091 = vmul.f32 %v3879, %v3879
  %v5092 = vmul.f32 %v3881, %v3881
  %v5093 = vmul.f32 %v4105, %v4105
  %v5094 = vmul.f32 %v4107, %v4107
  %v5095 = vmul.f32 %v4331, %v4331
  %v5096 = vmul.f32 %v4333, %v4333
  %v5097 = vmul.f32 %v4557, %v4557
  %v5098 = vmul.f32 %v4559, %v4559
  %v5099 = vmul.f32 %v4783, %v4783
  %v5100 = vmul.f32 %v4785, %v4785
  %v5101 = vmul.f32 %v5009, %v5009
  %v5102 = vmul.f32 %v5011, %v5011
  %v5103 = vmul.f32 %v3431, %v3431
  %v5104 = vmul.f32 %v3433, %v3433
  %v5105 = vmul.f32 %v3657, %v3657
  %v5106 = vmul.f32 %v3659, %v3659
  %v5107 = vmul.f32 %v3883, %v3883
  %v5108 = vmul.f32 %v3885, %v3885
  %v5109 = vmul.f32 %v4109, %v4109
  %v5110 = vmul.f32 %v4111, %v4111
  %v5111 = vmul.f32 %v4335, %v4335
  %v5112 = vmul.f32 %v4337, %v4337
  %v5113 = vmul.f32 %v4561, %v4561
  %v5114 = vmul.f32 %v4563, %v4563
  %v5115 = vmul.f32 %v4787, %v4787
  %v5116 = vmul.f32 %v4789, %v4789
  %v5117 = vmul.f32 %v5013, %v5013
  %v5118 = vmul.f32 %v5015, %v5015
  %v5119 = vmul.f32 %v3437, %v3437
  %v5120 = vmul.f32 %v3439, %v3439
  %v5121 = vmul.f32 %v3663, %v3663
  %v5122 = vmul.f32 %v3665, %v3665
  %v5123 = vmul.f32 %v3889, %v3889
  %v5124 = vmul.f32 %v3891, %v3891
  %v5125 = vmul.f32 %v4115, %v4115
  %v5126 = vmul.f32 %v4117, %v4117
  %v5127 = vmul.f32 %v4341, %v4341
  %v5128 = vmul.f32 %v4343, %v4343
  %v5129 = vmul.f32 %v4567, %v4567
  %v5130 = vmul.f32 %v4569, %v4569
  %v5131 = vmul.f32 %v4793, %v4793
  %v5132 = vmul.f32 %v4795, %v4795
  %v5133 = vmul.f32 %v5019, %v5019
  %v5134 = vmul.f32 %v5021, %v5021
  %v5135 = vmul.f32 %v3441, %v3441
  %v5136 = vmul.f32 %v3443, %v3443
  %v5137 = vmul.f32 %v3667, %v3667
  %v5138 = vmul.f32 %v3669, %v3669
  %v5139 = vmul.f32 %v3893, %v3893
  %v5140 = vmul.f32 %v3895, %v3895
  %v5141 = vmul.f32 %v4119, %v4119
  %v5142 = vmul.f32 %v4121, %v4121
  %v5143 = vmul.f32 %v4345, %v4345
  %v5144 = vmul.f32 %v4347, %v4347
  %v5145 = vmul.f32 %v4571, %v4571
  %v5146 = vmul.f32 %v4573, %v4573
  %v5147 = vmul.f32 %v4797, %v4797
  %v5148 = vmul.f32 %v4799, %v4799
  %v5149 = vmul.f32 %v5023, %v5023
  %v5150 = vmul.f32 %v5025, %v5025
  %v5151 = vmul.f32 %v3447, %v3447
  %v5152 = vmul.f32 %v3449, %v3449
  %v5153 = vmul.f32 %v3673, %v3673
  %v5154 = vmul.f32 %v3675, %v3675
  %v5155 = vmul.f32 %v3899, %v3899
  %v5156 = vmul.f32 %v3901, %v3901
  %v5157 = vmul.f32 %v4125, %v4125
  %v5158 = vmul.f32 %v4127, %v4127
  %v5159 = vmul.f32 %v4351, %v4351
  %v5160 = vmul.f32 %v4353, %v4353
  %v5161 = vmul.f32 %v4577, %v4577
  %v5162 = vmul.f32 %v4579, %v4579
  %v5163 = vmul.f32 %v4803, %v4803
  %v5164 = vmul.f32 %v4805, %v4805
  %v5165 = vmul.f32 %v5029, %v5029
  %v5166 = vmul.f32 %v5031, %v5031
  %v5167 = vmul.f32 %v3451, %v3451
  %v5168 = vmul.f32 %v3453, %v3453
  %v5169 = vmul.f32 %v3677, %v3677
  %v5170 = vmul.f32 %v3679, %v3679
  %v5171 = vmul.f32 %v3903, %v3903
  %v5172 = vmul.f32 %v3905, %v3905
  %v5173 = vmul.f32 %v4129, %v4129
  %v5174 = vmul.f32 %v4131, %v4131
  %v5175 = vmul.f32 %v4355, %v4355
  %v5176 = vmul.f32 %v4357, %v4357
  %v5177 = vmul.f32 %v4581, %v4581
  %v5178 = vmul.f32 %v4583, %v4583
  %v5179 = vmul.f32 %v4807, %v4807
  %v5180 = vmul.f32 %v4809, %v4809
  %v5181 = vmul.f32 %v5033, %v5033
  %v5182 = vmul.f32 %v5035, %v5035
  %v5183 = vmul.f32 %v3457, %v3457
  %v5184 = vmul.f32 %v3459, %v3459
  %v5185 = vmul.f32 %v3683, %v3683
  %v5186 = vmul.f32 %v3685, %v3685
  %v5187 = vmul.f32 %v3909, %v3909
  %v5188 = vmul.f32 %v3911, %v3911
  %v5189 = vmul.f32 %v4135, %v4135
  %v5190 = vmul.f32 %v4137, %v4137
  %v5191 = vmul.f32 %v4361, %v4361
  %v5192 = vmul.f32 %v4363, %v4363
  %v5193 = vmul.f32 %v4587, %v4587
  %v5194 = vmul.f32 %v4589, %v4589
  %v5195 = vmul.f32 %v4813, %v4813
  %v5196 = vmul.f32 %v4815, %v4815
  %v5197 = vmul.f32 %v5039, %v5039
  %v5198 = vmul.f32 %v5041, %v5041
  %v5199 = vmul.f32 %v3461, %v3461
  %v5200 = vmul.f32 %v3463, %v3463
  %v5201 = vmul.f32 %v3687, %v3687
  %v5202 = vmul.f32 %v3689, %v3689
  %v5203 = vmul.f32 %v3913, %v3913
  %v5204 = vmul.f32 %v3915, %v3915
  %v5205 = vmul.f32 %v4139, %v4139
  %v5206 = vmul.f32 %v4141, %v4141
  %v5207 = vmul.f32 %v4365, %v4365
  %v5208 = vmul.f32 %v4367, %v4367
  %v5209 = vmul.f32 %v4591, %v4591
  %v5210 = vmul.f32 %v4593, %v4593
  %v5211 = vmul.f32 %v4817, %v4817
  %v5212 = vmul.f32 %v4819, %v4819
  %v5213 = vmul.f32 %v5043, %v5043
  %v5214 = vmul.f32 %v5045, %v5045
  %v5215 = vmul.f32 %v3467, %v3467
  %v5216 = vmul.f32 %v3469, %v3469
  %v5217 = vmul.f32 %v3693, %v3693
  %v5218 = vmul.f32 %v3695, %v3695
  %v5219 = vmul.f32 %v3919, %v3919
  %v5220 = vmul.f32 %v3921, %v3921
  %v5221 = vmul.f32 %v4145, %v4145
  %v5222 = vmul.f32 %v4147, %v4147
  %v5223 = vmul.f32 %v4371, %v4371
  %v5224 = vmul.f32 %v4373, %v4373
  %v5225 = vmul.f32 %v4597, %v4597
  %v5226 = vmul.f32 %v4599, %v4599
  %v5227 = vmul.f32 %v4823, %v4823
  %v5228 = vmul.f32 %v4825, %v4825
  %v5229 = vmul.f32 %v5049, %v5049
  %v5230 = vmul.f32 %v5051, %v5051
  %v5231 = vmul.f32 %v3471, %v3471
  %v5232 = vmul.f32 %v3473, %v3473
  %v5233 = vmul.f32 %v3697, %v3697
  %v5234 = vmul.f32 %v3699, %v3699
  %v5235 = vmul.f32 %v3923, %v3923
  %v5236 = vmul.f32 %v3925, %v3925
  %v5237 = vmul.f32 %v4149, %v4149
  %v5238 = vmul.f32 %v4151, %v4151
  %v5239 = vmul.f32 %v4375, %v4375
  %v5240 = vmul.f32 %v4377, %v4377
  %v5241 = vmul.f32 %v4601, %v4601
  %v5242 = vmul.f32 %v4603, %v4603
  %v5243 = vmul.f32 %v4827, %v4827
  %v5244 = vmul.f32 %v4829, %v4829
  %v5245 = vmul.f32 %v5053, %v5053
  %v5246 = vmul.f32 %v5055, %v5055
  %v5247 = vmul.f32 %v3477, %v3477
  %v5248 = vmul.f32 %v3479, %v3479
  %v5249 = vmul.f32 %v3703, %v3703
  %v5250 = vmul.f32 %v3705, %v3705
  %v5251 = vmul.f32 %v3929, %v3929
  %v5252 = vmul.f32 %v3931, %v3931
  %v5253 = vmul.f32 %v4155, %v4155
  %v5254 = vmul.f32 %v4157, %v4157
  %v5255 = vmul.f32 %v4381, %v4381
  %v5256 = vmul.f32 %v4383, %v4383
  %v5257 = vmul.f32 %v4607, %v4607
  %v5258 = vmul.f32 %v4609, %v4609
  %v5259 = vmul.f32 %v4833, %v4833
  %v5260 = vmul.f32 %v4835, %v4835
  %v5261 = vmul.f32 %v5059, %v5059
  %v5262 = vmul.f32 %v5061, %v5061
  %v5263 = vmul.f32 %v3481, %v3481
  %v5264 = vmul.f32 %v3483, %v3483
  %v5265 = vmul.f32 %v3707, %v3707
  %v5266 = vmul.f32 %v3709, %v3709
  %v5267 = vmul.f32 %v3933, %v3933
  %v5268 = vmul.f32 %v3935, %v3935
  %v5269 = vmul.f32 %v4159, %v4159
  %v5270 = vmul.f32 %v4161, %v4161
  %v5271 = vmul.f32 %v4385, %v4385
  %v5272 = vmul.f32 %v4387, %v4387
  %v5273 = vmul.f32 %v4611, %v4611
  %v5274 = vmul.f32 %v4613, %v4613
  %v5275 = vmul.f32 %v4837, %v4837
  %v5276 = vmul.f32 %v4839, %v4839
  %v5277 = vmul.f32 %v5063, %v5063
  %v5278 = vmul.f32 %v5065, %v5065
  %v5279 = vmul.f32 %v3487, %v3487
  %v5280 = vmul.f32 %v3489, %v3489
  %v5281 = vmul.f32 %v3713, %v3713
  %v5282 = vmul.f32 %v3715, %v3715
  %v5283 = vmul.f32 %v3939, %v3939
  %v5284 = vmul.f32 %v3941, %v3941
  %v5285 = vmul.f32 %v4165, %v4165
  %v5286 = vmul.f32 %v4167, %v4167
  %v5287 = vmul.f32 %v4391, %v4391
  %v5288 = vmul.f32 %v4393, %v4393
  %v5289 = vmul.f32 %v4617, %v4617
  %v5290 = vmul.f32 %v4619, %v4619
  %v5291 = vmul.f32 %v4843, %v4843
  %v5292 = vmul.f32 %v4845, %v4845
  %v5293 = vmul.f32 %v5069, %v5069
  %v5294 = vmul.f32 %v5071, %v5071
  %v5295 = vmul.f32 %v3491, %v3491
  %v5296 = vmul.f32 %v3493, %v3493
  %v5297 = vmul.f32 %v3717, %v3717
  %v5298 = vmul.f32 %v3719, %v3719
  %v5299 = vmul.f32 %v3943, %v3943
  %v5300 = vmul.f32 %v3945, %v3945
  %v5301 = vmul.f32 %v4169, %v4169
  %v5302 = vmul.f32 %v4171, %v4171
  %v5303 = vmul.f32 %v4395, %v4395
  %v5304 = vmul.f32 %v4397, %v4397
  %v5305 = vmul.f32 %v4621, %v4621
  %v5306 = vmul.f32 %v4623, %v4623
  %v5307 = vmul.f32 %v4847, %v4847
  %v5308 = vmul.f32 %v4849, %v4849
  %v5309 = vmul.f32 %v5073, %v5073
  %v5310 = vmul.f32 %v5075, %v5075
  %v5311 = vmul.f32 %v3497, %v3497
  %v5312 = vmul.f32 %v3499, %v3499
  %v5313 = vmul.f32 %v3723, %v3723
  %v5314 = vmul.f32 %v3725, %v3725
  %v5315 = vmul.f32 %v3949, %v3949
  %v5316 = vmul.f32 %v3951, %v3951
  %v5317 = vmul.f32 %v4175, %v4175
  %v5318 = vmul.f32 %v4177, %v4177
  %v5319 = vmul.f32 %v4401, %v4401
  %v5320 = vmul.f32 %v4403, %v4403
  %v5321 = vmul.f32 %v4627, %v4627
  %v5322 = vmul.f32 %v4629, %v4629
  %v5323 = vmul.f32 %v4853, %v4853
  %v5324 = vmul.f32 %v4855, %v4855
  %v5325 = vmul.f32 %v5079, %v5079
  %v5326 = vmul.f32 %v5081, %v5081
  %v5327 = vmul.f32 %v3501, %v3501
  %v5328 = vmul.f32 %v3503, %v3503
  %v5329 = vmul.f32 %v3727, %v3727
  %v5330 = vmul.f32 %v3729, %v3729
  %v5331 = vmul.f32 %v3953, %v3953
  %v5332 = vmul.f32 %v3955, %v3955
  %v5333 = vmul.f32 %v4179, %v4179
  %v5334 = vmul.f32 %v4181, %v4181
  %v5335 = vmul.f32 %v4405, %v4405
  %v5336 = vmul.f32 %v4407, %v4407
  %v5337 = vmul.f32 %v4631, %v4631
  %v5338 = vmul.f32 %v4633, %v4633
  %v5339 = vmul.f32 %v4857, %v4857
  %v5340 = vmul.f32 %v4859, %v4859
  %v5341 = vmul.f32 %v5083, %v5083
  %v5342 = vmul.f32 %v5085, %v5085
  %v5343 = vadd.f32 %v5087, %v5095
  %v5344 = vadd.f32 %v5088, %v5096
  %v5345 = vadd.f32 %v5089, %v5097
  %v5346 = vadd.f32 %v5090, %v5098
  %v5347 = vadd.f32 %v5091, %v5099
  %v5348 = vadd.f32 %v5092, %v5100
  %v5349 = vadd.f32 %v5093, %v5101
  %v5350 = vadd.f32 %v5094, %v5102
  %v5351 = vadd.f32 %v5103, %v5111
  %v5352 = vadd.f32 %v5104, %v5112
  %v5353 = vadd.f32 %v5105, %v5113
  %v5354 = vadd.f32 %v5106, %v5114
  %v5355 = vadd.f32 %v5107, %v5115
  %v5356 = vadd.f32 %v5108, %v5116
  %v5357 = vadd.f32 %v5109, %v5117
  %v5358 = vadd.f32 %v5110, %v5118
  %v5359 = vadd.f32 %v5119, %v5127
  %v5360 = vadd.f32 %v5120, %v5128
  %v5361 = vadd.f32 %v5121, %v5129
  %v5362 = vadd.f32 %v5122, %v5130
  %v5363 = vadd.f32 %v5123, %v5131
  %v5364 = vadd.f32 %v5124, %v5132
  %v5365 = vadd.f32 %v5125, %v5133
  %v5366 = vadd.f32 %v5126, %v5134
  %v5367 = vadd.f32 %v5135, %v5143
  %v5368 = vadd.f32 %v5136, %v5144
  %v5369 = vadd.f32 %v5137, %v5145
  %v5370 = vadd.f32 %v5138, %v5146
  %v5371 = vadd.f32 %v5139, %v5147
  %v5372 = vadd.f32 %v5140, %v5148
  %v5373 = vadd.f32 %v5141, %v5149
  %v5374 = vadd.f32 %v5142, %v5150
  %v5375 = vadd.f32 %v5151, %v5159
  %v5376 = vadd.f32 %v5152, %v5160
  %v5377 = vadd.f32 %v5153, %v5161
  %v5378 = vadd.f32 %v5154, %v5162
  %v5379 = vadd.f32 %v5155, %v5163
  %v5380 = vadd.f32 %v5156, %v5164
  %v5381 = vadd.f32 %v5157, %v5165
  %v5382 = vadd.f32 %v5158, %v5166
  %v5383 = vadd.f32 %v5167, %v5175
  %v5384 = vadd.f32 %v5168, %v5176
  %v5385 = vadd.f32 %v5169, %v5177
  %v5386 = vadd.f32 %v5170, %v5178
  %v5387 = vadd.f32 %v5171, %v5179
  %v5388 = vadd.f32 %v5172, %v5180
  %v5389 = vadd.f32 %v5173, %v5181
  %v5390 = vadd.f32 %v5174, %v5182
  %v5391 = vadd.f32 %v5183, %v5191
  %v5392 = vadd.f32 %v5184, %v5192
  %v5393 = vadd.f32 %v5185, %v5193
  %v5394 = vadd.f32 %v5186, %v5194
  %v5395 = vadd.f32 %v5187, %v5195
  %v5396 = vadd.f32 %v5188, %v5196
  %v5397 = vadd.f32 %v5189, %v5197
  %v5398 = vadd.f32 %v5190, %v5198
  %v5399 = vadd.f32 %v5199, %v5207
  %v5400 = vadd.f32 %v5200, %v5208
  %v5401 = vadd.f32 %v5201, %v5209
  %v5402 = vadd.f32 %v5202, %v5210
  %v5403 = vadd.f32 %v5203, %v5211
  %v5404 = vadd.f32 %v5204, %v5212
  %v5405 = vadd.f32 %v5205, %v5213
  %v5406 = vadd.f32 %v5206, %v5214
  %v5407 = vadd.f32 %v5215, %v5223
  %v5408 = vadd.f32 %v5216, %v5224
  %v5409 = vadd.f32 %v5217, %v5225
  %v5410 = vadd.f32 %v5218, %v5226
  %v5411 = vadd.f32 %v5219, %v5227
  %v5412 = vadd.f32 %v5220, %v5228
  %v5413 = vadd.f32 %v5221, %v5229
  %v5414 = vadd.f32 %v5222, %v5230
  %v5415 = vadd.f32 %v5231, %v5239
  %v5416 = vadd.f32 %v5232, %v5240
  %v5417 = vadd.f32 %v5233, %v5241
  %v5418 = vadd.f32 %v5234, %v5242
  %v5419 = vadd.f32 %v5235, %v5243
  %v5420 = vadd.f32 %v5236, %v5244
  %v5421 = vadd.f32 %v5237, %v5245
  %v5422 = vadd.f32 %v5238, %v5246
  %v5423 = vadd.f32 %v5247, %v5255
  %v5424 = vadd.f32 %v5248, %v5256
  %v5425 = vadd.f32 %v5249, %v5257
  %v5426 = vadd.f32 %v5250, %v5258
  %v5427 = vadd.f32 %v5251, %v5259
  %v5428 = vadd.f32 %v5252, %v5260
  %v5429 = vadd.f32 %v5253, %v5261
  %v5430 = vadd.f32 %v5254, %v5262
  %v5431 = vadd.f32 %v5263, %v5271
  %v5432 = vadd.f32 %v5264, %v5272
  %v5433 = vadd.f32 %v5265, %v5273
  %v5434 = vadd.f32 %v5266, %v5274
  %v5435 = vadd.f32 %v5267, %v5275
  %v5436 = vadd.f32 %v5268, %v5276
  %v5437 = vadd.f32 %v5269, %v5277
  %v5438 = vadd.f32 %v5270, %v5278
  %v5439 = vadd.f32 %v5279, %v5287
  %v5440 = vadd.f32 %v5280, %v5288
  %v5441 = vadd.f32 %v5281, %v5289
  %v5442 = vadd.f32 %v5282, %v5290
  %v5443 = vadd.f32 %v5283, %v5291
  %v5444 = vadd.f32 %v5284, %v5292
  %v5445 = vadd.f32 %v5285, %v5293
  %v5446 = vadd.f32 %v5286, %v5294
  %v5447 = vadd.f32 %v5295, %v5303
  %v5448 = vadd.f32 %v5296, %v5304
  %v5449 = vadd.f32 %v5297, %v5305
  %v5450 = vadd.f32 %v5298, %v5306
  %v5451 = vadd.f32 %v5299, %v5307
  %v5452 = vadd.f32 %v5300, %v5308
  %v5453 = vadd.f32 %v5301, %v5309
  %v5454 = vadd.f32 %v5302, %v5310
  %v5455 = vadd.f32 %v5311, %v5319
  %v5456 = vadd.f32 %v5312, %v5320
  %v5457 = vadd.f32 %v5313, %v5321
  %v5458 = vadd.f32 %v5314, %v5322
  %v5459 = vadd.f32 %v5315, %v5323
  %v5460 = vadd.f32 %v5316, %v5324
  %v5461 = vadd.f32 %v5317, %v5325
  %v5462 = vadd.f32 %v5318, %v5326
  %v5463 = vadd.f32 %v5327, %v5335
  %v5464 = vadd.f32 %v5328, %v5336
  %v5465 = vadd.f32 %v5329, %v5337
  %v5466 = vadd.f32 %v5330, %v5338
  %v5467 = vadd.f32 %v5331, %v5339
  %v5468 = vadd.f32 %v5332, %v5340
  %v5469 = vadd.f32 %v5333, %v5341
  %v5470 = vadd.f32 %v5334, %v5342
  %v5471 = vpack.c.bf16 %v5351, %v5343
  %v5472 = vpack.c.bf16 %v5352, %v5344
  %v5473 = vpack.c.bf16 %v5353, %v5345
  %v5474 = vpack.c.bf16 %v5354, %v5346
  %v5475 = vpack.c.bf16 %v5355, %v5347
  %v5476 = vpack.c.bf16 %v5356, %v5348
  %v5477 = vpack.c.bf16 %v5357, %v5349
  %v5478 = vpack.c.bf16 %v5358, %v5350
  %v5479 = vpack.c.bf16 %v5367, %v5359
  %v5480 = vpack.c.bf16 %v5368, %v5360
  %v5481 = vpack.c.bf16 %v5369, %v5361
  %v5482 = vpack.c.bf16 %v5370, %v5362
  %v5483 = vpack.c.bf16 %v5371, %v5363
  %v5484 = vpack.c.bf16 %v5372, %v5364
  %v5485 = vpack.c.bf16 %v5373, %v5365
  %v5486 = vpack.c.bf16 %v5374, %v5366
  %v5487 = vpack.c.bf16 %v5383, %v5375
  %v5488 = vpack.c.bf16 %v5384, %v5376
  %v5489 = vpack.c.bf16 %v5385, %v5377
  %v5490 = vpack.c.bf16 %v5386, %v5378
  %v5491 = vpack.c.bf16 %v5387, %v5379
  %v5492 = vpack.c.bf16 %v5388, %v5380
  %v5493 = vpack.c.bf16 %v5389, %v5381
  %v5494 = vpack.c.bf16 %v5390, %v5382
  %v5495 = vpack.c.bf16 %v5399, %v5391
  %v5496 = vpack.c.bf16 %v5400, %v5392
  %v5497 = vpack.c.bf16 %v5401, %v5393
  %v5498 = vpack.c.bf16 %v5402, %v5394
  %v5499 = vpack.c.bf16 %v5403, %v5395
  %v5500 = vpack.c.bf16 %v5404, %v5396
  %v5501 = vpack.c.bf16 %v5405, %v5397
  %v5502 = vpack.c.bf16 %v5406, %v5398
  %v5503 = vpack.c.bf16 %v5415, %v5407
  %v5504 = vpack.c.bf16 %v5416, %v5408
  %v5505 = vpack.c.bf16 %v5417, %v5409
  %v5506 = vpack.c.bf16 %v5418, %v5410
  %v5507 = vpack.c.bf16 %v5419, %v5411
  %v5508 = vpack.c.bf16 %v5420, %v5412
  %v5509 = vpack.c.bf16 %v5421, %v5413
  %v5510 = vpack.c.bf16 %v5422, %v5414
  %v5511 = vpack.c.bf16 %v5431, %v5423
  %v5512 = vpack.c.bf16 %v5432, %v5424
  %v5513 = vpack.c.bf16 %v5433, %v5425
  %v5514 = vpack.c.bf16 %v5434, %v5426
  %v5515 = vpack.c.bf16 %v5435, %v5427
  %v5516 = vpack.c.bf16 %v5436, %v5428
  %v5517 = vpack.c.bf16 %v5437, %v5429
  %v5518 = vpack.c.bf16 %v5438, %v5430
  %v5519 = vpack.c.bf16 %v5447, %v5439
  %v5520 = vpack.c.bf16 %v5448, %v5440
  %v5521 = vpack.c.bf16 %v5449, %v5441
  %v5522 = vpack.c.bf16 %v5450, %v5442
  %v5523 = vpack.c.bf16 %v5451, %v5443
  %v5524 = vpack.c.bf16 %v5452, %v5444
  %v5525 = vpack.c.bf16 %v5453, %v5445
  %v5526 = vpack.c.bf16 %v5454, %v5446
  %v5527 = vpack.c.bf16 %v5463, %v5455
  %v5528 = vpack.c.bf16 %v5464, %v5456
  %v5529 = vpack.c.bf16 %v5465, %v5457
  %v5530 = vpack.c.bf16 %v5466, %v5458
  %v5531 = vpack.c.bf16 %v5467, %v5459
  %v5532 = vpack.c.bf16 %v5468, %v5460
  %v5533 = vpack.c.bf16 %v5469, %v5461
  %v5534 = vpack.c.bf16 %v5470, %v5462
  %v5535 = vrsqrt.bf16.pop %v5471
  %v5536 = vmul.bf16 %v5471, %v5535
  %vm5538 = vcmp.eq.bf16.partialorder %v5471, 2139127680
  %v5539 = vsel %vm5538, %v5471, %v5536
  %vm5541 = vcmp.eq.bf16.partialorder %v5471, 0
  %v5542 = vand.u32 2147450879, 0
  %v5543 = vand.u32 %v5471, 2147516416
  %v5544 = vor.u32 %v5542, %v5543
  %v5545 = vsel %vm5541, %v5544, %v5539
  %v5546 = vrsqrt.bf16.pop %v5472
  %v5547 = vmul.bf16 %v5472, %v5546
  %vm5549 = vcmp.eq.bf16.partialorder %v5472, 2139127680
  %v5550 = vsel %vm5549, %v5472, %v5547
  %vm5552 = vcmp.eq.bf16.partialorder %v5472, 0
  %v5553 = vand.u32 2147450879, 0
  %v5554 = vand.u32 %v5472, 2147516416
  %v5555 = vor.u32 %v5553, %v5554
  %v5556 = vsel %vm5552, %v5555, %v5550
  %v5557 = vrsqrt.bf16.pop %v5473
  %v5558 = vmul.bf16 %v5473, %v5557
  %vm5560 = vcmp.eq.bf16.partialorder %v5473, 2139127680
  %v5561 = vsel %vm5560, %v5473, %v5558
  %vm5563 = vcmp.eq.bf16.partialorder %v5473, 0
  %v5564 = vand.u32 2147450879, 0
  %v5565 = vand.u32 %v5473, 2147516416
  %v5566 = vor.u32 %v5564, %v5565
  %v5567 = vsel %vm5563, %v5566, %v5561
  %v5568 = vrsqrt.bf16.pop %v5474
  %v5569 = vmul.bf16 %v5474, %v5568
  %vm5571 = vcmp.eq.bf16.partialorder %v5474, 2139127680
  %v5572 = vsel %vm5571, %v5474, %v5569
  %vm5574 = vcmp.eq.bf16.partialorder %v5474, 0
  %v5575 = vand.u32 2147450879, 0
  %v5576 = vand.u32 %v5474, 2147516416
  %v5577 = vor.u32 %v5575, %v5576
  %v5578 = vsel %vm5574, %v5577, %v5572
  %v5579 = vrsqrt.bf16.pop %v5475
  %v5580 = vmul.bf16 %v5475, %v5579
  %vm5582 = vcmp.eq.bf16.partialorder %v5475, 2139127680
  %v5583 = vsel %vm5582, %v5475, %v5580
  %vm5585 = vcmp.eq.bf16.partialorder %v5475, 0
  %v5586 = vand.u32 2147450879, 0
  %v5587 = vand.u32 %v5475, 2147516416
  %v5588 = vor.u32 %v5586, %v5587
  %v5589 = vsel %vm5585, %v5588, %v5583
  %v5590 = vrsqrt.bf16.pop %v5476
  %v5591 = vmul.bf16 %v5476, %v5590
  %vm5593 = vcmp.eq.bf16.partialorder %v5476, 2139127680
  %v5594 = vsel %vm5593, %v5476, %v5591
  %vm5596 = vcmp.eq.bf16.partialorder %v5476, 0
  %v5597 = vand.u32 2147450879, 0
  %v5598 = vand.u32 %v5476, 2147516416
  %v5599 = vor.u32 %v5597, %v5598
  %v5600 = vsel %vm5596, %v5599, %v5594
  %v5601 = vrsqrt.bf16.pop %v5477
  %v5602 = vmul.bf16 %v5477, %v5601
  %vm5604 = vcmp.eq.bf16.partialorder %v5477, 2139127680
  %v5605 = vsel %vm5604, %v5477, %v5602
  %vm5607 = vcmp.eq.bf16.partialorder %v5477, 0
  %v5608 = vand.u32 2147450879, 0
  %v5609 = vand.u32 %v5477, 2147516416
  %v5610 = vor.u32 %v5608, %v5609
  %v5611 = vsel %vm5607, %v5610, %v5605
  %v5612 = vrsqrt.bf16.pop %v5478
  %v5613 = vmul.bf16 %v5478, %v5612
  %vm5615 = vcmp.eq.bf16.partialorder %v5478, 2139127680
  %v5616 = vsel %vm5615, %v5478, %v5613
  %vm5618 = vcmp.eq.bf16.partialorder %v5478, 0
  %v5619 = vand.u32 2147450879, 0
  %v5620 = vand.u32 %v5478, 2147516416
  %v5621 = vor.u32 %v5619, %v5620
  %v5622 = vsel %vm5618, %v5621, %v5616
  %v5623 = vrsqrt.bf16.pop %v5479
  %v5624 = vmul.bf16 %v5479, %v5623
  %vm5626 = vcmp.eq.bf16.partialorder %v5479, 2139127680
  %v5627 = vsel %vm5626, %v5479, %v5624
  %vm5629 = vcmp.eq.bf16.partialorder %v5479, 0
  %v5630 = vand.u32 2147450879, 0
  %v5631 = vand.u32 %v5479, 2147516416
  %v5632 = vor.u32 %v5630, %v5631
  %v5633 = vsel %vm5629, %v5632, %v5627
  %v5634 = vrsqrt.bf16.pop %v5480
  %v5635 = vmul.bf16 %v5480, %v5634
  %vm5637 = vcmp.eq.bf16.partialorder %v5480, 2139127680
  %v5638 = vsel %vm5637, %v5480, %v5635
  %vm5640 = vcmp.eq.bf16.partialorder %v5480, 0
  %v5641 = vand.u32 2147450879, 0
  %v5642 = vand.u32 %v5480, 2147516416
  %v5643 = vor.u32 %v5641, %v5642
  %v5644 = vsel %vm5640, %v5643, %v5638
  %v5645 = vrsqrt.bf16.pop %v5481
  %v5646 = vmul.bf16 %v5481, %v5645
  %vm5648 = vcmp.eq.bf16.partialorder %v5481, 2139127680
  %v5649 = vsel %vm5648, %v5481, %v5646
  %vm5651 = vcmp.eq.bf16.partialorder %v5481, 0
  %v5652 = vand.u32 2147450879, 0
  %v5653 = vand.u32 %v5481, 2147516416
  %v5654 = vor.u32 %v5652, %v5653
  %v5655 = vsel %vm5651, %v5654, %v5649
  %v5656 = vrsqrt.bf16.pop %v5482
  %v5657 = vmul.bf16 %v5482, %v5656
  %vm5659 = vcmp.eq.bf16.partialorder %v5482, 2139127680
  %v5660 = vsel %vm5659, %v5482, %v5657
  %vm5662 = vcmp.eq.bf16.partialorder %v5482, 0
  %v5663 = vand.u32 2147450879, 0
  %v5664 = vand.u32 %v5482, 2147516416
  %v5665 = vor.u32 %v5663, %v5664
  %v5666 = vsel %vm5662, %v5665, %v5660
  %v5667 = vrsqrt.bf16.pop %v5483
  %v5668 = vmul.bf16 %v5483, %v5667
  %vm5670 = vcmp.eq.bf16.partialorder %v5483, 2139127680
  %v5671 = vsel %vm5670, %v5483, %v5668
  %vm5673 = vcmp.eq.bf16.partialorder %v5483, 0
  %v5674 = vand.u32 2147450879, 0
  %v5675 = vand.u32 %v5483, 2147516416
  %v5676 = vor.u32 %v5674, %v5675
  %v5677 = vsel %vm5673, %v5676, %v5671
  %v5678 = vrsqrt.bf16.pop %v5484
  %v5679 = vmul.bf16 %v5484, %v5678
  %vm5681 = vcmp.eq.bf16.partialorder %v5484, 2139127680
  %v5682 = vsel %vm5681, %v5484, %v5679
  %vm5684 = vcmp.eq.bf16.partialorder %v5484, 0
  %v5685 = vand.u32 2147450879, 0
  %v5686 = vand.u32 %v5484, 2147516416
  %v5687 = vor.u32 %v5685, %v5686
  %v5688 = vsel %vm5684, %v5687, %v5682
  %v5689 = vrsqrt.bf16.pop %v5485
  %v5690 = vmul.bf16 %v5485, %v5689
  %vm5692 = vcmp.eq.bf16.partialorder %v5485, 2139127680
  %v5693 = vsel %vm5692, %v5485, %v5690
  %vm5695 = vcmp.eq.bf16.partialorder %v5485, 0
  %v5696 = vand.u32 2147450879, 0
  %v5697 = vand.u32 %v5485, 2147516416
  %v5698 = vor.u32 %v5696, %v5697
  %v5699 = vsel %vm5695, %v5698, %v5693
  %v5700 = vrsqrt.bf16.pop %v5486
  %v5701 = vmul.bf16 %v5486, %v5700
  %vm5703 = vcmp.eq.bf16.partialorder %v5486, 2139127680
  %v5704 = vsel %vm5703, %v5486, %v5701
  %vm5706 = vcmp.eq.bf16.partialorder %v5486, 0
  %v5707 = vand.u32 2147450879, 0
  %v5708 = vand.u32 %v5486, 2147516416
  %v5709 = vor.u32 %v5707, %v5708
  %v5710 = vsel %vm5706, %v5709, %v5704
  %v5711 = vrsqrt.bf16.pop %v5487
  %v5712 = vmul.bf16 %v5487, %v5711
  %vm5714 = vcmp.eq.bf16.partialorder %v5487, 2139127680
  %v5715 = vsel %vm5714, %v5487, %v5712
  %vm5717 = vcmp.eq.bf16.partialorder %v5487, 0
  %v5718 = vand.u32 2147450879, 0
  %v5719 = vand.u32 %v5487, 2147516416
  %v5720 = vor.u32 %v5718, %v5719
  %v5721 = vsel %vm5717, %v5720, %v5715
  %v5722 = vrsqrt.bf16.pop %v5488
  %v5723 = vmul.bf16 %v5488, %v5722
  %vm5725 = vcmp.eq.bf16.partialorder %v5488, 2139127680
  %v5726 = vsel %vm5725, %v5488, %v5723
  %vm5728 = vcmp.eq.bf16.partialorder %v5488, 0
  %v5729 = vand.u32 2147450879, 0
  %v5730 = vand.u32 %v5488, 2147516416
  %v5731 = vor.u32 %v5729, %v5730
  %v5732 = vsel %vm5728, %v5731, %v5726
  %v5733 = vrsqrt.bf16.pop %v5489
  %v5734 = vmul.bf16 %v5489, %v5733
  %vm5736 = vcmp.eq.bf16.partialorder %v5489, 2139127680
  %v5737 = vsel %vm5736, %v5489, %v5734
  %vm5739 = vcmp.eq.bf16.partialorder %v5489, 0
  %v5740 = vand.u32 2147450879, 0
  %v5741 = vand.u32 %v5489, 2147516416
  %v5742 = vor.u32 %v5740, %v5741
  %v5743 = vsel %vm5739, %v5742, %v5737
  %v5744 = vrsqrt.bf16.pop %v5490
  %v5745 = vmul.bf16 %v5490, %v5744
  %vm5747 = vcmp.eq.bf16.partialorder %v5490, 2139127680
  %v5748 = vsel %vm5747, %v5490, %v5745
  %vm5750 = vcmp.eq.bf16.partialorder %v5490, 0
  %v5751 = vand.u32 2147450879, 0
  %v5752 = vand.u32 %v5490, 2147516416
  %v5753 = vor.u32 %v5751, %v5752
  %v5754 = vsel %vm5750, %v5753, %v5748
  %v5755 = vrsqrt.bf16.pop %v5491
  %v5756 = vmul.bf16 %v5491, %v5755
  %vm5758 = vcmp.eq.bf16.partialorder %v5491, 2139127680
  %v5759 = vsel %vm5758, %v5491, %v5756
  %vm5761 = vcmp.eq.bf16.partialorder %v5491, 0
  %v5762 = vand.u32 2147450879, 0
  %v5763 = vand.u32 %v5491, 2147516416
  %v5764 = vor.u32 %v5762, %v5763
  %v5765 = vsel %vm5761, %v5764, %v5759
  %v5766 = vrsqrt.bf16.pop %v5492
  %v5767 = vmul.bf16 %v5492, %v5766
  %vm5769 = vcmp.eq.bf16.partialorder %v5492, 2139127680
  %v5770 = vsel %vm5769, %v5492, %v5767
  %vm5772 = vcmp.eq.bf16.partialorder %v5492, 0
  %v5773 = vand.u32 2147450879, 0
  %v5774 = vand.u32 %v5492, 2147516416
  %v5775 = vor.u32 %v5773, %v5774
  %v5776 = vsel %vm5772, %v5775, %v5770
  %v5777 = vrsqrt.bf16.pop %v5493
  %v5778 = vmul.bf16 %v5493, %v5777
  %vm5780 = vcmp.eq.bf16.partialorder %v5493, 2139127680
  %v5781 = vsel %vm5780, %v5493, %v5778
  %vm5783 = vcmp.eq.bf16.partialorder %v5493, 0
  %v5784 = vand.u32 2147450879, 0
  %v5785 = vand.u32 %v5493, 2147516416
  %v5786 = vor.u32 %v5784, %v5785
  %v5787 = vsel %vm5783, %v5786, %v5781
  %v5788 = vrsqrt.bf16.pop %v5494
  %v5789 = vmul.bf16 %v5494, %v5788
  %vm5791 = vcmp.eq.bf16.partialorder %v5494, 2139127680
  %v5792 = vsel %vm5791, %v5494, %v5789
  %vm5794 = vcmp.eq.bf16.partialorder %v5494, 0
  %v5795 = vand.u32 2147450879, 0
  %v5796 = vand.u32 %v5494, 2147516416
  %v5797 = vor.u32 %v5795, %v5796
  %v5798 = vsel %vm5794, %v5797, %v5792
  %v5799 = vrsqrt.bf16.pop %v5495
  %v5800 = vmul.bf16 %v5495, %v5799
  %vm5802 = vcmp.eq.bf16.partialorder %v5495, 2139127680
  %v5803 = vsel %vm5802, %v5495, %v5800
  %vm5805 = vcmp.eq.bf16.partialorder %v5495, 0
  %v5806 = vand.u32 2147450879, 0
  %v5807 = vand.u32 %v5495, 2147516416
  %v5808 = vor.u32 %v5806, %v5807
  %v5809 = vsel %vm5805, %v5808, %v5803
  %v5810 = vrsqrt.bf16.pop %v5496
  %v5811 = vmul.bf16 %v5496, %v5810
  %vm5813 = vcmp.eq.bf16.partialorder %v5496, 2139127680
  %v5814 = vsel %vm5813, %v5496, %v5811
  %vm5816 = vcmp.eq.bf16.partialorder %v5496, 0
  %v5817 = vand.u32 2147450879, 0
  %v5818 = vand.u32 %v5496, 2147516416
  %v5819 = vor.u32 %v5817, %v5818
  %v5820 = vsel %vm5816, %v5819, %v5814
  %v5821 = vrsqrt.bf16.pop %v5497
  %v5822 = vmul.bf16 %v5497, %v5821
  %vm5824 = vcmp.eq.bf16.partialorder %v5497, 2139127680
  %v5825 = vsel %vm5824, %v5497, %v5822
  %vm5827 = vcmp.eq.bf16.partialorder %v5497, 0
  %v5828 = vand.u32 2147450879, 0
  %v5829 = vand.u32 %v5497, 2147516416
  %v5830 = vor.u32 %v5828, %v5829
  %v5831 = vsel %vm5827, %v5830, %v5825
  %v5832 = vrsqrt.bf16.pop %v5498
  %v5833 = vmul.bf16 %v5498, %v5832
  %vm5835 = vcmp.eq.bf16.partialorder %v5498, 2139127680
  %v5836 = vsel %vm5835, %v5498, %v5833
  %vm5838 = vcmp.eq.bf16.partialorder %v5498, 0
  %v5839 = vand.u32 2147450879, 0
  %v5840 = vand.u32 %v5498, 2147516416
  %v5841 = vor.u32 %v5839, %v5840
  %v5842 = vsel %vm5838, %v5841, %v5836
  %v5843 = vrsqrt.bf16.pop %v5499
  %v5844 = vmul.bf16 %v5499, %v5843
  %vm5846 = vcmp.eq.bf16.partialorder %v5499, 2139127680
  %v5847 = vsel %vm5846, %v5499, %v5844
  %vm5849 = vcmp.eq.bf16.partialorder %v5499, 0
  %v5850 = vand.u32 2147450879, 0
  %v5851 = vand.u32 %v5499, 2147516416
  %v5852 = vor.u32 %v5850, %v5851
  %v5853 = vsel %vm5849, %v5852, %v5847
  %v5854 = vrsqrt.bf16.pop %v5500
  %v5855 = vmul.bf16 %v5500, %v5854
  %vm5857 = vcmp.eq.bf16.partialorder %v5500, 2139127680
  %v5858 = vsel %vm5857, %v5500, %v5855
  %vm5860 = vcmp.eq.bf16.partialorder %v5500, 0
  %v5861 = vand.u32 2147450879, 0
  %v5862 = vand.u32 %v5500, 2147516416
  %v5863 = vor.u32 %v5861, %v5862
  %v5864 = vsel %vm5860, %v5863, %v5858
  %v5865 = vrsqrt.bf16.pop %v5501
  %v5866 = vmul.bf16 %v5501, %v5865
  %vm5868 = vcmp.eq.bf16.partialorder %v5501, 2139127680
  %v5869 = vsel %vm5868, %v5501, %v5866
  %vm5871 = vcmp.eq.bf16.partialorder %v5501, 0
  %v5872 = vand.u32 2147450879, 0
  %v5873 = vand.u32 %v5501, 2147516416
  %v5874 = vor.u32 %v5872, %v5873
  %v5875 = vsel %vm5871, %v5874, %v5869
  %v5876 = vrsqrt.bf16.pop %v5502
  %v5877 = vmul.bf16 %v5502, %v5876
  %vm5879 = vcmp.eq.bf16.partialorder %v5502, 2139127680
  %v5880 = vsel %vm5879, %v5502, %v5877
  %vm5882 = vcmp.eq.bf16.partialorder %v5502, 0
  %v5883 = vand.u32 2147450879, 0
  %v5884 = vand.u32 %v5502, 2147516416
  %v5885 = vor.u32 %v5883, %v5884
  %v5886 = vsel %vm5882, %v5885, %v5880
  %v5887 = vrsqrt.bf16.pop %v5503
  %v5888 = vmul.bf16 %v5503, %v5887
  %vm5890 = vcmp.eq.bf16.partialorder %v5503, 2139127680
  %v5891 = vsel %vm5890, %v5503, %v5888
  %vm5893 = vcmp.eq.bf16.partialorder %v5503, 0
  %v5894 = vand.u32 2147450879, 0
  %v5895 = vand.u32 %v5503, 2147516416
  %v5896 = vor.u32 %v5894, %v5895
  %v5897 = vsel %vm5893, %v5896, %v5891
  %v5898 = vrsqrt.bf16.pop %v5504
  %v5899 = vmul.bf16 %v5504, %v5898
  %vm5901 = vcmp.eq.bf16.partialorder %v5504, 2139127680
  %v5902 = vsel %vm5901, %v5504, %v5899
  %vm5904 = vcmp.eq.bf16.partialorder %v5504, 0
  %v5905 = vand.u32 2147450879, 0
  %v5906 = vand.u32 %v5504, 2147516416
  %v5907 = vor.u32 %v5905, %v5906
  %v5908 = vsel %vm5904, %v5907, %v5902
  %v5909 = vrsqrt.bf16.pop %v5505
  %v5910 = vmul.bf16 %v5505, %v5909
  %vm5912 = vcmp.eq.bf16.partialorder %v5505, 2139127680
  %v5913 = vsel %vm5912, %v5505, %v5910
  %vm5915 = vcmp.eq.bf16.partialorder %v5505, 0
  %v5916 = vand.u32 2147450879, 0
  %v5917 = vand.u32 %v5505, 2147516416
  %v5918 = vor.u32 %v5916, %v5917
  %v5919 = vsel %vm5915, %v5918, %v5913
  %v5920 = vrsqrt.bf16.pop %v5506
  %v5921 = vmul.bf16 %v5506, %v5920
  %vm5923 = vcmp.eq.bf16.partialorder %v5506, 2139127680
  %v5924 = vsel %vm5923, %v5506, %v5921
  %vm5926 = vcmp.eq.bf16.partialorder %v5506, 0
  %v5927 = vand.u32 2147450879, 0
  %v5928 = vand.u32 %v5506, 2147516416
  %v5929 = vor.u32 %v5927, %v5928
  %v5930 = vsel %vm5926, %v5929, %v5924
  %v5931 = vrsqrt.bf16.pop %v5507
  %v5932 = vmul.bf16 %v5507, %v5931
  %vm5934 = vcmp.eq.bf16.partialorder %v5507, 2139127680
  %v5935 = vsel %vm5934, %v5507, %v5932
  %vm5937 = vcmp.eq.bf16.partialorder %v5507, 0
  %v5938 = vand.u32 2147450879, 0
  %v5939 = vand.u32 %v5507, 2147516416
  %v5940 = vor.u32 %v5938, %v5939
  %v5941 = vsel %vm5937, %v5940, %v5935
  %v5942 = vrsqrt.bf16.pop %v5508
  %v5943 = vmul.bf16 %v5508, %v5942
  %vm5945 = vcmp.eq.bf16.partialorder %v5508, 2139127680
  %v5946 = vsel %vm5945, %v5508, %v5943
  %vm5948 = vcmp.eq.bf16.partialorder %v5508, 0
  %v5949 = vand.u32 2147450879, 0
  %v5950 = vand.u32 %v5508, 2147516416
  %v5951 = vor.u32 %v5949, %v5950
  %v5952 = vsel %vm5948, %v5951, %v5946
  %v5953 = vrsqrt.bf16.pop %v5509
  %v5954 = vmul.bf16 %v5509, %v5953
  %vm5956 = vcmp.eq.bf16.partialorder %v5509, 2139127680
  %v5957 = vsel %vm5956, %v5509, %v5954
  %vm5959 = vcmp.eq.bf16.partialorder %v5509, 0
  %v5960 = vand.u32 2147450879, 0
  %v5961 = vand.u32 %v5509, 2147516416
  %v5962 = vor.u32 %v5960, %v5961
  %v5963 = vsel %vm5959, %v5962, %v5957
  %v5964 = vrsqrt.bf16.pop %v5510
  %v5965 = vmul.bf16 %v5510, %v5964
  %vm5967 = vcmp.eq.bf16.partialorder %v5510, 2139127680
  %v5968 = vsel %vm5967, %v5510, %v5965
  %vm5970 = vcmp.eq.bf16.partialorder %v5510, 0
  %v5971 = vand.u32 2147450879, 0
  %v5972 = vand.u32 %v5510, 2147516416
  %v5973 = vor.u32 %v5971, %v5972
  %v5974 = vsel %vm5970, %v5973, %v5968
  %v5975 = vrsqrt.bf16.pop %v5511
  %v5976 = vmul.bf16 %v5511, %v5975
  %vm5978 = vcmp.eq.bf16.partialorder %v5511, 2139127680
  %v5979 = vsel %vm5978, %v5511, %v5976
  %vm5981 = vcmp.eq.bf16.partialorder %v5511, 0
  %v5982 = vand.u32 2147450879, 0
  %v5983 = vand.u32 %v5511, 2147516416
  %v5984 = vor.u32 %v5982, %v5983
  %v5985 = vsel %vm5981, %v5984, %v5979
  %v5986 = vrsqrt.bf16.pop %v5512
  %v5987 = vmul.bf16 %v5512, %v5986
  %vm5989 = vcmp.eq.bf16.partialorder %v5512, 2139127680
  %v5990 = vsel %vm5989, %v5512, %v5987
  %vm5992 = vcmp.eq.bf16.partialorder %v5512, 0
  %v5993 = vand.u32 2147450879, 0
  %v5994 = vand.u32 %v5512, 2147516416
  %v5995 = vor.u32 %v5993, %v5994
  %v5996 = vsel %vm5992, %v5995, %v5990
  %v5997 = vrsqrt.bf16.pop %v5513
  %v5998 = vmul.bf16 %v5513, %v5997
  %vm6000 = vcmp.eq.bf16.partialorder %v5513, 2139127680
  %v6001 = vsel %vm6000, %v5513, %v5998
  %vm6003 = vcmp.eq.bf16.partialorder %v5513, 0
  %v6004 = vand.u32 2147450879, 0
  %v6005 = vand.u32 %v5513, 2147516416
  %v6006 = vor.u32 %v6004, %v6005
  %v6007 = vsel %vm6003, %v6006, %v6001
  %v6008 = vrsqrt.bf16.pop %v5514
  %v6009 = vmul.bf16 %v5514, %v6008
  %vm6011 = vcmp.eq.bf16.partialorder %v5514, 2139127680
  %v6012 = vsel %vm6011, %v5514, %v6009
  %vm6014 = vcmp.eq.bf16.partialorder %v5514, 0
  %v6015 = vand.u32 2147450879, 0
  %v6016 = vand.u32 %v5514, 2147516416
  %v6017 = vor.u32 %v6015, %v6016
  %v6018 = vsel %vm6014, %v6017, %v6012
  %v6019 = vrsqrt.bf16.pop %v5515
  %v6020 = vmul.bf16 %v5515, %v6019
  %vm6022 = vcmp.eq.bf16.partialorder %v5515, 2139127680
  %v6023 = vsel %vm6022, %v5515, %v6020
  %vm6025 = vcmp.eq.bf16.partialorder %v5515, 0
  %v6026 = vand.u32 2147450879, 0
  %v6027 = vand.u32 %v5515, 2147516416
  %v6028 = vor.u32 %v6026, %v6027
  %v6029 = vsel %vm6025, %v6028, %v6023
  %v6030 = vrsqrt.bf16.pop %v5516
  %v6031 = vmul.bf16 %v5516, %v6030
  %vm6033 = vcmp.eq.bf16.partialorder %v5516, 2139127680
  %v6034 = vsel %vm6033, %v5516, %v6031
  %vm6036 = vcmp.eq.bf16.partialorder %v5516, 0
  %v6037 = vand.u32 2147450879, 0
  %v6038 = vand.u32 %v5516, 2147516416
  %v6039 = vor.u32 %v6037, %v6038
  %v6040 = vsel %vm6036, %v6039, %v6034
  %v6041 = vrsqrt.bf16.pop %v5517
  %v6042 = vmul.bf16 %v5517, %v6041
  %vm6044 = vcmp.eq.bf16.partialorder %v5517, 2139127680
  %v6045 = vsel %vm6044, %v5517, %v6042
  %vm6047 = vcmp.eq.bf16.partialorder %v5517, 0
  %v6048 = vand.u32 2147450879, 0
  %v6049 = vand.u32 %v5517, 2147516416
  %v6050 = vor.u32 %v6048, %v6049
  %v6051 = vsel %vm6047, %v6050, %v6045
  %v6052 = vrsqrt.bf16.pop %v5518
  %v6053 = vmul.bf16 %v5518, %v6052
  %vm6055 = vcmp.eq.bf16.partialorder %v5518, 2139127680
  %v6056 = vsel %vm6055, %v5518, %v6053
  %vm6058 = vcmp.eq.bf16.partialorder %v5518, 0
  %v6059 = vand.u32 2147450879, 0
  %v6060 = vand.u32 %v5518, 2147516416
  %v6061 = vor.u32 %v6059, %v6060
  %v6062 = vsel %vm6058, %v6061, %v6056
  %v6063 = vrsqrt.bf16.pop %v5519
  %v6064 = vmul.bf16 %v5519, %v6063
  %vm6066 = vcmp.eq.bf16.partialorder %v5519, 2139127680
  %v6067 = vsel %vm6066, %v5519, %v6064
  %vm6069 = vcmp.eq.bf16.partialorder %v5519, 0
  %v6070 = vand.u32 2147450879, 0
  %v6071 = vand.u32 %v5519, 2147516416
  %v6072 = vor.u32 %v6070, %v6071
  %v6073 = vsel %vm6069, %v6072, %v6067
  %v6074 = vrsqrt.bf16.pop %v5520
  %v6075 = vmul.bf16 %v5520, %v6074
  %vm6077 = vcmp.eq.bf16.partialorder %v5520, 2139127680
  %v6078 = vsel %vm6077, %v5520, %v6075
  %vm6080 = vcmp.eq.bf16.partialorder %v5520, 0
  %v6081 = vand.u32 2147450879, 0
  %v6082 = vand.u32 %v5520, 2147516416
  %v6083 = vor.u32 %v6081, %v6082
  %v6084 = vsel %vm6080, %v6083, %v6078
  %v6085 = vrsqrt.bf16.pop %v5521
  %v6086 = vmul.bf16 %v5521, %v6085
  %vm6088 = vcmp.eq.bf16.partialorder %v5521, 2139127680
  %v6089 = vsel %vm6088, %v5521, %v6086
  %vm6091 = vcmp.eq.bf16.partialorder %v5521, 0
  %v6092 = vand.u32 2147450879, 0
  %v6093 = vand.u32 %v5521, 2147516416
  %v6094 = vor.u32 %v6092, %v6093
  %v6095 = vsel %vm6091, %v6094, %v6089
  %v6096 = vrsqrt.bf16.pop %v5522
  %v6097 = vmul.bf16 %v5522, %v6096
  %vm6099 = vcmp.eq.bf16.partialorder %v5522, 2139127680
  %v6100 = vsel %vm6099, %v5522, %v6097
  %vm6102 = vcmp.eq.bf16.partialorder %v5522, 0
  %v6103 = vand.u32 2147450879, 0
  %v6104 = vand.u32 %v5522, 2147516416
  %v6105 = vor.u32 %v6103, %v6104
  %v6106 = vsel %vm6102, %v6105, %v6100
  %v6107 = vrsqrt.bf16.pop %v5523
  %v6108 = vmul.bf16 %v5523, %v6107
  %vm6110 = vcmp.eq.bf16.partialorder %v5523, 2139127680
  %v6111 = vsel %vm6110, %v5523, %v6108
  %vm6113 = vcmp.eq.bf16.partialorder %v5523, 0
  %v6114 = vand.u32 2147450879, 0
  %v6115 = vand.u32 %v5523, 2147516416
  %v6116 = vor.u32 %v6114, %v6115
  %v6117 = vsel %vm6113, %v6116, %v6111
  %v6118 = vrsqrt.bf16.pop %v5524
  %v6119 = vmul.bf16 %v5524, %v6118
  %vm6121 = vcmp.eq.bf16.partialorder %v5524, 2139127680
  %v6122 = vsel %vm6121, %v5524, %v6119
  %vm6124 = vcmp.eq.bf16.partialorder %v5524, 0
  %v6125 = vand.u32 2147450879, 0
  %v6126 = vand.u32 %v5524, 2147516416
  %v6127 = vor.u32 %v6125, %v6126
  %v6128 = vsel %vm6124, %v6127, %v6122
  %v6129 = vrsqrt.bf16.pop %v5525
  %v6130 = vmul.bf16 %v5525, %v6129
  %vm6132 = vcmp.eq.bf16.partialorder %v5525, 2139127680
  %v6133 = vsel %vm6132, %v5525, %v6130
  %vm6135 = vcmp.eq.bf16.partialorder %v5525, 0
  %v6136 = vand.u32 2147450879, 0
  %v6137 = vand.u32 %v5525, 2147516416
  %v6138 = vor.u32 %v6136, %v6137
  %v6139 = vsel %vm6135, %v6138, %v6133
  %v6140 = vrsqrt.bf16.pop %v5526
  %v6141 = vmul.bf16 %v5526, %v6140
  %vm6143 = vcmp.eq.bf16.partialorder %v5526, 2139127680
  %v6144 = vsel %vm6143, %v5526, %v6141
  %vm6146 = vcmp.eq.bf16.partialorder %v5526, 0
  %v6147 = vand.u32 2147450879, 0
  %v6148 = vand.u32 %v5526, 2147516416
  %v6149 = vor.u32 %v6147, %v6148
  %v6150 = vsel %vm6146, %v6149, %v6144
  %v6151 = vrsqrt.bf16.pop %v5527
  %v6152 = vmul.bf16 %v5527, %v6151
  %vm6154 = vcmp.eq.bf16.partialorder %v5527, 2139127680
  %v6155 = vsel %vm6154, %v5527, %v6152
  %vm6157 = vcmp.eq.bf16.partialorder %v5527, 0
  %v6158 = vand.u32 2147450879, 0
  %v6159 = vand.u32 %v5527, 2147516416
  %v6160 = vor.u32 %v6158, %v6159
  %v6161 = vsel %vm6157, %v6160, %v6155
  %v6162 = vrsqrt.bf16.pop %v5528
  %v6163 = vmul.bf16 %v5528, %v6162
  %vm6165 = vcmp.eq.bf16.partialorder %v5528, 2139127680
  %v6166 = vsel %vm6165, %v5528, %v6163
  %vm6168 = vcmp.eq.bf16.partialorder %v5528, 0
  %v6169 = vand.u32 2147450879, 0
  %v6170 = vand.u32 %v5528, 2147516416
  %v6171 = vor.u32 %v6169, %v6170
  %v6172 = vsel %vm6168, %v6171, %v6166
  %v6173 = vrsqrt.bf16.pop %v5529
  %v6174 = vmul.bf16 %v5529, %v6173
  %vm6176 = vcmp.eq.bf16.partialorder %v5529, 2139127680
  %v6177 = vsel %vm6176, %v5529, %v6174
  %vm6179 = vcmp.eq.bf16.partialorder %v5529, 0
  %v6180 = vand.u32 2147450879, 0
  %v6181 = vand.u32 %v5529, 2147516416
  %v6182 = vor.u32 %v6180, %v6181
  %v6183 = vsel %vm6179, %v6182, %v6177
  %v6184 = vrsqrt.bf16.pop %v5530
  %v6185 = vmul.bf16 %v5530, %v6184
  %vm6187 = vcmp.eq.bf16.partialorder %v5530, 2139127680
  %v6188 = vsel %vm6187, %v5530, %v6185
  %vm6190 = vcmp.eq.bf16.partialorder %v5530, 0
  %v6191 = vand.u32 2147450879, 0
  %v6192 = vand.u32 %v5530, 2147516416
  %v6193 = vor.u32 %v6191, %v6192
  %v6194 = vsel %vm6190, %v6193, %v6188
  %v6195 = vrsqrt.bf16.pop %v5531
  %v6196 = vmul.bf16 %v5531, %v6195
  %vm6198 = vcmp.eq.bf16.partialorder %v5531, 2139127680
  %v6199 = vsel %vm6198, %v5531, %v6196
  %vm6201 = vcmp.eq.bf16.partialorder %v5531, 0
  %v6202 = vand.u32 2147450879, 0
  %v6203 = vand.u32 %v5531, 2147516416
  %v6204 = vor.u32 %v6202, %v6203
  %v6205 = vsel %vm6201, %v6204, %v6199
  %v6206 = vrsqrt.bf16.pop %v5532
  %v6207 = vmul.bf16 %v5532, %v6206
  %vm6209 = vcmp.eq.bf16.partialorder %v5532, 2139127680
  %v6210 = vsel %vm6209, %v5532, %v6207
  %vm6212 = vcmp.eq.bf16.partialorder %v5532, 0
  %v6213 = vand.u32 2147450879, 0
  %v6214 = vand.u32 %v5532, 2147516416
  %v6215 = vor.u32 %v6213, %v6214
  %v6216 = vsel %vm6212, %v6215, %v6210
  %v6217 = vrsqrt.bf16.pop %v5533
  %v6218 = vmul.bf16 %v5533, %v6217
  %vm6220 = vcmp.eq.bf16.partialorder %v5533, 2139127680
  %v6221 = vsel %vm6220, %v5533, %v6218
  %vm6223 = vcmp.eq.bf16.partialorder %v5533, 0
  %v6224 = vand.u32 2147450879, 0
  %v6225 = vand.u32 %v5533, 2147516416
  %v6226 = vor.u32 %v6224, %v6225
  %v6227 = vsel %vm6223, %v6226, %v6221
  %v6228 = vrsqrt.bf16.pop %v5534
  %v6229 = vmul.bf16 %v5534, %v6228
  %vm6231 = vcmp.eq.bf16.partialorder %v5534, 2139127680
  %v6232 = vsel %vm6231, %v5534, %v6229
  %vm6234 = vcmp.eq.bf16.partialorder %v5534, 0
  %v6235 = vand.u32 2147450879, 0
  %v6236 = vand.u32 %v5534, 2147516416
  %v6237 = vor.u32 %v6235, %v6236
  %v6238 = vsel %vm6234, %v6237, %v6232
  %v6239 = vld [vmem:[%s2] sm:$0xf]
  %v6240 = vld [vmem:[%s2 + $0x4] sm:$0xf]
  %v6241 = vld [vmem:[%s2 + $0x8] sm:$0xf]
  %v6242 = vld [vmem:[%s2 + $0xc] sm:$0xf]
  %v6243 = vld [vmem:[%s2 + $0x10] sm:$0xf]
  %v6244 = vld [vmem:[%s2 + $0x14] sm:$0xf]
  %v6245 = vld [vmem:[%s2 + $0x18] sm:$0xf]
  %v6246 = vld [vmem:[%s2 + $0x1c] sm:$0xf]
  %v6247 = vld [vmem:[%s2 + $0x20] sm:$0xf]
  %v6248 = vld [vmem:[%s2 + $0x24] sm:$0xf]
  %v6249 = vld [vmem:[%s2 + $0x28] sm:$0xf]
  %v6250 = vld [vmem:[%s2 + $0x2c] sm:$0xf]
  %v6251 = vld [vmem:[%s2 + $0x30] sm:$0xf]
  %v6252 = vld [vmem:[%s2 + $0x34] sm:$0xf]
  %v6253 = vld [vmem:[%s2 + $0x38] sm:$0xf]
  %v6254 = vld [vmem:[%s2 + $0x3c] sm:$0xf]
  %v6255 = vld [vmem:[%s2 + $0x40] sm:$0xf]
  %v6256 = vld [vmem:[%s2 + $0x44] sm:$0xf]
  %v6257 = vld [vmem:[%s2 + $0x48] sm:$0xf]
  %v6258 = vld [vmem:[%s2 + $0x4c] sm:$0xf]
  %v6259 = vld [vmem:[%s2 + $0x50] sm:$0xf]
  %v6260 = vld [vmem:[%s2 + $0x54] sm:$0xf]
  %v6261 = vld [vmem:[%s2 + $0x58] sm:$0xf]
  %v6262 = vld [vmem:[%s2 + $0x5c] sm:$0xf]
  %v6263 = vld [vmem:[%s2 + $0x60] sm:$0xf]
  %v6264 = vld [vmem:[%s2 + $0x64] sm:$0xf]
  %v6265 = vld [vmem:[%s2 + $0x68] sm:$0xf]
  %v6266 = vld [vmem:[%s2 + $0x6c] sm:$0xf]
  %v6267 = vld [vmem:[%s2 + $0x70] sm:$0xf]
  %v6268 = vld [vmem:[%s2 + $0x74] sm:$0xf]
  %v6269 = vld [vmem:[%s2 + $0x78] sm:$0xf]
  %v6270 = vld [vmem:[%s2 + $0x7c] sm:$0xf]
  %v6271 = vld [vmem:[%s2 + $0x80] sm:$0xf]
  %v6272 = vld [vmem:[%s2 + $0x84] sm:$0xf]
  %v6273 = vld [vmem:[%s2 + $0x88] sm:$0xf]
  %v6274 = vld [vmem:[%s2 + $0x8c] sm:$0xf]
  %v6275 = vld [vmem:[%s2 + $0x90] sm:$0xf]
  %v6276 = vld [vmem:[%s2 + $0x94] sm:$0xf]
  %v6277 = vld [vmem:[%s2 + $0x98] sm:$0xf]
  %v6278 = vld [vmem:[%s2 + $0x9c] sm:$0xf]
  %v6279 = vld [vmem:[%s2 + $0xa0] sm:$0xf]
  %v6280 = vld [vmem:[%s2 + $0xa4] sm:$0xf]
  %v6281 = vld [vmem:[%s2 + $0xa8] sm:$0xf]
  %v6282 = vld [vmem:[%s2 + $0xac] sm:$0xf]
  %v6283 = vld [vmem:[%s2 + $0xb0] sm:$0xf]
  %v6284 = vld [vmem:[%s2 + $0xb4] sm:$0xf]
  %v6285 = vld [vmem:[%s2 + $0xb8] sm:$0xf]
  %v6286 = vld [vmem:[%s2 + $0xbc] sm:$0xf]
  %v6287 = vld [vmem:[%s2 + $0xc0] sm:$0xf]
  %v6288 = vld [vmem:[%s2 + $0xc4] sm:$0xf]
  %v6289 = vld [vmem:[%s2 + $0xc8] sm:$0xf]
  %v6290 = vld [vmem:[%s2 + $0xcc] sm:$0xf]
  %v6291 = vld [vmem:[%s2 + $0xd0] sm:$0xf]
  %v6292 = vld [vmem:[%s2 + $0xd4] sm:$0xf]
  %v6293 = vld [vmem:[%s2 + $0xd8] sm:$0xf]
  %v6294 = vld [vmem:[%s2 + $0xdc] sm:$0xf]
  %v6295 = vld [vmem:[%s2 + $0xe0] sm:$0xf]
  %v6296 = vld [vmem:[%s2 + $0xe4] sm:$0xf]
  %v6297 = vld [vmem:[%s2 + $0xe8] sm:$0xf]
  %v6298 = vld [vmem:[%s2 + $0xec] sm:$0xf]
  %v6299 = vld [vmem:[%s2 + $0xf0] sm:$0xf]
  %v6300 = vld [vmem:[%s2 + $0xf4] sm:$0xf]
  %v6301 = vld [vmem:[%s2 + $0xf8] sm:$0xf]
  %v6302 = vld [vmem:[%s2 + $0xfc] sm:$0xf]
  %v6303 = vld [vmem:[%s2 + $0x100] sm:$0xf]
  %v6304 = vld [vmem:[%s2 + $0x104] sm:$0xf]
  %v6305 = vld [vmem:[%s2 + $0x108] sm:$0xf]
  %v6306 = vld [vmem:[%s2 + $0x10c] sm:$0xf]
  %v6307 = vld [vmem:[%s2 + $0x110] sm:$0xf]
  %v6308 = vld [vmem:[%s2 + $0x114] sm:$0xf]
  %v6309 = vld [vmem:[%s2 + $0x118] sm:$0xf]
  %v6310 = vld [vmem:[%s2 + $0x11c] sm:$0xf]
  %v6311 = vld [vmem:[%s2 + $0x120] sm:$0xf]
  %v6312 = vld [vmem:[%s2 + $0x124] sm:$0xf]
  %v6313 = vld [vmem:[%s2 + $0x128] sm:$0xf]
  %v6314 = vld [vmem:[%s2 + $0x12c] sm:$0xf]
  %v6315 = vld [vmem:[%s2 + $0x130] sm:$0xf]
  %v6316 = vld [vmem:[%s2 + $0x134] sm:$0xf]
  %v6317 = vld [vmem:[%s2 + $0x138] sm:$0xf]
  %v6318 = vld [vmem:[%s2 + $0x13c] sm:$0xf]
  %v6319 = vld [vmem:[%s2 + $0x140] sm:$0xf]
  %v6320 = vld [vmem:[%s2 + $0x144] sm:$0xf]
  %v6321 = vld [vmem:[%s2 + $0x148] sm:$0xf]
  %v6322 = vld [vmem:[%s2 + $0x14c] sm:$0xf]
  %v6323 = vld [vmem:[%s2 + $0x150] sm:$0xf]
  %v6324 = vld [vmem:[%s2 + $0x154] sm:$0xf]
  %v6325 = vld [vmem:[%s2 + $0x158] sm:$0xf]
  %v6326 = vld [vmem:[%s2 + $0x15c] sm:$0xf]
  %v6327 = vld [vmem:[%s2 + $0x160] sm:$0xf]
  %v6328 = vld [vmem:[%s2 + $0x164] sm:$0xf]
  %v6329 = vld [vmem:[%s2 + $0x168] sm:$0xf]
  %v6330 = vld [vmem:[%s2 + $0x16c] sm:$0xf]
  %v6331 = vld [vmem:[%s2 + $0x170] sm:$0xf]
  %v6332 = vld [vmem:[%s2 + $0x174] sm:$0xf]
  %v6333 = vld [vmem:[%s2 + $0x178] sm:$0xf]
  %v6334 = vld [vmem:[%s2 + $0x17c] sm:$0xf]
  %v6335 = vld [vmem:[%s2 + $0x180] sm:$0xf]
  %v6336 = vld [vmem:[%s2 + $0x184] sm:$0xf]
  %v6337 = vld [vmem:[%s2 + $0x188] sm:$0xf]
  %v6338 = vld [vmem:[%s2 + $0x18c] sm:$0xf]
  %v6339 = vld [vmem:[%s2 + $0x190] sm:$0xf]
  %v6340 = vld [vmem:[%s2 + $0x194] sm:$0xf]
  %v6341 = vld [vmem:[%s2 + $0x198] sm:$0xf]
  %v6342 = vld [vmem:[%s2 + $0x19c] sm:$0xf]
  %v6343 = vld [vmem:[%s2 + $0x1a0] sm:$0xf]
  %v6344 = vld [vmem:[%s2 + $0x1a4] sm:$0xf]
  %v6345 = vld [vmem:[%s2 + $0x1a8] sm:$0xf]
  %v6346 = vld [vmem:[%s2 + $0x1ac] sm:$0xf]
  %v6347 = vld [vmem:[%s2 + $0x1b0] sm:$0xf]
  %v6348 = vld [vmem:[%s2 + $0x1b4] sm:$0xf]
  %v6349 = vld [vmem:[%s2 + $0x1b8] sm:$0xf]
  %v6350 = vld [vmem:[%s2 + $0x1bc] sm:$0xf]
  %v6351 = vld [vmem:[%s2 + $0x1c0] sm:$0xf]
  %v6352 = vld [vmem:[%s2 + $0x1c4] sm:$0xf]
  %v6353 = vld [vmem:[%s2 + $0x1c8] sm:$0xf]
  %v6354 = vld [vmem:[%s2 + $0x1cc] sm:$0xf]
  %v6355 = vld [vmem:[%s2 + $0x1d0] sm:$0xf]
  %v6356 = vld [vmem:[%s2 + $0x1d4] sm:$0xf]
  %v6357 = vld [vmem:[%s2 + $0x1d8] sm:$0xf]
  %v6358 = vld [vmem:[%s2 + $0x1dc] sm:$0xf]
  %v6359 = vld [vmem:[%s2 + $0x1e0] sm:$0xf]
  %v6360 = vld [vmem:[%s2 + $0x1e4] sm:$0xf]
  %v6361 = vld [vmem:[%s2 + $0x1e8] sm:$0xf]
  %v6362 = vld [vmem:[%s2 + $0x1ec] sm:$0xf]
  %v6363 = vld [vmem:[%s2 + $0x1f0] sm:$0xf]
  %v6364 = vld [vmem:[%s2 + $0x1f4] sm:$0xf]
  %v6365 = vld [vmem:[%s2 + $0x1f8] sm:$0xf]
  %v6366 = vld [vmem:[%s2 + $0x1fc] sm:$0xf]
  %v6495 = vunpack.c.l.b16 %v6239
  %v6496 = vunpack.c.l.b16 %v6240
  %v6497 = vunpack.c.l.b16 %v6241
  %v6498 = vunpack.c.l.b16 %v6242
  %v6499 = vunpack.c.l.b16 %v6243
  %v6500 = vunpack.c.l.b16 %v6244
  %v6501 = vunpack.c.l.b16 %v6245
  %v6502 = vunpack.c.l.b16 %v6246
  %v6503 = vunpack.c.l.b16 %v6247
  %v6504 = vunpack.c.l.b16 %v6248
  %v6505 = vunpack.c.l.b16 %v6249
  %v6506 = vunpack.c.l.b16 %v6250
  %v6507 = vunpack.c.l.b16 %v6251
  %v6508 = vunpack.c.l.b16 %v6252
  %v6509 = vunpack.c.l.b16 %v6253
  %v6510 = vunpack.c.l.b16 %v6254
  %v6511 = vunpack.c.l.b16 %v6255
  %v6512 = vunpack.c.l.b16 %v6256
  %v6513 = vunpack.c.l.b16 %v6257
  %v6514 = vunpack.c.l.b16 %v6258
  %v6515 = vunpack.c.l.b16 %v6259
  %v6516 = vunpack.c.l.b16 %v6260
  %v6517 = vunpack.c.l.b16 %v6261
  %v6518 = vunpack.c.l.b16 %v6262
  %v6519 = vunpack.c.l.b16 %v6263
  %v6520 = vunpack.c.l.b16 %v6264
  %v6521 = vunpack.c.l.b16 %v6265
  %v6522 = vunpack.c.l.b16 %v6266
  %v6523 = vunpack.c.l.b16 %v6267
  %v6524 = vunpack.c.l.b16 %v6268
  %v6525 = vunpack.c.l.b16 %v6269
  %v6526 = vunpack.c.l.b16 %v6270
  %v6527 = vunpack.c.l.b16 %v6271
  %v6528 = vunpack.c.l.b16 %v6272
  %v6529 = vunpack.c.l.b16 %v6273
  %v6530 = vunpack.c.l.b16 %v6274
  %v6531 = vunpack.c.l.b16 %v6275
  %v6532 = vunpack.c.l.b16 %v6276
  %v6533 = vunpack.c.l.b16 %v6277
  %v6534 = vunpack.c.l.b16 %v6278
  %v6535 = vunpack.c.l.b16 %v6279
  %v6536 = vunpack.c.l.b16 %v6280
  %v6537 = vunpack.c.l.b16 %v6281
  %v6538 = vunpack.c.l.b16 %v6282
  %v6539 = vunpack.c.l.b16 %v6283
  %v6540 = vunpack.c.l.b16 %v6284
  %v6541 = vunpack.c.l.b16 %v6285
  %v6542 = vunpack.c.l.b16 %v6286
  %v6543 = vunpack.c.l.b16 %v6287
  %v6544 = vunpack.c.l.b16 %v6288
  %v6545 = vunpack.c.l.b16 %v6289
  %v6546 = vunpack.c.l.b16 %v6290
  %v6547 = vunpack.c.l.b16 %v6291
  %v6548 = vunpack.c.l.b16 %v6292
  %v6549 = vunpack.c.l.b16 %v6293
  %v6550 = vunpack.c.l.b16 %v6294
  %v6551 = vunpack.c.l.b16 %v6295
  %v6552 = vunpack.c.l.b16 %v6296
  %v6553 = vunpack.c.l.b16 %v6297
  %v6554 = vunpack.c.l.b16 %v6298
  %v6555 = vunpack.c.l.b16 %v6299
  %v6556 = vunpack.c.l.b16 %v6300
  %v6557 = vunpack.c.l.b16 %v6301
  %v6558 = vunpack.c.l.b16 %v6302
  %v6559 = vunpack.c.l.b16 %v6303
  %v6560 = vunpack.c.l.b16 %v6304
  %v6561 = vunpack.c.l.b16 %v6305
  %v6562 = vunpack.c.l.b16 %v6306
  %v6563 = vunpack.c.l.b16 %v6307
  %v6564 = vunpack.c.l.b16 %v6308
  %v6565 = vunpack.c.l.b16 %v6309
  %v6566 = vunpack.c.l.b16 %v6310
  %v6567 = vunpack.c.l.b16 %v6311
  %v6568 = vunpack.c.l.b16 %v6312
  %v6569 = vunpack.c.l.b16 %v6313
  %v6570 = vunpack.c.l.b16 %v6314
  %v6571 = vunpack.c.l.b16 %v6315
  %v6572 = vunpack.c.l.b16 %v6316
  %v6573 = vunpack.c.l.b16 %v6317
  %v6574 = vunpack.c.l.b16 %v6318
  %v6575 = vunpack.c.l.b16 %v6319
  %v6576 = vunpack.c.l.b16 %v6320
  %v6577 = vunpack.c.l.b16 %v6321
  %v6578 = vunpack.c.l.b16 %v6322
  %v6579 = vunpack.c.l.b16 %v6323
  %v6580 = vunpack.c.l.b16 %v6324
  %v6581 = vunpack.c.l.b16 %v6325
  %v6582 = vunpack.c.l.b16 %v6326
  %v6583 = vunpack.c.l.b16 %v6327
  %v6584 = vunpack.c.l.b16 %v6328
  %v6585 = vunpack.c.l.b16 %v6329
  %v6586 = vunpack.c.l.b16 %v6330
  %v6587 = vunpack.c.l.b16 %v6331
  %v6588 = vunpack.c.l.b16 %v6332
  %v6589 = vunpack.c.l.b16 %v6333
  %v6590 = vunpack.c.l.b16 %v6334
  %v6591 = vunpack.c.l.b16 %v6335
  %v6592 = vunpack.c.l.b16 %v6336
  %v6593 = vunpack.c.l.b16 %v6337
  %v6594 = vunpack.c.l.b16 %v6338
  %v6595 = vunpack.c.l.b16 %v6339
  %v6596 = vunpack.c.l.b16 %v6340
  %v6597 = vunpack.c.l.b16 %v6341
  %v6598 = vunpack.c.l.b16 %v6342
  %v6599 = vunpack.c.l.b16 %v6343
  %v6600 = vunpack.c.l.b16 %v6344
  %v6601 = vunpack.c.l.b16 %v6345
  %v6602 = vunpack.c.l.b16 %v6346
  %v6603 = vunpack.c.l.b16 %v6347
  %v6604 = vunpack.c.l.b16 %v6348
  %v6605 = vunpack.c.l.b16 %v6349
  %v6606 = vunpack.c.l.b16 %v6350
  %v6607 = vunpack.c.l.b16 %v6351
  %v6608 = vunpack.c.l.b16 %v6352
  %v6609 = vunpack.c.l.b16 %v6353
  %v6610 = vunpack.c.l.b16 %v6354
  %v6611 = vunpack.c.l.b16 %v6355
  %v6612 = vunpack.c.l.b16 %v6356
  %v6613 = vunpack.c.l.b16 %v6357
  %v6614 = vunpack.c.l.b16 %v6358
  %v6615 = vunpack.c.l.b16 %v6359
  %v6616 = vunpack.c.l.b16 %v6360
  %v6617 = vunpack.c.l.b16 %v6361
  %v6618 = vunpack.c.l.b16 %v6362
  %v6619 = vunpack.c.l.b16 %v6363
  %v6620 = vunpack.c.l.b16 %v6364
  %v6621 = vunpack.c.l.b16 %v6365
  %v6622 = vunpack.c.l.b16 %v6366
  %v6623 = vpack.c.b16 %v6496, %v6495
  %v6624 = vpack.c.b16 %v6498, %v6497
  %v6625 = vpack.c.b16 %v6500, %v6499
  %v6626 = vpack.c.b16 %v6502, %v6501
  %v6627 = vpack.c.b16 %v6504, %v6503
  %v6628 = vpack.c.b16 %v6506, %v6505
  %v6629 = vpack.c.b16 %v6508, %v6507
  %v6630 = vpack.c.b16 %v6510, %v6509
  %v6631 = vpack.c.b16 %v6512, %v6511
  %v6632 = vpack.c.b16 %v6514, %v6513
  %v6633 = vpack.c.b16 %v6516, %v6515
  %v6634 = vpack.c.b16 %v6518, %v6517
  %v6635 = vpack.c.b16 %v6520, %v6519
  %v6636 = vpack.c.b16 %v6522, %v6521
  %v6637 = vpack.c.b16 %v6524, %v6523
  %v6638 = vpack.c.b16 %v6526, %v6525
  %v6639 = vpack.c.b16 %v6528, %v6527
  %v6640 = vpack.c.b16 %v6530, %v6529
  %v6641 = vpack.c.b16 %v6532, %v6531
  %v6642 = vpack.c.b16 %v6534, %v6533
  %v6643 = vpack.c.b16 %v6536, %v6535
  %v6644 = vpack.c.b16 %v6538, %v6537
  %v6645 = vpack.c.b16 %v6540, %v6539
  %v6646 = vpack.c.b16 %v6542, %v6541
  %v6647 = vpack.c.b16 %v6544, %v6543
  %v6648 = vpack.c.b16 %v6546, %v6545
  %v6649 = vpack.c.b16 %v6548, %v6547
  %v6650 = vpack.c.b16 %v6550, %v6549
  %v6651 = vpack.c.b16 %v6552, %v6551
  %v6652 = vpack.c.b16 %v6554, %v6553
  %v6653 = vpack.c.b16 %v6556, %v6555
  %v6654 = vpack.c.b16 %v6558, %v6557
  %v6655 = vpack.c.b16 %v6560, %v6559
  %v6656 = vpack.c.b16 %v6562, %v6561
  %v6657 = vpack.c.b16 %v6564, %v6563
  %v6658 = vpack.c.b16 %v6566, %v6565
  %v6659 = vpack.c.b16 %v6568, %v6567
  %v6660 = vpack.c.b16 %v6570, %v6569
  %v6661 = vpack.c.b16 %v6572, %v6571
  %v6662 = vpack.c.b16 %v6574, %v6573
  %v6663 = vpack.c.b16 %v6576, %v6575
  %v6664 = vpack.c.b16 %v6578, %v6577
  %v6665 = vpack.c.b16 %v6580, %v6579
  %v6666 = vpack.c.b16 %v6582, %v6581
  %v6667 = vpack.c.b16 %v6584, %v6583
  %v6668 = vpack.c.b16 %v6586, %v6585
  %v6669 = vpack.c.b16 %v6588, %v6587
  %v6670 = vpack.c.b16 %v6590, %v6589
  %v6671 = vpack.c.b16 %v6592, %v6591
  %v6672 = vpack.c.b16 %v6594, %v6593
  %v6673 = vpack.c.b16 %v6596, %v6595
  %v6674 = vpack.c.b16 %v6598, %v6597
  %v6675 = vpack.c.b16 %v6600, %v6599
  %v6676 = vpack.c.b16 %v6602, %v6601
  %v6677 = vpack.c.b16 %v6604, %v6603
  %v6678 = vpack.c.b16 %v6606, %v6605
  %v6679 = vpack.c.b16 %v6608, %v6607
  %v6680 = vpack.c.b16 %v6610, %v6609
  %v6681 = vpack.c.b16 %v6612, %v6611
  %v6682 = vpack.c.b16 %v6614, %v6613
  %v6683 = vpack.c.b16 %v6616, %v6615
  %v6684 = vpack.c.b16 %v6618, %v6617
  %v6685 = vpack.c.b16 %v6620, %v6619
  %v6686 = vpack.c.b16 %v6622, %v6621
  %6751 = vmatprep.subr.bf16.mxu0 0
  %6752 = vmatpush1.bf16.msra.mxu0 %v6623
  %6753 = vmatprep.subr.bf16.mxu0 0
  %6754 = vmatpush1.bf16.msra.mxu0 %v6624
  %6755 = vmatprep.subr.bf16.mxu0 0
  %6756 = vmatpush1.bf16.msra.mxu0 %v6625
  %6757 = vmatprep.subr.bf16.mxu0 0
  %6758 = vmatpush1.bf16.msra.mxu0 %v6626
  %6759 = vmatprep.subr.bf16.mxu0 0
  %6760 = vmatpush1.bf16.msra.mxu0 %v6627
  %6761 = vmatprep.subr.bf16.mxu0 0
  %6762 = vmatpush1.bf16.msra.mxu0 %v6628
  %6763 = vmatprep.subr.bf16.mxu0 0
  %6764 = vmatpush1.bf16.msra.mxu0 %v6629
  %6765 = vmatprep.subr.bf16.mxu0 0
  %6766 = vmatpush1.bf16.msra.mxu0 %v6630
  %6767 = vmatprep.subr.bf16.mxu0 0
  %6768 = vmatpush1.bf16.msra.mxu0 %v6631
  %6769 = vmatprep.subr.bf16.mxu0 0
  %6770 = vmatpush1.bf16.msra.mxu0 %v6632
  %6771 = vmatprep.subr.bf16.mxu0 0
  %6772 = vmatpush1.bf16.msra.mxu0 %v6633
  %6773 = vmatprep.subr.bf16.mxu0 0
  %6774 = vmatpush1.bf16.msra.mxu0 %v6634
  %6775 = vmatprep.subr.bf16.mxu0 0
  %6776 = vmatpush1.bf16.msra.mxu0 %v6635
  %6777 = vmatprep.subr.bf16.mxu0 0
  %6778 = vmatpush1.bf16.msra.mxu0 %v6636
  %6779 = vmatprep.subr.bf16.mxu0 0
  %6780 = vmatpush1.bf16.msra.mxu0 %v6637
  %6781 = vmatprep.subr.bf16.mxu0 0
  %6782 = vmatpush1.bf16.msra.mxu0 %v6638
  %6783 = vmatprep.mubr.bf16.mxu0 %v5556
  %6784 = vmatmul.mubr.bf16.gmra.mrb[0].mxu0 %v5545
  %v6785 = vpop.f32.mrb[0].mxu0
  %v6786 = vadd.f32 0.0, %v6785
  %v6787 = vpop.f32.mrb[0].mxu0
  %v6788 = vpop.f32.mrb[0].mxu0
  %v6789 = vadd.f32 0.0, %v6788
  %v6790 = vpop.f32.mrb[0].mxu0
  %6791 = vmatprep.mubr.bf16.mxu0 %v5644
  %6792 = vmatmul.mubr.bf16.gmra.mrb[0].mxu0 %v5633
  %v6793 = vpop.f32.mrb[0].mxu0
  %v6794 = vadd.f32 0.0, %v6793
  %v6795 = vpop.f32.mrb[0].mxu0
  %v6796 = vpop.f32.mrb[0].mxu0
  %v6797 = vadd.f32 0.0, %v6796
  %v6798 = vpop.f32.mrb[0].mxu0
  %6799 = vmatprep.mubr.bf16.mxu0 %v5732
  %6800 = vmatmul.mubr.bf16.gmra.mrb[0].mxu0 %v5721
  %v6801 = vpop.f32.mrb[0].mxu0
  %v6802 = vadd.f32 0.0, %v6801
  %v6803 = vpop.f32.mrb[0].mxu0
  %v6804 = vpop.f32.mrb[0].mxu0
  %v6805 = vadd.f32 0.0, %v6804
  %v6806 = vpop.f32.mrb[0].mxu0
  %6807 = vmatprep.mubr.bf16.mxu0 %v5820
  %6808 = vmatmul.mubr.bf16.gmra.mrb[0].mxu0 %v5809
  %v6809 = vpop.f32.mrb[0].mxu0
  %v6810 = vadd.f32 0.0, %v6809
  %v6811 = vpop.f32.mrb[0].mxu0
  %v6812 = vpop.f32.mrb[0].mxu0
  %v6813 = vadd.f32 0.0, %v6812
  %v6814 = vpop.f32.mrb[0].mxu0
  %6815 = vmatprep.mubr.bf16.mxu0 %v5908
  %6816 = vmatmul.mubr.bf16.gmra.mrb[0].mxu0 %v5897
  %v6817 = vpop.f32.mrb[0].mxu0
  %v6818 = vadd.f32 0.0, %v6817
  %v6819 = vpop.f32.mrb[0].mxu0
  %v6820 = vpop.f32.mrb[0].mxu0
  %v6821 = vadd.f32 0.0, %v6820
  %v6822 = vpop.f32.mrb[0].mxu0
  %6823 = vmatprep.mubr.bf16.mxu0 %v5996
  %6824 = vmatmul.mubr.bf16.gmra.mrb[0].mxu0 %v5985
  %v6825 = vpop.f32.mrb[0].mxu0
  %v6826 = vadd.f32 0.0, %v6825
  %v6827 = vpop.f32.mrb[0].mxu0
  %v6828 = vpop.f32.mrb[0].mxu0
  %v6829 = vadd.f32 0.0, %v6828
  %v6830 = vpop.f32.mrb[0].mxu0
  %6831 = vmatprep.mubr.bf16.mxu0 %v6084
  %6832 = vmatmul.mubr.bf16.gmra.mrb[0].mxu0 %v6073
  %v6833 = vpop.f32.mrb[0].mxu0
  %v6834 = vadd.f32 0.0, %v6833
  %v6835 = vpop.f32.mrb[0].mxu0
  %v6836 = vpop.f32.mrb[0].mxu0
  %v6837 = vadd.f32 0.0, %v6836
  %v6838 = vpop.f32.mrb[0].mxu0
  %6839 = vmatprep.mubr.bf16.mxu0 %v6172
  %6840 = vmatmul.mubr.bf16.gmra.mrb[0].mxu0 %v6161
  %v6841 = vpop.f32.mrb[0].mxu0
  %v6842 = vadd.f32 0.0, %v6841
  %v6843 = vpop.f32.mrb[0].mxu0
  %v6844 = vpop.f32.mrb[0].mxu0
  %v6845 = vadd.f32 0.0, %v6844
  %v6846 = vpop.f32.mrb[0].mxu0
  %6847 = vdwg.mxu0
  %6848 = vmatprep.subr.bf16.mxu0 0
  %6849 = vmatpush1.bf16.msra.mxu0 %v6639
  %6850 = vmatprep.subr.bf16.mxu0 0
  %6851 = vmatpush1.bf16.msra.mxu0 %v6640
  %6852 = vmatprep.subr.bf16.mxu0 0
  %6853 = vmatpush1.bf16.msra.mxu0 %v6641
  %6854 = vmatprep.subr.bf16.mxu0 0
  %6855 = vmatpush1.bf16.msra.mxu0 %v6642
  %6856 = vmatprep.subr.bf16.mxu0 0
  %6857 = vmatpush1.bf16.msra.mxu0 %v6643
  %6858 = vmatprep.subr.bf16.mxu0 0
  %6859 = vmatpush1.bf16.msra.mxu0 %v6644
  %6860 = vmatprep.subr.bf16.mxu0 0
  %6861 = vmatpush1.bf16.msra.mxu0 %v6645
  %6862 = vmatprep.subr.bf16.mxu0 0
  %6863 = vmatpush1.bf16.msra.mxu0 %v6646
  %6864 = vmatprep.subr.bf16.mxu0 0
  %6865 = vmatpush1.bf16.msra.mxu0 %v6647
  %6866 = vmatprep.subr.bf16.mxu0 0
  %6867 = vmatpush1.bf16.msra.mxu0 %v6648
  %6868 = vmatprep.subr.bf16.mxu0 0
  %6869 = vmatpush1.bf16.msra.mxu0 %v6649
  %6870 = vmatprep.subr.bf16.mxu0 0
  %6871 = vmatpush1.bf16.msra.mxu0 %v6650
  %6872 = vmatprep.subr.bf16.mxu0 0
  %6873 = vmatpush1.bf16.msra.mxu0 %v6651
  %6874 = vmatprep.subr.bf16.mxu0 0
  %6875 = vmatpush1.bf16.msra.mxu0 %v6652
  %6876 = vmatprep.subr.bf16.mxu0 0
  %6877 = vmatpush1.bf16.msra.mxu0 %v6653
  %6878 = vmatprep.subr.bf16.mxu0 0
  %6879 = vmatpush1.bf16.msra.mxu0 %v6654
  %6880 = vmatprep.mubr.bf16.mxu0 %v5578
  %6881 = vmatmul.mubr.bf16.gmra.mrb[0].mxu0 %v5567
  %v6882 = vpop.f32.mrb[0].mxu0
  %v6883 = vadd.f32 %v6786, %v6882
  %v6884 = vpop.f32.mrb[0].mxu0
  %v6885 = vpop.f32.mrb[0].mxu0
  %v6886 = vadd.f32 %v6789, %v6885
  %v6887 = vpop.f32.mrb[0].mxu0
  %6888 = vmatprep.mubr.bf16.mxu0 %v5666
  %6889 = vmatmul.mubr.bf16.gmra.mrb[0].mxu0 %v5655
  %v6890 = vpop.f32.mrb[0].mxu0
  %v6891 = vadd.f32 %v6794, %v6890
  %v6892 = vpop.f32.mrb[0].mxu0
  %v6893 = vpop.f32.mrb[0].mxu0
  %v6894 = vadd.f32 %v6797, %v6893
  %v6895 = vpop.f32.mrb[0].mxu0
  %6896 = vmatprep.mubr.bf16.mxu0 %v5754
  %6897 = vmatmul.mubr.bf16.gmra.mrb[0].mxu0 %v5743
  %v6898 = vpop.f32.mrb[0].mxu0
  %v6899 = vadd.f32 %v6802, %v6898
  %v6900 = vpop.f32.mrb[0].mxu0
  %v6901 = vpop.f32.mrb[0].mxu0
  %v6902 = vadd.f32 %v6805, %v6901
  %v6903 = vpop.f32.mrb[0].mxu0
  %6904 = vmatprep.mubr.bf16.mxu0 %v5842
  %6905 = vmatmul.mubr.bf16.gmra.mrb[0].mxu0 %v5831
  %v6906 = vpop.f32.mrb[0].mxu0
  %v6907 = vadd.f32 %v6810, %v6906
  %v6908 = vpop.f32.mrb[0].mxu0
  %v6909 = vpop.f32.mrb[0].mxu0
  %v6910 = vadd.f32 %v6813, %v6909
  %v6911 = vpop.f32.mrb[0].mxu0
  %6912 = vmatprep.mubr.bf16.mxu0 %v5930
  %6913 = vmatmul.mubr.bf16.gmra.mrb[0].mxu0 %v5919
  %v6914 = vpop.f32.mrb[0].mxu0
  %v6915 = vadd.f32 %v6818, %v6914
  %v6916 = vpop.f32.mrb[0].mxu0
  %v6917 = vpop.f32.mrb[0].mxu0
  %v6918 = vadd.f32 %v6821, %v6917
  %v6919 = vpop.f32.mrb[0].mxu0
  %6920 = vmatprep.mubr.bf16.mxu0 %v6018
  %6921 = vmatmul.mubr.bf16.gmra.mrb[0].mxu0 %v6007
  %v6922 = vpop.f32.mrb[0].mxu0
  %v6923 = vadd.f32 %v6826, %v6922
  %v6924 = vpop.f32.mrb[0].mxu0
  %v6925 = vpop.f32.mrb[0].mxu0
  %v6926 = vadd.f32 %v6829, %v6925
  %v6927 = vpop.f32.mrb[0].mxu0
  %6928 = vmatprep.mubr.bf16.mxu0 %v6106
  %6929 = vmatmul.mubr.bf16.gmra.mrb[0].mxu0 %v6095
  %v6930 = vpop.f32.mrb[0].mxu0
  %v6931 = vadd.f32 %v6834, %v6930
  %v6932 = vpop.f32.mrb[0].mxu0
  %v6933 = vpop.f32.mrb[0].mxu0
  %v6934 = vadd.f32 %v6837, %v6933
  %v6935 = vpop.f32.mrb[0].mxu0
  %6936 = vmatprep.mubr.bf16.mxu0 %v6194
  %6937 = vmatmul.mubr.bf16.gmra.mrb[0].mxu0 %v6183
  %v6938 = vpop.f32.mrb[0].mxu0
  %v6939 = vadd.f32 %v6842, %v6938
  %v6940 = vpop.f32.mrb[0].mxu0
  %v6941 = vpop.f32.mrb[0].mxu0
  %v6942 = vadd.f32 %v6845, %v6941
  %v6943 = vpop.f32.mrb[0].mxu0
  %6944 = vdwg.mxu0
  %6945 = vmatprep.subr.bf16.mxu0 0
  %6946 = vmatpush1.bf16.msra.mxu0 %v6655
  %6947 = vmatprep.subr.bf16.mxu0 0
  %6948 = vmatpush1.bf16.msra.mxu0 %v6656
  %6949 = vmatprep.subr.bf16.mxu0 0
  %6950 = vmatpush1.bf16.msra.mxu0 %v6657
  %6951 = vmatprep.subr.bf16.mxu0 0
  %6952 = vmatpush1.bf16.msra.mxu0 %v6658
  %6953 = vmatprep.subr.bf16.mxu0 0
  %6954 = vmatpush1.bf16.msra.mxu0 %v6659
  %6955 = vmatprep.subr.bf16.mxu0 0
  %6956 = vmatpush1.bf16.msra.mxu0 %v6660
  %6957 = vmatprep.subr.bf16.mxu0 0
  %6958 = vmatpush1.bf16.msra.mxu0 %v6661
  %6959 = vmatprep.subr.bf16.mxu0 0
  %6960 = vmatpush1.bf16.msra.mxu0 %v6662
  %6961 = vmatprep.subr.bf16.mxu0 0
  %6962 = vmatpush1.bf16.msra.mxu0 %v6663
  %6963 = vmatprep.subr.bf16.mxu0 0
  %6964 = vmatpush1.bf16.msra.mxu0 %v6664
  %6965 = vmatprep.subr.bf16.mxu0 0
  %6966 = vmatpush1.bf16.msra.mxu0 %v6665
  %6967 = vmatprep.subr.bf16.mxu0 0
  %6968 = vmatpush1.bf16.msra.mxu0 %v6666
  %6969 = vmatprep.subr.bf16.mxu0 0
  %6970 = vmatpush1.bf16.msra.mxu0 %v6667
  %6971 = vmatprep.subr.bf16.mxu0 0
  %6972 = vmatpush1.bf16.msra.mxu0 %v6668
  %6973 = vmatprep.subr.bf16.mxu0 0
  %6974 = vmatpush1.bf16.msra.mxu0 %v6669
  %6975 = vmatprep.subr.bf16.mxu0 0
  %6976 = vmatpush1.bf16.msra.mxu0 %v6670
  %6977 = vmatprep.mubr.bf16.mxu0 %v5600
  %6978 = vmatmul.mubr.bf16.gmra.mrb[0].mxu0 %v5589
  %v6979 = vpop.f32.mrb[0].mxu0
  %v6980 = vadd.f32 %v6883, %v6979
  %v6981 = vpop.f32.mrb[0].mxu0
  %v6982 = vpop.f32.mrb[0].mxu0
  %v6983 = vadd.f32 %v6886, %v6982
  %v6984 = vpop.f32.mrb[0].mxu0
  %6985 = vmatprep.mubr.bf16.mxu0 %v5688
  %6986 = vmatmul.mubr.bf16.gmra.mrb[0].mxu0 %v5677
  %v6987 = vpop.f32.mrb[0].mxu0
  %v6988 = vadd.f32 %v6891, %v6987
  %v6989 = vpop.f32.mrb[0].mxu0
  %v6990 = vpop.f32.mrb[0].mxu0
  %v6991 = vadd.f32 %v6894, %v6990
  %v6992 = vpop.f32.mrb[0].mxu0
  %6993 = vmatprep.mubr.bf16.mxu0 %v5776
  %6994 = vmatmul.mubr.bf16.gmra.mrb[0].mxu0 %v5765
  %v6995 = vpop.f32.mrb[0].mxu0
  %v6996 = vadd.f32 %v6899, %v6995
  %v6997 = vpop.f32.mrb[0].mxu0
  %v6998 = vpop.f32.mrb[0].mxu0
  %v6999 = vadd.f32 %v6902, %v6998
  %v7000 = vpop.f32.mrb[0].mxu0
  %7001 = vmatprep.mubr.bf16.mxu0 %v5864
  %7002 = vmatmul.mubr.bf16.gmra.mrb[0].mxu0 %v5853
  %v7003 = vpop.f32.mrb[0].mxu0
  %v7004 = vadd.f32 %v6907, %v7003
  %v7005 = vpop.f32.mrb[0].mxu0
  %v7006 = vpop.f32.mrb[0].mxu0
  %v7007 = vadd.f32 %v6910, %v7006
  %v7008 = vpop.f32.mrb[0].mxu0
  %7009 = vmatprep.mubr.bf16.mxu0 %v5952
  %7010 = vmatmul.mubr.bf16.gmra.mrb[0].mxu0 %v5941
  %v7011 = vpop.f32.mrb[0].mxu0
  %v7012 = vadd.f32 %v6915, %v7011
  %v7013 = vpop.f32.mrb[0].mxu0
  %v7014 = vpop.f32.mrb[0].mxu0
  %v7015 = vadd.f32 %v6918, %v7014
  %v7016 = vpop.f32.mrb[0].mxu0
  %7017 = vmatprep.mubr.bf16.mxu0 %v6040
  %7018 = vmatmul.mubr.bf16.gmra.mrb[0].mxu0 %v6029
  %v7019 = vpop.f32.mrb[0].mxu0
  %v7020 = vadd.f32 %v6923, %v7019
  %v7021 = vpop.f32.mrb[0].mxu0
  %v7022 = vpop.f32.mrb[0].mxu0
  %v7023 = vadd.f32 %v6926, %v7022
  %v7024 = vpop.f32.mrb[0].mxu0
  %7025 = vmatprep.mubr.bf16.mxu0 %v6128
  %7026 = vmatmul.mubr.bf16.gmra.mrb[0].mxu0 %v6117
  %v7027 = vpop.f32.mrb[0].mxu0
  %v7028 = vadd.f32 %v6931, %v7027
  %v7029 = vpop.f32.mrb[0].mxu0
  %v7030 = vpop.f32.mrb[0].mxu0
  %v7031 = vadd.f32 %v6934, %v7030
  %v7032 = vpop.f32.mrb[0].mxu0
  %7033 = vmatprep.mubr.bf16.mxu0 %v6216
  %7034 = vmatmul.mubr.bf16.gmra.mrb[0].mxu0 %v6205
  %v7035 = vpop.f32.mrb[0].mxu0
  %v7036 = vadd.f32 %v6939, %v7035
  %v7037 = vpop.f32.mrb[0].mxu0
  %v7038 = vpop.f32.mrb[0].mxu0
  %v7039 = vadd.f32 %v6942, %v7038
  %v7040 = vpop.f32.mrb[0].mxu0
  %7041 = vdwg.mxu0
  %7042 = vmatprep.subr.bf16.mxu0 0
  %7043 = vmatpush1.bf16.msra.mxu0 %v6671
  %7044 = vmatprep.subr.bf16.mxu0 0
  %7045 = vmatpush1.bf16.msra.mxu0 %v6672
  %7046 = vmatprep.subr.bf16.mxu0 0
  %7047 = vmatpush1.bf16.msra.mxu0 %v6673
  %7048 = vmatprep.subr.bf16.mxu0 0
  %7049 = vmatpush1.bf16.msra.mxu0 %v6674
  %7050 = vmatprep.subr.bf16.mxu0 0
  %7051 = vmatpush1.bf16.msra.mxu0 %v6675
  %7052 = vmatprep.subr.bf16.mxu0 0
  %7053 = vmatpush1.bf16.msra.mxu0 %v6676
  %7054 = vmatprep.subr.bf16.mxu0 0
  %7055 = vmatpush1.bf16.msra.mxu0 %v6677
  %7056 = vmatprep.subr.bf16.mxu0 0
  %7057 = vmatpush1.bf16.msra.mxu0 %v6678
  %7058 = vmatprep.subr.bf16.mxu0 0
  %7059 = vmatpush1.bf16.msra.mxu0 %v6679
  %7060 = vmatprep.subr.bf16.mxu0 0
  %7061 = vmatpush1.bf16.msra.mxu0 %v6680
  %7062 = vmatprep.subr.bf16.mxu0 0
  %7063 = vmatpush1.bf16.msra.mxu0 %v6681
  %7064 = vmatprep.subr.bf16.mxu0 0
  %7065 = vmatpush1.bf16.msra.mxu0 %v6682
  %7066 = vmatprep.subr.bf16.mxu0 0
  %7067 = vmatpush1.bf16.msra.mxu0 %v6683
  %7068 = vmatprep.subr.bf16.mxu0 0
  %7069 = vmatpush1.bf16.msra.mxu0 %v6684
  %7070 = vmatprep.subr.bf16.mxu0 0
  %7071 = vmatpush1.bf16.msra.mxu0 %v6685
  %7072 = vmatprep.subr.bf16.mxu0 0
  %7073 = vmatpush1.bf16.msra.mxu0 %v6686
  %7074 = vmatprep.mubr.bf16.mxu0 %v5622
  %7075 = vmatmul.mubr.bf16.gmra.mrb[0].mxu0 %v5611
  %v7076 = vpop.f32.mrb[0].mxu0
  %v7077 = vadd.f32 %v6980, %v7076
  %v7078 = vpop.f32.mrb[0].mxu0
  %v7079 = vpop.f32.mrb[0].mxu0
  %v7080 = vadd.f32 %v6983, %v7079
  %v7081 = vpop.f32.mrb[0].mxu0
  %7082 = vmatprep.mubr.bf16.mxu0 %v5710
  %7083 = vmatmul.mubr.bf16.gmra.mrb[0].mxu0 %v5699
  %v7084 = vpop.f32.mrb[0].mxu0
  %v7085 = vadd.f32 %v6988, %v7084
  %v7086 = vpop.f32.mrb[0].mxu0
  %v7087 = vpop.f32.mrb[0].mxu0
  %v7088 = vadd.f32 %v6991, %v7087
  %v7089 = vpop.f32.mrb[0].mxu0
  %7090 = vmatprep.mubr.bf16.mxu0 %v5798
  %7091 = vmatmul.mubr.bf16.gmra.mrb[0].mxu0 %v5787
  %v7092 = vpop.f32.mrb[0].mxu0
  %v7093 = vadd.f32 %v6996, %v7092
  %v7094 = vpop.f32.mrb[0].mxu0
  %v7095 = vpop.f32.mrb[0].mxu0
  %v7096 = vadd.f32 %v6999, %v7095
  %v7097 = vpop.f32.mrb[0].mxu0
  %7098 = vmatprep.mubr.bf16.mxu0 %v5886
  %7099 = vmatmul.mubr.bf16.gmra.mrb[0].mxu0 %v5875
  %v7100 = vpop.f32.mrb[0].mxu0
  %v7101 = vadd.f32 %v7004, %v7100
  %v7102 = vpop.f32.mrb[0].mxu0
  %v7103 = vpop.f32.mrb[0].mxu0
  %v7104 = vadd.f32 %v7007, %v7103
  %v7105 = vpop.f32.mrb[0].mxu0
  %7106 = vmatprep.mubr.bf16.mxu0 %v5974
  %7107 = vmatmul.mubr.bf16.gmra.mrb[0].mxu0 %v5963
  %v7108 = vpop.f32.mrb[0].mxu0
  %v7109 = vadd.f32 %v7012, %v7108
  %v7110 = vpop.f32.mrb[0].mxu0
  %v7111 = vpop.f32.mrb[0].mxu0
  %v7112 = vadd.f32 %v7015, %v7111
  %v7113 = vpop.f32.mrb[0].mxu0
  %7114 = vmatprep.mubr.bf16.mxu0 %v6062
  %7115 = vmatmul.mubr.bf16.gmra.mrb[0].mxu0 %v6051
  %v7116 = vpop.f32.mrb[0].mxu0
  %v7117 = vadd.f32 %v7020, %v7116
  %v7118 = vpop.f32.mrb[0].mxu0
  %v7119 = vpop.f32.mrb[0].mxu0
  %v7120 = vadd.f32 %v7023, %v7119
  %v7121 = vpop.f32.mrb[0].mxu0
  %7122 = vmatprep.mubr.bf16.mxu0 %v6150
  %7123 = vmatmul.mubr.bf16.gmra.mrb[0].mxu0 %v6139
  %v7124 = vpop.f32.mrb[0].mxu0
  %v7125 = vadd.f32 %v7028, %v7124
  %v7126 = vpop.f32.mrb[0].mxu0
  %v7127 = vpop.f32.mrb[0].mxu0
  %v7128 = vadd.f32 %v7031, %v7127
  %v7129 = vpop.f32.mrb[0].mxu0
  %7130 = vmatprep.mubr.bf16.mxu0 %v6238
  %7131 = vmatmul.mubr.bf16.gmra.mrb[0].mxu0 %v6227
  %v7132 = vpop.f32.mrb[0].mxu0
  %v7133 = vadd.f32 %v7036, %v7132
  %v7134 = vpop.f32.mrb[0].mxu0
  %v7135 = vpop.f32.mrb[0].mxu0
  %v7136 = vadd.f32 %v7039, %v7135
  %v7137 = vpop.f32.mrb[0].mxu0
  %7138 = vdwg.mxu0
  %v7139 = vadd.f32 %v7077, 1.0
  %v7140 = vlog2.pop %v7139
  %v7141 = vmul.f32 %v7140, 0.6931472
  %v7142 = vmul.f32 -0.5, %v7077
  %v7143 = vadd.f32 %v7142, 1.0
  %v7144 = vmul.f32 %v7143, %v7077
  %v7145 = vand.u32 2147483647, %v7077
  %vm7146 = vcmp.lt.f32.partialorder %v7145, 0.0004427343
  %v7147 = vsel %vm7146, %v7144, %v7141
  %v7148 = vadd.f32 %v7080, 1.0
  %v7149 = vlog2.pop %v7148
  %v7150 = vmul.f32 %v7149, 0.6931472
  %v7151 = vmul.f32 -0.5, %v7080
  %v7152 = vadd.f32 %v7151, 1.0
  %v7153 = vmul.f32 %v7152, %v7080
  %v7154 = vand.u32 2147483647, %v7080
  %vm7155 = vcmp.lt.f32.partialorder %v7154, 0.0004427343
  %v7156 = vsel %vm7155, %v7153, %v7150
  %v7157 = vadd.f32 %v7085, 1.0
  %v7158 = vlog2.pop %v7157
  %v7159 = vmul.f32 %v7158, 0.6931472
  %v7160 = vmul.f32 -0.5, %v7085
  %v7161 = vadd.f32 %v7160, 1.0
  %v7162 = vmul.f32 %v7161, %v7085
  %v7163 = vand.u32 2147483647, %v7085
  %vm7164 = vcmp.lt.f32.partialorder %v7163, 0.0004427343
  %v7165 = vsel %vm7164, %v7162, %v7159
  %v7166 = vadd.f32 %v7088, 1.0
  %v7167 = vlog2.pop %v7166
  %v7168 = vmul.f32 %v7167, 0.6931472
  %v7169 = vmul.f32 -0.5, %v7088
  %v7170 = vadd.f32 %v7169, 1.0
  %v7171 = vmul.f32 %v7170, %v7088
  %v7172 = vand.u32 2147483647, %v7088
  %vm7173 = vcmp.lt.f32.partialorder %v7172, 0.0004427343
  %v7174 = vsel %vm7173, %v7171, %v7168
  %v7175 = vadd.f32 %v7093, 1.0
  %v7176 = vlog2.pop %v7175
  %v7177 = vmul.f32 %v7176, 0.6931472
  %v7178 = vmul.f32 -0.5, %v7093
  %v7179 = vadd.f32 %v7178, 1.0
  %v7180 = vmul.f32 %v7179, %v7093
  %v7181 = vand.u32 2147483647, %v7093
  %vm7182 = vcmp.lt.f32.partialorder %v7181, 0.0004427343
  %v7183 = vsel %vm7182, %v7180, %v7177
  %v7184 = vadd.f32 %v7096, 1.0
  %v7185 = vlog2.pop %v7184
  %v7186 = vmul.f32 %v7185, 0.6931472
  %v7187 = vmul.f32 -0.5, %v7096
  %v7188 = vadd.f32 %v7187, 1.0
  %v7189 = vmul.f32 %v7188, %v7096
  %v7190 = vand.u32 2147483647, %v7096
  %vm7191 = vcmp.lt.f32.partialorder %v7190, 0.0004427343
  %v7192 = vsel %vm7191, %v7189, %v7186
  %v7193 = vadd.f32 %v7101, 1.0
  %v7194 = vlog2.pop %v7193
  %v7195 = vmul.f32 %v7194, 0.6931472
  %v7196 = vmul.f32 -0.5, %v7101
  %v7197 = vadd.f32 %v7196, 1.0
  %v7198 = vmul.f32 %v7197, %v7101
  %v7199 = vand.u32 2147483647, %v7101
  %vm7200 = vcmp.lt.f32.partialorder %v7199, 0.0004427343
  %v7201 = vsel %vm7200, %v7198, %v7195
  %v7202 = vadd.f32 %v7104, 1.0
  %v7203 = vlog2.pop %v7202
  %v7204 = vmul.f32 %v7203, 0.6931472
  %v7205 = vmul.f32 -0.5, %v7104
  %v7206 = vadd.f32 %v7205, 1.0
  %v7207 = vmul.f32 %v7206, %v7104
  %v7208 = vand.u32 2147483647, %v7104
  %vm7209 = vcmp.lt.f32.partialorder %v7208, 0.0004427343
  %v7210 = vsel %vm7209, %v7207, %v7204
  %v7211 = vadd.f32 %v7109, 1.0
  %v7212 = vlog2.pop %v7211
  %v7213 = vmul.f32 %v7212, 0.6931472
  %v7214 = vmul.f32 -0.5, %v7109
  %v7215 = vadd.f32 %v7214, 1.0
  %v7216 = vmul.f32 %v7215, %v7109
  %v7217 = vand.u32 2147483647, %v7109
  %vm7218 = vcmp.lt.f32.partialorder %v7217, 0.0004427343
  %v7219 = vsel %vm7218, %v7216, %v7213
  %v7220 = vadd.f32 %v7112, 1.0
  %v7221 = vlog2.pop %v7220
  %v7222 = vmul.f32 %v7221, 0.6931472
  %v7223 = vmul.f32 -0.5, %v7112
  %v7224 = vadd.f32 %v7223, 1.0
  %v7225 = vmul.f32 %v7224, %v7112
  %v7226 = vand.u32 2147483647, %v7112
  %vm7227 = vcmp.lt.f32.partialorder %v7226, 0.0004427343
  %v7228 = vsel %vm7227, %v7225, %v7222
  %v7229 = vadd.f32 %v7117, 1.0
  %v7230 = vlog2.pop %v7229
  %v7231 = vmul.f32 %v7230, 0.6931472
  %v7232 = vmul.f32 -0.5, %v7117
  %v7233 = vadd.f32 %v7232, 1.0
  %v7234 = vmul.f32 %v7233, %v7117
  %v7235 = vand.u32 2147483647, %v7117
  %vm7236 = vcmp.lt.f32.partialorder %v7235, 0.0004427343
  %v7237 = vsel %vm7236, %v7234, %v7231
  %v7238 = vadd.f32 %v7120, 1.0
  %v7239 = vlog2.pop %v7238
  %v7240 = vmul.f32 %v7239, 0.6931472
  %v7241 = vmul.f32 -0.5, %v7120
  %v7242 = vadd.f32 %v7241, 1.0
  %v7243 = vmul.f32 %v7242, %v7120
  %v7244 = vand.u32 2147483647, %v7120
  %vm7245 = vcmp.lt.f32.partialorder %v7244, 0.0004427343
  %v7246 = vsel %vm7245, %v7243, %v7240
  %v7247 = vadd.f32 %v7125, 1.0
  %v7248 = vlog2.pop %v7247
  %v7249 = vmul.f32 %v7248, 0.6931472
  %v7250 = vmul.f32 -0.5, %v7125
  %v7251 = vadd.f32 %v7250, 1.0
  %v7252 = vmul.f32 %v7251, %v7125
  %v7253 = vand.u32 2147483647, %v7125
  %vm7254 = vcmp.lt.f32.partialorder %v7253, 0.0004427343
  %v7255 = vsel %vm7254, %v7252, %v7249
  %v7256 = vadd.f32 %v7128, 1.0
  %v7257 = vlog2.pop %v7256
  %v7258 = vmul.f32 %v7257, 0.6931472
  %v7259 = vmul.f32 -0.5, %v7128
  %v7260 = vadd.f32 %v7259, 1.0
  %v7261 = vmul.f32 %v7260, %v7128
  %v7262 = vand.u32 2147483647, %v7128
  %vm7263 = vcmp.lt.f32.partialorder %v7262, 0.0004427343
  %v7264 = vsel %vm7263, %v7261, %v7258
  %v7265 = vadd.f32 %v7133, 1.0
  %v7266 = vlog2.pop %v7265
  %v7267 = vmul.f32 %v7266, 0.6931472
  %v7268 = vmul.f32 -0.5, %v7133
  %v7269 = vadd.f32 %v7268, 1.0
  %v7270 = vmul.f32 %v7269, %v7133
  %v7271 = vand.u32 2147483647, %v7133
  %vm7272 = vcmp.lt.f32.partialorder %v7271, 0.0004427343
  %v7273 = vsel %vm7272, %v7270, %v7267
  %v7274 = vadd.f32 %v7136, 1.0
  %v7275 = vlog2.pop %v7274
  %v7276 = vmul.f32 %v7275, 0.6931472
  %v7277 = vmul.f32 -0.5, %v7136
  %v7278 = vadd.f32 %v7277, 1.0
  %v7279 = vmul.f32 %v7278, %v7136
  %v7280 = vand.u32 2147483647, %v7136
  %vm7281 = vcmp.lt.f32.partialorder %v7280, 0.0004427343
  %v7282 = vsel %vm7281, %v7279, %v7276
  %v7283 = vmul.f32 %v7147, 0.4342945
  %v7284 = vmul.f32 %v7156, 0.4342945
  %v7285 = vmul.f32 %v7165, 0.4342945
  %v7286 = vmul.f32 %v7174, 0.4342945
  %v7287 = vmul.f32 %v7183, 0.4342945
  %v7288 = vmul.f32 %v7192, 0.4342945
  %v7289 = vmul.f32 %v7201, 0.4342945
  %v7290 = vmul.f32 %v7210, 0.4342945
  %v7291 = vmul.f32 %v7219, 0.4342945
  %v7292 = vmul.f32 %v7228, 0.4342945
  %v7293 = vmul.f32 %v7237, 0.4342945
  %v7294 = vmul.f32 %v7246, 0.4342945
  %v7295 = vmul.f32 %v7255, 0.4342945
  %v7296 = vmul.f32 %v7264, 0.4342945
  %v7297 = vmul.f32 %v7273, 0.4342945
  %v7298 = vmul.f32 %v7282, 0.4342945
  %7299 = vst [vmem:[%s3] sm:$0xff] %v7283
  %7300 = vst [vmem:[%s3 + $0x8] sm:$0xff] %v7284
  %7301 = vst [vmem:[%s3 + $0x10] sm:$0xff] %v7285
  %7302 = vst [vmem:[%s3 + $0x18] sm:$0xff] %v7286
  %7303 = vst [vmem:[%s3 + $0x20] sm:$0xff] %v7287
  %7304 = vst [vmem:[%s3 + $0x28] sm:$0xff] %v7288
  %7305 = vst [vmem:[%s3 + $0x30] sm:$0xff] %v7289
  %7306 = vst [vmem:[%s3 + $0x38] sm:$0xff] %v7290
  %7307 = vst [vmem:[%s3 + $0x40] sm:$0xff] %v7291
  %7308 = vst [vmem:[%s3 + $0x48] sm:$0xff] %v7292
  %7309 = vst [vmem:[%s3 + $0x50] sm:$0xff] %v7293
  %7310 = vst [vmem:[%s3 + $0x58] sm:$0xff] %v7294
  %7311 = vst [vmem:[%s3 + $0x60] sm:$0xff] %v7295
  %7312 = vst [vmem:[%s3 + $0x68] sm:$0xff] %v7296
  %7313 = vst [vmem:[%s3 + $0x70] sm:$0xff] %v7297
  %7314 = vst [vmem:[%s3 + $0x78] sm:$0xff] %v7298
  // Predicated region
  $region14: #{fwd.3} parent=0 // pred_check
    _
  $region15: #{fwd.3} parent=0 // pred_check_branch
    %7316 = sbr.rel (0) target = $region17
  $region16: #{fwd.3} parent=0 // pred_region
    _
  $region17: #{fwd.3} parent=0 // pred_fallthru
    _
  // Predicated region
  $region18: #{fwd.3} parent=0 // pred_check
    _
  $region19: #{fwd.3} parent=0 // pred_check_branch
    %7318 = sbr.rel (0) target = $region21
  $region20: #{fwd.3} parent=0 // pred_region
    _
  $region21: #{fwd.3} parent=0 // pred_fallthru
    _

</llo_original>
